<compile_context>
chip_gen: v6e
topology: v6e:2x2x1
jax: 0.10.0
libtpu: 0.0.40
codegen_flags: <defaults>
</compile_context>

<pallas_src>
import jax
import jax.numpy as jnp
from jax.experimental import pallas as pl
from jax.experimental.pallas import tpu as pltpu

C = 576            # SE / backbone channel count (fixed by the module)
RED = 16           # SE reduction
C_RED = C // RED   # 36
H1, H2, OUT = 128, 32, 2


def _se_head(x_map, w1, b1, w2, b2):
    """x_map: (TB, C, HW) NCHW feature-map block resident in VMEM."""
    # AdaptiveAvgPool2d(1): mean over the spatial (lane) axis; accumulate in f32
    # so bf16-shipped feature maps stay exact enough.
    pooled = jnp.mean(x_map.astype(jnp.float32), axis=-1)               # (TB, C)
    h = jnp.dot(pooled, w1, preferred_element_type=jnp.float32) + b1    # (TB, C/16)
    h = jnp.maximum(h, 0.0)                                             # ReLU
    g = jnp.dot(h, w2, preferred_element_type=jnp.float32) + b2         # (TB, C)
    gate = jax.nn.sigmoid(g)                                            # Sigmoid
    # mean([2,3]) of (x * gate) == pooled * gate (gate constant over HW).
    return pooled * gate                                                # (TB, C)


def ddpredictor_kernel(
    eye_ref, mouth_ref,
    ew1_ref, eb1_ref, ew2_ref, eb2_ref,                      # eye SE fc params
    mw1_ref, mb1_ref, mw2_ref, mb2_ref,                      # mouth SE fc params
    cw1_ref, cb1_ref, cw2_ref, cb2_ref, cw3_ref, cb3_ref,    # classifier params
    out_ref,
):
    eye_fea = _se_head(eye_ref[...], ew1_ref[...], eb1_ref[...],
                       ew2_ref[...], eb2_ref[...])                      # (TB, 576)
    mouth_fea = _se_head(mouth_ref[...], mw1_ref[...], mb1_ref[...],
                         mw2_ref[...], mb2_ref[...])                    # (TB, 576)

    # fea = cat([eye_fea, mouth_fea], dim=1) followed by Linear(1152, 128):
    # computed as a split matmul to avoid an explicit lane concat.
    w1_eye = cw1_ref[0:C, :]        # (576, 128) static, sublane-aligned slice view
    w1_mouth = cw1_ref[C:2 * C, :]  # (576, 128)
    h = (jnp.dot(eye_fea, w1_eye, preferred_element_type=jnp.float32)
         + jnp.dot(mouth_fea, w1_mouth, preferred_element_type=jnp.float32)
         + cb1_ref[...])                                                # (TB, 128)
    h = jnp.maximum(h, 0.0)

    h = jnp.dot(h, cw2_ref[...], preferred_element_type=jnp.float32) + cb2_ref[...]  # (TB, 32)
    h = jnp.maximum(h, 0.0)

    logits = jnp.dot(h, cw3_ref[...], preferred_element_type=jnp.float32) + cb3_ref[...]  # (TB, 2)
    out_ref[...] = jax.nn.sigmoid(logits).astype(out_ref.dtype)


def _linear_params(key, fan_in, fan_out):
    kw, kb = jax.random.split(key)
    scale = 1.0 / jnp.sqrt(jnp.float32(fan_in))
    w = jax.random.normal(kw, (fan_in, fan_out), jnp.float32) * scale   # torch weight.T
    b = jax.random.normal(kb, (1, fan_out), jnp.float32) * 0.01
    return w, b


def init_params(key):
    keys = jax.random.split(key, 8)
    ew1, eb1 = _linear_params(keys[0], C, C_RED)        # eye SE fc[0]
    ew2, eb2 = _linear_params(keys[1], C_RED, C)        # eye SE fc[2]
    mw1, mb1 = _linear_params(keys[2], C, C_RED)        # mouth SE fc[0]
    mw2, mb2 = _linear_params(keys[3], C_RED, C)        # mouth SE fc[2]
    cw1, cb1 = _linear_params(keys[4], 2 * C, H1)       # Linear(1152, 128)
    cw2, cb2 = _linear_params(keys[5], H1, H2)          # Linear(128, 32)
    cw3, cb3 = _linear_params(keys[6], H2, OUT)         # Linear(32, 2)
    return (ew1, eb1, ew2, eb2, mw1, mb1, mw2, mb2,
            cw1, cb1, cw2, cb2, cw3, cb3)


def _default_batch_tile(hw, itemsize, vmem_budget_bytes=32 << 20):
    """Largest batch tile (multiple of 8, capped at 64) whose double-buffered
    input blocks fit `vmem_budget_bytes`. Accounts for VMEM lane padding: the
    minor dim (HW) of a VMEM tile is padded up to 128."""
    hw_pad = max(128, pl.cdiv(hw, 128) * 128)
    per_sample = 2 * 2 * C * hw_pad * itemsize        # 2 maps x 2 buffers
    tb = int(vmem_budget_bytes // per_sample)
    tb = max(8, min(64, (tb // 8) * 8))
    return tb


def ddpredictor_forward(eye_fea_nchw, mouth_fea_nchw, params):
    """eye_fea_nchw / mouth_fea_nchw: (B, 576, H, W) backbone feature maps (NCHW)."""
    b, c, h, w = eye_fea_nchw.shape
    assert c == C and mouth_fea_nchw.shape == eye_fea_nchw.shape
    hw = h * w

    # NCHW -> (B, C, H*W): contiguous reshape only (no transpose pass over HBM).
    # The spatial mean is done in-kernel over the lane axis.
    eye = eye_fea_nchw.reshape(b, C, hw)
    mouth = mouth_fea_nchw.reshape(b, C, hw)

    # Batch tile: sized so two double-buffered (TB, 576, HW) slabs fit the VMEM
    # budget even on v7x (64 MiB total VMEM). TB<=64 as per-generation guidance.
    tb_max = _default_batch_tile(hw, eye.dtype.itemsize)
    if b <= tb_max:
        tb, b_pad = b, b
    else:
        tb = tb_max
        b_pad = pl.cdiv(b, tb) * tb
        pad = ((0, b_pad - b), (0, 0), (0, 0))
        eye = jnp.pad(eye, pad)
        mouth = jnp.pad(mouth, pad)

    grid = (b_pad // tb,)

    fmap_spec = pl.BlockSpec((tb, C, hw), lambda i: (i, 0, 0))

    def const_spec(arr):
        ndim = arr.ndim
        # Full-array block, constant index -> stays VMEM-resident across steps.
        return pl.BlockSpec(arr.shape, lambda i, _n=ndim: (0,) * _n)

    in_specs = [fmap_spec, fmap_spec] + [const_spec(p) for p in params]
    out_spec = pl.BlockSpec((tb, OUT), lambda i: (i, 0))

    itemsize = eye.dtype.itemsize
    w_bytes = sum(int(p.size) * p.dtype.itemsize for p in params)
    cost = pl.CostEstimate(
        flops=int(b_pad * (2 * 2 * C * hw                       # spatial pooling
                           + 2 * 2 * (C * C_RED + C_RED * C)    # SE fc's
                           + 2 * (2 * C * H1 + H1 * H2 + H2 * OUT))),
        transcendentals=int(b_pad * (2 * C + OUT)),             # sigmoids
        bytes_accessed=int(2 * b_pad * C * hw * itemsize + w_bytes + b_pad * OUT * 4),
    )

    out = pl.pallas_call(
        ddpredictor_kernel,
        out_shape=jax.ShapeDtypeStruct((b_pad, OUT), jnp.float32),
        grid=grid,
        in_specs=in_specs,
        out_specs=out_spec,
        compiler_params=pltpu.CompilerParams(
            dimension_semantics=("parallel",),      # shard batch across TCs (v7x)
            vmem_limit_bytes=48 << 20,              # < 64 MiB physical on v7x
        ),
        cost_estimate=cost,
    )(eye, mouth, *params)

    return out[:b]


def _reference_forward(eye_fea_nchw, mouth_fea_nchw, params):
    """Plain-JAX reference mirroring the PyTorch eval-mode forward."""
    (ew1, eb1, ew2, eb2, mw1, mb1, mw2, mb2,
     cw1, cb1, cw2, cb2, cw3, cb3) = params

    def se(x, w1, b1, w2, b2):
        y = jnp.mean(x, axis=(2, 3))                    # (B, C)
        y = jnp.maximum(y @ w1 + b1, 0.0)
        y = jax.nn.sigmoid(y @ w2 + b2)
        return x * y[:, :, None, None]

    e = se(eye_fea_nchw, ew1, eb1, ew2, eb2).mean(axis=(2, 3))
    m = se(mouth_fea_nchw, mw1, mb1, mw2, mb2).mean(axis=(2, 3))
    fea = jnp.concatenate([e, m], axis=1)
    h = jnp.maximum(fea @ cw1 + cb1, 0.0)
    h = jnp.maximum(h @ cw2 + cb2, 0.0)
    return jax.nn.sigmoid(h @ cw3 + cb3)


if __name__ == "__main__":
    key = jax.random.PRNGKey(0)
    k_eye, k_mouth, k_params = jax.random.split(key, 3)

    B, Hs, Ws = 2, 4, 4  # small spatial extent for the 576-ch backbone feature maps
    eye_fea = jax.random.normal(k_eye, (B, C, Hs, Ws), jnp.float32)
    mouth_fea = jax.random.normal(k_mouth, (B, C, Hs, Ws), jnp.float32)
    params = init_params(k_params)

    out = ddpredictor_forward(eye_fea, mouth_fea, params)
    out = jax.block_until_ready(out)

    ref = _reference_forward(eye_fea, mouth_fea, params)
    assert out.shape == (B, OUT)
    assert jnp.allclose(out, ref, atol=1e-5, rtol=1e-5), (out, ref)

    print("KERNEL_OK")
</pallas_src>

<mosaic_0001>
module attributes {stable_mosaic.version = 11 : i64} {
  func.func @ddpredictor_kernel(%arg0: i32, %arg1: memref<2x576x16xf32, #tpu.memory_space<vmem>>, %arg2: memref<2x576x16xf32, #tpu.memory_space<vmem>>, %arg3: memref<576x36xf32, #tpu.memory_space<vmem>>, %arg4: memref<1x36xf32, #tpu.memory_space<vmem>>, %arg5: memref<36x576xf32, #tpu.memory_space<vmem>>, %arg6: memref<1x576xf32, #tpu.memory_space<vmem>>, %arg7: memref<576x36xf32, #tpu.memory_space<vmem>>, %arg8: memref<1x36xf32, #tpu.memory_space<vmem>>, %arg9: memref<36x576xf32, #tpu.memory_space<vmem>>, %arg10: memref<1x576xf32, #tpu.memory_space<vmem>>, %arg11: memref<1152x128xf32, #tpu.memory_space<vmem>>, %arg12: memref<1x128xf32, #tpu.memory_space<vmem>>, %arg13: memref<128x32xf32, #tpu.memory_space<vmem>>, %arg14: memref<1x32xf32, #tpu.memory_space<vmem>>, %arg15: memref<32x2xf32, #tpu.memory_space<vmem>>, %arg16: memref<1x2xf32, #tpu.memory_space<vmem>>, %arg17: memref<2x2xf32, #tpu.memory_space<vmem>>) attributes {dimension_semantics = [#tpu.dimension_semantics<parallel>], iteration_bounds = array<i64: 1>, scalar_prefetch = 0 : i64, scratch_operands = 0 : i64, tpu.core_type = #tpu.core_type<tc>, window_params = [{transform_indices = @transform_0, window_bounds = array<i64: 2, 576, 16>}, {transform_indices = @transform_1, window_bounds = array<i64: 2, 576, 16>}, {pipeline_mode = #tpu.pipeline_mode<synchronous>, transform_indices = @transform_2, window_bounds = array<i64: 576, 36>}, {pipeline_mode = #tpu.pipeline_mode<synchronous>, transform_indices = @transform_3, window_bounds = array<i64: 1, 36>}, {pipeline_mode = #tpu.pipeline_mode<synchronous>, transform_indices = @transform_4, window_bounds = array<i64: 36, 576>}, {pipeline_mode = #tpu.pipeline_mode<synchronous>, transform_indices = @transform_5, window_bounds = array<i64: 1, 576>}, {pipeline_mode = #tpu.pipeline_mode<synchronous>, transform_indices = @transform_6, window_bounds = array<i64: 576, 36>}, {pipeline_mode = #tpu.pipeline_mode<synchronous>, transform_indices = @transform_7, window_bounds = array<i64: 1, 36>}, {pipeline_mode = #tpu.pipeline_mode<synchronous>, transform_indices = @transform_8, window_bounds = array<i64: 36, 576>}, {pipeline_mode = #tpu.pipeline_mode<synchronous>, transform_indices = @transform_9, window_bounds = array<i64: 1, 576>}, {pipeline_mode = #tpu.pipeline_mode<synchronous>, transform_indices = @transform_10, window_bounds = array<i64: 1152, 128>}, {pipeline_mode = #tpu.pipeline_mode<synchronous>, transform_indices = @transform_11, window_bounds = array<i64: 1, 128>}, {pipeline_mode = #tpu.pipeline_mode<synchronous>, transform_indices = @transform_12, window_bounds = array<i64: 128, 32>}, {pipeline_mode = #tpu.pipeline_mode<synchronous>, transform_indices = @transform_13, window_bounds = array<i64: 1, 32>}, {pipeline_mode = #tpu.pipeline_mode<synchronous>, transform_indices = @transform_14, window_bounds = array<i64: 32, 2>}, {pipeline_mode = #tpu.pipeline_mode<synchronous>, transform_indices = @transform_15, window_bounds = array<i64: 1, 2>}, {transform_indices = @transform_16, window_bounds = array<i64: 2, 2>}]} {
    %c0 = arith.constant 0 : index
    %c0_0 = arith.constant 0 : index
    %c0_1 = arith.constant 0 : index
    %0 = vector.load %arg1[%c0, %c0_0, %c0_1] : memref<2x576x16xf32, #tpu.memory_space<vmem>>, vector<2x576x16xf32>
    %c0_2 = arith.constant 0 : index
    %c0_3 = arith.constant 0 : index
    %1 = vector.load %arg3[%c0_2, %c0_3] : memref<576x36xf32, #tpu.memory_space<vmem>>, vector<576x36xf32>
    %c0_4 = arith.constant 0 : index
    %c0_5 = arith.constant 0 : index
    %2 = vector.load %arg4[%c0_4, %c0_5] : memref<1x36xf32, #tpu.memory_space<vmem>>, vector<1x36xf32>
    %c0_6 = arith.constant 0 : index
    %c0_7 = arith.constant 0 : index
    %3 = vector.load %arg5[%c0_6, %c0_7] : memref<36x576xf32, #tpu.memory_space<vmem>>, vector<36x576xf32>
    %c0_8 = arith.constant 0 : index
    %c0_9 = arith.constant 0 : index
    %4 = vector.load %arg6[%c0_8, %c0_9] : memref<1x576xf32, #tpu.memory_space<vmem>>, vector<1x576xf32>
    %cst = arith.constant dense<0.000000e+00> : vector<2x576xf32>
    %5 = vector.multi_reduction <add>, %0, %cst [2] : vector<2x576x16xf32> to vector<2x576xf32>
    %cst_10 = arith.constant 1.600000e+01 : f32
    %6 = vector.broadcast %cst_10 : f32 to vector<2x576xf32>
    %7 = arith.divf %5, %6 : vector<2x576xf32>
    %cst_11 = arith.constant dense<0.000000e+00> : vector<2x36xf32>
    %8 = tpu.matmul %7, %1, %cst_11 {dimension_numbers = #tpu.dot_dimension_numbers<[1], [0], [0], [1], [0, 0, 1, 1], [], []>} : vector<2x576xf32>, vector<576x36xf32>, vector<2x36xf32> -> vector<2x36xf32>
    %9 = vector.broadcast %2 : vector<1x36xf32> to vector<2x36xf32>
    %10 = arith.addf %8, %9 : vector<2x36xf32>
    %cst_12 = arith.constant 0.000000e+00 : f32
    %11 = vector.broadcast %cst_12 : f32 to vector<2x36xf32>
    %12 = arith.maximumf %10, %11 : vector<2x36xf32>
    %cst_13 = arith.constant dense<0.000000e+00> : vector<2x576xf32>
    %13 = tpu.matmul %12, %3, %cst_13 {dimension_numbers = #tpu.dot_dimension_numbers<[1], [0], [0], [1], [0, 0, 1, 1], [], []>} : vector<2x36xf32>, vector<36x576xf32>, vector<2x576xf32> -> vector<2x576xf32>
    %14 = vector.broadcast %4 : vector<1x576xf32> to vector<2x576xf32>
    %15 = arith.addf %13, %14 : vector<2x576xf32>
    %16 = arith.negf %15 : vector<2x576xf32>
    %17 = math.exp %16 : vector<2x576xf32>
    %cst_14 = arith.constant 1.000000e+00 : f32
    %18 = vector.broadcast %cst_14 : f32 to vector<2x576xf32>
    %19 = arith.addf %18, %17 : vector<2x576xf32>
    %20 = arith.divf %18, %19 : vector<2x576xf32>
    %21 = arith.mulf %7, %20 : vector<2x576xf32>
    %c0_15 = arith.constant 0 : index
    %c0_16 = arith.constant 0 : index
    %c0_17 = arith.constant 0 : index
    %22 = vector.load %arg2[%c0_15, %c0_16, %c0_17] : memref<2x576x16xf32, #tpu.memory_space<vmem>>, vector<2x576x16xf32>
    %c0_18 = arith.constant 0 : index
    %c0_19 = arith.constant 0 : index
    %23 = vector.load %arg7[%c0_18, %c0_19] : memref<576x36xf32, #tpu.memory_space<vmem>>, vector<576x36xf32>
    %c0_20 = arith.constant 0 : index
    %c0_21 = arith.constant 0 : index
    %24 = vector.load %arg8[%c0_20, %c0_21] : memref<1x36xf32, #tpu.memory_space<vmem>>, vector<1x36xf32>
    %c0_22 = arith.constant 0 : index
    %c0_23 = arith.constant 0 : index
    %25 = vector.load %arg9[%c0_22, %c0_23] : memref<36x576xf32, #tpu.memory_space<vmem>>, vector<36x576xf32>
    %c0_24 = arith.constant 0 : index
    %c0_25 = arith.constant 0 : index
    %26 = vector.load %arg10[%c0_24, %c0_25] : memref<1x576xf32, #tpu.memory_space<vmem>>, vector<1x576xf32>
    %cst_26 = arith.constant dense<0.000000e+00> : vector<2x576xf32>
    %27 = vector.multi_reduction <add>, %22, %cst_26 [2] : vector<2x576x16xf32> to vector<2x576xf32>
    %cst_27 = arith.constant 1.600000e+01 : f32
    %28 = vector.broadcast %cst_27 : f32 to vector<2x576xf32>
    %29 = arith.divf %27, %28 : vector<2x576xf32>
    %cst_28 = arith.constant dense<0.000000e+00> : vector<2x36xf32>
    %30 = tpu.matmul %29, %23, %cst_28 {dimension_numbers = #tpu.dot_dimension_numbers<[1], [0], [0], [1], [0, 0, 1, 1], [], []>} : vector<2x576xf32>, vector<576x36xf32>, vector<2x36xf32> -> vector<2x36xf32>
    %31 = vector.broadcast %24 : vector<1x36xf32> to vector<2x36xf32>
    %32 = arith.addf %30, %31 : vector<2x36xf32>
    %cst_29 = arith.constant 0.000000e+00 : f32
    %33 = vector.broadcast %cst_29 : f32 to vector<2x36xf32>
    %34 = arith.maximumf %32, %33 : vector<2x36xf32>
    %cst_30 = arith.constant dense<0.000000e+00> : vector<2x576xf32>
    %35 = tpu.matmul %34, %25, %cst_30 {dimension_numbers = #tpu.dot_dimension_numbers<[1], [0], [0], [1], [0, 0, 1, 1], [], []>} : vector<2x36xf32>, vector<36x576xf32>, vector<2x576xf32> -> vector<2x576xf32>
    %36 = vector.broadcast %26 : vector<1x576xf32> to vector<2x576xf32>
    %37 = arith.addf %35, %36 : vector<2x576xf32>
    %38 = arith.negf %37 : vector<2x576xf32>
    %39 = math.exp %38 : vector<2x576xf32>
    %cst_31 = arith.constant 1.000000e+00 : f32
    %40 = vector.broadcast %cst_31 : f32 to vector<2x576xf32>
    %41 = arith.addf %40, %39 : vector<2x576xf32>
    %42 = arith.divf %40, %41 : vector<2x576xf32>
    %43 = arith.mulf %29, %42 : vector<2x576xf32>
    %c0_32 = arith.constant 0 : index
    %c0_33 = arith.constant 0 : index
    %44 = vector.load %arg11[%c0_32, %c0_33] : memref<1152x128xf32, #tpu.memory_space<vmem>>, vector<576x128xf32>
    %c576 = arith.constant 576 : index
    %c0_34 = arith.constant 0 : index
    %45 = vector.load %arg11[%c576, %c0_34] : memref<1152x128xf32, #tpu.memory_space<vmem>>, vector<576x128xf32>
    %cst_35 = arith.constant dense<0.000000e+00> : vector<2x128xf32>
    %46 = tpu.matmul %21, %44, %cst_35 {dimension_numbers = #tpu.dot_dimension_numbers<[1], [0], [0], [1], [0, 0, 1, 1], [], []>} : vector<2x576xf32>, vector<576x128xf32>, vector<2x128xf32> -> vector<2x128xf32>
    %cst_36 = arith.constant dense<0.000000e+00> : vector<2x128xf32>
    %47 = tpu.matmul %43, %45, %cst_36 {dimension_numbers = #tpu.dot_dimension_numbers<[1], [0], [0], [1], [0, 0, 1, 1], [], []>} : vector<2x576xf32>, vector<576x128xf32>, vector<2x128xf32> -> vector<2x128xf32>
    %48 = arith.addf %46, %47 : vector<2x128xf32>
    %c0_37 = arith.constant 0 : index
    %c0_38 = arith.constant 0 : index
    %49 = vector.load %arg12[%c0_37, %c0_38] : memref<1x128xf32, #tpu.memory_space<vmem>>, vector<1x128xf32>
    %50 = vector.broadcast %49 : vector<1x128xf32> to vector<2x128xf32>
    %51 = arith.addf %48, %50 : vector<2x128xf32>
    %cst_39 = arith.constant 0.000000e+00 : f32
    %52 = vector.broadcast %cst_39 : f32 to vector<2x128xf32>
    %53 = arith.maximumf %51, %52 : vector<2x128xf32>
    %c0_40 = arith.constant 0 : index
    %c0_41 = arith.constant 0 : index
    %54 = vector.load %arg13[%c0_40, %c0_41] : memref<128x32xf32, #tpu.memory_space<vmem>>, vector<128x32xf32>
    %cst_42 = arith.constant dense<0.000000e+00> : vector<2x32xf32>
    %55 = tpu.matmul %53, %54, %cst_42 {dimension_numbers = #tpu.dot_dimension_numbers<[1], [0], [0], [1], [0, 0, 1, 1], [], []>} : vector<2x128xf32>, vector<128x32xf32>, vector<2x32xf32> -> vector<2x32xf32>
    %c0_43 = arith.constant 0 : index
    %c0_44 = arith.constant 0 : index
    %56 = vector.load %arg14[%c0_43, %c0_44] : memref<1x32xf32, #tpu.memory_space<vmem>>, vector<1x32xf32>
    %57 = vector.broadcast %56 : vector<1x32xf32> to vector<2x32xf32>
    %58 = arith.addf %55, %57 : vector<2x32xf32>
    %cst_45 = arith.constant 0.000000e+00 : f32
    %59 = vector.broadcast %cst_45 : f32 to vector<2x32xf32>
    %60 = arith.maximumf %58, %59 : vector<2x32xf32>
    %c0_46 = arith.constant 0 : index
    %c0_47 = arith.constant 0 : index
    %61 = vector.load %arg15[%c0_46, %c0_47] : memref<32x2xf32, #tpu.memory_space<vmem>>, vector<32x2xf32>
    %cst_48 = arith.constant dense<0.000000e+00> : vector<2x2xf32>
    %62 = tpu.matmul %60, %61, %cst_48 {dimension_numbers = #tpu.dot_dimension_numbers<[1], [0], [0], [1], [0, 0, 1, 1], [], []>} : vector<2x32xf32>, vector<32x2xf32>, vector<2x2xf32> -> vector<2x2xf32>
    %c0_49 = arith.constant 0 : index
    %c0_50 = arith.constant 0 : index
    %63 = vector.load %arg16[%c0_49, %c0_50] : memref<1x2xf32, #tpu.memory_space<vmem>>, vector<1x2xf32>
    %64 = vector.broadcast %63 : vector<1x2xf32> to vector<2x2xf32>
    %65 = arith.addf %62, %64 : vector<2x2xf32>
    %66 = arith.negf %65 : vector<2x2xf32>
    %67 = math.exp %66 : vector<2x2xf32>
    %cst_51 = arith.constant 1.000000e+00 : f32
    %68 = vector.broadcast %cst_51 : f32 to vector<2x2xf32>
    %69 = arith.addf %68, %67 : vector<2x2xf32>
    %70 = arith.divf %68, %69 : vector<2x2xf32>
    %c0_52 = arith.constant 0 : index
    %c0_53 = arith.constant 0 : index
    %71 = vector.load %arg17[%c0_52, %c0_53] : memref<2x2xf32, #tpu.memory_space<vmem>>, vector<2x2xf32>
    tpu.vector_store %arg17[%c0_52, %c0_53], %70 {strides = array<i32>} : memref<2x2xf32, #tpu.memory_space<vmem>>, vector<2x2xf32>,
    return
  }
  func.func @transform_0(%arg0: i32) -> (i32, i32, i32) {
    %c0_i32 = arith.constant 0 : i32
    %c0_i32_0 = arith.constant 0 : i32
    %c0_i32_1 = arith.constant 0 : i32
    return %arg0, %c0_i32, %c0_i32_0 : i32, i32, i32
  }
  func.func @transform_1(%arg0: i32) -> (i32, i32, i32) {
    %c0_i32 = arith.constant 0 : i32
    %c0_i32_0 = arith.constant 0 : i32
    %c0_i32_1 = arith.constant 0 : i32
    return %arg0, %c0_i32, %c0_i32_0 : i32, i32, i32
  }
  func.func @transform_2(%arg0: i32) -> (i32, i32) {
    %c0_i32 = arith.constant 0 : i32
    %c0_i32_0 = arith.constant 0 : i32
    %c0_i32_1 = arith.constant 0 : i32
    return %c0_i32, %c0_i32_0 : i32, i32
  }
  func.func @transform_3(%arg0: i32) -> (i32, i32) {
    %c0_i32 = arith.constant 0 : i32
    %c0_i32_0 = arith.constant 0 : i32
    %c0_i32_1 = arith.constant 0 : i32
    return %c0_i32, %c0_i32_0 : i32, i32
  }
  func.func @transform_4(%arg0: i32) -> (i32, i32) {
    %c0_i32 = arith.constant 0 : i32
    %c0_i32_0 = arith.constant 0 : i32
    %c0_i32_1 = arith.constant 0 : i32
    return %c0_i32, %c0_i32_0 : i32, i32
  }
  func.func @transform_5(%arg0: i32) -> (i32, i32) {
    %c0_i32 = arith.constant 0 : i32
    %c0_i32_0 = arith.constant 0 : i32
    %c0_i32_1 = arith.constant 0 : i32
    return %c0_i32, %c0_i32_0 : i32, i32
  }
  func.func @transform_6(%arg0: i32) -> (i32, i32) {
    %c0_i32 = arith.constant 0 : i32
    %c0_i32_0 = arith.constant 0 : i32
    %c0_i32_1 = arith.constant 0 : i32
    return %c0_i32, %c0_i32_0 : i32, i32
  }
  func.func @transform_7(%arg0: i32) -> (i32, i32) {
    %c0_i32 = arith.constant 0 : i32
    %c0_i32_0 = arith.constant 0 : i32
    %c0_i32_1 = arith.constant 0 : i32
    return %c0_i32, %c0_i32_0 : i32, i32
  }
  func.func @transform_8(%arg0: i32) -> (i32, i32) {
    %c0_i32 = arith.constant 0 : i32
    %c0_i32_0 = arith.constant 0 : i32
    %c0_i32_1 = arith.constant 0 : i32
    return %c0_i32, %c0_i32_0 : i32, i32
  }
  func.func @transform_9(%arg0: i32) -> (i32, i32) {
    %c0_i32 = arith.constant 0 : i32
    %c0_i32_0 = arith.constant 0 : i32
    %c0_i32_1 = arith.constant 0 : i32
    return %c0_i32, %c0_i32_0 : i32, i32
  }
  func.func @transform_10(%arg0: i32) -> (i32, i32) {
    %c0_i32 = arith.constant 0 : i32
    %c0_i32_0 = arith.constant 0 : i32
    %c0_i32_1 = arith.constant 0 : i32
    return %c0_i32, %c0_i32_0 : i32, i32
  }
  func.func @transform_11(%arg0: i32) -> (i32, i32) {
    %c0_i32 = arith.constant 0 : i32
    %c0_i32_0 = arith.constant 0 : i32
    %c0_i32_1 = arith.constant 0 : i32
    return %c0_i32, %c0_i32_0 : i32, i32
  }
  func.func @transform_12(%arg0: i32) -> (i32, i32) {
    %c0_i32 = arith.constant 0 : i32
    %c0_i32_0 = arith.constant 0 : i32
    %c0_i32_1 = arith.constant 0 : i32
    return %c0_i32, %c0_i32_0 : i32, i32
  }
  func.func @transform_13(%arg0: i32) -> (i32, i32) {
    %c0_i32 = arith.constant 0 : i32
    %c0_i32_0 = arith.constant 0 : i32
    %c0_i32_1 = arith.constant 0 : i32
    return %c0_i32, %c0_i32_0 : i32, i32
  }
  func.func @transform_14(%arg0: i32) -> (i32, i32) {
    %c0_i32 = arith.constant 0 : i32
    %c0_i32_0 = arith.constant 0 : i32
    %c0_i32_1 = arith.constant 0 : i32
    return %c0_i32, %c0_i32_0 : i32, i32
  }
  func.func @transform_15(%arg0: i32) -> (i32, i32) {
    %c0_i32 = arith.constant 0 : i32
    %c0_i32_0 = arith.constant 0 : i32
    %c0_i32_1 = arith.constant 0 : i32
    return %c0_i32, %c0_i32_0 : i32, i32
  }
  func.func @transform_16(%arg0: i32) -> (i32, i32) {
    %c0_i32 = arith.constant 0 : i32
    %c0_i32_0 = arith.constant 0 : i32
    return %arg0, %c0_i32 : i32, i32
  }
}

</mosaic_0001>

<llo_original>
// kernel: tpu_custom_call.1
$region0: #{tpu_custom_call.1}
  #allocation0 [shape = 'u32[]', space=smem, size = 0x4, offset = 0x4, fixed_abs, tag = 'smem constant byte address 0x4 - core index']
  #allocation1 [shape = 'u32[144,128]{1,0:T(1,128)}', space=vmem, size = 0x12000, scoped, tag = 'internal scratch']
  %s0 = inlined_call_operand.vmem [shape: f32[2,576,16], index: 0, kind: input, shape index: {}]
  %s1 = inlined_call_operand.vmem [shape: f32[2,576,16], index: 1, kind: input, shape index: {}]
  %s2 = inlined_call_operand.vmem [shape: f32[576,36], index: 2, kind: input, shape index: {}]
  %s3 = inlined_call_operand.vmem [shape: f32[1,36], index: 3, kind: input, shape index: {}]
  %s4 = inlined_call_operand.vmem [shape: f32[36,576], index: 4, kind: input, shape index: {}]
  %s5 = inlined_call_operand.vmem [shape: f32[1,576], index: 5, kind: input, shape index: {}]
  %s6 = inlined_call_operand.vmem [shape: f32[576,36], index: 6, kind: input, shape index: {}]
  %s7 = inlined_call_operand.vmem [shape: f32[1,36], index: 7, kind: input, shape index: {}]
  %s8 = inlined_call_operand.vmem [shape: f32[36,576], index: 8, kind: input, shape index: {}]
  %s9 = inlined_call_operand.vmem [shape: f32[1,576], index: 9, kind: input, shape index: {}]
  %s10 = inlined_call_operand.vmem [shape: f32[1152,128], index: 10, kind: input, shape index: {}]
  %s11 = inlined_call_operand.vmem [shape: f32[1,128], index: 11, kind: input, shape index: {}]
  %s12 = inlined_call_operand.vmem [shape: f32[128,32], index: 12, kind: input, shape index: {}]
  %s13 = inlined_call_operand.vmem [shape: f32[1,32], index: 13, kind: input, shape index: {}]
  %s14 = inlined_call_operand.vmem [shape: f32[32,2], index: 14, kind: input, shape index: {}]
  %s15 = inlined_call_operand.vmem [shape: f32[1,2], index: 15, kind: input, shape index: {}]
  %s16 = inlined_call_operand.hbm [shape: f32[2,2], index: 16, kind: output, shape index: {}]
  %s17 = sld [smem:[#allocation0]]
  $region74: #{tpu_custom_call.1} parent=0
    _
  %s19 = ssub.s32 1, %s17
  %s20 = scalar_select 0, %s19, %s17
  $region1: #{tpu_custom_call.1} parent=0
    #allocation2 [shape = 'u8[1024]{0}', space=vmem, size = 0x400, scoped, tag = 'output window, operand 0, single buffered']
    #allocation3 [shape = 's32[1]{0}', space=sflag, size = 0x4, scoped, tag = 'scoped memory for tpu_custom_call.1']
    %21 = vsyncpa [#allocation3], 0
    // Predicated region
    $region2: #{tpu_custom_call.1} parent=1 // pred_check
      _
    $region3: #{tpu_custom_call.1} parent=1 // pred_check_branch
      %23 = sbr.rel (0) target = $region5
    $region4: #{tpu_custom_call.1} parent=1 // pred_region
      _
    $region5: #{tpu_custom_call.1} parent=1 // pred_fallthru
      _
    // Predicated region
    $region6: #{tpu_custom_call.1} parent=1 // pred_check
      _
    $region7: #{tpu_custom_call.1} parent=1 // pred_check_branch
      %25 = sbr.rel (0) target = $region9
    $region8: #{tpu_custom_call.1} parent=1 // pred_region
      _
    $region9: #{tpu_custom_call.1} parent=1 // pred_fallthru
      _
    // Predicated region
    $region10: #{tpu_custom_call.1} parent=1 // pred_check
      _
    $region11: #{tpu_custom_call.1} parent=1 // pred_check_branch
      %27 = sbr.rel (0) target = $region13
    $region12: #{tpu_custom_call.1} parent=1 // pred_region
      _
    $region13: #{tpu_custom_call.1} parent=1 // pred_fallthru
      _
    // Predicated region
    $region14: #{tpu_custom_call.1} parent=1 // pred_check
      _
    $region15: #{tpu_custom_call.1} parent=1 // pred_check_branch
      %29 = sbr.rel (0) target = $region17
    $region16: #{tpu_custom_call.1} parent=1 // pred_region
      _
    $region17: #{tpu_custom_call.1} parent=1 // pred_fallthru
      _
    // Predicated region
    $region18: #{tpu_custom_call.1} parent=1 // pred_check
      _
    $region19: #{tpu_custom_call.1} parent=1 // pred_check_branch
      %31 = sbr.rel (0) target = $region21
    $region20: #{tpu_custom_call.1} parent=1 // pred_region
      _
    $region21: #{tpu_custom_call.1} parent=1 // pred_fallthru
      _
    // Predicated region
    $region22: #{tpu_custom_call.1} parent=1 // pred_check
      _
    $region23: #{tpu_custom_call.1} parent=1 // pred_check_branch
      %33 = sbr.rel (0) target = $region25
    $region24: #{tpu_custom_call.1} parent=1 // pred_region
      _
    $region25: #{tpu_custom_call.1} parent=1 // pred_fallthru
      _
    // Predicated region
    $region26: #{tpu_custom_call.1} parent=1 // pred_check
      _
    $region27: #{tpu_custom_call.1} parent=1 // pred_check_branch
      %35 = sbr.rel (0) target = $region29
    $region28: #{tpu_custom_call.1} parent=1 // pred_region
      _
    $region29: #{tpu_custom_call.1} parent=1 // pred_fallthru
      _
    // Predicated region
    $region30: #{tpu_custom_call.1} parent=1 // pred_check
      _
    $region31: #{tpu_custom_call.1} parent=1 // pred_check_branch
      %37 = sbr.rel (0) target = $region33
    $region32: #{tpu_custom_call.1} parent=1 // pred_region
      _
    $region33: #{tpu_custom_call.1} parent=1 // pred_fallthru
      _
    // Predicated region
    $region34: #{tpu_custom_call.1} parent=1 // pred_check
      _
    $region35: #{tpu_custom_call.1} parent=1 // pred_check_branch
      %39 = sbr.rel (0) target = $region37
    $region36: #{tpu_custom_call.1} parent=1 // pred_region
      _
    $region37: #{tpu_custom_call.1} parent=1 // pred_fallthru
      _
    // Predicated region
    $region38: #{tpu_custom_call.1} parent=1 // pred_check
      _
    $region39: #{tpu_custom_call.1} parent=1 // pred_check_branch
      %41 = sbr.rel (0) target = $region41
    $region40: #{tpu_custom_call.1} parent=1 // pred_region
      _
    $region41: #{tpu_custom_call.1} parent=1 // pred_fallthru
      _
    // Predicated region
    $region42: #{tpu_custom_call.1} parent=1 // pred_check
      _
    $region43: #{tpu_custom_call.1} parent=1 // pred_check_branch
      %43 = sbr.rel (0) target = $region45
    $region44: #{tpu_custom_call.1} parent=1 // pred_region
      _
    $region45: #{tpu_custom_call.1} parent=1 // pred_fallthru
      _
    // Predicated region
    $region46: #{tpu_custom_call.1} parent=1 // pred_check
      _
    $region47: #{tpu_custom_call.1} parent=1 // pred_check_branch
      %45 = sbr.rel (0) target = $region49
    $region48: #{tpu_custom_call.1} parent=1 // pred_region
      _
    $region49: #{tpu_custom_call.1} parent=1 // pred_fallthru
      _
    // Predicated region
    $region50: #{tpu_custom_call.1} parent=1 // pred_check
      _
    $region51: #{tpu_custom_call.1} parent=1 // pred_check_branch
      %47 = sbr.rel (0) target = $region53
    $region52: #{tpu_custom_call.1} parent=1 // pred_region
      _
    $region53: #{tpu_custom_call.1} parent=1 // pred_fallthru
      _
    // Predicated region
    $region54: #{tpu_custom_call.1} parent=1 // pred_check
      _
    $region55: #{tpu_custom_call.1} parent=1 // pred_check_branch
      %49 = sbr.rel (0) target = $region57
    $region56: #{tpu_custom_call.1} parent=1 // pred_region
      _
    $region57: #{tpu_custom_call.1} parent=1 // pred_fallthru
      _
    // Predicated region
    $region58: #{tpu_custom_call.1} parent=1 // pred_check
      _
    $region59: #{tpu_custom_call.1} parent=1 // pred_check_branch
      %51 = sbr.rel (0) target = $region61
    $region60: #{tpu_custom_call.1} parent=1 // pred_region
      _
    $region61: #{tpu_custom_call.1} parent=1 // pred_fallthru
      _
    // Predicated region
    $region62: #{tpu_custom_call.1} parent=1 // pred_check
      _
    $region63: #{tpu_custom_call.1} parent=1 // pred_check_branch
      %53 = sbr.rel (0) target = $region65
    $region64: #{tpu_custom_call.1} parent=1 // pred_region
      _
    $region65: #{tpu_custom_call.1} parent=1 // pred_fallthru
      _
    %v54 = vld [vmem:[%s0] sm:$0xff]
    %v55 = vld [vmem:[%s0 + $0x8] sm:$0xff]
    %v56 = vld [vmem:[%s0 + $0x10] sm:$0xff]
    %v57 = vld [vmem:[%s0 + $0x18] sm:$0xff]
    %v58 = vld [vmem:[%s0 + $0x20] sm:$0xff]
    %v59 = vld [vmem:[%s0 + $0x28] sm:$0xff]
    %v60 = vld [vmem:[%s0 + $0x30] sm:$0xff]
    %v61 = vld [vmem:[%s0 + $0x38] sm:$0xff]
    %v62 = vld [vmem:[%s0 + $0x40] sm:$0xff]
    %v63 = vld [vmem:[%s0 + $0x48] sm:$0xff]
    %v64 = vld [vmem:[%s0 + $0x50] sm:$0xff]
    %v65 = vld [vmem:[%s0 + $0x58] sm:$0xff]
    %v66 = vld [vmem:[%s0 + $0x60] sm:$0xff]
    %v67 = vld [vmem:[%s0 + $0x68] sm:$0xff]
    %v68 = vld [vmem:[%s0 + $0x70] sm:$0xff]
    %v69 = vld [vmem:[%s0 + $0x78] sm:$0xff]
    %v70 = vld [vmem:[%s0 + $0x80] sm:$0xff]
    %v71 = vld [vmem:[%s0 + $0x88] sm:$0xff]
    %v72 = vld [vmem:[%s0 + $0x90] sm:$0xff]
    %v73 = vld [vmem:[%s0 + $0x98] sm:$0xff]
    %v74 = vld [vmem:[%s0 + $0xa0] sm:$0xff]
    %v75 = vld [vmem:[%s0 + $0xa8] sm:$0xff]
    %v76 = vld [vmem:[%s0 + $0xb0] sm:$0xff]
    %v77 = vld [vmem:[%s0 + $0xb8] sm:$0xff]
    %v78 = vld [vmem:[%s0 + $0xc0] sm:$0xff]
    %v79 = vld [vmem:[%s0 + $0xc8] sm:$0xff]
    %v80 = vld [vmem:[%s0 + $0xd0] sm:$0xff]
    %v81 = vld [vmem:[%s0 + $0xd8] sm:$0xff]
    %v82 = vld [vmem:[%s0 + $0xe0] sm:$0xff]
    %v83 = vld [vmem:[%s0 + $0xe8] sm:$0xff]
    %v84 = vld [vmem:[%s0 + $0xf0] sm:$0xff]
    %v85 = vld [vmem:[%s0 + $0xf8] sm:$0xff]
    %v86 = vld [vmem:[%s0 + $0x100] sm:$0xff]
    %v87 = vld [vmem:[%s0 + $0x108] sm:$0xff]
    %v88 = vld [vmem:[%s0 + $0x110] sm:$0xff]
    %v89 = vld [vmem:[%s0 + $0x118] sm:$0xff]
    %v90 = vld [vmem:[%s0 + $0x120] sm:$0xff]
    %v91 = vld [vmem:[%s0 + $0x128] sm:$0xff]
    %v92 = vld [vmem:[%s0 + $0x130] sm:$0xff]
    %v93 = vld [vmem:[%s0 + $0x138] sm:$0xff]
    %v94 = vld [vmem:[%s0 + $0x140] sm:$0xff]
    %v95 = vld [vmem:[%s0 + $0x148] sm:$0xff]
    %v96 = vld [vmem:[%s0 + $0x150] sm:$0xff]
    %v97 = vld [vmem:[%s0 + $0x158] sm:$0xff]
    %v98 = vld [vmem:[%s0 + $0x160] sm:$0xff]
    %v99 = vld [vmem:[%s0 + $0x168] sm:$0xff]
    %v100 = vld [vmem:[%s0 + $0x170] sm:$0xff]
    %v101 = vld [vmem:[%s0 + $0x178] sm:$0xff]
    %v102 = vld [vmem:[%s0 + $0x180] sm:$0xff]
    %v103 = vld [vmem:[%s0 + $0x188] sm:$0xff]
    %v104 = vld [vmem:[%s0 + $0x190] sm:$0xff]
    %v105 = vld [vmem:[%s0 + $0x198] sm:$0xff]
    %v106 = vld [vmem:[%s0 + $0x1a0] sm:$0xff]
    %v107 = vld [vmem:[%s0 + $0x1a8] sm:$0xff]
    %v108 = vld [vmem:[%s0 + $0x1b0] sm:$0xff]
    %v109 = vld [vmem:[%s0 + $0x1b8] sm:$0xff]
    %v110 = vld [vmem:[%s0 + $0x1c0] sm:$0xff]
    %v111 = vld [vmem:[%s0 + $0x1c8] sm:$0xff]
    %v112 = vld [vmem:[%s0 + $0x1d0] sm:$0xff]
    %v113 = vld [vmem:[%s0 + $0x1d8] sm:$0xff]
    %v114 = vld [vmem:[%s0 + $0x1e0] sm:$0xff]
    %v115 = vld [vmem:[%s0 + $0x1e8] sm:$0xff]
    %v116 = vld [vmem:[%s0 + $0x1f0] sm:$0xff]
    %v117 = vld [vmem:[%s0 + $0x1f8] sm:$0xff]
    %v118 = vld [vmem:[%s0 + $0x200] sm:$0xff]
    %v119 = vld [vmem:[%s0 + $0x208] sm:$0xff]
    %v120 = vld [vmem:[%s0 + $0x210] sm:$0xff]
    %v121 = vld [vmem:[%s0 + $0x218] sm:$0xff]
    %v122 = vld [vmem:[%s0 + $0x220] sm:$0xff]
    %v123 = vld [vmem:[%s0 + $0x228] sm:$0xff]
    %v124 = vld [vmem:[%s0 + $0x230] sm:$0xff]
    %v125 = vld [vmem:[%s0 + $0x238] sm:$0xff]
    %v126 = vld [vmem:[%s0 + $0x240] sm:$0xff]
    %v127 = vld [vmem:[%s0 + $0x248] sm:$0xff]
    %v128 = vld [vmem:[%s0 + $0x250] sm:$0xff]
    %v129 = vld [vmem:[%s0 + $0x258] sm:$0xff]
    %v130 = vld [vmem:[%s0 + $0x260] sm:$0xff]
    %v131 = vld [vmem:[%s0 + $0x268] sm:$0xff]
    %v132 = vld [vmem:[%s0 + $0x270] sm:$0xff]
    %v133 = vld [vmem:[%s0 + $0x278] sm:$0xff]
    %v134 = vld [vmem:[%s0 + $0x280] sm:$0xff]
    %v135 = vld [vmem:[%s0 + $0x288] sm:$0xff]
    %v136 = vld [vmem:[%s0 + $0x290] sm:$0xff]
    %v137 = vld [vmem:[%s0 + $0x298] sm:$0xff]
    %v138 = vld [vmem:[%s0 + $0x2a0] sm:$0xff]
    %v139 = vld [vmem:[%s0 + $0x2a8] sm:$0xff]
    %v140 = vld [vmem:[%s0 + $0x2b0] sm:$0xff]
    %v141 = vld [vmem:[%s0 + $0x2b8] sm:$0xff]
    %v142 = vld [vmem:[%s0 + $0x2c0] sm:$0xff]
    %v143 = vld [vmem:[%s0 + $0x2c8] sm:$0xff]
    %v144 = vld [vmem:[%s0 + $0x2d0] sm:$0xff]
    %v145 = vld [vmem:[%s0 + $0x2d8] sm:$0xff]
    %v146 = vld [vmem:[%s0 + $0x2e0] sm:$0xff]
    %v147 = vld [vmem:[%s0 + $0x2e8] sm:$0xff]
    %v148 = vld [vmem:[%s0 + $0x2f0] sm:$0xff]
    %v149 = vld [vmem:[%s0 + $0x2f8] sm:$0xff]
    %v150 = vld [vmem:[%s0 + $0x300] sm:$0xff]
    %v151 = vld [vmem:[%s0 + $0x308] sm:$0xff]
    %v152 = vld [vmem:[%s0 + $0x310] sm:$0xff]
    %v153 = vld [vmem:[%s0 + $0x318] sm:$0xff]
    %v154 = vld [vmem:[%s0 + $0x320] sm:$0xff]
    %v155 = vld [vmem:[%s0 + $0x328] sm:$0xff]
    %v156 = vld [vmem:[%s0 + $0x330] sm:$0xff]
    %v157 = vld [vmem:[%s0 + $0x338] sm:$0xff]
    %v158 = vld [vmem:[%s0 + $0x340] sm:$0xff]
    %v159 = vld [vmem:[%s0 + $0x348] sm:$0xff]
    %v160 = vld [vmem:[%s0 + $0x350] sm:$0xff]
    %v161 = vld [vmem:[%s0 + $0x358] sm:$0xff]
    %v162 = vld [vmem:[%s0 + $0x360] sm:$0xff]
    %v163 = vld [vmem:[%s0 + $0x368] sm:$0xff]
    %v164 = vld [vmem:[%s0 + $0x370] sm:$0xff]
    %v165 = vld [vmem:[%s0 + $0x378] sm:$0xff]
    %v166 = vld [vmem:[%s0 + $0x380] sm:$0xff]
    %v167 = vld [vmem:[%s0 + $0x388] sm:$0xff]
    %v168 = vld [vmem:[%s0 + $0x390] sm:$0xff]
    %v169 = vld [vmem:[%s0 + $0x398] sm:$0xff]
    %v170 = vld [vmem:[%s0 + $0x3a0] sm:$0xff]
    %v171 = vld [vmem:[%s0 + $0x3a8] sm:$0xff]
    %v172 = vld [vmem:[%s0 + $0x3b0] sm:$0xff]
    %v173 = vld [vmem:[%s0 + $0x3b8] sm:$0xff]
    %v174 = vld [vmem:[%s0 + $0x3c0] sm:$0xff]
    %v175 = vld [vmem:[%s0 + $0x3c8] sm:$0xff]
    %v176 = vld [vmem:[%s0 + $0x3d0] sm:$0xff]
    %v177 = vld [vmem:[%s0 + $0x3d8] sm:$0xff]
    %v178 = vld [vmem:[%s0 + $0x3e0] sm:$0xff]
    %v179 = vld [vmem:[%s0 + $0x3e8] sm:$0xff]
    %v180 = vld [vmem:[%s0 + $0x3f0] sm:$0xff]
    %v181 = vld [vmem:[%s0 + $0x3f8] sm:$0xff]
    %v182 = vld [vmem:[%s0 + $0x400] sm:$0xff]
    %v183 = vld [vmem:[%s0 + $0x408] sm:$0xff]
    %v184 = vld [vmem:[%s0 + $0x410] sm:$0xff]
    %v185 = vld [vmem:[%s0 + $0x418] sm:$0xff]
    %v186 = vld [vmem:[%s0 + $0x420] sm:$0xff]
    %v187 = vld [vmem:[%s0 + $0x428] sm:$0xff]
    %v188 = vld [vmem:[%s0 + $0x430] sm:$0xff]
    %v189 = vld [vmem:[%s0 + $0x438] sm:$0xff]
    %v190 = vld [vmem:[%s0 + $0x440] sm:$0xff]
    %v191 = vld [vmem:[%s0 + $0x448] sm:$0xff]
    %v192 = vld [vmem:[%s0 + $0x450] sm:$0xff]
    %v193 = vld [vmem:[%s0 + $0x458] sm:$0xff]
    %v194 = vld [vmem:[%s0 + $0x460] sm:$0xff]
    %v195 = vld [vmem:[%s0 + $0x468] sm:$0xff]
    %v196 = vld [vmem:[%s0 + $0x470] sm:$0xff]
    %v197 = vld [vmem:[%s0 + $0x478] sm:$0xff]
    %v198 = vld [vmem:[%s2] sm:$0xff]
    %v199 = vld [vmem:[%s2 + $0x8] sm:$0xff]
    %v200 = vld [vmem:[%s2 + $0x10] sm:$0xff]
    %v201 = vld [vmem:[%s2 + $0x18] sm:$0xff]
    %v202 = vld [vmem:[%s2 + $0x20] sm:$0xff]
    %v203 = vld [vmem:[%s2 + $0x28] sm:$0xff]
    %v204 = vld [vmem:[%s2 + $0x30] sm:$0xff]
    %v205 = vld [vmem:[%s2 + $0x38] sm:$0xff]
    %v206 = vld [vmem:[%s2 + $0x40] sm:$0xff]
    %v207 = vld [vmem:[%s2 + $0x48] sm:$0xff]
    %v208 = vld [vmem:[%s2 + $0x50] sm:$0xff]
    %v209 = vld [vmem:[%s2 + $0x58] sm:$0xff]
    %v210 = vld [vmem:[%s2 + $0x60] sm:$0xff]
    %v211 = vld [vmem:[%s2 + $0x68] sm:$0xff]
    %v212 = vld [vmem:[%s2 + $0x70] sm:$0xff]
    %v213 = vld [vmem:[%s2 + $0x78] sm:$0xff]
    %v214 = vld [vmem:[%s2 + $0x80] sm:$0xff]
    %v215 = vld [vmem:[%s2 + $0x88] sm:$0xff]
    %v216 = vld [vmem:[%s2 + $0x90] sm:$0xff]
    %v217 = vld [vmem:[%s2 + $0x98] sm:$0xff]
    %v218 = vld [vmem:[%s2 + $0xa0] sm:$0xff]
    %v219 = vld [vmem:[%s2 + $0xa8] sm:$0xff]
    %v220 = vld [vmem:[%s2 + $0xb0] sm:$0xff]
    %v221 = vld [vmem:[%s2 + $0xb8] sm:$0xff]
    %v222 = vld [vmem:[%s2 + $0xc0] sm:$0xff]
    %v223 = vld [vmem:[%s2 + $0xc8] sm:$0xff]
    %v224 = vld [vmem:[%s2 + $0xd0] sm:$0xff]
    %v225 = vld [vmem:[%s2 + $0xd8] sm:$0xff]
    %v226 = vld [vmem:[%s2 + $0xe0] sm:$0xff]
    %v227 = vld [vmem:[%s2 + $0xe8] sm:$0xff]
    %v228 = vld [vmem:[%s2 + $0xf0] sm:$0xff]
    %v229 = vld [vmem:[%s2 + $0xf8] sm:$0xff]
    %v230 = vld [vmem:[%s2 + $0x100] sm:$0xff]
    %v231 = vld [vmem:[%s2 + $0x108] sm:$0xff]
    %v232 = vld [vmem:[%s2 + $0x110] sm:$0xff]
    %v233 = vld [vmem:[%s2 + $0x118] sm:$0xff]
    %v234 = vld [vmem:[%s2 + $0x120] sm:$0xff]
    %v235 = vld [vmem:[%s2 + $0x128] sm:$0xff]
    %v236 = vld [vmem:[%s2 + $0x130] sm:$0xff]
    %v237 = vld [vmem:[%s2 + $0x138] sm:$0xff]
    %v238 = vld [vmem:[%s2 + $0x140] sm:$0xff]
    %v239 = vld [vmem:[%s2 + $0x148] sm:$0xff]
    %v240 = vld [vmem:[%s2 + $0x150] sm:$0xff]
    %v241 = vld [vmem:[%s2 + $0x158] sm:$0xff]
    %v242 = vld [vmem:[%s2 + $0x160] sm:$0xff]
    %v243 = vld [vmem:[%s2 + $0x168] sm:$0xff]
    %v244 = vld [vmem:[%s2 + $0x170] sm:$0xff]
    %v245 = vld [vmem:[%s2 + $0x178] sm:$0xff]
    %v246 = vld [vmem:[%s2 + $0x180] sm:$0xff]
    %v247 = vld [vmem:[%s2 + $0x188] sm:$0xff]
    %v248 = vld [vmem:[%s2 + $0x190] sm:$0xff]
    %v249 = vld [vmem:[%s2 + $0x198] sm:$0xff]
    %v250 = vld [vmem:[%s2 + $0x1a0] sm:$0xff]
    %v251 = vld [vmem:[%s2 + $0x1a8] sm:$0xff]
    %v252 = vld [vmem:[%s2 + $0x1b0] sm:$0xff]
    %v253 = vld [vmem:[%s2 + $0x1b8] sm:$0xff]
    %v254 = vld [vmem:[%s2 + $0x1c0] sm:$0xff]
    %v255 = vld [vmem:[%s2 + $0x1c8] sm:$0xff]
    %v256 = vld [vmem:[%s2 + $0x1d0] sm:$0xff]
    %v257 = vld [vmem:[%s2 + $0x1d8] sm:$0xff]
    %v258 = vld [vmem:[%s2 + $0x1e0] sm:$0xff]
    %v259 = vld [vmem:[%s2 + $0x1e8] sm:$0xff]
    %v260 = vld [vmem:[%s2 + $0x1f0] sm:$0xff]
    %v261 = vld [vmem:[%s2 + $0x1f8] sm:$0xff]
    %v262 = vld [vmem:[%s2 + $0x200] sm:$0xff]
    %v263 = vld [vmem:[%s2 + $0x208] sm:$0xff]
    %v264 = vld [vmem:[%s2 + $0x210] sm:$0xff]
    %v265 = vld [vmem:[%s2 + $0x218] sm:$0xff]
    %v266 = vld [vmem:[%s2 + $0x220] sm:$0xff]
    %v267 = vld [vmem:[%s2 + $0x228] sm:$0xff]
    %v268 = vld [vmem:[%s2 + $0x230] sm:$0xff]
    %v269 = vld [vmem:[%s2 + $0x238] sm:$0xff]
    %v270 = vld [vmem:[%s3] sm:$0x1]
    %v271 = vld [vmem:[%s4] sm:$0xff]
    %v272 = vld [vmem:[%s4 + $0x8] sm:$0xff]
    %v273 = vld [vmem:[%s4 + $0x10] sm:$0xff]
    %v274 = vld [vmem:[%s4 + $0x18] sm:$0xff]
    %v275 = vld [vmem:[%s4 + $0x20] sm:$0xff]
    %v276 = vld [vmem:[%s4 + $0x28] sm:$0xff]
    %v277 = vld [vmem:[%s4 + $0x30] sm:$0xff]
    %v278 = vld [vmem:[%s4 + $0x38] sm:$0xff]
    %v279 = vld [vmem:[%s4 + $0x40] sm:$0xff]
    %v280 = vld [vmem:[%s4 + $0x48] sm:$0xff]
    %v281 = vld [vmem:[%s4 + $0x50] sm:$0xff]
    %v282 = vld [vmem:[%s4 + $0x58] sm:$0xff]
    %v283 = vld [vmem:[%s4 + $0x60] sm:$0xff]
    %v284 = vld [vmem:[%s4 + $0x68] sm:$0xff]
    %v285 = vld [vmem:[%s4 + $0x70] sm:$0xff]
    %v286 = vld [vmem:[%s4 + $0x78] sm:$0xff]
    %v287 = vld [vmem:[%s4 + $0x80] sm:$0xff]
    %v288 = vld [vmem:[%s4 + $0x88] sm:$0xff]
    %v289 = vld [vmem:[%s4 + $0x90] sm:$0xff]
    %v290 = vld [vmem:[%s4 + $0x98] sm:$0xff]
    %v291 = vld [vmem:[%s4 + $0xa0] sm:$0xf]
    %v292 = vld [vmem:[%s4 + $0xa8] sm:$0xf]
    %v293 = vld [vmem:[%s4 + $0xb0] sm:$0xf]
    %v294 = vld [vmem:[%s4 + $0xb8] sm:$0xf]
    %v295 = vld [vmem:[%s4 + $0xc0] sm:$0xf]
    %v296 = vld [vmem:[%s5] sm:$0x1f]
    %vm297 = vcmask 130048
    %v298 = vsel %vm297, %v54, 0.0
    %299 = vadd.xlane.f32.xlu0 %v298
    %v300 = vpop.xlane.xlu0 %299
    %v301 = vsel %vm297, %v55, 0.0
    %302 = vadd.xlane.f32.xlu0 %v301
    %v303 = vpop.xlane.xlu0 %302
    %v304 = vsel %vm297, %v56, 0.0
    %305 = vadd.xlane.f32.xlu0 %v304
    %v306 = vpop.xlane.xlu0 %305
    %v307 = vsel %vm297, %v57, 0.0
    %308 = vadd.xlane.f32.xlu0 %v307
    %v309 = vpop.xlane.xlu0 %308
    %v310 = vsel %vm297, %v58, 0.0
    %311 = vadd.xlane.f32.xlu0 %v310
    %v312 = vpop.xlane.xlu0 %311
    %v313 = vsel %vm297, %v59, 0.0
    %314 = vadd.xlane.f32.xlu0 %v313
    %v315 = vpop.xlane.xlu0 %314
    %v316 = vsel %vm297, %v60, 0.0
    %317 = vadd.xlane.f32.xlu0 %v316
    %v318 = vpop.xlane.xlu0 %317
    %v319 = vsel %vm297, %v61, 0.0
    %320 = vadd.xlane.f32.xlu0 %v319
    %v321 = vpop.xlane.xlu0 %320
    %v322 = vsel %vm297, %v62, 0.0
    %323 = vadd.xlane.f32.xlu0 %v322
    %v324 = vpop.xlane.xlu0 %323
    %v325 = vsel %vm297, %v63, 0.0
    %326 = vadd.xlane.f32.xlu0 %v325
    %v327 = vpop.xlane.xlu0 %326
    %v328 = vsel %vm297, %v64, 0.0
    %329 = vadd.xlane.f32.xlu0 %v328
    %v330 = vpop.xlane.xlu0 %329
    %v331 = vsel %vm297, %v65, 0.0
    %332 = vadd.xlane.f32.xlu0 %v331
    %v333 = vpop.xlane.xlu0 %332
    %v334 = vsel %vm297, %v66, 0.0
    %335 = vadd.xlane.f32.xlu0 %v334
    %v336 = vpop.xlane.xlu0 %335
    %v337 = vsel %vm297, %v67, 0.0
    %338 = vadd.xlane.f32.xlu0 %v337
    %v339 = vpop.xlane.xlu0 %338
    %v340 = vsel %vm297, %v68, 0.0
    %341 = vadd.xlane.f32.xlu0 %v340
    %v342 = vpop.xlane.xlu0 %341
    %v343 = vsel %vm297, %v69, 0.0
    %344 = vadd.xlane.f32.xlu0 %v343
    %v345 = vpop.xlane.xlu0 %344
    %v346 = vsel %vm297, %v70, 0.0
    %347 = vadd.xlane.f32.xlu0 %v346
    %v348 = vpop.xlane.xlu0 %347
    %v349 = vsel %vm297, %v71, 0.0
    %350 = vadd.xlane.f32.xlu0 %v349
    %v351 = vpop.xlane.xlu0 %350
    %v352 = vsel %vm297, %v72, 0.0
    %353 = vadd.xlane.f32.xlu0 %v352
    %v354 = vpop.xlane.xlu0 %353
    %v355 = vsel %vm297, %v73, 0.0
    %356 = vadd.xlane.f32.xlu0 %v355
    %v357 = vpop.xlane.xlu0 %356
    %v358 = vsel %vm297, %v74, 0.0
    %359 = vadd.xlane.f32.xlu0 %v358
    %v360 = vpop.xlane.xlu0 %359
    %v361 = vsel %vm297, %v75, 0.0
    %362 = vadd.xlane.f32.xlu0 %v361
    %v363 = vpop.xlane.xlu0 %362
    %v364 = vsel %vm297, %v76, 0.0
    %365 = vadd.xlane.f32.xlu0 %v364
    %v366 = vpop.xlane.xlu0 %365
    %v367 = vsel %vm297, %v77, 0.0
    %368 = vadd.xlane.f32.xlu0 %v367
    %v369 = vpop.xlane.xlu0 %368
    %v370 = vsel %vm297, %v78, 0.0
    %371 = vadd.xlane.f32.xlu0 %v370
    %v372 = vpop.xlane.xlu0 %371
    %v373 = vsel %vm297, %v79, 0.0
    %374 = vadd.xlane.f32.xlu0 %v373
    %v375 = vpop.xlane.xlu0 %374
    %v376 = vsel %vm297, %v80, 0.0
    %377 = vadd.xlane.f32.xlu0 %v376
    %v378 = vpop.xlane.xlu0 %377
    %v379 = vsel %vm297, %v81, 0.0
    %380 = vadd.xlane.f32.xlu0 %v379
    %v381 = vpop.xlane.xlu0 %380
    %v382 = vsel %vm297, %v82, 0.0
    %383 = vadd.xlane.f32.xlu0 %v382
    %v384 = vpop.xlane.xlu0 %383
    %v385 = vsel %vm297, %v83, 0.0
    %386 = vadd.xlane.f32.xlu0 %v385
    %v387 = vpop.xlane.xlu0 %386
    %v388 = vsel %vm297, %v84, 0.0
    %389 = vadd.xlane.f32.xlu0 %v388
    %v390 = vpop.xlane.xlu0 %389
    %v391 = vsel %vm297, %v85, 0.0
    %392 = vadd.xlane.f32.xlu0 %v391
    %v393 = vpop.xlane.xlu0 %392
    %v394 = vsel %vm297, %v86, 0.0
    %395 = vadd.xlane.f32.xlu0 %v394
    %v396 = vpop.xlane.xlu0 %395
    %v397 = vsel %vm297, %v87, 0.0
    %398 = vadd.xlane.f32.xlu0 %v397
    %v399 = vpop.xlane.xlu0 %398
    %v400 = vsel %vm297, %v88, 0.0
    %401 = vadd.xlane.f32.xlu0 %v400
    %v402 = vpop.xlane.xlu0 %401
    %v403 = vsel %vm297, %v89, 0.0
    %404 = vadd.xlane.f32.xlu0 %v403
    %v405 = vpop.xlane.xlu0 %404
    %v406 = vsel %vm297, %v90, 0.0
    %407 = vadd.xlane.f32.xlu0 %v406
    %v408 = vpop.xlane.xlu0 %407
    %v409 = vsel %vm297, %v91, 0.0
    %410 = vadd.xlane.f32.xlu0 %v409
    %v411 = vpop.xlane.xlu0 %410
    %v412 = vsel %vm297, %v92, 0.0
    %413 = vadd.xlane.f32.xlu0 %v412
    %v414 = vpop.xlane.xlu0 %413
    %v415 = vsel %vm297, %v93, 0.0
    %416 = vadd.xlane.f32.xlu0 %v415
    %v417 = vpop.xlane.xlu0 %416
    %v418 = vsel %vm297, %v94, 0.0
    %419 = vadd.xlane.f32.xlu0 %v418
    %v420 = vpop.xlane.xlu0 %419
    %v421 = vsel %vm297, %v95, 0.0
    %422 = vadd.xlane.f32.xlu0 %v421
    %v423 = vpop.xlane.xlu0 %422
    %v424 = vsel %vm297, %v96, 0.0
    %425 = vadd.xlane.f32.xlu0 %v424
    %v426 = vpop.xlane.xlu0 %425
    %v427 = vsel %vm297, %v97, 0.0
    %428 = vadd.xlane.f32.xlu0 %v427
    %v429 = vpop.xlane.xlu0 %428
    %v430 = vsel %vm297, %v98, 0.0
    %431 = vadd.xlane.f32.xlu0 %v430
    %v432 = vpop.xlane.xlu0 %431
    %v433 = vsel %vm297, %v99, 0.0
    %434 = vadd.xlane.f32.xlu0 %v433
    %v435 = vpop.xlane.xlu0 %434
    %v436 = vsel %vm297, %v100, 0.0
    %437 = vadd.xlane.f32.xlu0 %v436
    %v438 = vpop.xlane.xlu0 %437
    %v439 = vsel %vm297, %v101, 0.0
    %440 = vadd.xlane.f32.xlu0 %v439
    %v441 = vpop.xlane.xlu0 %440
    %v442 = vsel %vm297, %v102, 0.0
    %443 = vadd.xlane.f32.xlu0 %v442
    %v444 = vpop.xlane.xlu0 %443
    %v445 = vsel %vm297, %v103, 0.0
    %446 = vadd.xlane.f32.xlu0 %v445
    %v447 = vpop.xlane.xlu0 %446
    %v448 = vsel %vm297, %v104, 0.0
    %449 = vadd.xlane.f32.xlu0 %v448
    %v450 = vpop.xlane.xlu0 %449
    %v451 = vsel %vm297, %v105, 0.0
    %452 = vadd.xlane.f32.xlu0 %v451
    %v453 = vpop.xlane.xlu0 %452
    %v454 = vsel %vm297, %v106, 0.0
    %455 = vadd.xlane.f32.xlu0 %v454
    %v456 = vpop.xlane.xlu0 %455
    %v457 = vsel %vm297, %v107, 0.0
    %458 = vadd.xlane.f32.xlu0 %v457
    %v459 = vpop.xlane.xlu0 %458
    %v460 = vsel %vm297, %v108, 0.0
    %461 = vadd.xlane.f32.xlu0 %v460
    %v462 = vpop.xlane.xlu0 %461
    %v463 = vsel %vm297, %v109, 0.0
    %464 = vadd.xlane.f32.xlu0 %v463
    %v465 = vpop.xlane.xlu0 %464
    %v466 = vsel %vm297, %v110, 0.0
    %467 = vadd.xlane.f32.xlu0 %v466
    %v468 = vpop.xlane.xlu0 %467
    %v469 = vsel %vm297, %v111, 0.0
    %470 = vadd.xlane.f32.xlu0 %v469
    %v471 = vpop.xlane.xlu0 %470
    %v472 = vsel %vm297, %v112, 0.0
    %473 = vadd.xlane.f32.xlu0 %v472
    %v474 = vpop.xlane.xlu0 %473
    %v475 = vsel %vm297, %v113, 0.0
    %476 = vadd.xlane.f32.xlu0 %v475
    %v477 = vpop.xlane.xlu0 %476
    %v478 = vsel %vm297, %v114, 0.0
    %479 = vadd.xlane.f32.xlu0 %v478
    %v480 = vpop.xlane.xlu0 %479
    %v481 = vsel %vm297, %v115, 0.0
    %482 = vadd.xlane.f32.xlu0 %v481
    %v483 = vpop.xlane.xlu0 %482
    %v484 = vsel %vm297, %v116, 0.0
    %485 = vadd.xlane.f32.xlu0 %v484
    %v486 = vpop.xlane.xlu0 %485
    %v487 = vsel %vm297, %v117, 0.0
    %488 = vadd.xlane.f32.xlu0 %v487
    %v489 = vpop.xlane.xlu0 %488
    %v490 = vsel %vm297, %v118, 0.0
    %491 = vadd.xlane.f32.xlu0 %v490
    %v492 = vpop.xlane.xlu0 %491
    %v493 = vsel %vm297, %v119, 0.0
    %494 = vadd.xlane.f32.xlu0 %v493
    %v495 = vpop.xlane.xlu0 %494
    %v496 = vsel %vm297, %v120, 0.0
    %497 = vadd.xlane.f32.xlu0 %v496
    %v498 = vpop.xlane.xlu0 %497
    %v499 = vsel %vm297, %v121, 0.0
    %500 = vadd.xlane.f32.xlu0 %v499
    %v501 = vpop.xlane.xlu0 %500
    %v502 = vsel %vm297, %v122, 0.0
    %503 = vadd.xlane.f32.xlu0 %v502
    %v504 = vpop.xlane.xlu0 %503
    %v505 = vsel %vm297, %v123, 0.0
    %506 = vadd.xlane.f32.xlu0 %v505
    %v507 = vpop.xlane.xlu0 %506
    %v508 = vsel %vm297, %v124, 0.0
    %509 = vadd.xlane.f32.xlu0 %v508
    %v510 = vpop.xlane.xlu0 %509
    %v511 = vsel %vm297, %v125, 0.0
    %512 = vadd.xlane.f32.xlu0 %v511
    %v513 = vpop.xlane.xlu0 %512
    %v514 = vsel %vm297, %v126, 0.0
    %515 = vadd.xlane.f32.xlu0 %v514
    %v516 = vpop.xlane.xlu0 %515
    %v517 = vsel %vm297, %v127, 0.0
    %518 = vadd.xlane.f32.xlu0 %v517
    %v519 = vpop.xlane.xlu0 %518
    %v520 = vsel %vm297, %v128, 0.0
    %521 = vadd.xlane.f32.xlu0 %v520
    %v522 = vpop.xlane.xlu0 %521
    %v523 = vsel %vm297, %v129, 0.0
    %524 = vadd.xlane.f32.xlu0 %v523
    %v525 = vpop.xlane.xlu0 %524
    %v526 = vsel %vm297, %v130, 0.0
    %527 = vadd.xlane.f32.xlu0 %v526
    %v528 = vpop.xlane.xlu0 %527
    %v529 = vsel %vm297, %v131, 0.0
    %530 = vadd.xlane.f32.xlu0 %v529
    %v531 = vpop.xlane.xlu0 %530
    %v532 = vsel %vm297, %v132, 0.0
    %533 = vadd.xlane.f32.xlu0 %v532
    %v534 = vpop.xlane.xlu0 %533
    %v535 = vsel %vm297, %v133, 0.0
    %536 = vadd.xlane.f32.xlu0 %v535
    %v537 = vpop.xlane.xlu0 %536
    %v538 = vsel %vm297, %v134, 0.0
    %539 = vadd.xlane.f32.xlu0 %v538
    %v540 = vpop.xlane.xlu0 %539
    %v541 = vsel %vm297, %v135, 0.0
    %542 = vadd.xlane.f32.xlu0 %v541
    %v543 = vpop.xlane.xlu0 %542
    %v544 = vsel %vm297, %v136, 0.0
    %545 = vadd.xlane.f32.xlu0 %v544
    %v546 = vpop.xlane.xlu0 %545
    %v547 = vsel %vm297, %v137, 0.0
    %548 = vadd.xlane.f32.xlu0 %v547
    %v549 = vpop.xlane.xlu0 %548
    %v550 = vsel %vm297, %v138, 0.0
    %551 = vadd.xlane.f32.xlu0 %v550
    %v552 = vpop.xlane.xlu0 %551
    %v553 = vsel %vm297, %v139, 0.0
    %554 = vadd.xlane.f32.xlu0 %v553
    %v555 = vpop.xlane.xlu0 %554
    %v556 = vsel %vm297, %v140, 0.0
    %557 = vadd.xlane.f32.xlu0 %v556
    %v558 = vpop.xlane.xlu0 %557
    %v559 = vsel %vm297, %v141, 0.0
    %560 = vadd.xlane.f32.xlu0 %v559
    %v561 = vpop.xlane.xlu0 %560
    %v562 = vsel %vm297, %v142, 0.0
    %563 = vadd.xlane.f32.xlu0 %v562
    %v564 = vpop.xlane.xlu0 %563
    %v565 = vsel %vm297, %v143, 0.0
    %566 = vadd.xlane.f32.xlu0 %v565
    %v567 = vpop.xlane.xlu0 %566
    %v568 = vsel %vm297, %v144, 0.0
    %569 = vadd.xlane.f32.xlu0 %v568
    %v570 = vpop.xlane.xlu0 %569
    %v571 = vsel %vm297, %v145, 0.0
    %572 = vadd.xlane.f32.xlu0 %v571
    %v573 = vpop.xlane.xlu0 %572
    %v574 = vsel %vm297, %v146, 0.0
    %575 = vadd.xlane.f32.xlu0 %v574
    %v576 = vpop.xlane.xlu0 %575
    %v577 = vsel %vm297, %v147, 0.0
    %578 = vadd.xlane.f32.xlu0 %v577
    %v579 = vpop.xlane.xlu0 %578
    %v580 = vsel %vm297, %v148, 0.0
    %581 = vadd.xlane.f32.xlu0 %v580
    %v582 = vpop.xlane.xlu0 %581
    %v583 = vsel %vm297, %v149, 0.0
    %584 = vadd.xlane.f32.xlu0 %v583
    %v585 = vpop.xlane.xlu0 %584
    %v586 = vsel %vm297, %v150, 0.0
    %587 = vadd.xlane.f32.xlu0 %v586
    %v588 = vpop.xlane.xlu0 %587
    %v589 = vsel %vm297, %v151, 0.0
    %590 = vadd.xlane.f32.xlu0 %v589
    %v591 = vpop.xlane.xlu0 %590
    %v592 = vsel %vm297, %v152, 0.0
    %593 = vadd.xlane.f32.xlu0 %v592
    %v594 = vpop.xlane.xlu0 %593
    %v595 = vsel %vm297, %v153, 0.0
    %596 = vadd.xlane.f32.xlu0 %v595
    %v597 = vpop.xlane.xlu0 %596
    %v598 = vsel %vm297, %v154, 0.0
    %599 = vadd.xlane.f32.xlu0 %v598
    %v600 = vpop.xlane.xlu0 %599
    %v601 = vsel %vm297, %v155, 0.0
    %602 = vadd.xlane.f32.xlu0 %v601
    %v603 = vpop.xlane.xlu0 %602
    %v604 = vsel %vm297, %v156, 0.0
    %605 = vadd.xlane.f32.xlu0 %v604
    %v606 = vpop.xlane.xlu0 %605
    %v607 = vsel %vm297, %v157, 0.0
    %608 = vadd.xlane.f32.xlu0 %v607
    %v609 = vpop.xlane.xlu0 %608
    %v610 = vsel %vm297, %v158, 0.0
    %611 = vadd.xlane.f32.xlu0 %v610
    %v612 = vpop.xlane.xlu0 %611
    %v613 = vsel %vm297, %v159, 0.0
    %614 = vadd.xlane.f32.xlu0 %v613
    %v615 = vpop.xlane.xlu0 %614
    %v616 = vsel %vm297, %v160, 0.0
    %617 = vadd.xlane.f32.xlu0 %v616
    %v618 = vpop.xlane.xlu0 %617
    %v619 = vsel %vm297, %v161, 0.0
    %620 = vadd.xlane.f32.xlu0 %v619
    %v621 = vpop.xlane.xlu0 %620
    %v622 = vsel %vm297, %v162, 0.0
    %623 = vadd.xlane.f32.xlu0 %v622
    %v624 = vpop.xlane.xlu0 %623
    %v625 = vsel %vm297, %v163, 0.0
    %626 = vadd.xlane.f32.xlu0 %v625
    %v627 = vpop.xlane.xlu0 %626
    %v628 = vsel %vm297, %v164, 0.0
    %629 = vadd.xlane.f32.xlu0 %v628
    %v630 = vpop.xlane.xlu0 %629
    %v631 = vsel %vm297, %v165, 0.0
    %632 = vadd.xlane.f32.xlu0 %v631
    %v633 = vpop.xlane.xlu0 %632
    %v634 = vsel %vm297, %v166, 0.0
    %635 = vadd.xlane.f32.xlu0 %v634
    %v636 = vpop.xlane.xlu0 %635
    %v637 = vsel %vm297, %v167, 0.0
    %638 = vadd.xlane.f32.xlu0 %v637
    %v639 = vpop.xlane.xlu0 %638
    %v640 = vsel %vm297, %v168, 0.0
    %641 = vadd.xlane.f32.xlu0 %v640
    %v642 = vpop.xlane.xlu0 %641
    %v643 = vsel %vm297, %v169, 0.0
    %644 = vadd.xlane.f32.xlu0 %v643
    %v645 = vpop.xlane.xlu0 %644
    %v646 = vsel %vm297, %v170, 0.0
    %647 = vadd.xlane.f32.xlu0 %v646
    %v648 = vpop.xlane.xlu0 %647
    %v649 = vsel %vm297, %v171, 0.0
    %650 = vadd.xlane.f32.xlu0 %v649
    %v651 = vpop.xlane.xlu0 %650
    %v652 = vsel %vm297, %v172, 0.0
    %653 = vadd.xlane.f32.xlu0 %v652
    %v654 = vpop.xlane.xlu0 %653
    %v655 = vsel %vm297, %v173, 0.0
    %656 = vadd.xlane.f32.xlu0 %v655
    %v657 = vpop.xlane.xlu0 %656
    %v658 = vsel %vm297, %v174, 0.0
    %659 = vadd.xlane.f32.xlu0 %v658
    %v660 = vpop.xlane.xlu0 %659
    %v661 = vsel %vm297, %v175, 0.0
    %662 = vadd.xlane.f32.xlu0 %v661
    %v663 = vpop.xlane.xlu0 %662
    %v664 = vsel %vm297, %v176, 0.0
    %665 = vadd.xlane.f32.xlu0 %v664
    %v666 = vpop.xlane.xlu0 %665
    %v667 = vsel %vm297, %v177, 0.0
    %668 = vadd.xlane.f32.xlu0 %v667
    %v669 = vpop.xlane.xlu0 %668
    %v670 = vsel %vm297, %v178, 0.0
    %671 = vadd.xlane.f32.xlu0 %v670
    %v672 = vpop.xlane.xlu0 %671
    %v673 = vsel %vm297, %v179, 0.0
    %674 = vadd.xlane.f32.xlu0 %v673
    %v675 = vpop.xlane.xlu0 %674
    %v676 = vsel %vm297, %v180, 0.0
    %677 = vadd.xlane.f32.xlu0 %v676
    %v678 = vpop.xlane.xlu0 %677
    %v679 = vsel %vm297, %v181, 0.0
    %680 = vadd.xlane.f32.xlu0 %v679
    %v681 = vpop.xlane.xlu0 %680
    %v682 = vsel %vm297, %v182, 0.0
    %683 = vadd.xlane.f32.xlu0 %v682
    %v684 = vpop.xlane.xlu0 %683
    %v685 = vsel %vm297, %v183, 0.0
    %686 = vadd.xlane.f32.xlu0 %v685
    %v687 = vpop.xlane.xlu0 %686
    %v688 = vsel %vm297, %v184, 0.0
    %689 = vadd.xlane.f32.xlu0 %v688
    %v690 = vpop.xlane.xlu0 %689
    %v691 = vsel %vm297, %v185, 0.0
    %692 = vadd.xlane.f32.xlu0 %v691
    %v693 = vpop.xlane.xlu0 %692
    %v694 = vsel %vm297, %v186, 0.0
    %695 = vadd.xlane.f32.xlu0 %v694
    %v696 = vpop.xlane.xlu0 %695
    %v697 = vsel %vm297, %v187, 0.0
    %698 = vadd.xlane.f32.xlu0 %v697
    %v699 = vpop.xlane.xlu0 %698
    %v700 = vsel %vm297, %v188, 0.0
    %701 = vadd.xlane.f32.xlu0 %v700
    %v702 = vpop.xlane.xlu0 %701
    %v703 = vsel %vm297, %v189, 0.0
    %704 = vadd.xlane.f32.xlu0 %v703
    %v705 = vpop.xlane.xlu0 %704
    %v706 = vsel %vm297, %v190, 0.0
    %707 = vadd.xlane.f32.xlu0 %v706
    %v708 = vpop.xlane.xlu0 %707
    %v709 = vsel %vm297, %v191, 0.0
    %710 = vadd.xlane.f32.xlu0 %v709
    %v711 = vpop.xlane.xlu0 %710
    %v712 = vsel %vm297, %v192, 0.0
    %713 = vadd.xlane.f32.xlu0 %v712
    %v714 = vpop.xlane.xlu0 %713
    %v715 = vsel %vm297, %v193, 0.0
    %716 = vadd.xlane.f32.xlu0 %v715
    %v717 = vpop.xlane.xlu0 %716
    %v718 = vsel %vm297, %v194, 0.0
    %719 = vadd.xlane.f32.xlu0 %v718
    %v720 = vpop.xlane.xlu0 %719
    %v721 = vsel %vm297, %v195, 0.0
    %722 = vadd.xlane.f32.xlu0 %v721
    %v723 = vpop.xlane.xlu0 %722
    %v724 = vsel %vm297, %v196, 0.0
    %725 = vadd.xlane.f32.xlu0 %v724
    %v726 = vpop.xlane.xlu0 %725
    %v727 = vsel %vm297, %v197, 0.0
    %728 = vadd.xlane.f32.xlu0 %v727
    %v729 = vpop.xlane.xlu0 %728
    %v730 = vrcp.pop 16.0
    %v731 = vmul.f32 %v300, %v730
    %v732 = vmul.f32 %v303, %v730
    %v733 = vmul.f32 %v306, %v730
    %v734 = vmul.f32 %v309, %v730
    %v735 = vmul.f32 %v312, %v730
    %v736 = vmul.f32 %v315, %v730
    %v737 = vmul.f32 %v318, %v730
    %v738 = vmul.f32 %v321, %v730
    %v739 = vmul.f32 %v324, %v730
    %v740 = vmul.f32 %v327, %v730
    %v741 = vmul.f32 %v330, %v730
    %v742 = vmul.f32 %v333, %v730
    %v743 = vmul.f32 %v336, %v730
    %v744 = vmul.f32 %v339, %v730
    %v745 = vmul.f32 %v342, %v730
    %v746 = vmul.f32 %v345, %v730
    %v747 = vmul.f32 %v348, %v730
    %v748 = vmul.f32 %v351, %v730
    %v749 = vmul.f32 %v354, %v730
    %v750 = vmul.f32 %v357, %v730
    %v751 = vmul.f32 %v360, %v730
    %v752 = vmul.f32 %v363, %v730
    %v753 = vmul.f32 %v366, %v730
    %v754 = vmul.f32 %v369, %v730
    %v755 = vmul.f32 %v372, %v730
    %v756 = vmul.f32 %v375, %v730
    %v757 = vmul.f32 %v378, %v730
    %v758 = vmul.f32 %v381, %v730
    %v759 = vmul.f32 %v384, %v730
    %v760 = vmul.f32 %v387, %v730
    %v761 = vmul.f32 %v390, %v730
    %v762 = vmul.f32 %v393, %v730
    %v763 = vmul.f32 %v396, %v730
    %v764 = vmul.f32 %v399, %v730
    %v765 = vmul.f32 %v402, %v730
    %v766 = vmul.f32 %v405, %v730
    %v767 = vmul.f32 %v408, %v730
    %v768 = vmul.f32 %v411, %v730
    %v769 = vmul.f32 %v414, %v730
    %v770 = vmul.f32 %v417, %v730
    %v771 = vmul.f32 %v420, %v730
    %v772 = vmul.f32 %v423, %v730
    %v773 = vmul.f32 %v426, %v730
    %v774 = vmul.f32 %v429, %v730
    %v775 = vmul.f32 %v432, %v730
    %v776 = vmul.f32 %v435, %v730
    %v777 = vmul.f32 %v438, %v730
    %v778 = vmul.f32 %v441, %v730
    %v779 = vmul.f32 %v444, %v730
    %v780 = vmul.f32 %v447, %v730
    %v781 = vmul.f32 %v450, %v730
    %v782 = vmul.f32 %v453, %v730
    %v783 = vmul.f32 %v456, %v730
    %v784 = vmul.f32 %v459, %v730
    %v785 = vmul.f32 %v462, %v730
    %v786 = vmul.f32 %v465, %v730
    %v787 = vmul.f32 %v468, %v730
    %v788 = vmul.f32 %v471, %v730
    %v789 = vmul.f32 %v474, %v730
    %v790 = vmul.f32 %v477, %v730
    %v791 = vmul.f32 %v480, %v730
    %v792 = vmul.f32 %v483, %v730
    %v793 = vmul.f32 %v486, %v730
    %v794 = vmul.f32 %v489, %v730
    %v795 = vmul.f32 %v492, %v730
    %v796 = vmul.f32 %v495, %v730
    %v797 = vmul.f32 %v498, %v730
    %v798 = vmul.f32 %v501, %v730
    %v799 = vmul.f32 %v504, %v730
    %v800 = vmul.f32 %v507, %v730
    %v801 = vmul.f32 %v510, %v730
    %v802 = vmul.f32 %v513, %v730
    %v803 = vmul.f32 %v516, %v730
    %v804 = vmul.f32 %v519, %v730
    %v805 = vmul.f32 %v522, %v730
    %v806 = vmul.f32 %v525, %v730
    %v807 = vmul.f32 %v528, %v730
    %v808 = vmul.f32 %v531, %v730
    %v809 = vmul.f32 %v534, %v730
    %v810 = vmul.f32 %v537, %v730
    %v811 = vmul.f32 %v540, %v730
    %v812 = vmul.f32 %v543, %v730
    %v813 = vmul.f32 %v546, %v730
    %v814 = vmul.f32 %v549, %v730
    %v815 = vmul.f32 %v552, %v730
    %v816 = vmul.f32 %v555, %v730
    %v817 = vmul.f32 %v558, %v730
    %v818 = vmul.f32 %v561, %v730
    %v819 = vmul.f32 %v564, %v730
    %v820 = vmul.f32 %v567, %v730
    %v821 = vmul.f32 %v570, %v730
    %v822 = vmul.f32 %v573, %v730
    %v823 = vmul.f32 %v576, %v730
    %v824 = vmul.f32 %v579, %v730
    %v825 = vmul.f32 %v582, %v730
    %v826 = vmul.f32 %v585, %v730
    %v827 = vmul.f32 %v588, %v730
    %v828 = vmul.f32 %v591, %v730
    %v829 = vmul.f32 %v594, %v730
    %v830 = vmul.f32 %v597, %v730
    %v831 = vmul.f32 %v600, %v730
    %v832 = vmul.f32 %v603, %v730
    %v833 = vmul.f32 %v606, %v730
    %v834 = vmul.f32 %v609, %v730
    %v835 = vmul.f32 %v612, %v730
    %v836 = vmul.f32 %v615, %v730
    %v837 = vmul.f32 %v618, %v730
    %v838 = vmul.f32 %v621, %v730
    %v839 = vmul.f32 %v624, %v730
    %v840 = vmul.f32 %v627, %v730
    %v841 = vmul.f32 %v630, %v730
    %v842 = vmul.f32 %v633, %v730
    %v843 = vmul.f32 %v636, %v730
    %v844 = vmul.f32 %v639, %v730
    %v845 = vmul.f32 %v642, %v730
    %v846 = vmul.f32 %v645, %v730
    %v847 = vmul.f32 %v648, %v730
    %v848 = vmul.f32 %v651, %v730
    %v849 = vmul.f32 %v654, %v730
    %v850 = vmul.f32 %v657, %v730
    %v851 = vmul.f32 %v660, %v730
    %v852 = vmul.f32 %v663, %v730
    %v853 = vmul.f32 %v666, %v730
    %v854 = vmul.f32 %v669, %v730
    %v855 = vmul.f32 %v672, %v730
    %v856 = vmul.f32 %v675, %v730
    %v857 = vmul.f32 %v678, %v730
    %v858 = vmul.f32 %v681, %v730
    %v859 = vmul.f32 %v684, %v730
    %v860 = vmul.f32 %v687, %v730
    %v861 = vmul.f32 %v690, %v730
    %v862 = vmul.f32 %v693, %v730
    %v863 = vmul.f32 %v696, %v730
    %v864 = vmul.f32 %v699, %v730
    %v865 = vmul.f32 %v702, %v730
    %v866 = vmul.f32 %v705, %v730
    %v867 = vmul.f32 %v708, %v730
    %v868 = vmul.f32 %v711, %v730
    %v869 = vmul.f32 %v714, %v730
    %v870 = vmul.f32 %v717, %v730
    %v871 = vmul.f32 %v720, %v730
    %v872 = vmul.f32 %v723, %v730
    %v873 = vmul.f32 %v726, %v730
    %v874 = vmul.f32 %v729, %v730
    %v876 = vlaneseq
    %v877 = vshrl.u32 %v876, 7
    %v878 = vsub.s32 0, %v877
    %v879 = vrot.slane %v270, %v878
    %v1025 = vlaneseq
    %v1026 = vand.u32 %v1025, 127
    %v1027 = vlaneseq
    %v1028 = vshrl.u32 %v1027, 7
    %v1029 = vsub.s32 %v1026, %v1028
    %v1030 = vrot.slane %v731, %v1029
    %v1031 = vadd.s32 %v1026, 4294967288
    %v1032 = vlaneseq
    %v1033 = vshrl.u32 %v1032, 7
    %v1034 = vsub.s32 %v1031, %v1033
    %v1035 = vrot.slane %v732, %v1034
    %vm1036 = vcmask 130112
    %v1037 = vsel %vm1036, %v1035, %v1030
    %v1038 = vadd.s32 %v1026, 4294967280
    %v1039 = vlaneseq
    %v1040 = vshrl.u32 %v1039, 7
    %v1041 = vsub.s32 %v1038, %v1040
    %v1042 = vrot.slane %v733, %v1041
    %vm1043 = vcmask 195712
    %v1044 = vsel %vm1043, %v1042, %v1037
    %v1045 = vadd.s32 %v1026, 4294967272
    %v1046 = vlaneseq
    %v1047 = vshrl.u32 %v1046, 7
    %v1048 = vsub.s32 %v1045, %v1047
    %v1049 = vrot.slane %v734, %v1048
    %vm1050 = vcmask 261312
    %v1051 = vsel %vm1050, %v1049, %v1044
    %v1052 = vadd.s32 %v1026, 4294967264
    %v1053 = vlaneseq
    %v1054 = vshrl.u32 %v1053, 7
    %v1055 = vsub.s32 %v1052, %v1054
    %v1056 = vrot.slane %v735, %v1055
    %vm1057 = vcmask 326912
    %v1058 = vsel %vm1057, %v1056, %v1051
    %v1059 = vadd.s32 %v1026, 4294967256
    %v1060 = vlaneseq
    %v1061 = vshrl.u32 %v1060, 7
    %v1062 = vsub.s32 %v1059, %v1061
    %v1063 = vrot.slane %v736, %v1062
    %vm1064 = vcmask 392512
    %v1065 = vsel %vm1064, %v1063, %v1058
    %v1066 = vadd.s32 %v1026, 4294967248
    %v1067 = vlaneseq
    %v1068 = vshrl.u32 %v1067, 7
    %v1069 = vsub.s32 %v1066, %v1068
    %v1070 = vrot.slane %v737, %v1069
    %vm1071 = vcmask 458112
    %v1072 = vsel %vm1071, %v1070, %v1065
    %v1073 = vadd.s32 %v1026, 4294967240
    %v1074 = vlaneseq
    %v1075 = vshrl.u32 %v1074, 7
    %v1076 = vsub.s32 %v1073, %v1075
    %v1077 = vrot.slane %v738, %v1076
    %vm1078 = vcmask 523712
    %v1079 = vsel %vm1078, %v1077, %v1072
    %v1080 = vadd.s32 %v1026, 4294967232
    %v1081 = vlaneseq
    %v1082 = vshrl.u32 %v1081, 7
    %v1083 = vsub.s32 %v1080, %v1082
    %v1084 = vrot.slane %v739, %v1083
    %vm1085 = vcmask 589312
    %v1086 = vsel %vm1085, %v1084, %v1079
    %v1087 = vadd.s32 %v1026, 4294967224
    %v1088 = vlaneseq
    %v1089 = vshrl.u32 %v1088, 7
    %v1090 = vsub.s32 %v1087, %v1089
    %v1091 = vrot.slane %v740, %v1090
    %vm1092 = vcmask 654912
    %v1093 = vsel %vm1092, %v1091, %v1086
    %v1094 = vadd.s32 %v1026, 4294967216
    %v1095 = vlaneseq
    %v1096 = vshrl.u32 %v1095, 7
    %v1097 = vsub.s32 %v1094, %v1096
    %v1098 = vrot.slane %v741, %v1097
    %vm1099 = vcmask 720512
    %v1100 = vsel %vm1099, %v1098, %v1093
    %v1101 = vadd.s32 %v1026, 4294967208
    %v1102 = vlaneseq
    %v1103 = vshrl.u32 %v1102, 7
    %v1104 = vsub.s32 %v1101, %v1103
    %v1105 = vrot.slane %v742, %v1104
    %vm1106 = vcmask 786112
    %v1107 = vsel %vm1106, %v1105, %v1100
    %v1108 = vadd.s32 %v1026, 4294967200
    %v1109 = vlaneseq
    %v1110 = vshrl.u32 %v1109, 7
    %v1111 = vsub.s32 %v1108, %v1110
    %v1112 = vrot.slane %v743, %v1111
    %vm1113 = vcmask 851712
    %v1114 = vsel %vm1113, %v1112, %v1107
    %v1115 = vadd.s32 %v1026, 4294967192
    %v1116 = vlaneseq
    %v1117 = vshrl.u32 %v1116, 7
    %v1118 = vsub.s32 %v1115, %v1117
    %v1119 = vrot.slane %v744, %v1118
    %vm1120 = vcmask 917312
    %v1121 = vsel %vm1120, %v1119, %v1114
    %v1122 = vadd.s32 %v1026, 4294967184
    %v1123 = vlaneseq
    %v1124 = vshrl.u32 %v1123, 7
    %v1125 = vsub.s32 %v1122, %v1124
    %v1126 = vrot.slane %v745, %v1125
    %vm1127 = vcmask 982912
    %v1128 = vsel %vm1127, %v1126, %v1121
    %v1129 = vadd.s32 %v1026, 4294967176
    %v1130 = vlaneseq
    %v1131 = vshrl.u32 %v1130, 7
    %v1132 = vsub.s32 %v1129, %v1131
    %v1133 = vrot.slane %v746, %v1132
    %vm1134 = vcmask 1048512
    %v1135 = vsel %vm1134, %v1133, %v1128
    %v1136 = vlaneseq
    %v1137 = vshrl.u32 %v1136, 7
    %v1138 = vsub.s32 %v1026, %v1137
    %v1139 = vrot.slane %v747, %v1138
    %v1140 = vlaneseq
    %v1141 = vshrl.u32 %v1140, 7
    %v1142 = vsub.s32 %v1031, %v1141
    %v1143 = vrot.slane %v748, %v1142
    %v1144 = vsel %vm1036, %v1143, %v1139
    %v1145 = vlaneseq
    %v1146 = vshrl.u32 %v1145, 7
    %v1147 = vsub.s32 %v1038, %v1146
    %v1148 = vrot.slane %v749, %v1147
    %v1149 = vsel %vm1043, %v1148, %v1144
    %v1150 = vlaneseq
    %v1151 = vshrl.u32 %v1150, 7
    %v1152 = vsub.s32 %v1045, %v1151
    %v1153 = vrot.slane %v750, %v1152
    %v1154 = vsel %vm1050, %v1153, %v1149
    %v1155 = vlaneseq
    %v1156 = vshrl.u32 %v1155, 7
    %v1157 = vsub.s32 %v1052, %v1156
    %v1158 = vrot.slane %v751, %v1157
    %v1159 = vsel %vm1057, %v1158, %v1154
    %v1160 = vlaneseq
    %v1161 = vshrl.u32 %v1160, 7
    %v1162 = vsub.s32 %v1059, %v1161
    %v1163 = vrot.slane %v752, %v1162
    %v1164 = vsel %vm1064, %v1163, %v1159
    %v1165 = vlaneseq
    %v1166 = vshrl.u32 %v1165, 7
    %v1167 = vsub.s32 %v1066, %v1166
    %v1168 = vrot.slane %v753, %v1167
    %v1169 = vsel %vm1071, %v1168, %v1164
    %v1170 = vlaneseq
    %v1171 = vshrl.u32 %v1170, 7
    %v1172 = vsub.s32 %v1073, %v1171
    %v1173 = vrot.slane %v754, %v1172
    %v1174 = vsel %vm1078, %v1173, %v1169
    %v1175 = vlaneseq
    %v1176 = vshrl.u32 %v1175, 7
    %v1177 = vsub.s32 %v1080, %v1176
    %v1178 = vrot.slane %v755, %v1177
    %v1179 = vsel %vm1085, %v1178, %v1174
    %v1180 = vlaneseq
    %v1181 = vshrl.u32 %v1180, 7
    %v1182 = vsub.s32 %v1087, %v1181
    %v1183 = vrot.slane %v756, %v1182
    %v1184 = vsel %vm1092, %v1183, %v1179
    %v1185 = vlaneseq
    %v1186 = vshrl.u32 %v1185, 7
    %v1187 = vsub.s32 %v1094, %v1186
    %v1188 = vrot.slane %v757, %v1187
    %v1189 = vsel %vm1099, %v1188, %v1184
    %v1190 = vlaneseq
    %v1191 = vshrl.u32 %v1190, 7
    %v1192 = vsub.s32 %v1101, %v1191
    %v1193 = vrot.slane %v758, %v1192
    %v1194 = vsel %vm1106, %v1193, %v1189
    %v1195 = vlaneseq
    %v1196 = vshrl.u32 %v1195, 7
    %v1197 = vsub.s32 %v1108, %v1196
    %v1198 = vrot.slane %v759, %v1197
    %v1199 = vsel %vm1113, %v1198, %v1194
    %v1200 = vlaneseq
    %v1201 = vshrl.u32 %v1200, 7
    %v1202 = vsub.s32 %v1115, %v1201
    %v1203 = vrot.slane %v760, %v1202
    %v1204 = vsel %vm1120, %v1203, %v1199
    %v1205 = vlaneseq
    %v1206 = vshrl.u32 %v1205, 7
    %v1207 = vsub.s32 %v1122, %v1206
    %v1208 = vrot.slane %v761, %v1207
    %v1209 = vsel %vm1127, %v1208, %v1204
    %v1210 = vlaneseq
    %v1211 = vshrl.u32 %v1210, 7
    %v1212 = vsub.s32 %v1129, %v1211
    %v1213 = vrot.slane %v762, %v1212
    %v1214 = vsel %vm1134, %v1213, %v1209
    %v1215 = vlaneseq
    %v1216 = vshrl.u32 %v1215, 7
    %v1217 = vsub.s32 %v1026, %v1216
    %v1218 = vrot.slane %v763, %v1217
    %v1219 = vlaneseq
    %v1220 = vshrl.u32 %v1219, 7
    %v1221 = vsub.s32 %v1031, %v1220
    %v1222 = vrot.slane %v764, %v1221
    %v1223 = vsel %vm1036, %v1222, %v1218
    %v1224 = vlaneseq
    %v1225 = vshrl.u32 %v1224, 7
    %v1226 = vsub.s32 %v1038, %v1225
    %v1227 = vrot.slane %v765, %v1226
    %v1228 = vsel %vm1043, %v1227, %v1223
    %v1229 = vlaneseq
    %v1230 = vshrl.u32 %v1229, 7
    %v1231 = vsub.s32 %v1045, %v1230
    %v1232 = vrot.slane %v766, %v1231
    %v1233 = vsel %vm1050, %v1232, %v1228
    %v1234 = vlaneseq
    %v1235 = vshrl.u32 %v1234, 7
    %v1236 = vsub.s32 %v1052, %v1235
    %v1237 = vrot.slane %v767, %v1236
    %v1238 = vsel %vm1057, %v1237, %v1233
    %v1239 = vlaneseq
    %v1240 = vshrl.u32 %v1239, 7
    %v1241 = vsub.s32 %v1059, %v1240
    %v1242 = vrot.slane %v768, %v1241
    %v1243 = vsel %vm1064, %v1242, %v1238
    %v1244 = vlaneseq
    %v1245 = vshrl.u32 %v1244, 7
    %v1246 = vsub.s32 %v1066, %v1245
    %v1247 = vrot.slane %v769, %v1246
    %v1248 = vsel %vm1071, %v1247, %v1243
    %v1249 = vlaneseq
    %v1250 = vshrl.u32 %v1249, 7
    %v1251 = vsub.s32 %v1073, %v1250
    %v1252 = vrot.slane %v770, %v1251
    %v1253 = vsel %vm1078, %v1252, %v1248
    %v1254 = vlaneseq
    %v1255 = vshrl.u32 %v1254, 7
    %v1256 = vsub.s32 %v1080, %v1255
    %v1257 = vrot.slane %v771, %v1256
    %v1258 = vsel %vm1085, %v1257, %v1253
    %v1259 = vlaneseq
    %v1260 = vshrl.u32 %v1259, 7
    %v1261 = vsub.s32 %v1087, %v1260
    %v1262 = vrot.slane %v772, %v1261
    %v1263 = vsel %vm1092, %v1262, %v1258
    %v1264 = vlaneseq
    %v1265 = vshrl.u32 %v1264, 7
    %v1266 = vsub.s32 %v1094, %v1265
    %v1267 = vrot.slane %v773, %v1266
    %v1268 = vsel %vm1099, %v1267, %v1263
    %v1269 = vlaneseq
    %v1270 = vshrl.u32 %v1269, 7
    %v1271 = vsub.s32 %v1101, %v1270
    %v1272 = vrot.slane %v774, %v1271
    %v1273 = vsel %vm1106, %v1272, %v1268
    %v1274 = vlaneseq
    %v1275 = vshrl.u32 %v1274, 7
    %v1276 = vsub.s32 %v1108, %v1275
    %v1277 = vrot.slane %v775, %v1276
    %v1278 = vsel %vm1113, %v1277, %v1273
    %v1279 = vlaneseq
    %v1280 = vshrl.u32 %v1279, 7
    %v1281 = vsub.s32 %v1115, %v1280
    %v1282 = vrot.slane %v776, %v1281
    %v1283 = vsel %vm1120, %v1282, %v1278
    %v1284 = vlaneseq
    %v1285 = vshrl.u32 %v1284, 7
    %v1286 = vsub.s32 %v1122, %v1285
    %v1287 = vrot.slane %v777, %v1286
    %v1288 = vsel %vm1127, %v1287, %v1283
    %v1289 = vlaneseq
    %v1290 = vshrl.u32 %v1289, 7
    %v1291 = vsub.s32 %v1129, %v1290
    %v1292 = vrot.slane %v778, %v1291
    %v1293 = vsel %vm1134, %v1292, %v1288
    %v1294 = vlaneseq
    %v1295 = vshrl.u32 %v1294, 7
    %v1296 = vsub.s32 %v1026, %v1295
    %v1297 = vrot.slane %v779, %v1296
    %v1298 = vlaneseq
    %v1299 = vshrl.u32 %v1298, 7
    %v1300 = vsub.s32 %v1031, %v1299
    %v1301 = vrot.slane %v780, %v1300
    %v1302 = vsel %vm1036, %v1301, %v1297
    %v1303 = vlaneseq
    %v1304 = vshrl.u32 %v1303, 7
    %v1305 = vsub.s32 %v1038, %v1304
    %v1306 = vrot.slane %v781, %v1305
    %v1307 = vsel %vm1043, %v1306, %v1302
    %v1308 = vlaneseq
    %v1309 = vshrl.u32 %v1308, 7
    %v1310 = vsub.s32 %v1045, %v1309
    %v1311 = vrot.slane %v782, %v1310
    %v1312 = vsel %vm1050, %v1311, %v1307
    %v1313 = vlaneseq
    %v1314 = vshrl.u32 %v1313, 7
    %v1315 = vsub.s32 %v1052, %v1314
    %v1316 = vrot.slane %v783, %v1315
    %v1317 = vsel %vm1057, %v1316, %v1312
    %v1318 = vlaneseq
    %v1319 = vshrl.u32 %v1318, 7
    %v1320 = vsub.s32 %v1059, %v1319
    %v1321 = vrot.slane %v784, %v1320
    %v1322 = vsel %vm1064, %v1321, %v1317
    %v1323 = vlaneseq
    %v1324 = vshrl.u32 %v1323, 7
    %v1325 = vsub.s32 %v1066, %v1324
    %v1326 = vrot.slane %v785, %v1325
    %v1327 = vsel %vm1071, %v1326, %v1322
    %v1328 = vlaneseq
    %v1329 = vshrl.u32 %v1328, 7
    %v1330 = vsub.s32 %v1073, %v1329
    %v1331 = vrot.slane %v786, %v1330
    %v1332 = vsel %vm1078, %v1331, %v1327
    %v1333 = vlaneseq
    %v1334 = vshrl.u32 %v1333, 7
    %v1335 = vsub.s32 %v1080, %v1334
    %v1336 = vrot.slane %v787, %v1335
    %v1337 = vsel %vm1085, %v1336, %v1332
    %v1338 = vlaneseq
    %v1339 = vshrl.u32 %v1338, 7
    %v1340 = vsub.s32 %v1087, %v1339
    %v1341 = vrot.slane %v788, %v1340
    %v1342 = vsel %vm1092, %v1341, %v1337
    %v1343 = vlaneseq
    %v1344 = vshrl.u32 %v1343, 7
    %v1345 = vsub.s32 %v1094, %v1344
    %v1346 = vrot.slane %v789, %v1345
    %v1347 = vsel %vm1099, %v1346, %v1342
    %v1348 = vlaneseq
    %v1349 = vshrl.u32 %v1348, 7
    %v1350 = vsub.s32 %v1101, %v1349
    %v1351 = vrot.slane %v790, %v1350
    %v1352 = vsel %vm1106, %v1351, %v1347
    %v1353 = vlaneseq
    %v1354 = vshrl.u32 %v1353, 7
    %v1355 = vsub.s32 %v1108, %v1354
    %v1356 = vrot.slane %v791, %v1355
    %v1357 = vsel %vm1113, %v1356, %v1352
    %v1358 = vlaneseq
    %v1359 = vshrl.u32 %v1358, 7
    %v1360 = vsub.s32 %v1115, %v1359
    %v1361 = vrot.slane %v792, %v1360
    %v1362 = vsel %vm1120, %v1361, %v1357
    %v1363 = vlaneseq
    %v1364 = vshrl.u32 %v1363, 7
    %v1365 = vsub.s32 %v1122, %v1364
    %v1366 = vrot.slane %v793, %v1365
    %v1367 = vsel %vm1127, %v1366, %v1362
    %v1368 = vlaneseq
    %v1369 = vshrl.u32 %v1368, 7
    %v1370 = vsub.s32 %v1129, %v1369
    %v1371 = vrot.slane %v794, %v1370
    %v1372 = vsel %vm1134, %v1371, %v1367
    %v1373 = vlaneseq
    %v1374 = vshrl.u32 %v1373, 7
    %v1375 = vsub.s32 %v1026, %v1374
    %v1376 = vrot.slane %v795, %v1375
    %v1377 = vlaneseq
    %v1378 = vshrl.u32 %v1377, 7
    %v1379 = vsub.s32 %v1031, %v1378
    %v1380 = vrot.slane %v796, %v1379
    %v1381 = vsel %vm1036, %v1380, %v1376
    %v1382 = vlaneseq
    %v1383 = vshrl.u32 %v1382, 7
    %v1384 = vsub.s32 %v1038, %v1383
    %v1385 = vrot.slane %v797, %v1384
    %v1386 = vsel %vm1043, %v1385, %v1381
    %v1387 = vlaneseq
    %v1388 = vshrl.u32 %v1387, 7
    %v1389 = vsub.s32 %v1045, %v1388
    %v1390 = vrot.slane %v798, %v1389
    %v1391 = vsel %vm1050, %v1390, %v1386
    %v1392 = vlaneseq
    %v1393 = vshrl.u32 %v1392, 7
    %v1394 = vsub.s32 %v1052, %v1393
    %v1395 = vrot.slane %v799, %v1394
    %v1396 = vsel %vm1057, %v1395, %v1391
    %v1397 = vlaneseq
    %v1398 = vshrl.u32 %v1397, 7
    %v1399 = vsub.s32 %v1059, %v1398
    %v1400 = vrot.slane %v800, %v1399
    %v1401 = vsel %vm1064, %v1400, %v1396
    %v1402 = vlaneseq
    %v1403 = vshrl.u32 %v1402, 7
    %v1404 = vsub.s32 %v1066, %v1403
    %v1405 = vrot.slane %v801, %v1404
    %v1406 = vsel %vm1071, %v1405, %v1401
    %v1407 = vlaneseq
    %v1408 = vshrl.u32 %v1407, 7
    %v1409 = vsub.s32 %v1073, %v1408
    %v1410 = vrot.slane %v802, %v1409
    %v1411 = vsel %vm1078, %v1410, %v1406
    %v1412 = vlaneseq
    %v1413 = vshrl.u32 %v1412, 7
    %v1414 = vsub.s32 %v1026, %v1413
    %v1415 = vrot.slane %v803, %v1414
    %v1416 = vlaneseq
    %v1417 = vshrl.u32 %v1416, 7
    %v1418 = vsub.s32 %v1031, %v1417
    %v1419 = vrot.slane %v804, %v1418
    %v1420 = vsel %vm1036, %v1419, %v1415
    %v1421 = vlaneseq
    %v1422 = vshrl.u32 %v1421, 7
    %v1423 = vsub.s32 %v1038, %v1422
    %v1424 = vrot.slane %v805, %v1423
    %v1425 = vsel %vm1043, %v1424, %v1420
    %v1426 = vlaneseq
    %v1427 = vshrl.u32 %v1426, 7
    %v1428 = vsub.s32 %v1045, %v1427
    %v1429 = vrot.slane %v806, %v1428
    %v1430 = vsel %vm1050, %v1429, %v1425
    %v1431 = vlaneseq
    %v1432 = vshrl.u32 %v1431, 7
    %v1433 = vsub.s32 %v1052, %v1432
    %v1434 = vrot.slane %v807, %v1433
    %v1435 = vsel %vm1057, %v1434, %v1430
    %v1436 = vlaneseq
    %v1437 = vshrl.u32 %v1436, 7
    %v1438 = vsub.s32 %v1059, %v1437
    %v1439 = vrot.slane %v808, %v1438
    %v1440 = vsel %vm1064, %v1439, %v1435
    %v1441 = vlaneseq
    %v1442 = vshrl.u32 %v1441, 7
    %v1443 = vsub.s32 %v1066, %v1442
    %v1444 = vrot.slane %v809, %v1443
    %v1445 = vsel %vm1071, %v1444, %v1440
    %v1446 = vlaneseq
    %v1447 = vshrl.u32 %v1446, 7
    %v1448 = vsub.s32 %v1073, %v1447
    %v1449 = vrot.slane %v810, %v1448
    %v1450 = vsel %vm1078, %v1449, %v1445
    %v1451 = vlaneseq
    %v1452 = vshrl.u32 %v1451, 7
    %v1453 = vsub.s32 %v1080, %v1452
    %v1454 = vrot.slane %v811, %v1453
    %v1455 = vsel %vm1085, %v1454, %v1450
    %v1456 = vlaneseq
    %v1457 = vshrl.u32 %v1456, 7
    %v1458 = vsub.s32 %v1087, %v1457
    %v1459 = vrot.slane %v812, %v1458
    %v1460 = vsel %vm1092, %v1459, %v1455
    %v1461 = vlaneseq
    %v1462 = vshrl.u32 %v1461, 7
    %v1463 = vsub.s32 %v1094, %v1462
    %v1464 = vrot.slane %v813, %v1463
    %v1465 = vsel %vm1099, %v1464, %v1460
    %v1466 = vlaneseq
    %v1467 = vshrl.u32 %v1466, 7
    %v1468 = vsub.s32 %v1101, %v1467
    %v1469 = vrot.slane %v814, %v1468
    %v1470 = vsel %vm1106, %v1469, %v1465
    %v1471 = vlaneseq
    %v1472 = vshrl.u32 %v1471, 7
    %v1473 = vsub.s32 %v1108, %v1472
    %v1474 = vrot.slane %v815, %v1473
    %v1475 = vsel %vm1113, %v1474, %v1470
    %v1476 = vlaneseq
    %v1477 = vshrl.u32 %v1476, 7
    %v1478 = vsub.s32 %v1115, %v1477
    %v1479 = vrot.slane %v816, %v1478
    %v1480 = vsel %vm1120, %v1479, %v1475
    %v1481 = vlaneseq
    %v1482 = vshrl.u32 %v1481, 7
    %v1483 = vsub.s32 %v1122, %v1482
    %v1484 = vrot.slane %v817, %v1483
    %v1485 = vsel %vm1127, %v1484, %v1480
    %v1486 = vlaneseq
    %v1487 = vshrl.u32 %v1486, 7
    %v1488 = vsub.s32 %v1129, %v1487
    %v1489 = vrot.slane %v818, %v1488
    %v1490 = vsel %vm1134, %v1489, %v1485
    %v1491 = vlaneseq
    %v1492 = vshrl.u32 %v1491, 7
    %v1493 = vsub.s32 %v1026, %v1492
    %v1494 = vrot.slane %v819, %v1493
    %v1495 = vlaneseq
    %v1496 = vshrl.u32 %v1495, 7
    %v1497 = vsub.s32 %v1031, %v1496
    %v1498 = vrot.slane %v820, %v1497
    %v1499 = vsel %vm1036, %v1498, %v1494
    %v1500 = vlaneseq
    %v1501 = vshrl.u32 %v1500, 7
    %v1502 = vsub.s32 %v1038, %v1501
    %v1503 = vrot.slane %v821, %v1502
    %v1504 = vsel %vm1043, %v1503, %v1499
    %v1505 = vlaneseq
    %v1506 = vshrl.u32 %v1505, 7
    %v1507 = vsub.s32 %v1045, %v1506
    %v1508 = vrot.slane %v822, %v1507
    %v1509 = vsel %vm1050, %v1508, %v1504
    %v1510 = vlaneseq
    %v1511 = vshrl.u32 %v1510, 7
    %v1512 = vsub.s32 %v1052, %v1511
    %v1513 = vrot.slane %v823, %v1512
    %v1514 = vsel %vm1057, %v1513, %v1509
    %v1515 = vlaneseq
    %v1516 = vshrl.u32 %v1515, 7
    %v1517 = vsub.s32 %v1059, %v1516
    %v1518 = vrot.slane %v824, %v1517
    %v1519 = vsel %vm1064, %v1518, %v1514
    %v1520 = vlaneseq
    %v1521 = vshrl.u32 %v1520, 7
    %v1522 = vsub.s32 %v1066, %v1521
    %v1523 = vrot.slane %v825, %v1522
    %v1524 = vsel %vm1071, %v1523, %v1519
    %v1525 = vlaneseq
    %v1526 = vshrl.u32 %v1525, 7
    %v1527 = vsub.s32 %v1073, %v1526
    %v1528 = vrot.slane %v826, %v1527
    %v1529 = vsel %vm1078, %v1528, %v1524
    %v1530 = vlaneseq
    %v1531 = vshrl.u32 %v1530, 7
    %v1532 = vsub.s32 %v1080, %v1531
    %v1533 = vrot.slane %v827, %v1532
    %v1534 = vsel %vm1085, %v1533, %v1529
    %v1535 = vlaneseq
    %v1536 = vshrl.u32 %v1535, 7
    %v1537 = vsub.s32 %v1087, %v1536
    %v1538 = vrot.slane %v828, %v1537
    %v1539 = vsel %vm1092, %v1538, %v1534
    %v1540 = vlaneseq
    %v1541 = vshrl.u32 %v1540, 7
    %v1542 = vsub.s32 %v1094, %v1541
    %v1543 = vrot.slane %v829, %v1542
    %v1544 = vsel %vm1099, %v1543, %v1539
    %v1545 = vlaneseq
    %v1546 = vshrl.u32 %v1545, 7
    %v1547 = vsub.s32 %v1101, %v1546
    %v1548 = vrot.slane %v830, %v1547
    %v1549 = vsel %vm1106, %v1548, %v1544
    %v1550 = vlaneseq
    %v1551 = vshrl.u32 %v1550, 7
    %v1552 = vsub.s32 %v1108, %v1551
    %v1553 = vrot.slane %v831, %v1552
    %v1554 = vsel %vm1113, %v1553, %v1549
    %v1555 = vlaneseq
    %v1556 = vshrl.u32 %v1555, 7
    %v1557 = vsub.s32 %v1115, %v1556
    %v1558 = vrot.slane %v832, %v1557
    %v1559 = vsel %vm1120, %v1558, %v1554
    %v1560 = vlaneseq
    %v1561 = vshrl.u32 %v1560, 7
    %v1562 = vsub.s32 %v1122, %v1561
    %v1563 = vrot.slane %v833, %v1562
    %v1564 = vsel %vm1127, %v1563, %v1559
    %v1565 = vlaneseq
    %v1566 = vshrl.u32 %v1565, 7
    %v1567 = vsub.s32 %v1129, %v1566
    %v1568 = vrot.slane %v834, %v1567
    %v1569 = vsel %vm1134, %v1568, %v1564
    %v1570 = vlaneseq
    %v1571 = vshrl.u32 %v1570, 7
    %v1572 = vsub.s32 %v1026, %v1571
    %v1573 = vrot.slane %v835, %v1572
    %v1574 = vlaneseq
    %v1575 = vshrl.u32 %v1574, 7
    %v1576 = vsub.s32 %v1031, %v1575
    %v1577 = vrot.slane %v836, %v1576
    %v1578 = vsel %vm1036, %v1577, %v1573
    %v1579 = vlaneseq
    %v1580 = vshrl.u32 %v1579, 7
    %v1581 = vsub.s32 %v1038, %v1580
    %v1582 = vrot.slane %v837, %v1581
    %v1583 = vsel %vm1043, %v1582, %v1578
    %v1584 = vlaneseq
    %v1585 = vshrl.u32 %v1584, 7
    %v1586 = vsub.s32 %v1045, %v1585
    %v1587 = vrot.slane %v838, %v1586
    %v1588 = vsel %vm1050, %v1587, %v1583
    %v1589 = vlaneseq
    %v1590 = vshrl.u32 %v1589, 7
    %v1591 = vsub.s32 %v1052, %v1590
    %v1592 = vrot.slane %v839, %v1591
    %v1593 = vsel %vm1057, %v1592, %v1588
    %v1594 = vlaneseq
    %v1595 = vshrl.u32 %v1594, 7
    %v1596 = vsub.s32 %v1059, %v1595
    %v1597 = vrot.slane %v840, %v1596
    %v1598 = vsel %vm1064, %v1597, %v1593
    %v1599 = vlaneseq
    %v1600 = vshrl.u32 %v1599, 7
    %v1601 = vsub.s32 %v1066, %v1600
    %v1602 = vrot.slane %v841, %v1601
    %v1603 = vsel %vm1071, %v1602, %v1598
    %v1604 = vlaneseq
    %v1605 = vshrl.u32 %v1604, 7
    %v1606 = vsub.s32 %v1073, %v1605
    %v1607 = vrot.slane %v842, %v1606
    %v1608 = vsel %vm1078, %v1607, %v1603
    %v1609 = vlaneseq
    %v1610 = vshrl.u32 %v1609, 7
    %v1611 = vsub.s32 %v1080, %v1610
    %v1612 = vrot.slane %v843, %v1611
    %v1613 = vsel %vm1085, %v1612, %v1608
    %v1614 = vlaneseq
    %v1615 = vshrl.u32 %v1614, 7
    %v1616 = vsub.s32 %v1087, %v1615
    %v1617 = vrot.slane %v844, %v1616
    %v1618 = vsel %vm1092, %v1617, %v1613
    %v1619 = vlaneseq
    %v1620 = vshrl.u32 %v1619, 7
    %v1621 = vsub.s32 %v1094, %v1620
    %v1622 = vrot.slane %v845, %v1621
    %v1623 = vsel %vm1099, %v1622, %v1618
    %v1624 = vlaneseq
    %v1625 = vshrl.u32 %v1624, 7
    %v1626 = vsub.s32 %v1101, %v1625
    %v1627 = vrot.slane %v846, %v1626
    %v1628 = vsel %vm1106, %v1627, %v1623
    %v1629 = vlaneseq
    %v1630 = vshrl.u32 %v1629, 7
    %v1631 = vsub.s32 %v1108, %v1630
    %v1632 = vrot.slane %v847, %v1631
    %v1633 = vsel %vm1113, %v1632, %v1628
    %v1634 = vlaneseq
    %v1635 = vshrl.u32 %v1634, 7
    %v1636 = vsub.s32 %v1115, %v1635
    %v1637 = vrot.slane %v848, %v1636
    %v1638 = vsel %vm1120, %v1637, %v1633
    %v1639 = vlaneseq
    %v1640 = vshrl.u32 %v1639, 7
    %v1641 = vsub.s32 %v1122, %v1640
    %v1642 = vrot.slane %v849, %v1641
    %v1643 = vsel %vm1127, %v1642, %v1638
    %v1644 = vlaneseq
    %v1645 = vshrl.u32 %v1644, 7
    %v1646 = vsub.s32 %v1129, %v1645
    %v1647 = vrot.slane %v850, %v1646
    %v1648 = vsel %vm1134, %v1647, %v1643
    %v1649 = vlaneseq
    %v1650 = vshrl.u32 %v1649, 7
    %v1651 = vsub.s32 %v1026, %v1650
    %v1652 = vrot.slane %v851, %v1651
    %v1653 = vlaneseq
    %v1654 = vshrl.u32 %v1653, 7
    %v1655 = vsub.s32 %v1031, %v1654
    %v1656 = vrot.slane %v852, %v1655
    %v1657 = vsel %vm1036, %v1656, %v1652
    %v1658 = vlaneseq
    %v1659 = vshrl.u32 %v1658, 7
    %v1660 = vsub.s32 %v1038, %v1659
    %v1661 = vrot.slane %v853, %v1660
    %v1662 = vsel %vm1043, %v1661, %v1657
    %v1663 = vlaneseq
    %v1664 = vshrl.u32 %v1663, 7
    %v1665 = vsub.s32 %v1045, %v1664
    %v1666 = vrot.slane %v854, %v1665
    %v1667 = vsel %vm1050, %v1666, %v1662
    %v1668 = vlaneseq
    %v1669 = vshrl.u32 %v1668, 7
    %v1670 = vsub.s32 %v1052, %v1669
    %v1671 = vrot.slane %v855, %v1670
    %v1672 = vsel %vm1057, %v1671, %v1667
    %v1673 = vlaneseq
    %v1674 = vshrl.u32 %v1673, 7
    %v1675 = vsub.s32 %v1059, %v1674
    %v1676 = vrot.slane %v856, %v1675
    %v1677 = vsel %vm1064, %v1676, %v1672
    %v1678 = vlaneseq
    %v1679 = vshrl.u32 %v1678, 7
    %v1680 = vsub.s32 %v1066, %v1679
    %v1681 = vrot.slane %v857, %v1680
    %v1682 = vsel %vm1071, %v1681, %v1677
    %v1683 = vlaneseq
    %v1684 = vshrl.u32 %v1683, 7
    %v1685 = vsub.s32 %v1073, %v1684
    %v1686 = vrot.slane %v858, %v1685
    %v1687 = vsel %vm1078, %v1686, %v1682
    %v1688 = vlaneseq
    %v1689 = vshrl.u32 %v1688, 7
    %v1690 = vsub.s32 %v1080, %v1689
    %v1691 = vrot.slane %v859, %v1690
    %v1692 = vsel %vm1085, %v1691, %v1687
    %v1693 = vlaneseq
    %v1694 = vshrl.u32 %v1693, 7
    %v1695 = vsub.s32 %v1087, %v1694
    %v1696 = vrot.slane %v860, %v1695
    %v1697 = vsel %vm1092, %v1696, %v1692
    %v1698 = vlaneseq
    %v1699 = vshrl.u32 %v1698, 7
    %v1700 = vsub.s32 %v1094, %v1699
    %v1701 = vrot.slane %v861, %v1700
    %v1702 = vsel %vm1099, %v1701, %v1697
    %v1703 = vlaneseq
    %v1704 = vshrl.u32 %v1703, 7
    %v1705 = vsub.s32 %v1101, %v1704
    %v1706 = vrot.slane %v862, %v1705
    %v1707 = vsel %vm1106, %v1706, %v1702
    %v1708 = vlaneseq
    %v1709 = vshrl.u32 %v1708, 7
    %v1710 = vsub.s32 %v1108, %v1709
    %v1711 = vrot.slane %v863, %v1710
    %v1712 = vsel %vm1113, %v1711, %v1707
    %v1713 = vlaneseq
    %v1714 = vshrl.u32 %v1713, 7
    %v1715 = vsub.s32 %v1115, %v1714
    %v1716 = vrot.slane %v864, %v1715
    %v1717 = vsel %vm1120, %v1716, %v1712
    %v1718 = vlaneseq
    %v1719 = vshrl.u32 %v1718, 7
    %v1720 = vsub.s32 %v1122, %v1719
    %v1721 = vrot.slane %v865, %v1720
    %v1722 = vsel %vm1127, %v1721, %v1717
    %v1723 = vlaneseq
    %v1724 = vshrl.u32 %v1723, 7
    %v1725 = vsub.s32 %v1129, %v1724
    %v1726 = vrot.slane %v866, %v1725
    %v1727 = vsel %vm1134, %v1726, %v1722
    %v1728 = vlaneseq
    %v1729 = vshrl.u32 %v1728, 7
    %v1730 = vsub.s32 %v1026, %v1729
    %v1731 = vrot.slane %v867, %v1730
    %v1732 = vlaneseq
    %v1733 = vshrl.u32 %v1732, 7
    %v1734 = vsub.s32 %v1031, %v1733
    %v1735 = vrot.slane %v868, %v1734
    %v1736 = vsel %vm1036, %v1735, %v1731
    %v1737 = vlaneseq
    %v1738 = vshrl.u32 %v1737, 7
    %v1739 = vsub.s32 %v1038, %v1738
    %v1740 = vrot.slane %v869, %v1739
    %v1741 = vsel %vm1043, %v1740, %v1736
    %v1742 = vlaneseq
    %v1743 = vshrl.u32 %v1742, 7
    %v1744 = vsub.s32 %v1045, %v1743
    %v1745 = vrot.slane %v870, %v1744
    %v1746 = vsel %vm1050, %v1745, %v1741
    %v1747 = vlaneseq
    %v1748 = vshrl.u32 %v1747, 7
    %v1749 = vsub.s32 %v1052, %v1748
    %v1750 = vrot.slane %v871, %v1749
    %v1751 = vsel %vm1057, %v1750, %v1746
    %v1752 = vlaneseq
    %v1753 = vshrl.u32 %v1752, 7
    %v1754 = vsub.s32 %v1059, %v1753
    %v1755 = vrot.slane %v872, %v1754
    %v1756 = vsel %vm1064, %v1755, %v1751
    %v1757 = vlaneseq
    %v1758 = vshrl.u32 %v1757, 7
    %v1759 = vsub.s32 %v1066, %v1758
    %v1760 = vrot.slane %v873, %v1759
    %v1761 = vsel %vm1071, %v1760, %v1756
    %v1762 = vlaneseq
    %v1763 = vshrl.u32 %v1762, 7
    %v1764 = vsub.s32 %v1073, %v1763
    %v1765 = vrot.slane %v874, %v1764
    %v1766 = vsel %vm1078, %v1765, %v1761
    %vm1767 = vcmask 1041409
    %v1768 = vsel %vm1767, %v1490, %v1135
    %v1769 = vsel %vm1767, %v1569, %v1214
    %v1770 = vsel %vm1767, %v1648, %v1293
    %v1771 = vsel %vm1767, %v1727, %v1372
    %v1772 = vsel %vm1767, %v1766, %v1411
    %vm1777 = vcmask 523264
    %v1778 = vsel %vm1777, %v1772, 0
    %1780 = vmatprep.subr.mxu0 0.0
    %1781 = vmatpush1.msra.mxu0 %v213
    %1782 = vmatprep.subr.mxu0 0.0
    %1783 = vmatpush1.msra.mxu0 %v212
    %1784 = vmatprep.subr.mxu0 0.0
    %1785 = vmatpush1.msra.mxu0 %v211
    %1786 = vmatprep.subr.mxu0 0.0
    %1787 = vmatpush1.msra.mxu0 %v210
    %1788 = vmatprep.subr.mxu0 0.0
    %1789 = vmatpush1.msra.mxu0 %v209
    %1790 = vmatprep.subr.mxu0 0.0
    %1791 = vmatpush1.msra.mxu0 %v208
    %1792 = vmatprep.subr.mxu0 0.0
    %1793 = vmatpush1.msra.mxu0 %v207
    %1794 = vmatprep.subr.mxu0 0.0
    %1795 = vmatpush1.msra.mxu0 %v206
    %1796 = vmatprep.subr.mxu0 0.0
    %1797 = vmatpush1.msra.mxu0 %v205
    %1798 = vmatprep.subr.mxu0 0.0
    %1799 = vmatpush1.msra.mxu0 %v204
    %1800 = vmatprep.subr.mxu0 0.0
    %1801 = vmatpush1.msra.mxu0 %v203
    %1802 = vmatprep.subr.mxu0 0.0
    %1803 = vmatpush1.msra.mxu0 %v202
    %1804 = vmatprep.subr.mxu0 0.0
    %1805 = vmatpush1.msra.mxu0 %v201
    %1806 = vmatprep.subr.mxu0 0.0
    %1807 = vmatpush1.msra.mxu0 %v200
    %1808 = vmatprep.subr.mxu0 0.0
    %1809 = vmatpush1.msra.mxu0 %v199
    %1810 = vmatprep.subr.mxu0 0.0
    %1811 = vmatpush1.msra.mxu0 %v198
    %1812 = vmatprep.subr.mxu0 0.0
    %1813 = vmatpush2.msra.mxu0 %v229
    %1814 = vmatprep.subr.mxu0 0.0
    %1815 = vmatpush2.msra.mxu0 %v228
    %1816 = vmatprep.subr.mxu0 0.0
    %1817 = vmatpush2.msra.mxu0 %v227
    %1818 = vmatprep.subr.mxu0 0.0
    %1819 = vmatpush2.msra.mxu0 %v226
    %1820 = vmatprep.subr.mxu0 0.0
    %1821 = vmatpush2.msra.mxu0 %v225
    %1822 = vmatprep.subr.mxu0 0.0
    %1823 = vmatpush2.msra.mxu0 %v224
    %1824 = vmatprep.subr.mxu0 0.0
    %1825 = vmatpush2.msra.mxu0 %v223
    %1826 = vmatprep.subr.mxu0 0.0
    %1827 = vmatpush2.msra.mxu0 %v222
    %1828 = vmatprep.subr.mxu0 0.0
    %1829 = vmatpush2.msra.mxu0 %v221
    %1830 = vmatprep.subr.mxu0 0.0
    %1831 = vmatpush2.msra.mxu0 %v220
    %1832 = vmatprep.subr.mxu0 0.0
    %1833 = vmatpush2.msra.mxu0 %v219
    %1834 = vmatprep.subr.mxu0 0.0
    %1835 = vmatpush2.msra.mxu0 %v218
    %1836 = vmatprep.subr.mxu0 0.0
    %1837 = vmatpush2.msra.mxu0 %v217
    %1838 = vmatprep.subr.mxu0 0.0
    %1839 = vmatpush2.msra.mxu0 %v216
    %1840 = vmatprep.subr.mxu0 0.0
    %1841 = vmatpush2.msra.mxu0 %v215
    %1842 = vmatprep.subr.mxu0 0.0
    %1843 = vmatpush2.msra.mxu0 %v214
    %1844 = vmatprep.mubr.f32.mxu0 %v1769
    %1845 = vmatmul.mubr.f32.gmra.mxu0 %v1768
    %v1846 = vpop.f32.mrf.mxu0
    %v1847 = vadd.f32 %v879, %v1846
    %v1848 = vpop.f32.mrf.mxu0
    %1849 = vdwg.mxu0
    %1850 = vmatprep.subr.mxu0 0.0
    %1851 = vmatpush1.msra.mxu0 %v245
    %1852 = vmatprep.subr.mxu0 0.0
    %1853 = vmatpush1.msra.mxu0 %v244
    %1854 = vmatprep.subr.mxu0 0.0
    %1855 = vmatpush1.msra.mxu0 %v243
    %1856 = vmatprep.subr.mxu0 0.0
    %1857 = vmatpush1.msra.mxu0 %v242
    %1858 = vmatprep.subr.mxu0 0.0
    %1859 = vmatpush1.msra.mxu0 %v241
    %1860 = vmatprep.subr.mxu0 0.0
    %1861 = vmatpush1.msra.mxu0 %v240
    %1862 = vmatprep.subr.mxu0 0.0
    %1863 = vmatpush1.msra.mxu0 %v239
    %1864 = vmatprep.subr.mxu0 0.0
    %1865 = vmatpush1.msra.mxu0 %v238
    %1866 = vmatprep.subr.mxu0 0.0
    %1867 = vmatpush1.msra.mxu0 %v237
    %1868 = vmatprep.subr.mxu0 0.0
    %1869 = vmatpush1.msra.mxu0 %v236
    %1870 = vmatprep.subr.mxu0 0.0
    %1871 = vmatpush1.msra.mxu0 %v235
    %1872 = vmatprep.subr.mxu0 0.0
    %1873 = vmatpush1.msra.mxu0 %v234
    %1874 = vmatprep.subr.mxu0 0.0
    %1875 = vmatpush1.msra.mxu0 %v233
    %1876 = vmatprep.subr.mxu0 0.0
    %1877 = vmatpush1.msra.mxu0 %v232
    %1878 = vmatprep.subr.mxu0 0.0
    %1879 = vmatpush1.msra.mxu0 %v231
    %1880 = vmatprep.subr.mxu0 0.0
    %1881 = vmatpush1.msra.mxu0 %v230
    %1882 = vmatprep.subr.mxu0 0.0
    %1883 = vmatpush2.msra.mxu0 %v261
    %1884 = vmatprep.subr.mxu0 0.0
    %1885 = vmatpush2.msra.mxu0 %v260
    %1886 = vmatprep.subr.mxu0 0.0
    %1887 = vmatpush2.msra.mxu0 %v259
    %1888 = vmatprep.subr.mxu0 0.0
    %1889 = vmatpush2.msra.mxu0 %v258
    %1890 = vmatprep.subr.mxu0 0.0
    %1891 = vmatpush2.msra.mxu0 %v257
    %1892 = vmatprep.subr.mxu0 0.0
    %1893 = vmatpush2.msra.mxu0 %v256
    %1894 = vmatprep.subr.mxu0 0.0
    %1895 = vmatpush2.msra.mxu0 %v255
    %1896 = vmatprep.subr.mxu0 0.0
    %1897 = vmatpush2.msra.mxu0 %v254
    %1898 = vmatprep.subr.mxu0 0.0
    %1899 = vmatpush2.msra.mxu0 %v253
    %1900 = vmatprep.subr.mxu0 0.0
    %1901 = vmatpush2.msra.mxu0 %v252
    %1902 = vmatprep.subr.mxu0 0.0
    %1903 = vmatpush2.msra.mxu0 %v251
    %1904 = vmatprep.subr.mxu0 0.0
    %1905 = vmatpush2.msra.mxu0 %v250
    %1906 = vmatprep.subr.mxu0 0.0
    %1907 = vmatpush2.msra.mxu0 %v249
    %1908 = vmatprep.subr.mxu0 0.0
    %1909 = vmatpush2.msra.mxu0 %v248
    %1910 = vmatprep.subr.mxu0 0.0
    %1911 = vmatpush2.msra.mxu0 %v247
    %1912 = vmatprep.subr.mxu0 0.0
    %1913 = vmatpush2.msra.mxu0 %v246
    %1914 = vmatprep.mubr.f32.mxu0 %v1771
    %1915 = vmatmul.mubr.f32.gmra.mxu0 %v1770
    %v1916 = vpop.f32.mrf.mxu0
    %v1917 = vadd.f32 %v1847, %v1916
    %v1918 = vpop.f32.mrf.mxu0
    %1919 = vdwg.mxu0
    %1920 = vmatprep.subr.mxu0 0.0
    %1921 = vmatpush1.msra.mxu0 0.0
    %1922 = vmatprep.subr.mxu0 0.0
    %1923 = vmatpush1.msra.mxu0 0.0
    %1924 = vmatprep.subr.mxu0 0.0
    %1925 = vmatpush1.msra.mxu0 0.0
    %1926 = vmatprep.subr.mxu0 0.0
    %1927 = vmatpush1.msra.mxu0 0.0
    %1928 = vmatprep.subr.mxu0 0.0
    %1929 = vmatpush1.msra.mxu0 0.0
    %1930 = vmatprep.subr.mxu0 0.0
    %1931 = vmatpush1.msra.mxu0 0.0
    %1932 = vmatprep.subr.mxu0 0.0
    %1933 = vmatpush1.msra.mxu0 0.0
    %1934 = vmatprep.subr.mxu0 0.0
    %1935 = vmatpush1.msra.mxu0 0.0
    %1936 = vmatprep.subr.mxu0 0.0
    %1937 = vmatpush1.msra.mxu0 %v269
    %1938 = vmatprep.subr.mxu0 0.0
    %1939 = vmatpush1.msra.mxu0 %v268
    %1940 = vmatprep.subr.mxu0 0.0
    %1941 = vmatpush1.msra.mxu0 %v267
    %1942 = vmatprep.subr.mxu0 0.0
    %1943 = vmatpush1.msra.mxu0 %v266
    %1944 = vmatprep.subr.mxu0 0.0
    %1945 = vmatpush1.msra.mxu0 %v265
    %1946 = vmatprep.subr.mxu0 0.0
    %1947 = vmatpush1.msra.mxu0 %v264
    %1948 = vmatprep.subr.mxu0 0.0
    %1949 = vmatpush1.msra.mxu0 %v263
    %1950 = vmatprep.subr.mxu0 0.0
    %1951 = vmatpush1.msra.mxu0 %v262
    %1952 = vmatprep.subr.mxu0 0.0
    %1953 = vmatpush2.msra.mxu0 0.0
    %1954 = vmatprep.subr.mxu0 0.0
    %1955 = vmatpush2.msra.mxu0 0.0
    %1956 = vmatprep.subr.mxu0 0.0
    %1957 = vmatpush2.msra.mxu0 0.0
    %1958 = vmatprep.subr.mxu0 0.0
    %1959 = vmatpush2.msra.mxu0 0.0
    %1960 = vmatprep.subr.mxu0 0.0
    %1961 = vmatpush2.msra.mxu0 0.0
    %1962 = vmatprep.subr.mxu0 0.0
    %1963 = vmatpush2.msra.mxu0 0.0
    %1964 = vmatprep.subr.mxu0 0.0
    %1965 = vmatpush2.msra.mxu0 0.0
    %1966 = vmatprep.subr.mxu0 0.0
    %1967 = vmatpush2.msra.mxu0 0.0
    %1968 = vmatprep.subr.mxu0 0.0
    %1969 = vmatpush2.msra.mxu0 0.0
    %1970 = vmatprep.subr.mxu0 0.0
    %1971 = vmatpush2.msra.mxu0 0.0
    %1972 = vmatprep.subr.mxu0 0.0
    %1973 = vmatpush2.msra.mxu0 0.0
    %1974 = vmatprep.subr.mxu0 0.0
    %1975 = vmatpush2.msra.mxu0 0.0
    %1976 = vmatprep.subr.mxu0 0.0
    %1977 = vmatpush2.msra.mxu0 0.0
    %1978 = vmatprep.subr.mxu0 0.0
    %1979 = vmatpush2.msra.mxu0 0.0
    %1980 = vmatprep.subr.mxu0 0.0
    %1981 = vmatpush2.msra.mxu0 0.0
    %1982 = vmatprep.subr.mxu0 0.0
    %1983 = vmatpush2.msra.mxu0 0.0
    %1984 = vmatprep.mubr.f32.mxu0 0.0
    %1985 = vmatmul.mubr.f32.gmra.mxu0 %v1778
    %v1986 = vpop.f32.mrf.mxu0
    %v1987 = vadd.f32 %v1917, %v1986
    %v1988 = vpop.f32.mrf.mxu0
    %1989 = vdwg.mxu0
    %v1990 = vmax.f32 %v1987, 0.0
    %v1992 = vlaneseq
    %v1993 = vshrl.u32 %v1992, 7
    %v1994 = vsub.s32 0, %v1993
    %v1995 = vrot.slane %v296, %v1994
    %v1996 = vlaneseq
    %v1997 = vshrl.u32 %v1996, 7
    %v1998 = vsub.s32 1, %v1997
    %v1999 = vrot.slane %v296, %v1998
    %v2000 = vlaneseq
    %v2001 = vshrl.u32 %v2000, 7
    %v2002 = vsub.s32 2, %v2001
    %v2003 = vrot.slane %v296, %v2002
    %v2004 = vlaneseq
    %v2005 = vshrl.u32 %v2004, 7
    %v2006 = vsub.s32 3, %v2005
    %v2007 = vrot.slane %v296, %v2006
    %v2008 = vlaneseq
    %v2009 = vshrl.u32 %v2008, 7
    %v2010 = vsub.s32 4, %v2009
    %v2011 = vrot.slane %v296, %v2010
    %vm2017 = vcmask 293888
    %v2019 = vsel %vm2017, %v1990, 0
    %vm2021 = vcmask 1043456
    %v2023 = vsel %vm2021, %v291, 0
    %v2026 = vsel %vm2021, %v292, 0
    %v2029 = vsel %vm2021, %v293, 0
    %v2032 = vsel %vm2021, %v294, 0
    %v2035 = vsel %vm2021, %v295, 0
    %2037 = vmatprep.subr.mxu0 0.0
    %2038 = vmatpush1.msra.mxu0 0.0
    %2039 = vmatprep.subr.mxu0 0.0
    %2040 = vmatpush1.msra.mxu0 0.0
    %2041 = vmatprep.subr.mxu0 0.0
    %2042 = vmatpush1.msra.mxu0 0.0
    %2043 = vmatprep.subr.mxu0 0.0
    %2044 = vmatpush1.msra.mxu0 0.0
    %2045 = vmatprep.subr.mxu0 0.0
    %2046 = vmatpush1.msra.mxu0 0.0
    %2047 = vmatprep.subr.mxu0 0.0
    %2048 = vmatpush1.msra.mxu0 0.0
    %2049 = vmatprep.subr.mxu0 0.0
    %2050 = vmatpush1.msra.mxu0 0.0
    %2051 = vmatprep.subr.mxu0 0.0
    %2052 = vmatpush1.msra.mxu0 0.0
    %2053 = vmatprep.subr.mxu0 0.0
    %2054 = vmatpush1.msra.mxu0 0.0
    %2055 = vmatprep.subr.mxu0 0.0
    %2056 = vmatpush1.msra.mxu0 0.0
    %2057 = vmatprep.subr.mxu0 0.0
    %2058 = vmatpush1.msra.mxu0 0.0
    %2059 = vmatprep.subr.mxu0 %v2026
    %2060 = vmatpush1.msra.mxu0 %v2023
    %2061 = vmatprep.subr.mxu0 %v287
    %2062 = vmatpush1.msra.mxu0 %v286
    %2063 = vmatprep.subr.mxu0 %v282
    %2064 = vmatpush1.msra.mxu0 %v281
    %2065 = vmatprep.subr.mxu0 %v277
    %2066 = vmatpush1.msra.mxu0 %v276
    %2067 = vmatprep.subr.mxu0 %v272
    %2068 = vmatpush1.msra.mxu0 %v271
    %2069 = vmatprep.subr.mxu0 0.0
    %2070 = vmatpush2.msra.mxu0 0.0
    %2071 = vmatprep.subr.mxu0 0.0
    %2072 = vmatpush2.msra.mxu0 0.0
    %2073 = vmatprep.subr.mxu0 0.0
    %2074 = vmatpush2.msra.mxu0 0.0
    %2075 = vmatprep.subr.mxu0 0.0
    %2076 = vmatpush2.msra.mxu0 0.0
    %2077 = vmatprep.subr.mxu0 0.0
    %2078 = vmatpush2.msra.mxu0 0.0
    %2079 = vmatprep.subr.mxu0 0.0
    %2080 = vmatpush2.msra.mxu0 0.0
    %2081 = vmatprep.subr.mxu0 0.0
    %2082 = vmatpush2.msra.mxu0 0.0
    %2083 = vmatprep.subr.mxu0 0.0
    %2084 = vmatpush2.msra.mxu0 0.0
    %2085 = vmatprep.subr.mxu0 0.0
    %2086 = vmatpush2.msra.mxu0 0.0
    %2087 = vmatprep.subr.mxu0 0.0
    %2088 = vmatpush2.msra.mxu0 0.0
    %2089 = vmatprep.subr.mxu0 0.0
    %2090 = vmatpush2.msra.mxu0 0.0
    %2091 = vmatprep.subr.mxu0 0.0
    %2092 = vmatpush2.msra.mxu0 0.0
    %2093 = vmatprep.subr.mxu0 0.0
    %2094 = vmatpush2.msra.mxu0 0.0
    %2095 = vmatprep.subr.mxu0 0.0
    %2096 = vmatpush2.msra.mxu0 0.0
    %2097 = vmatprep.subr.mxu0 0.0
    %2098 = vmatpush2.msra.mxu0 0.0
    %2099 = vmatprep.subr.mxu0 0.0
    %2100 = vmatpush2.msra.mxu0 0.0
    %2101 = vmatprep.mubr.f32.mxu0 0.0
    %2102 = vmatmul.mubr.f32.gmra.mxu0 %v2019
    %v2103 = vpop.f32.mrf.mxu0
    %v2104 = vadd.f32 %v1995, %v2103
    %v2105 = vpop.f32.mrf.mxu0
    %v2106 = vadd.f32 %v1999, %v2105
    %2107 = vdwg.mxu0
    %2108 = vmatprep.subr.mxu0 0.0
    %2109 = vmatpush1.msra.mxu0 0.0
    %2110 = vmatprep.subr.mxu0 0.0
    %2111 = vmatpush1.msra.mxu0 0.0
    %2112 = vmatprep.subr.mxu0 0.0
    %2113 = vmatpush1.msra.mxu0 0.0
    %2114 = vmatprep.subr.mxu0 0.0
    %2115 = vmatpush1.msra.mxu0 0.0
    %2116 = vmatprep.subr.mxu0 0.0
    %2117 = vmatpush1.msra.mxu0 0.0
    %2118 = vmatprep.subr.mxu0 0.0
    %2119 = vmatpush1.msra.mxu0 0.0
    %2120 = vmatprep.subr.mxu0 0.0
    %2121 = vmatpush1.msra.mxu0 0.0
    %2122 = vmatprep.subr.mxu0 0.0
    %2123 = vmatpush1.msra.mxu0 0.0
    %2124 = vmatprep.subr.mxu0 0.0
    %2125 = vmatpush1.msra.mxu0 0.0
    %2126 = vmatprep.subr.mxu0 0.0
    %2127 = vmatpush1.msra.mxu0 0.0
    %2128 = vmatprep.subr.mxu0 0.0
    %2129 = vmatpush1.msra.mxu0 0.0
    %2130 = vmatprep.subr.mxu0 %v2032
    %2131 = vmatpush1.msra.mxu0 %v2029
    %2132 = vmatprep.subr.mxu0 %v289
    %2133 = vmatpush1.msra.mxu0 %v288
    %2134 = vmatprep.subr.mxu0 %v284
    %2135 = vmatpush1.msra.mxu0 %v283
    %2136 = vmatprep.subr.mxu0 %v279
    %2137 = vmatpush1.msra.mxu0 %v278
    %2138 = vmatprep.subr.mxu0 %v274
    %2139 = vmatpush1.msra.mxu0 %v273
    %2140 = vmatprep.subr.mxu0 0.0
    %2141 = vmatpush2.msra.mxu0 0.0
    %2142 = vmatprep.subr.mxu0 0.0
    %2143 = vmatpush2.msra.mxu0 0.0
    %2144 = vmatprep.subr.mxu0 0.0
    %2145 = vmatpush2.msra.mxu0 0.0
    %2146 = vmatprep.subr.mxu0 0.0
    %2147 = vmatpush2.msra.mxu0 0.0
    %2148 = vmatprep.subr.mxu0 0.0
    %2149 = vmatpush2.msra.mxu0 0.0
    %2150 = vmatprep.subr.mxu0 0.0
    %2151 = vmatpush2.msra.mxu0 0.0
    %2152 = vmatprep.subr.mxu0 0.0
    %2153 = vmatpush2.msra.mxu0 0.0
    %2154 = vmatprep.subr.mxu0 0.0
    %2155 = vmatpush2.msra.mxu0 0.0
    %2156 = vmatprep.subr.mxu0 0.0
    %2157 = vmatpush2.msra.mxu0 0.0
    %2158 = vmatprep.subr.mxu0 0.0
    %2159 = vmatpush2.msra.mxu0 0.0
    %2160 = vmatprep.subr.mxu0 0.0
    %2161 = vmatpush2.msra.mxu0 0.0
    %2162 = vmatprep.subr.mxu0 0.0
    %2163 = vmatpush2.msra.mxu0 0.0
    %2164 = vmatprep.subr.mxu0 0.0
    %2165 = vmatpush2.msra.mxu0 0.0
    %2166 = vmatprep.subr.mxu0 0.0
    %2167 = vmatpush2.msra.mxu0 0.0
    %2168 = vmatprep.subr.mxu0 0.0
    %2169 = vmatpush2.msra.mxu0 0.0
    %2170 = vmatprep.subr.mxu0 0.0
    %2171 = vmatpush2.msra.mxu0 0.0
    %2172 = vmatprep.mubr.f32.mxu0 0.0
    %2173 = vmatmul.mubr.f32.gmra.mxu0 %v2019
    %v2174 = vpop.f32.mrf.mxu0
    %v2175 = vadd.f32 %v2003, %v2174
    %v2176 = vpop.f32.mrf.mxu0
    %v2177 = vadd.f32 %v2007, %v2176
    %2178 = vdwg.mxu0
    %2179 = vmatprep.subr.mxu0 0.0
    %2180 = vmatpush1.msra.mxu0 0.0
    %2181 = vmatprep.subr.mxu0 0.0
    %2182 = vmatpush1.msra.mxu0 0.0
    %2183 = vmatprep.subr.mxu0 0.0
    %2184 = vmatpush1.msra.mxu0 0.0
    %2185 = vmatprep.subr.mxu0 0.0
    %2186 = vmatpush1.msra.mxu0 0.0
    %2187 = vmatprep.subr.mxu0 0.0
    %2188 = vmatpush1.msra.mxu0 0.0
    %2189 = vmatprep.subr.mxu0 0.0
    %2190 = vmatpush1.msra.mxu0 0.0
    %2191 = vmatprep.subr.mxu0 0.0
    %2192 = vmatpush1.msra.mxu0 0.0
    %2193 = vmatprep.subr.mxu0 0.0
    %2194 = vmatpush1.msra.mxu0 0.0
    %2195 = vmatprep.subr.mxu0 0.0
    %2196 = vmatpush1.msra.mxu0 0.0
    %2197 = vmatprep.subr.mxu0 0.0
    %2198 = vmatpush1.msra.mxu0 0.0
    %2199 = vmatprep.subr.mxu0 0.0
    %2200 = vmatpush1.msra.mxu0 0.0
    %2201 = vmatprep.subr.mxu0 0.0
    %2202 = vmatpush1.msra.mxu0 %v2035
    %2203 = vmatprep.subr.mxu0 0.0
    %2204 = vmatpush1.msra.mxu0 %v290
    %2205 = vmatprep.subr.mxu0 0.0
    %2206 = vmatpush1.msra.mxu0 %v285
    %2207 = vmatprep.subr.mxu0 0.0
    %2208 = vmatpush1.msra.mxu0 %v280
    %2209 = vmatprep.subr.mxu0 0.0
    %2210 = vmatpush1.msra.mxu0 %v275
    %2211 = vmatprep.subr.mxu0 0.0
    %2212 = vmatpush2.msra.mxu0 0.0
    %2213 = vmatprep.subr.mxu0 0.0
    %2214 = vmatpush2.msra.mxu0 0.0
    %2215 = vmatprep.subr.mxu0 0.0
    %2216 = vmatpush2.msra.mxu0 0.0
    %2217 = vmatprep.subr.mxu0 0.0
    %2218 = vmatpush2.msra.mxu0 0.0
    %2219 = vmatprep.subr.mxu0 0.0
    %2220 = vmatpush2.msra.mxu0 0.0
    %2221 = vmatprep.subr.mxu0 0.0
    %2222 = vmatpush2.msra.mxu0 0.0
    %2223 = vmatprep.subr.mxu0 0.0
    %2224 = vmatpush2.msra.mxu0 0.0
    %2225 = vmatprep.subr.mxu0 0.0
    %2226 = vmatpush2.msra.mxu0 0.0
    %2227 = vmatprep.subr.mxu0 0.0
    %2228 = vmatpush2.msra.mxu0 0.0
    %2229 = vmatprep.subr.mxu0 0.0
    %2230 = vmatpush2.msra.mxu0 0.0
    %2231 = vmatprep.subr.mxu0 0.0
    %2232 = vmatpush2.msra.mxu0 0.0
    %2233 = vmatprep.subr.mxu0 0.0
    %2234 = vmatpush2.msra.mxu0 0.0
    %2235 = vmatprep.subr.mxu0 0.0
    %2236 = vmatpush2.msra.mxu0 0.0
    %2237 = vmatprep.subr.mxu0 0.0
    %2238 = vmatpush2.msra.mxu0 0.0
    %2239 = vmatprep.subr.mxu0 0.0
    %2240 = vmatpush2.msra.mxu0 0.0
    %2241 = vmatprep.subr.mxu0 0.0
    %2242 = vmatpush2.msra.mxu0 0.0
    %2243 = vmatprep.mubr.f32.mxu0 0.0
    %2244 = vmatmul.mubr.f32.gmra.mxu0 %v2019
    %v2245 = vpop.f32.mrf.mxu0
    %v2246 = vadd.f32 %v2011, %v2245
    %v2247 = vpop.f32.mrf.mxu0
    %2248 = vdwg.mxu0
    %v2249 = vxor.u32 %v2104, 2147483648
    %v2250 = vxor.u32 %v2106, 2147483648
    %v2251 = vxor.u32 %v2175, 2147483648
    %v2252 = vxor.u32 %v2177, 2147483648
    %v2253 = vxor.u32 %v2246, 2147483648
    %v2254 = vmul.f32 %v2249, 1.442695
    %v2255 = vpow.pop %v2254
    %v2256 = vmul.f32 %v2250, 1.442695
    %v2257 = vpow.pop %v2256
    %v2258 = vmul.f32 %v2251, 1.442695
    %v2259 = vpow.pop %v2258
    %v2260 = vmul.f32 %v2252, 1.442695
    %v2261 = vpow.pop %v2260
    %v2262 = vmul.f32 %v2253, 1.442695
    %v2263 = vpow.pop %v2262
    %v2264 = vadd.f32 %v2255, 1.0
    %v2265 = vadd.f32 %v2257, 1.0
    %v2266 = vadd.f32 %v2259, 1.0
    %v2267 = vadd.f32 %v2261, 1.0
    %v2268 = vadd.f32 %v2263, 1.0
    %v2269 = vrcp.pop %v2264
    %v2270 = vmul.f32 1.0, %v2269
    %v2271 = vrcp.pop %v2265
    %v2272 = vmul.f32 1.0, %v2271
    %v2273 = vrcp.pop %v2266
    %v2274 = vmul.f32 1.0, %v2273
    %v2275 = vrcp.pop %v2267
    %v2276 = vmul.f32 1.0, %v2275
    %v2277 = vrcp.pop %v2268
    %v2278 = vmul.f32 1.0, %v2277
    %v2284 = vlaneseq
    %v2285 = vshrl.u32 %v2284, 7
    %v2286 = vsub.s32 0, %v2285
    %v2287 = vrot.slane %v2270, %v2286
    %2289 = vbcast.lane.b32.xlu0 %v2287, 256
    %v2290 = vpop.permute.xlu0 %2289
    %s2292 = sor.u32 256, 8
    %2293 = vbcast.lane.b32.xlu0 %v2287, %s2292
    %v2294 = vpop.permute.xlu0 %2293
    %s2296 = sor.u32 256, 16
    %2297 = vbcast.lane.b32.xlu0 %v2287, %s2296
    %v2298 = vpop.permute.xlu0 %2297
    %s2300 = sor.u32 256, 24
    %2301 = vbcast.lane.b32.xlu0 %v2287, %s2300
    %v2302 = vpop.permute.xlu0 %2301
    %s2304 = sor.u32 256, 32
    %2305 = vbcast.lane.b32.xlu0 %v2287, %s2304
    %v2306 = vpop.permute.xlu0 %2305
    %s2308 = sor.u32 256, 40
    %2309 = vbcast.lane.b32.xlu0 %v2287, %s2308
    %v2310 = vpop.permute.xlu0 %2309
    %s2312 = sor.u32 256, 48
    %2313 = vbcast.lane.b32.xlu0 %v2287, %s2312
    %v2314 = vpop.permute.xlu0 %2313
    %s2316 = sor.u32 256, 56
    %2317 = vbcast.lane.b32.xlu0 %v2287, %s2316
    %v2318 = vpop.permute.xlu0 %2317
    %s2320 = sor.u32 256, 64
    %2321 = vbcast.lane.b32.xlu0 %v2287, %s2320
    %v2322 = vpop.permute.xlu0 %2321
    %s2324 = sor.u32 256, 72
    %2325 = vbcast.lane.b32.xlu0 %v2287, %s2324
    %v2326 = vpop.permute.xlu0 %2325
    %s2328 = sor.u32 256, 80
    %2329 = vbcast.lane.b32.xlu0 %v2287, %s2328
    %v2330 = vpop.permute.xlu0 %2329
    %s2332 = sor.u32 256, 88
    %2333 = vbcast.lane.b32.xlu0 %v2287, %s2332
    %v2334 = vpop.permute.xlu0 %2333
    %s2336 = sor.u32 256, 96
    %2337 = vbcast.lane.b32.xlu0 %v2287, %s2336
    %v2338 = vpop.permute.xlu0 %2337
    %s2340 = sor.u32 256, 104
    %2341 = vbcast.lane.b32.xlu0 %v2287, %s2340
    %v2342 = vpop.permute.xlu0 %2341
    %s2344 = sor.u32 256, 112
    %2345 = vbcast.lane.b32.xlu0 %v2287, %s2344
    %v2346 = vpop.permute.xlu0 %2345
    %s2348 = sor.u32 256, 120
    %2349 = vbcast.lane.b32.xlu0 %v2287, %s2348
    %v2350 = vpop.permute.xlu0 %2349
    %v2351 = vlaneseq
    %v2352 = vshrl.u32 %v2351, 7
    %v2353 = vsub.s32 0, %v2352
    %v2354 = vrot.slane %v2272, %v2353
    %2356 = vbcast.lane.b32.xlu0 %v2354, 256
    %v2357 = vpop.permute.xlu0 %2356
    %s2359 = sor.u32 256, 8
    %2360 = vbcast.lane.b32.xlu0 %v2354, %s2359
    %v2361 = vpop.permute.xlu0 %2360
    %s2363 = sor.u32 256, 16
    %2364 = vbcast.lane.b32.xlu0 %v2354, %s2363
    %v2365 = vpop.permute.xlu0 %2364
    %s2367 = sor.u32 256, 24
    %2368 = vbcast.lane.b32.xlu0 %v2354, %s2367
    %v2369 = vpop.permute.xlu0 %2368
    %s2371 = sor.u32 256, 32
    %2372 = vbcast.lane.b32.xlu0 %v2354, %s2371
    %v2373 = vpop.permute.xlu0 %2372
    %s2375 = sor.u32 256, 40
    %2376 = vbcast.lane.b32.xlu0 %v2354, %s2375
    %v2377 = vpop.permute.xlu0 %2376
    %s2379 = sor.u32 256, 48
    %2380 = vbcast.lane.b32.xlu0 %v2354, %s2379
    %v2381 = vpop.permute.xlu0 %2380
    %s2383 = sor.u32 256, 56
    %2384 = vbcast.lane.b32.xlu0 %v2354, %s2383
    %v2385 = vpop.permute.xlu0 %2384
    %s2387 = sor.u32 256, 64
    %2388 = vbcast.lane.b32.xlu0 %v2354, %s2387
    %v2389 = vpop.permute.xlu0 %2388
    %s2391 = sor.u32 256, 72
    %2392 = vbcast.lane.b32.xlu0 %v2354, %s2391
    %v2393 = vpop.permute.xlu0 %2392
    %s2395 = sor.u32 256, 80
    %2396 = vbcast.lane.b32.xlu0 %v2354, %s2395
    %v2397 = vpop.permute.xlu0 %2396
    %s2399 = sor.u32 256, 88
    %2400 = vbcast.lane.b32.xlu0 %v2354, %s2399
    %v2401 = vpop.permute.xlu0 %2400
    %s2403 = sor.u32 256, 96
    %2404 = vbcast.lane.b32.xlu0 %v2354, %s2403
    %v2405 = vpop.permute.xlu0 %2404
    %s2407 = sor.u32 256, 104
    %2408 = vbcast.lane.b32.xlu0 %v2354, %s2407
    %v2409 = vpop.permute.xlu0 %2408
    %s2411 = sor.u32 256, 112
    %2412 = vbcast.lane.b32.xlu0 %v2354, %s2411
    %v2413 = vpop.permute.xlu0 %2412
    %s2415 = sor.u32 256, 120
    %2416 = vbcast.lane.b32.xlu0 %v2354, %s2415
    %v2417 = vpop.permute.xlu0 %2416
    %v2418 = vlaneseq
    %v2419 = vshrl.u32 %v2418, 7
    %v2420 = vsub.s32 0, %v2419
    %v2421 = vrot.slane %v2274, %v2420
    %2423 = vbcast.lane.b32.xlu0 %v2421, 256
    %v2424 = vpop.permute.xlu0 %2423
    %s2426 = sor.u32 256, 8
    %2427 = vbcast.lane.b32.xlu0 %v2421, %s2426
    %v2428 = vpop.permute.xlu0 %2427
    %s2430 = sor.u32 256, 16
    %2431 = vbcast.lane.b32.xlu0 %v2421, %s2430
    %v2432 = vpop.permute.xlu0 %2431
    %s2434 = sor.u32 256, 24
    %2435 = vbcast.lane.b32.xlu0 %v2421, %s2434
    %v2436 = vpop.permute.xlu0 %2435
    %s2438 = sor.u32 256, 32
    %2439 = vbcast.lane.b32.xlu0 %v2421, %s2438
    %v2440 = vpop.permute.xlu0 %2439
    %s2442 = sor.u32 256, 40
    %2443 = vbcast.lane.b32.xlu0 %v2421, %s2442
    %v2444 = vpop.permute.xlu0 %2443
    %s2446 = sor.u32 256, 48
    %2447 = vbcast.lane.b32.xlu0 %v2421, %s2446
    %v2448 = vpop.permute.xlu0 %2447
    %s2450 = sor.u32 256, 56
    %2451 = vbcast.lane.b32.xlu0 %v2421, %s2450
    %v2452 = vpop.permute.xlu0 %2451
    %s2454 = sor.u32 256, 64
    %2455 = vbcast.lane.b32.xlu0 %v2421, %s2454
    %v2456 = vpop.permute.xlu0 %2455
    %s2458 = sor.u32 256, 72
    %2459 = vbcast.lane.b32.xlu0 %v2421, %s2458
    %v2460 = vpop.permute.xlu0 %2459
    %s2462 = sor.u32 256, 80
    %2463 = vbcast.lane.b32.xlu0 %v2421, %s2462
    %v2464 = vpop.permute.xlu0 %2463
    %s2466 = sor.u32 256, 88
    %2467 = vbcast.lane.b32.xlu0 %v2421, %s2466
    %v2468 = vpop.permute.xlu0 %2467
    %s2470 = sor.u32 256, 96
    %2471 = vbcast.lane.b32.xlu0 %v2421, %s2470
    %v2472 = vpop.permute.xlu0 %2471
    %s2474 = sor.u32 256, 104
    %2475 = vbcast.lane.b32.xlu0 %v2421, %s2474
    %v2476 = vpop.permute.xlu0 %2475
    %s2478 = sor.u32 256, 112
    %2479 = vbcast.lane.b32.xlu0 %v2421, %s2478
    %v2480 = vpop.permute.xlu0 %2479
    %s2482 = sor.u32 256, 120
    %2483 = vbcast.lane.b32.xlu0 %v2421, %s2482
    %v2484 = vpop.permute.xlu0 %2483
    %v2485 = vlaneseq
    %v2486 = vshrl.u32 %v2485, 7
    %v2487 = vsub.s32 0, %v2486
    %v2488 = vrot.slane %v2276, %v2487
    %2490 = vbcast.lane.b32.xlu0 %v2488, 256
    %v2491 = vpop.permute.xlu0 %2490
    %s2493 = sor.u32 256, 8
    %2494 = vbcast.lane.b32.xlu0 %v2488, %s2493
    %v2495 = vpop.permute.xlu0 %2494
    %s2497 = sor.u32 256, 16
    %2498 = vbcast.lane.b32.xlu0 %v2488, %s2497
    %v2499 = vpop.permute.xlu0 %2498
    %s2501 = sor.u32 256, 24
    %2502 = vbcast.lane.b32.xlu0 %v2488, %s2501
    %v2503 = vpop.permute.xlu0 %2502
    %s2505 = sor.u32 256, 32
    %2506 = vbcast.lane.b32.xlu0 %v2488, %s2505
    %v2507 = vpop.permute.xlu0 %2506
    %s2509 = sor.u32 256, 40
    %2510 = vbcast.lane.b32.xlu0 %v2488, %s2509
    %v2511 = vpop.permute.xlu0 %2510
    %s2513 = sor.u32 256, 48
    %2514 = vbcast.lane.b32.xlu0 %v2488, %s2513
    %v2515 = vpop.permute.xlu0 %2514
    %s2517 = sor.u32 256, 56
    %2518 = vbcast.lane.b32.xlu0 %v2488, %s2517
    %v2519 = vpop.permute.xlu0 %2518
    %s2521 = sor.u32 256, 64
    %2522 = vbcast.lane.b32.xlu0 %v2488, %s2521
    %v2523 = vpop.permute.xlu0 %2522
    %s2525 = sor.u32 256, 72
    %2526 = vbcast.lane.b32.xlu0 %v2488, %s2525
    %v2527 = vpop.permute.xlu0 %2526
    %s2529 = sor.u32 256, 80
    %2530 = vbcast.lane.b32.xlu0 %v2488, %s2529
    %v2531 = vpop.permute.xlu0 %2530
    %s2533 = sor.u32 256, 88
    %2534 = vbcast.lane.b32.xlu0 %v2488, %s2533
    %v2535 = vpop.permute.xlu0 %2534
    %s2537 = sor.u32 256, 96
    %2538 = vbcast.lane.b32.xlu0 %v2488, %s2537
    %v2539 = vpop.permute.xlu0 %2538
    %s2541 = sor.u32 256, 104
    %2542 = vbcast.lane.b32.xlu0 %v2488, %s2541
    %v2543 = vpop.permute.xlu0 %2542
    %s2545 = sor.u32 256, 112
    %2546 = vbcast.lane.b32.xlu0 %v2488, %s2545
    %v2547 = vpop.permute.xlu0 %2546
    %s2549 = sor.u32 256, 120
    %2550 = vbcast.lane.b32.xlu0 %v2488, %s2549
    %v2551 = vpop.permute.xlu0 %2550
    %v2552 = vlaneseq
    %v2553 = vshrl.u32 %v2552, 7
    %v2554 = vsub.s32 0, %v2553
    %v2555 = vrot.slane %v2278, %v2554
    %2557 = vbcast.lane.b32.xlu0 %v2555, 256
    %v2558 = vpop.permute.xlu0 %2557
    %s2560 = sor.u32 256, 8
    %2561 = vbcast.lane.b32.xlu0 %v2555, %s2560
    %v2562 = vpop.permute.xlu0 %2561
    %s2564 = sor.u32 256, 16
    %2565 = vbcast.lane.b32.xlu0 %v2555, %s2564
    %v2566 = vpop.permute.xlu0 %2565
    %s2568 = sor.u32 256, 24
    %2569 = vbcast.lane.b32.xlu0 %v2555, %s2568
    %v2570 = vpop.permute.xlu0 %2569
    %s2572 = sor.u32 256, 32
    %2573 = vbcast.lane.b32.xlu0 %v2555, %s2572
    %v2574 = vpop.permute.xlu0 %2573
    %s2576 = sor.u32 256, 40
    %2577 = vbcast.lane.b32.xlu0 %v2555, %s2576
    %v2578 = vpop.permute.xlu0 %2577
    %s2580 = sor.u32 256, 48
    %2581 = vbcast.lane.b32.xlu0 %v2555, %s2580
    %v2582 = vpop.permute.xlu0 %2581
    %s2584 = sor.u32 256, 56
    %2585 = vbcast.lane.b32.xlu0 %v2555, %s2584
    %v2586 = vpop.permute.xlu0 %2585
    %v2587 = vlaneseq
    %v2588 = vshrl.u32 %v2587, 7
    %v2589 = vsub.s32 1, %v2588
    %v2590 = vrot.slane %v2270, %v2589
    %2592 = vbcast.lane.b32.xlu0 %v2590, 256
    %v2593 = vpop.permute.xlu0 %2592
    %s2595 = sor.u32 256, 8
    %2596 = vbcast.lane.b32.xlu0 %v2590, %s2595
    %v2597 = vpop.permute.xlu0 %2596
    %s2599 = sor.u32 256, 16
    %2600 = vbcast.lane.b32.xlu0 %v2590, %s2599
    %v2601 = vpop.permute.xlu0 %2600
    %s2603 = sor.u32 256, 24
    %2604 = vbcast.lane.b32.xlu0 %v2590, %s2603
    %v2605 = vpop.permute.xlu0 %2604
    %s2607 = sor.u32 256, 32
    %2608 = vbcast.lane.b32.xlu0 %v2590, %s2607
    %v2609 = vpop.permute.xlu0 %2608
    %s2611 = sor.u32 256, 40
    %2612 = vbcast.lane.b32.xlu0 %v2590, %s2611
    %v2613 = vpop.permute.xlu0 %2612
    %s2615 = sor.u32 256, 48
    %2616 = vbcast.lane.b32.xlu0 %v2590, %s2615
    %v2617 = vpop.permute.xlu0 %2616
    %s2619 = sor.u32 256, 56
    %2620 = vbcast.lane.b32.xlu0 %v2590, %s2619
    %v2621 = vpop.permute.xlu0 %2620
    %s2623 = sor.u32 256, 64
    %2624 = vbcast.lane.b32.xlu0 %v2590, %s2623
    %v2625 = vpop.permute.xlu0 %2624
    %s2627 = sor.u32 256, 72
    %2628 = vbcast.lane.b32.xlu0 %v2590, %s2627
    %v2629 = vpop.permute.xlu0 %2628
    %s2631 = sor.u32 256, 80
    %2632 = vbcast.lane.b32.xlu0 %v2590, %s2631
    %v2633 = vpop.permute.xlu0 %2632
    %s2635 = sor.u32 256, 88
    %2636 = vbcast.lane.b32.xlu0 %v2590, %s2635
    %v2637 = vpop.permute.xlu0 %2636
    %s2639 = sor.u32 256, 96
    %2640 = vbcast.lane.b32.xlu0 %v2590, %s2639
    %v2641 = vpop.permute.xlu0 %2640
    %s2643 = sor.u32 256, 104
    %2644 = vbcast.lane.b32.xlu0 %v2590, %s2643
    %v2645 = vpop.permute.xlu0 %2644
    %s2647 = sor.u32 256, 112
    %2648 = vbcast.lane.b32.xlu0 %v2590, %s2647
    %v2649 = vpop.permute.xlu0 %2648
    %s2651 = sor.u32 256, 120
    %2652 = vbcast.lane.b32.xlu0 %v2590, %s2651
    %v2653 = vpop.permute.xlu0 %2652
    %v2654 = vlaneseq
    %v2655 = vshrl.u32 %v2654, 7
    %v2656 = vsub.s32 1, %v2655
    %v2657 = vrot.slane %v2272, %v2656
    %2659 = vbcast.lane.b32.xlu0 %v2657, 256
    %v2660 = vpop.permute.xlu0 %2659
    %s2662 = sor.u32 256, 8
    %2663 = vbcast.lane.b32.xlu0 %v2657, %s2662
    %v2664 = vpop.permute.xlu0 %2663
    %s2666 = sor.u32 256, 16
    %2667 = vbcast.lane.b32.xlu0 %v2657, %s2666
    %v2668 = vpop.permute.xlu0 %2667
    %s2670 = sor.u32 256, 24
    %2671 = vbcast.lane.b32.xlu0 %v2657, %s2670
    %v2672 = vpop.permute.xlu0 %2671
    %s2674 = sor.u32 256, 32
    %2675 = vbcast.lane.b32.xlu0 %v2657, %s2674
    %v2676 = vpop.permute.xlu0 %2675
    %s2678 = sor.u32 256, 40
    %2679 = vbcast.lane.b32.xlu0 %v2657, %s2678
    %v2680 = vpop.permute.xlu0 %2679
    %s2682 = sor.u32 256, 48
    %2683 = vbcast.lane.b32.xlu0 %v2657, %s2682
    %v2684 = vpop.permute.xlu0 %2683
    %s2686 = sor.u32 256, 56
    %2687 = vbcast.lane.b32.xlu0 %v2657, %s2686
    %v2688 = vpop.permute.xlu0 %2687
    %s2690 = sor.u32 256, 64
    %2691 = vbcast.lane.b32.xlu0 %v2657, %s2690
    %v2692 = vpop.permute.xlu0 %2691
    %s2694 = sor.u32 256, 72
    %2695 = vbcast.lane.b32.xlu0 %v2657, %s2694
    %v2696 = vpop.permute.xlu0 %2695
    %s2698 = sor.u32 256, 80
    %2699 = vbcast.lane.b32.xlu0 %v2657, %s2698
    %v2700 = vpop.permute.xlu0 %2699
    %s2702 = sor.u32 256, 88
    %2703 = vbcast.lane.b32.xlu0 %v2657, %s2702
    %v2704 = vpop.permute.xlu0 %2703
    %s2706 = sor.u32 256, 96
    %2707 = vbcast.lane.b32.xlu0 %v2657, %s2706
    %v2708 = vpop.permute.xlu0 %2707
    %s2710 = sor.u32 256, 104
    %2711 = vbcast.lane.b32.xlu0 %v2657, %s2710
    %v2712 = vpop.permute.xlu0 %2711
    %s2714 = sor.u32 256, 112
    %2715 = vbcast.lane.b32.xlu0 %v2657, %s2714
    %v2716 = vpop.permute.xlu0 %2715
    %s2718 = sor.u32 256, 120
    %2719 = vbcast.lane.b32.xlu0 %v2657, %s2718
    %v2720 = vpop.permute.xlu0 %2719
    %v2721 = vlaneseq
    %v2722 = vshrl.u32 %v2721, 7
    %v2723 = vsub.s32 1, %v2722
    %v2724 = vrot.slane %v2274, %v2723
    %2726 = vbcast.lane.b32.xlu0 %v2724, 256
    %v2727 = vpop.permute.xlu0 %2726
    %s2729 = sor.u32 256, 8
    %2730 = vbcast.lane.b32.xlu0 %v2724, %s2729
    %v2731 = vpop.permute.xlu0 %2730
    %s2733 = sor.u32 256, 16
    %2734 = vbcast.lane.b32.xlu0 %v2724, %s2733
    %v2735 = vpop.permute.xlu0 %2734
    %s2737 = sor.u32 256, 24
    %2738 = vbcast.lane.b32.xlu0 %v2724, %s2737
    %v2739 = vpop.permute.xlu0 %2738
    %s2741 = sor.u32 256, 32
    %2742 = vbcast.lane.b32.xlu0 %v2724, %s2741
    %v2743 = vpop.permute.xlu0 %2742
    %s2745 = sor.u32 256, 40
    %2746 = vbcast.lane.b32.xlu0 %v2724, %s2745
    %v2747 = vpop.permute.xlu0 %2746
    %s2749 = sor.u32 256, 48
    %2750 = vbcast.lane.b32.xlu0 %v2724, %s2749
    %v2751 = vpop.permute.xlu0 %2750
    %s2753 = sor.u32 256, 56
    %2754 = vbcast.lane.b32.xlu0 %v2724, %s2753
    %v2755 = vpop.permute.xlu0 %2754
    %s2757 = sor.u32 256, 64
    %2758 = vbcast.lane.b32.xlu0 %v2724, %s2757
    %v2759 = vpop.permute.xlu0 %2758
    %s2761 = sor.u32 256, 72
    %2762 = vbcast.lane.b32.xlu0 %v2724, %s2761
    %v2763 = vpop.permute.xlu0 %2762
    %s2765 = sor.u32 256, 80
    %2766 = vbcast.lane.b32.xlu0 %v2724, %s2765
    %v2767 = vpop.permute.xlu0 %2766
    %s2769 = sor.u32 256, 88
    %2770 = vbcast.lane.b32.xlu0 %v2724, %s2769
    %v2771 = vpop.permute.xlu0 %2770
    %s2773 = sor.u32 256, 96
    %2774 = vbcast.lane.b32.xlu0 %v2724, %s2773
    %v2775 = vpop.permute.xlu0 %2774
    %s2777 = sor.u32 256, 104
    %2778 = vbcast.lane.b32.xlu0 %v2724, %s2777
    %v2779 = vpop.permute.xlu0 %2778
    %s2781 = sor.u32 256, 112
    %2782 = vbcast.lane.b32.xlu0 %v2724, %s2781
    %v2783 = vpop.permute.xlu0 %2782
    %s2785 = sor.u32 256, 120
    %2786 = vbcast.lane.b32.xlu0 %v2724, %s2785
    %v2787 = vpop.permute.xlu0 %2786
    %v2788 = vlaneseq
    %v2789 = vshrl.u32 %v2788, 7
    %v2790 = vsub.s32 1, %v2789
    %v2791 = vrot.slane %v2276, %v2790
    %2793 = vbcast.lane.b32.xlu0 %v2791, 256
    %v2794 = vpop.permute.xlu0 %2793
    %s2796 = sor.u32 256, 8
    %2797 = vbcast.lane.b32.xlu0 %v2791, %s2796
    %v2798 = vpop.permute.xlu0 %2797
    %s2800 = sor.u32 256, 16
    %2801 = vbcast.lane.b32.xlu0 %v2791, %s2800
    %v2802 = vpop.permute.xlu0 %2801
    %s2804 = sor.u32 256, 24
    %2805 = vbcast.lane.b32.xlu0 %v2791, %s2804
    %v2806 = vpop.permute.xlu0 %2805
    %s2808 = sor.u32 256, 32
    %2809 = vbcast.lane.b32.xlu0 %v2791, %s2808
    %v2810 = vpop.permute.xlu0 %2809
    %s2812 = sor.u32 256, 40
    %2813 = vbcast.lane.b32.xlu0 %v2791, %s2812
    %v2814 = vpop.permute.xlu0 %2813
    %s2816 = sor.u32 256, 48
    %2817 = vbcast.lane.b32.xlu0 %v2791, %s2816
    %v2818 = vpop.permute.xlu0 %2817
    %s2820 = sor.u32 256, 56
    %2821 = vbcast.lane.b32.xlu0 %v2791, %s2820
    %v2822 = vpop.permute.xlu0 %2821
    %s2824 = sor.u32 256, 64
    %2825 = vbcast.lane.b32.xlu0 %v2791, %s2824
    %v2826 = vpop.permute.xlu0 %2825
    %s2828 = sor.u32 256, 72
    %2829 = vbcast.lane.b32.xlu0 %v2791, %s2828
    %v2830 = vpop.permute.xlu0 %2829
    %s2832 = sor.u32 256, 80
    %2833 = vbcast.lane.b32.xlu0 %v2791, %s2832
    %v2834 = vpop.permute.xlu0 %2833
    %s2836 = sor.u32 256, 88
    %2837 = vbcast.lane.b32.xlu0 %v2791, %s2836
    %v2838 = vpop.permute.xlu0 %2837
    %s2840 = sor.u32 256, 96
    %2841 = vbcast.lane.b32.xlu0 %v2791, %s2840
    %v2842 = vpop.permute.xlu0 %2841
    %s2844 = sor.u32 256, 104
    %2845 = vbcast.lane.b32.xlu0 %v2791, %s2844
    %v2846 = vpop.permute.xlu0 %2845
    %s2848 = sor.u32 256, 112
    %2849 = vbcast.lane.b32.xlu0 %v2791, %s2848
    %v2850 = vpop.permute.xlu0 %2849
    %s2852 = sor.u32 256, 120
    %2853 = vbcast.lane.b32.xlu0 %v2791, %s2852
    %v2854 = vpop.permute.xlu0 %2853
    %v2855 = vlaneseq
    %v2856 = vshrl.u32 %v2855, 7
    %v2857 = vsub.s32 1, %v2856
    %v2858 = vrot.slane %v2278, %v2857
    %2860 = vbcast.lane.b32.xlu0 %v2858, 256
    %v2861 = vpop.permute.xlu0 %2860
    %s2863 = sor.u32 256, 8
    %2864 = vbcast.lane.b32.xlu0 %v2858, %s2863
    %v2865 = vpop.permute.xlu0 %2864
    %s2867 = sor.u32 256, 16
    %2868 = vbcast.lane.b32.xlu0 %v2858, %s2867
    %v2869 = vpop.permute.xlu0 %2868
    %s2871 = sor.u32 256, 24
    %2872 = vbcast.lane.b32.xlu0 %v2858, %s2871
    %v2873 = vpop.permute.xlu0 %2872
    %s2875 = sor.u32 256, 32
    %2876 = vbcast.lane.b32.xlu0 %v2858, %s2875
    %v2877 = vpop.permute.xlu0 %2876
    %s2879 = sor.u32 256, 40
    %2880 = vbcast.lane.b32.xlu0 %v2858, %s2879
    %v2881 = vpop.permute.xlu0 %2880
    %s2883 = sor.u32 256, 48
    %2884 = vbcast.lane.b32.xlu0 %v2858, %s2883
    %v2885 = vpop.permute.xlu0 %2884
    %s2887 = sor.u32 256, 56
    %2888 = vbcast.lane.b32.xlu0 %v2858, %s2887
    %v2889 = vpop.permute.xlu0 %2888
    %v3034 = vmul.f32 %v731, %v2290
    %v3035 = vmul.f32 %v732, %v2294
    %v3036 = vmul.f32 %v733, %v2298
    %v3037 = vmul.f32 %v734, %v2302
    %v3038 = vmul.f32 %v735, %v2306
    %v3039 = vmul.f32 %v736, %v2310
    %v3040 = vmul.f32 %v737, %v2314
    %v3041 = vmul.f32 %v738, %v2318
    %v3042 = vmul.f32 %v739, %v2322
    %v3043 = vmul.f32 %v740, %v2326
    %v3044 = vmul.f32 %v741, %v2330
    %v3045 = vmul.f32 %v742, %v2334
    %v3046 = vmul.f32 %v743, %v2338
    %v3047 = vmul.f32 %v744, %v2342
    %v3048 = vmul.f32 %v745, %v2346
    %v3049 = vmul.f32 %v746, %v2350
    %v3050 = vmul.f32 %v747, %v2357
    %v3051 = vmul.f32 %v748, %v2361
    %v3052 = vmul.f32 %v749, %v2365
    %v3053 = vmul.f32 %v750, %v2369
    %v3054 = vmul.f32 %v751, %v2373
    %v3055 = vmul.f32 %v752, %v2377
    %v3056 = vmul.f32 %v753, %v2381
    %v3057 = vmul.f32 %v754, %v2385
    %v3058 = vmul.f32 %v755, %v2389
    %v3059 = vmul.f32 %v756, %v2393
    %v3060 = vmul.f32 %v757, %v2397
    %v3061 = vmul.f32 %v758, %v2401
    %v3062 = vmul.f32 %v759, %v2405
    %v3063 = vmul.f32 %v760, %v2409
    %v3064 = vmul.f32 %v761, %v2413
    %v3065 = vmul.f32 %v762, %v2417
    %v3066 = vmul.f32 %v763, %v2424
    %v3067 = vmul.f32 %v764, %v2428
    %v3068 = vmul.f32 %v765, %v2432
    %v3069 = vmul.f32 %v766, %v2436
    %v3070 = vmul.f32 %v767, %v2440
    %v3071 = vmul.f32 %v768, %v2444
    %v3072 = vmul.f32 %v769, %v2448
    %v3073 = vmul.f32 %v770, %v2452
    %v3074 = vmul.f32 %v771, %v2456
    %v3075 = vmul.f32 %v772, %v2460
    %v3076 = vmul.f32 %v773, %v2464
    %v3077 = vmul.f32 %v774, %v2468
    %v3078 = vmul.f32 %v775, %v2472
    %v3079 = vmul.f32 %v776, %v2476
    %v3080 = vmul.f32 %v777, %v2480
    %v3081 = vmul.f32 %v778, %v2484
    %v3082 = vmul.f32 %v779, %v2491
    %v3083 = vmul.f32 %v780, %v2495
    %v3084 = vmul.f32 %v781, %v2499
    %v3085 = vmul.f32 %v782, %v2503
    %v3086 = vmul.f32 %v783, %v2507
    %v3087 = vmul.f32 %v784, %v2511
    %v3088 = vmul.f32 %v785, %v2515
    %v3089 = vmul.f32 %v786, %v2519
    %v3090 = vmul.f32 %v787, %v2523
    %v3091 = vmul.f32 %v788, %v2527
    %v3092 = vmul.f32 %v789, %v2531
    %v3093 = vmul.f32 %v790, %v2535
    %v3094 = vmul.f32 %v791, %v2539
    %v3095 = vmul.f32 %v792, %v2543
    %v3096 = vmul.f32 %v793, %v2547
    %v3097 = vmul.f32 %v794, %v2551
    %v3098 = vmul.f32 %v795, %v2558
    %v3099 = vmul.f32 %v796, %v2562
    %v3100 = vmul.f32 %v797, %v2566
    %v3101 = vmul.f32 %v798, %v2570
    %v3102 = vmul.f32 %v799, %v2574
    %v3103 = vmul.f32 %v800, %v2578
    %v3104 = vmul.f32 %v801, %v2582
    %v3105 = vmul.f32 %v802, %v2586
    %v3106 = vmul.f32 %v803, %v2593
    %v3107 = vmul.f32 %v804, %v2597
    %v3108 = vmul.f32 %v805, %v2601
    %v3109 = vmul.f32 %v806, %v2605
    %v3110 = vmul.f32 %v807, %v2609
    %v3111 = vmul.f32 %v808, %v2613
    %v3112 = vmul.f32 %v809, %v2617
    %v3113 = vmul.f32 %v810, %v2621
    %v3114 = vmul.f32 %v811, %v2625
    %v3115 = vmul.f32 %v812, %v2629
    %v3116 = vmul.f32 %v813, %v2633
    %v3117 = vmul.f32 %v814, %v2637
    %v3118 = vmul.f32 %v815, %v2641
    %v3119 = vmul.f32 %v816, %v2645
    %v3120 = vmul.f32 %v817, %v2649
    %v3121 = vmul.f32 %v818, %v2653
    %v3122 = vmul.f32 %v819, %v2660
    %v3123 = vmul.f32 %v820, %v2664
    %v3124 = vmul.f32 %v821, %v2668
    %v3125 = vmul.f32 %v822, %v2672
    %v3126 = vmul.f32 %v823, %v2676
    %v3127 = vmul.f32 %v824, %v2680
    %v3128 = vmul.f32 %v825, %v2684
    %v3129 = vmul.f32 %v826, %v2688
    %v3130 = vmul.f32 %v827, %v2692
    %v3131 = vmul.f32 %v828, %v2696
    %v3132 = vmul.f32 %v829, %v2700
    %v3133 = vmul.f32 %v830, %v2704
    %v3134 = vmul.f32 %v831, %v2708
    %v3135 = vmul.f32 %v832, %v2712
    %v3136 = vmul.f32 %v833, %v2716
    %v3137 = vmul.f32 %v834, %v2720
    %v3138 = vmul.f32 %v835, %v2727
    %v3139 = vmul.f32 %v836, %v2731
    %v3140 = vmul.f32 %v837, %v2735
    %v3141 = vmul.f32 %v838, %v2739
    %v3142 = vmul.f32 %v839, %v2743
    %v3143 = vmul.f32 %v840, %v2747
    %v3144 = vmul.f32 %v841, %v2751
    %v3145 = vmul.f32 %v842, %v2755
    %v3146 = vmul.f32 %v843, %v2759
    %v3147 = vmul.f32 %v844, %v2763
    %v3148 = vmul.f32 %v845, %v2767
    %v3149 = vmul.f32 %v846, %v2771
    %v3150 = vmul.f32 %v847, %v2775
    %v3151 = vmul.f32 %v848, %v2779
    %v3152 = vmul.f32 %v849, %v2783
    %v3153 = vmul.f32 %v850, %v2787
    %v3154 = vmul.f32 %v851, %v2794
    %v3155 = vmul.f32 %v852, %v2798
    %v3156 = vmul.f32 %v853, %v2802
    %v3157 = vmul.f32 %v854, %v2806
    %v3158 = vmul.f32 %v855, %v2810
    %v3159 = vmul.f32 %v856, %v2814
    %v3160 = vmul.f32 %v857, %v2818
    %v3161 = vmul.f32 %v858, %v2822
    %v3162 = vmul.f32 %v859, %v2826
    %v3163 = vmul.f32 %v860, %v2830
    %v3164 = vmul.f32 %v861, %v2834
    %v3165 = vmul.f32 %v862, %v2838
    %v3166 = vmul.f32 %v863, %v2842
    %v3167 = vmul.f32 %v864, %v2846
    %v3168 = vmul.f32 %v865, %v2850
    %v3169 = vmul.f32 %v866, %v2854
    %v3170 = vmul.f32 %v867, %v2861
    %v3171 = vmul.f32 %v868, %v2865
    %v3172 = vmul.f32 %v869, %v2869
    %v3173 = vmul.f32 %v870, %v2873
    %v3174 = vmul.f32 %v871, %v2877
    %v3175 = vmul.f32 %v872, %v2881
    %v3176 = vmul.f32 %v873, %v2885
    %v3177 = vmul.f32 %v874, %v2889
    %v3178 = vld [vmem:[%s1] sm:$0xff]
    %v3179 = vld [vmem:[%s1 + $0x8] sm:$0xff]
    %v3180 = vld [vmem:[%s1 + $0x10] sm:$0xff]
    %v3181 = vld [vmem:[%s1 + $0x18] sm:$0xff]
    %v3182 = vld [vmem:[%s1 + $0x20] sm:$0xff]
    %v3183 = vld [vmem:[%s1 + $0x28] sm:$0xff]
    %v3184 = vld [vmem:[%s1 + $0x30] sm:$0xff]
    %v3185 = vld [vmem:[%s1 + $0x38] sm:$0xff]
    %v3186 = vld [vmem:[%s1 + $0x40] sm:$0xff]
    %v3187 = vld [vmem:[%s1 + $0x48] sm:$0xff]
    %v3188 = vld [vmem:[%s1 + $0x50] sm:$0xff]
    %v3189 = vld [vmem:[%s1 + $0x58] sm:$0xff]
    %v3190 = vld [vmem:[%s1 + $0x60] sm:$0xff]
    %v3191 = vld [vmem:[%s1 + $0x68] sm:$0xff]
    %v3192 = vld [vmem:[%s1 + $0x70] sm:$0xff]
    %v3193 = vld [vmem:[%s1 + $0x78] sm:$0xff]
    %v3194 = vld [vmem:[%s1 + $0x80] sm:$0xff]
    %v3195 = vld [vmem:[%s1 + $0x88] sm:$0xff]
    %v3196 = vld [vmem:[%s1 + $0x90] sm:$0xff]
    %v3197 = vld [vmem:[%s1 + $0x98] sm:$0xff]
    %v3198 = vld [vmem:[%s1 + $0xa0] sm:$0xff]
    %v3199 = vld [vmem:[%s1 + $0xa8] sm:$0xff]
    %v3200 = vld [vmem:[%s1 + $0xb0] sm:$0xff]
    %v3201 = vld [vmem:[%s1 + $0xb8] sm:$0xff]
    %v3202 = vld [vmem:[%s1 + $0xc0] sm:$0xff]
    %v3203 = vld [vmem:[%s1 + $0xc8] sm:$0xff]
    %v3204 = vld [vmem:[%s1 + $0xd0] sm:$0xff]
    %v3205 = vld [vmem:[%s1 + $0xd8] sm:$0xff]
    %v3206 = vld [vmem:[%s1 + $0xe0] sm:$0xff]
    %v3207 = vld [vmem:[%s1 + $0xe8] sm:$0xff]
    %v3208 = vld [vmem:[%s1 + $0xf0] sm:$0xff]
    %v3209 = vld [vmem:[%s1 + $0xf8] sm:$0xff]
    %v3210 = vld [vmem:[%s1 + $0x100] sm:$0xff]
    %v3211 = vld [vmem:[%s1 + $0x108] sm:$0xff]
    %v3212 = vld [vmem:[%s1 + $0x110] sm:$0xff]
    %v3213 = vld [vmem:[%s1 + $0x118] sm:$0xff]
    %v3214 = vld [vmem:[%s1 + $0x120] sm:$0xff]
    %v3215 = vld [vmem:[%s1 + $0x128] sm:$0xff]
    %v3216 = vld [vmem:[%s1 + $0x130] sm:$0xff]
    %v3217 = vld [vmem:[%s1 + $0x138] sm:$0xff]
    %v3218 = vld [vmem:[%s1 + $0x140] sm:$0xff]
    %v3219 = vld [vmem:[%s1 + $0x148] sm:$0xff]
    %v3220 = vld [vmem:[%s1 + $0x150] sm:$0xff]
    %v3221 = vld [vmem:[%s1 + $0x158] sm:$0xff]
    %v3222 = vld [vmem:[%s1 + $0x160] sm:$0xff]
    %v3223 = vld [vmem:[%s1 + $0x168] sm:$0xff]
    %v3224 = vld [vmem:[%s1 + $0x170] sm:$0xff]
    %v3225 = vld [vmem:[%s1 + $0x178] sm:$0xff]
    %v3226 = vld [vmem:[%s1 + $0x180] sm:$0xff]
    %v3227 = vld [vmem:[%s1 + $0x188] sm:$0xff]
    %v3228 = vld [vmem:[%s1 + $0x190] sm:$0xff]
    %v3229 = vld [vmem:[%s1 + $0x198] sm:$0xff]
    %v3230 = vld [vmem:[%s1 + $0x1a0] sm:$0xff]
    %v3231 = vld [vmem:[%s1 + $0x1a8] sm:$0xff]
    %v3232 = vld [vmem:[%s1 + $0x1b0] sm:$0xff]
    %v3233 = vld [vmem:[%s1 + $0x1b8] sm:$0xff]
    %v3234 = vld [vmem:[%s1 + $0x1c0] sm:$0xff]
    %v3235 = vld [vmem:[%s1 + $0x1c8] sm:$0xff]
    %v3236 = vld [vmem:[%s1 + $0x1d0] sm:$0xff]
    %v3237 = vld [vmem:[%s1 + $0x1d8] sm:$0xff]
    %v3238 = vld [vmem:[%s1 + $0x1e0] sm:$0xff]
    %v3239 = vld [vmem:[%s1 + $0x1e8] sm:$0xff]
    %v3240 = vld [vmem:[%s1 + $0x1f0] sm:$0xff]
    %v3241 = vld [vmem:[%s1 + $0x1f8] sm:$0xff]
    %v3242 = vld [vmem:[%s1 + $0x200] sm:$0xff]
    %v3243 = vld [vmem:[%s1 + $0x208] sm:$0xff]
    %v3244 = vld [vmem:[%s1 + $0x210] sm:$0xff]
    %v3245 = vld [vmem:[%s1 + $0x218] sm:$0xff]
    %v3246 = vld [vmem:[%s1 + $0x220] sm:$0xff]
    %v3247 = vld [vmem:[%s1 + $0x228] sm:$0xff]
    %v3248 = vld [vmem:[%s1 + $0x230] sm:$0xff]
    %v3249 = vld [vmem:[%s1 + $0x238] sm:$0xff]
    %v3250 = vld [vmem:[%s1 + $0x240] sm:$0xff]
    %v3251 = vld [vmem:[%s1 + $0x248] sm:$0xff]
    %v3252 = vld [vmem:[%s1 + $0x250] sm:$0xff]
    %v3253 = vld [vmem:[%s1 + $0x258] sm:$0xff]
    %v3254 = vld [vmem:[%s1 + $0x260] sm:$0xff]
    %v3255 = vld [vmem:[%s1 + $0x268] sm:$0xff]
    %v3256 = vld [vmem:[%s1 + $0x270] sm:$0xff]
    %v3257 = vld [vmem:[%s1 + $0x278] sm:$0xff]
    %v3258 = vld [vmem:[%s1 + $0x280] sm:$0xff]
    %v3259 = vld [vmem:[%s1 + $0x288] sm:$0xff]
    %v3260 = vld [vmem:[%s1 + $0x290] sm:$0xff]
    %v3261 = vld [vmem:[%s1 + $0x298] sm:$0xff]
    %v3262 = vld [vmem:[%s1 + $0x2a0] sm:$0xff]
    %v3263 = vld [vmem:[%s1 + $0x2a8] sm:$0xff]
    %v3264 = vld [vmem:[%s1 + $0x2b0] sm:$0xff]
    %v3265 = vld [vmem:[%s1 + $0x2b8] sm:$0xff]
    %v3266 = vld [vmem:[%s1 + $0x2c0] sm:$0xff]
    %v3267 = vld [vmem:[%s1 + $0x2c8] sm:$0xff]
    %v3268 = vld [vmem:[%s1 + $0x2d0] sm:$0xff]
    %v3269 = vld [vmem:[%s1 + $0x2d8] sm:$0xff]
    %v3270 = vld [vmem:[%s1 + $0x2e0] sm:$0xff]
    %v3271 = vld [vmem:[%s1 + $0x2e8] sm:$0xff]
    %v3272 = vld [vmem:[%s1 + $0x2f0] sm:$0xff]
    %v3273 = vld [vmem:[%s1 + $0x2f8] sm:$0xff]
    %v3274 = vld [vmem:[%s1 + $0x300] sm:$0xff]
    %v3275 = vld [vmem:[%s1 + $0x308] sm:$0xff]
    %v3276 = vld [vmem:[%s1 + $0x310] sm:$0xff]
    %v3277 = vld [vmem:[%s1 + $0x318] sm:$0xff]
    %v3278 = vld [vmem:[%s1 + $0x320] sm:$0xff]
    %v3279 = vld [vmem:[%s1 + $0x328] sm:$0xff]
    %v3280 = vld [vmem:[%s1 + $0x330] sm:$0xff]
    %v3281 = vld [vmem:[%s1 + $0x338] sm:$0xff]
    %v3282 = vld [vmem:[%s1 + $0x340] sm:$0xff]
    %v3283 = vld [vmem:[%s1 + $0x348] sm:$0xff]
    %v3284 = vld [vmem:[%s1 + $0x350] sm:$0xff]
    %v3285 = vld [vmem:[%s1 + $0x358] sm:$0xff]
    %v3286 = vld [vmem:[%s1 + $0x360] sm:$0xff]
    %v3287 = vld [vmem:[%s1 + $0x368] sm:$0xff]
    %v3288 = vld [vmem:[%s1 + $0x370] sm:$0xff]
    %v3289 = vld [vmem:[%s1 + $0x378] sm:$0xff]
    %v3290 = vld [vmem:[%s1 + $0x380] sm:$0xff]
    %v3291 = vld [vmem:[%s1 + $0x388] sm:$0xff]
    %v3292 = vld [vmem:[%s1 + $0x390] sm:$0xff]
    %v3293 = vld [vmem:[%s1 + $0x398] sm:$0xff]
    %v3294 = vld [vmem:[%s1 + $0x3a0] sm:$0xff]
    %v3295 = vld [vmem:[%s1 + $0x3a8] sm:$0xff]
    %v3296 = vld [vmem:[%s1 + $0x3b0] sm:$0xff]
    %v3297 = vld [vmem:[%s1 + $0x3b8] sm:$0xff]
    %v3298 = vld [vmem:[%s1 + $0x3c0] sm:$0xff]
    %v3299 = vld [vmem:[%s1 + $0x3c8] sm:$0xff]
    %v3300 = vld [vmem:[%s1 + $0x3d0] sm:$0xff]
    %v3301 = vld [vmem:[%s1 + $0x3d8] sm:$0xff]
    %v3302 = vld [vmem:[%s1 + $0x3e0] sm:$0xff]
    %v3303 = vld [vmem:[%s1 + $0x3e8] sm:$0xff]
    %v3304 = vld [vmem:[%s1 + $0x3f0] sm:$0xff]
    %v3305 = vld [vmem:[%s1 + $0x3f8] sm:$0xff]
    %v3306 = vld [vmem:[%s1 + $0x400] sm:$0xff]
    %v3307 = vld [vmem:[%s1 + $0x408] sm:$0xff]
    %v3308 = vld [vmem:[%s1 + $0x410] sm:$0xff]
    %v3309 = vld [vmem:[%s1 + $0x418] sm:$0xff]
    %v3310 = vld [vmem:[%s1 + $0x420] sm:$0xff]
    %v3311 = vld [vmem:[%s1 + $0x428] sm:$0xff]
    %v3312 = vld [vmem:[%s1 + $0x430] sm:$0xff]
    %v3313 = vld [vmem:[%s1 + $0x438] sm:$0xff]
    %v3314 = vld [vmem:[%s1 + $0x440] sm:$0xff]
    %v3315 = vld [vmem:[%s1 + $0x448] sm:$0xff]
    %v3316 = vld [vmem:[%s1 + $0x450] sm:$0xff]
    %v3317 = vld [vmem:[%s1 + $0x458] sm:$0xff]
    %v3318 = vld [vmem:[%s1 + $0x460] sm:$0xff]
    %v3319 = vld [vmem:[%s1 + $0x468] sm:$0xff]
    %v3320 = vld [vmem:[%s1 + $0x470] sm:$0xff]
    %v3321 = vld [vmem:[%s1 + $0x478] sm:$0xff]
    %v3322 = vld [vmem:[%s6] sm:$0xff]
    %v3323 = vld [vmem:[%s6 + $0x8] sm:$0xff]
    %v3324 = vld [vmem:[%s6 + $0x10] sm:$0xff]
    %v3325 = vld [vmem:[%s6 + $0x18] sm:$0xff]
    %v3326 = vld [vmem:[%s6 + $0x20] sm:$0xff]
    %v3327 = vld [vmem:[%s6 + $0x28] sm:$0xff]
    %v3328 = vld [vmem:[%s6 + $0x30] sm:$0xff]
    %v3329 = vld [vmem:[%s6 + $0x38] sm:$0xff]
    %v3330 = vld [vmem:[%s6 + $0x40] sm:$0xff]
    %v3331 = vld [vmem:[%s6 + $0x48] sm:$0xff]
    %v3332 = vld [vmem:[%s6 + $0x50] sm:$0xff]
    %v3333 = vld [vmem:[%s6 + $0x58] sm:$0xff]
    %v3334 = vld [vmem:[%s6 + $0x60] sm:$0xff]
    %v3335 = vld [vmem:[%s6 + $0x68] sm:$0xff]
    %v3336 = vld [vmem:[%s6 + $0x70] sm:$0xff]
    %v3337 = vld [vmem:[%s6 + $0x78] sm:$0xff]
    %v3338 = vld [vmem:[%s6 + $0x80] sm:$0xff]
    %v3339 = vld [vmem:[%s6 + $0x88] sm:$0xff]
    %v3340 = vld [vmem:[%s6 + $0x90] sm:$0xff]
    %v3341 = vld [vmem:[%s6 + $0x98] sm:$0xff]
    %v3342 = vld [vmem:[%s6 + $0xa0] sm:$0xff]
    %v3343 = vld [vmem:[%s6 + $0xa8] sm:$0xff]
    %v3344 = vld [vmem:[%s6 + $0xb0] sm:$0xff]
    %v3345 = vld [vmem:[%s6 + $0xb8] sm:$0xff]
    %v3346 = vld [vmem:[%s6 + $0xc0] sm:$0xff]
    %v3347 = vld [vmem:[%s6 + $0xc8] sm:$0xff]
    %v3348 = vld [vmem:[%s6 + $0xd0] sm:$0xff]
    %v3349 = vld [vmem:[%s6 + $0xd8] sm:$0xff]
    %v3350 = vld [vmem:[%s6 + $0xe0] sm:$0xff]
    %v3351 = vld [vmem:[%s6 + $0xe8] sm:$0xff]
    %v3352 = vld [vmem:[%s6 + $0xf0] sm:$0xff]
    %v3353 = vld [vmem:[%s6 + $0xf8] sm:$0xff]
    %v3354 = vld [vmem:[%s6 + $0x100] sm:$0xff]
    %v3355 = vld [vmem:[%s6 + $0x108] sm:$0xff]
    %v3356 = vld [vmem:[%s6 + $0x110] sm:$0xff]
    %v3357 = vld [vmem:[%s6 + $0x118] sm:$0xff]
    %v3358 = vld [vmem:[%s6 + $0x120] sm:$0xff]
    %v3359 = vld [vmem:[%s6 + $0x128] sm:$0xff]
    %v3360 = vld [vmem:[%s6 + $0x130] sm:$0xff]
    %v3361 = vld [vmem:[%s6 + $0x138] sm:$0xff]
    %v3362 = vld [vmem:[%s6 + $0x140] sm:$0xff]
    %v3363 = vld [vmem:[%s6 + $0x148] sm:$0xff]
    %v3364 = vld [vmem:[%s6 + $0x150] sm:$0xff]
    %v3365 = vld [vmem:[%s6 + $0x158] sm:$0xff]
    %v3366 = vld [vmem:[%s6 + $0x160] sm:$0xff]
    %v3367 = vld [vmem:[%s6 + $0x168] sm:$0xff]
    %v3368 = vld [vmem:[%s6 + $0x170] sm:$0xff]
    %v3369 = vld [vmem:[%s6 + $0x178] sm:$0xff]
    %v3370 = vld [vmem:[%s6 + $0x180] sm:$0xff]
    %v3371 = vld [vmem:[%s6 + $0x188] sm:$0xff]
    %v3372 = vld [vmem:[%s6 + $0x190] sm:$0xff]
    %v3373 = vld [vmem:[%s6 + $0x198] sm:$0xff]
    %v3374 = vld [vmem:[%s6 + $0x1a0] sm:$0xff]
    %v3375 = vld [vmem:[%s6 + $0x1a8] sm:$0xff]
    %v3376 = vld [vmem:[%s6 + $0x1b0] sm:$0xff]
    %v3377 = vld [vmem:[%s6 + $0x1b8] sm:$0xff]
    %v3378 = vld [vmem:[%s6 + $0x1c0] sm:$0xff]
    %v3379 = vld [vmem:[%s6 + $0x1c8] sm:$0xff]
    %v3380 = vld [vmem:[%s6 + $0x1d0] sm:$0xff]
    %v3381 = vld [vmem:[%s6 + $0x1d8] sm:$0xff]
    %v3382 = vld [vmem:[%s6 + $0x1e0] sm:$0xff]
    %v3383 = vld [vmem:[%s6 + $0x1e8] sm:$0xff]
    %v3384 = vld [vmem:[%s6 + $0x1f0] sm:$0xff]
    %v3385 = vld [vmem:[%s6 + $0x1f8] sm:$0xff]
    %v3386 = vld [vmem:[%s6 + $0x200] sm:$0xff]
    %v3387 = vld [vmem:[%s6 + $0x208] sm:$0xff]
    %v3388 = vld [vmem:[%s6 + $0x210] sm:$0xff]
    %v3389 = vld [vmem:[%s6 + $0x218] sm:$0xff]
    %v3390 = vld [vmem:[%s6 + $0x220] sm:$0xff]
    %v3391 = vld [vmem:[%s6 + $0x228] sm:$0xff]
    %v3392 = vld [vmem:[%s6 + $0x230] sm:$0xff]
    %v3393 = vld [vmem:[%s6 + $0x238] sm:$0xff]
    %v3394 = vld [vmem:[%s7] sm:$0x1]
    %v3395 = vld [vmem:[%s8] sm:$0xff]
    %v3396 = vld [vmem:[%s8 + $0x8] sm:$0xff]
    %v3397 = vld [vmem:[%s8 + $0x10] sm:$0xff]
    %v3398 = vld [vmem:[%s8 + $0x18] sm:$0xff]
    %v3399 = vld [vmem:[%s8 + $0x20] sm:$0xff]
    %v3400 = vld [vmem:[%s8 + $0x28] sm:$0xff]
    %v3401 = vld [vmem:[%s8 + $0x30] sm:$0xff]
    %v3402 = vld [vmem:[%s8 + $0x38] sm:$0xff]
    %v3403 = vld [vmem:[%s8 + $0x40] sm:$0xff]
    %v3404 = vld [vmem:[%s8 + $0x48] sm:$0xff]
    %v3405 = vld [vmem:[%s8 + $0x50] sm:$0xff]
    %v3406 = vld [vmem:[%s8 + $0x58] sm:$0xff]
    %v3407 = vld [vmem:[%s8 + $0x60] sm:$0xff]
    %v3408 = vld [vmem:[%s8 + $0x68] sm:$0xff]
    %v3409 = vld [vmem:[%s8 + $0x70] sm:$0xff]
    %v3410 = vld [vmem:[%s8 + $0x78] sm:$0xff]
    %v3411 = vld [vmem:[%s8 + $0x80] sm:$0xff]
    %v3412 = vld [vmem:[%s8 + $0x88] sm:$0xff]
    %v3413 = vld [vmem:[%s8 + $0x90] sm:$0xff]
    %v3414 = vld [vmem:[%s8 + $0x98] sm:$0xff]
    %v3415 = vld [vmem:[%s8 + $0xa0] sm:$0xf]
    %v3416 = vld [vmem:[%s8 + $0xa8] sm:$0xf]
    %v3417 = vld [vmem:[%s8 + $0xb0] sm:$0xf]
    %v3418 = vld [vmem:[%s8 + $0xb8] sm:$0xf]
    %v3419 = vld [vmem:[%s8 + $0xc0] sm:$0xf]
    %v3420 = vld [vmem:[%s9] sm:$0x1f]
    %v3421 = vsel %vm297, %v3178, 0.0
    %3422 = vadd.xlane.f32.xlu0 %v3421
    %v3423 = vpop.xlane.xlu0 %3422
    %v3424 = vsel %vm297, %v3179, 0.0
    %3425 = vadd.xlane.f32.xlu0 %v3424
    %v3426 = vpop.xlane.xlu0 %3425
    %v3427 = vsel %vm297, %v3180, 0.0
    %3428 = vadd.xlane.f32.xlu0 %v3427
    %v3429 = vpop.xlane.xlu0 %3428
    %v3430 = vsel %vm297, %v3181, 0.0
    %3431 = vadd.xlane.f32.xlu0 %v3430
    %v3432 = vpop.xlane.xlu0 %3431
    %v3433 = vsel %vm297, %v3182, 0.0
    %3434 = vadd.xlane.f32.xlu0 %v3433
    %v3435 = vpop.xlane.xlu0 %3434
    %v3436 = vsel %vm297, %v3183, 0.0
    %3437 = vadd.xlane.f32.xlu0 %v3436
    %v3438 = vpop.xlane.xlu0 %3437
    %v3439 = vsel %vm297, %v3184, 0.0
    %3440 = vadd.xlane.f32.xlu0 %v3439
    %v3441 = vpop.xlane.xlu0 %3440
    %v3442 = vsel %vm297, %v3185, 0.0
    %3443 = vadd.xlane.f32.xlu0 %v3442
    %v3444 = vpop.xlane.xlu0 %3443
    %v3445 = vsel %vm297, %v3186, 0.0
    %3446 = vadd.xlane.f32.xlu0 %v3445
    %v3447 = vpop.xlane.xlu0 %3446
    %v3448 = vsel %vm297, %v3187, 0.0
    %3449 = vadd.xlane.f32.xlu0 %v3448
    %v3450 = vpop.xlane.xlu0 %3449
    %v3451 = vsel %vm297, %v3188, 0.0
    %3452 = vadd.xlane.f32.xlu0 %v3451
    %v3453 = vpop.xlane.xlu0 %3452
    %v3454 = vsel %vm297, %v3189, 0.0
    %3455 = vadd.xlane.f32.xlu0 %v3454
    %v3456 = vpop.xlane.xlu0 %3455
    %v3457 = vsel %vm297, %v3190, 0.0
    %3458 = vadd.xlane.f32.xlu0 %v3457
    %v3459 = vpop.xlane.xlu0 %3458
    %v3460 = vsel %vm297, %v3191, 0.0
    %3461 = vadd.xlane.f32.xlu0 %v3460
    %v3462 = vpop.xlane.xlu0 %3461
    %v3463 = vsel %vm297, %v3192, 0.0
    %3464 = vadd.xlane.f32.xlu0 %v3463
    %v3465 = vpop.xlane.xlu0 %3464
    %v3466 = vsel %vm297, %v3193, 0.0
    %3467 = vadd.xlane.f32.xlu0 %v3466
    %v3468 = vpop.xlane.xlu0 %3467
    %v3469 = vsel %vm297, %v3194, 0.0
    %3470 = vadd.xlane.f32.xlu0 %v3469
    %v3471 = vpop.xlane.xlu0 %3470
    %v3472 = vsel %vm297, %v3195, 0.0
    %3473 = vadd.xlane.f32.xlu0 %v3472
    %v3474 = vpop.xlane.xlu0 %3473
    %v3475 = vsel %vm297, %v3196, 0.0
    %3476 = vadd.xlane.f32.xlu0 %v3475
    %v3477 = vpop.xlane.xlu0 %3476
    %v3478 = vsel %vm297, %v3197, 0.0
    %3479 = vadd.xlane.f32.xlu0 %v3478
    %v3480 = vpop.xlane.xlu0 %3479
    %v3481 = vsel %vm297, %v3198, 0.0
    %3482 = vadd.xlane.f32.xlu0 %v3481
    %v3483 = vpop.xlane.xlu0 %3482
    %v3484 = vsel %vm297, %v3199, 0.0
    %3485 = vadd.xlane.f32.xlu0 %v3484
    %v3486 = vpop.xlane.xlu0 %3485
    %v3487 = vsel %vm297, %v3200, 0.0
    %3488 = vadd.xlane.f32.xlu0 %v3487
    %v3489 = vpop.xlane.xlu0 %3488
    %v3490 = vsel %vm297, %v3201, 0.0
    %3491 = vadd.xlane.f32.xlu0 %v3490
    %v3492 = vpop.xlane.xlu0 %3491
    %v3493 = vsel %vm297, %v3202, 0.0
    %3494 = vadd.xlane.f32.xlu0 %v3493
    %v3495 = vpop.xlane.xlu0 %3494
    %v3496 = vsel %vm297, %v3203, 0.0
    %3497 = vadd.xlane.f32.xlu0 %v3496
    %v3498 = vpop.xlane.xlu0 %3497
    %v3499 = vsel %vm297, %v3204, 0.0
    %3500 = vadd.xlane.f32.xlu0 %v3499
    %v3501 = vpop.xlane.xlu0 %3500
    %v3502 = vsel %vm297, %v3205, 0.0
    %3503 = vadd.xlane.f32.xlu0 %v3502
    %v3504 = vpop.xlane.xlu0 %3503
    %v3505 = vsel %vm297, %v3206, 0.0
    %3506 = vadd.xlane.f32.xlu0 %v3505
    %v3507 = vpop.xlane.xlu0 %3506
    %v3508 = vsel %vm297, %v3207, 0.0
    %3509 = vadd.xlane.f32.xlu0 %v3508
    %v3510 = vpop.xlane.xlu0 %3509
    %v3511 = vsel %vm297, %v3208, 0.0
    %3512 = vadd.xlane.f32.xlu0 %v3511
    %v3513 = vpop.xlane.xlu0 %3512
    %v3514 = vsel %vm297, %v3209, 0.0
    %3515 = vadd.xlane.f32.xlu0 %v3514
    %v3516 = vpop.xlane.xlu0 %3515
    %v3517 = vsel %vm297, %v3210, 0.0
    %3518 = vadd.xlane.f32.xlu0 %v3517
    %v3519 = vpop.xlane.xlu0 %3518
    %v3520 = vsel %vm297, %v3211, 0.0
    %3521 = vadd.xlane.f32.xlu0 %v3520
    %v3522 = vpop.xlane.xlu0 %3521
    %v3523 = vsel %vm297, %v3212, 0.0
    %3524 = vadd.xlane.f32.xlu0 %v3523
    %v3525 = vpop.xlane.xlu0 %3524
    %v3526 = vsel %vm297, %v3213, 0.0
    %3527 = vadd.xlane.f32.xlu0 %v3526
    %v3528 = vpop.xlane.xlu0 %3527
    %v3529 = vsel %vm297, %v3214, 0.0
    %3530 = vadd.xlane.f32.xlu0 %v3529
    %v3531 = vpop.xlane.xlu0 %3530
    %v3532 = vsel %vm297, %v3215, 0.0
    %3533 = vadd.xlane.f32.xlu0 %v3532
    %v3534 = vpop.xlane.xlu0 %3533
    %v3535 = vsel %vm297, %v3216, 0.0
    %3536 = vadd.xlane.f32.xlu0 %v3535
    %v3537 = vpop.xlane.xlu0 %3536
    %v3538 = vsel %vm297, %v3217, 0.0
    %3539 = vadd.xlane.f32.xlu0 %v3538
    %v3540 = vpop.xlane.xlu0 %3539
    %v3541 = vsel %vm297, %v3218, 0.0
    %3542 = vadd.xlane.f32.xlu0 %v3541
    %v3543 = vpop.xlane.xlu0 %3542
    %v3544 = vsel %vm297, %v3219, 0.0
    %3545 = vadd.xlane.f32.xlu0 %v3544
    %v3546 = vpop.xlane.xlu0 %3545
    %v3547 = vsel %vm297, %v3220, 0.0
    %3548 = vadd.xlane.f32.xlu0 %v3547
    %v3549 = vpop.xlane.xlu0 %3548
    %v3550 = vsel %vm297, %v3221, 0.0
    %3551 = vadd.xlane.f32.xlu0 %v3550
    %v3552 = vpop.xlane.xlu0 %3551
    %v3553 = vsel %vm297, %v3222, 0.0
    %3554 = vadd.xlane.f32.xlu0 %v3553
    %v3555 = vpop.xlane.xlu0 %3554
    %v3556 = vsel %vm297, %v3223, 0.0
    %3557 = vadd.xlane.f32.xlu0 %v3556
    %v3558 = vpop.xlane.xlu0 %3557
    %v3559 = vsel %vm297, %v3224, 0.0
    %3560 = vadd.xlane.f32.xlu0 %v3559
    %v3561 = vpop.xlane.xlu0 %3560
    %v3562 = vsel %vm297, %v3225, 0.0
    %3563 = vadd.xlane.f32.xlu0 %v3562
    %v3564 = vpop.xlane.xlu0 %3563
    %v3565 = vsel %vm297, %v3226, 0.0
    %3566 = vadd.xlane.f32.xlu0 %v3565
    %v3567 = vpop.xlane.xlu0 %3566
    %v3568 = vsel %vm297, %v3227, 0.0
    %3569 = vadd.xlane.f32.xlu0 %v3568
    %v3570 = vpop.xlane.xlu0 %3569
    %v3571 = vsel %vm297, %v3228, 0.0
    %3572 = vadd.xlane.f32.xlu0 %v3571
    %v3573 = vpop.xlane.xlu0 %3572
    %v3574 = vsel %vm297, %v3229, 0.0
    %3575 = vadd.xlane.f32.xlu0 %v3574
    %v3576 = vpop.xlane.xlu0 %3575
    %v3577 = vsel %vm297, %v3230, 0.0
    %3578 = vadd.xlane.f32.xlu0 %v3577
    %v3579 = vpop.xlane.xlu0 %3578
    %v3580 = vsel %vm297, %v3231, 0.0
    %3581 = vadd.xlane.f32.xlu0 %v3580
    %v3582 = vpop.xlane.xlu0 %3581
    %v3583 = vsel %vm297, %v3232, 0.0
    %3584 = vadd.xlane.f32.xlu0 %v3583
    %v3585 = vpop.xlane.xlu0 %3584
    %v3586 = vsel %vm297, %v3233, 0.0
    %3587 = vadd.xlane.f32.xlu0 %v3586
    %v3588 = vpop.xlane.xlu0 %3587
    %v3589 = vsel %vm297, %v3234, 0.0
    %3590 = vadd.xlane.f32.xlu0 %v3589
    %v3591 = vpop.xlane.xlu0 %3590
    %v3592 = vsel %vm297, %v3235, 0.0
    %3593 = vadd.xlane.f32.xlu0 %v3592
    %v3594 = vpop.xlane.xlu0 %3593
    %v3595 = vsel %vm297, %v3236, 0.0
    %3596 = vadd.xlane.f32.xlu0 %v3595
    %v3597 = vpop.xlane.xlu0 %3596
    %v3598 = vsel %vm297, %v3237, 0.0
    %3599 = vadd.xlane.f32.xlu0 %v3598
    %v3600 = vpop.xlane.xlu0 %3599
    %v3601 = vsel %vm297, %v3238, 0.0
    %3602 = vadd.xlane.f32.xlu0 %v3601
    %v3603 = vpop.xlane.xlu0 %3602
    %v3604 = vsel %vm297, %v3239, 0.0
    %3605 = vadd.xlane.f32.xlu0 %v3604
    %v3606 = vpop.xlane.xlu0 %3605
    %v3607 = vsel %vm297, %v3240, 0.0
    %3608 = vadd.xlane.f32.xlu0 %v3607
    %v3609 = vpop.xlane.xlu0 %3608
    %v3610 = vsel %vm297, %v3241, 0.0
    %3611 = vadd.xlane.f32.xlu0 %v3610
    %v3612 = vpop.xlane.xlu0 %3611
    %v3613 = vsel %vm297, %v3242, 0.0
    %3614 = vadd.xlane.f32.xlu0 %v3613
    %v3615 = vpop.xlane.xlu0 %3614
    %v3616 = vsel %vm297, %v3243, 0.0
    %3617 = vadd.xlane.f32.xlu0 %v3616
    %v3618 = vpop.xlane.xlu0 %3617
    %v3619 = vsel %vm297, %v3244, 0.0
    %3620 = vadd.xlane.f32.xlu0 %v3619
    %v3621 = vpop.xlane.xlu0 %3620
    %v3622 = vsel %vm297, %v3245, 0.0
    %3623 = vadd.xlane.f32.xlu0 %v3622
    %v3624 = vpop.xlane.xlu0 %3623
    %v3625 = vsel %vm297, %v3246, 0.0
    %3626 = vadd.xlane.f32.xlu0 %v3625
    %v3627 = vpop.xlane.xlu0 %3626
    %v3628 = vsel %vm297, %v3247, 0.0
    %3629 = vadd.xlane.f32.xlu0 %v3628
    %v3630 = vpop.xlane.xlu0 %3629
    %v3631 = vsel %vm297, %v3248, 0.0
    %3632 = vadd.xlane.f32.xlu0 %v3631
    %v3633 = vpop.xlane.xlu0 %3632
    %v3634 = vsel %vm297, %v3249, 0.0
    %3635 = vadd.xlane.f32.xlu0 %v3634
    %v3636 = vpop.xlane.xlu0 %3635
    %v3637 = vsel %vm297, %v3250, 0.0
    %3638 = vadd.xlane.f32.xlu0 %v3637
    %v3639 = vpop.xlane.xlu0 %3638
    %v3640 = vsel %vm297, %v3251, 0.0
    %3641 = vadd.xlane.f32.xlu0 %v3640
    %v3642 = vpop.xlane.xlu0 %3641
    %v3643 = vsel %vm297, %v3252, 0.0
    %3644 = vadd.xlane.f32.xlu0 %v3643
    %v3645 = vpop.xlane.xlu0 %3644
    %v3646 = vsel %vm297, %v3253, 0.0
    %3647 = vadd.xlane.f32.xlu0 %v3646
    %v3648 = vpop.xlane.xlu0 %3647
    %v3649 = vsel %vm297, %v3254, 0.0
    %3650 = vadd.xlane.f32.xlu0 %v3649
    %v3651 = vpop.xlane.xlu0 %3650
    %v3652 = vsel %vm297, %v3255, 0.0
    %3653 = vadd.xlane.f32.xlu0 %v3652
    %v3654 = vpop.xlane.xlu0 %3653
    %v3655 = vsel %vm297, %v3256, 0.0
    %3656 = vadd.xlane.f32.xlu0 %v3655
    %v3657 = vpop.xlane.xlu0 %3656
    %v3658 = vsel %vm297, %v3257, 0.0
    %3659 = vadd.xlane.f32.xlu0 %v3658
    %v3660 = vpop.xlane.xlu0 %3659
    %v3661 = vsel %vm297, %v3258, 0.0
    %3662 = vadd.xlane.f32.xlu0 %v3661
    %v3663 = vpop.xlane.xlu0 %3662
    %v3664 = vsel %vm297, %v3259, 0.0
    %3665 = vadd.xlane.f32.xlu0 %v3664
    %v3666 = vpop.xlane.xlu0 %3665
    %v3667 = vsel %vm297, %v3260, 0.0
    %3668 = vadd.xlane.f32.xlu0 %v3667
    %v3669 = vpop.xlane.xlu0 %3668
    %v3670 = vsel %vm297, %v3261, 0.0
    %3671 = vadd.xlane.f32.xlu0 %v3670
    %v3672 = vpop.xlane.xlu0 %3671
    %v3673 = vsel %vm297, %v3262, 0.0
    %3674 = vadd.xlane.f32.xlu0 %v3673
    %v3675 = vpop.xlane.xlu0 %3674
    %v3676 = vsel %vm297, %v3263, 0.0
    %3677 = vadd.xlane.f32.xlu0 %v3676
    %v3678 = vpop.xlane.xlu0 %3677
    %v3679 = vsel %vm297, %v3264, 0.0
    %3680 = vadd.xlane.f32.xlu0 %v3679
    %v3681 = vpop.xlane.xlu0 %3680
    %v3682 = vsel %vm297, %v3265, 0.0
    %3683 = vadd.xlane.f32.xlu0 %v3682
    %v3684 = vpop.xlane.xlu0 %3683
    %v3685 = vsel %vm297, %v3266, 0.0
    %3686 = vadd.xlane.f32.xlu0 %v3685
    %v3687 = vpop.xlane.xlu0 %3686
    %v3688 = vsel %vm297, %v3267, 0.0
    %3689 = vadd.xlane.f32.xlu0 %v3688
    %v3690 = vpop.xlane.xlu0 %3689
    %v3691 = vsel %vm297, %v3268, 0.0
    %3692 = vadd.xlane.f32.xlu0 %v3691
    %v3693 = vpop.xlane.xlu0 %3692
    %v3694 = vsel %vm297, %v3269, 0.0
    %3695 = vadd.xlane.f32.xlu0 %v3694
    %v3696 = vpop.xlane.xlu0 %3695
    %v3697 = vsel %vm297, %v3270, 0.0
    %3698 = vadd.xlane.f32.xlu0 %v3697
    %v3699 = vpop.xlane.xlu0 %3698
    %v3700 = vsel %vm297, %v3271, 0.0
    %3701 = vadd.xlane.f32.xlu0 %v3700
    %v3702 = vpop.xlane.xlu0 %3701
    %v3703 = vsel %vm297, %v3272, 0.0
    %3704 = vadd.xlane.f32.xlu0 %v3703
    %v3705 = vpop.xlane.xlu0 %3704
    %v3706 = vsel %vm297, %v3273, 0.0
    %3707 = vadd.xlane.f32.xlu0 %v3706
    %v3708 = vpop.xlane.xlu0 %3707
    %v3709 = vsel %vm297, %v3274, 0.0
    %3710 = vadd.xlane.f32.xlu0 %v3709
    %v3711 = vpop.xlane.xlu0 %3710
    %v3712 = vsel %vm297, %v3275, 0.0
    %3713 = vadd.xlane.f32.xlu0 %v3712
    %v3714 = vpop.xlane.xlu0 %3713
    %v3715 = vsel %vm297, %v3276, 0.0
    %3716 = vadd.xlane.f32.xlu0 %v3715
    %v3717 = vpop.xlane.xlu0 %3716
    %v3718 = vsel %vm297, %v3277, 0.0
    %3719 = vadd.xlane.f32.xlu0 %v3718
    %v3720 = vpop.xlane.xlu0 %3719
    %v3721 = vsel %vm297, %v3278, 0.0
    %3722 = vadd.xlane.f32.xlu0 %v3721
    %v3723 = vpop.xlane.xlu0 %3722
    %v3724 = vsel %vm297, %v3279, 0.0
    %3725 = vadd.xlane.f32.xlu0 %v3724
    %v3726 = vpop.xlane.xlu0 %3725
    %v3727 = vsel %vm297, %v3280, 0.0
    %3728 = vadd.xlane.f32.xlu0 %v3727
    %v3729 = vpop.xlane.xlu0 %3728
    %v3730 = vsel %vm297, %v3281, 0.0
    %3731 = vadd.xlane.f32.xlu0 %v3730
    %v3732 = vpop.xlane.xlu0 %3731
    %v3733 = vsel %vm297, %v3282, 0.0
    %3734 = vadd.xlane.f32.xlu0 %v3733
    %v3735 = vpop.xlane.xlu0 %3734
    %v3736 = vsel %vm297, %v3283, 0.0
    %3737 = vadd.xlane.f32.xlu0 %v3736
    %v3738 = vpop.xlane.xlu0 %3737
    %v3739 = vsel %vm297, %v3284, 0.0
    %3740 = vadd.xlane.f32.xlu0 %v3739
    %v3741 = vpop.xlane.xlu0 %3740
    %v3742 = vsel %vm297, %v3285, 0.0
    %3743 = vadd.xlane.f32.xlu0 %v3742
    %v3744 = vpop.xlane.xlu0 %3743
    %v3745 = vsel %vm297, %v3286, 0.0
    %3746 = vadd.xlane.f32.xlu0 %v3745
    %v3747 = vpop.xlane.xlu0 %3746
    %v3748 = vsel %vm297, %v3287, 0.0
    %3749 = vadd.xlane.f32.xlu0 %v3748
    %v3750 = vpop.xlane.xlu0 %3749
    %v3751 = vsel %vm297, %v3288, 0.0
    %3752 = vadd.xlane.f32.xlu0 %v3751
    %v3753 = vpop.xlane.xlu0 %3752
    %v3754 = vsel %vm297, %v3289, 0.0
    %3755 = vadd.xlane.f32.xlu0 %v3754
    %v3756 = vpop.xlane.xlu0 %3755
    %v3757 = vsel %vm297, %v3290, 0.0
    %3758 = vadd.xlane.f32.xlu0 %v3757
    %v3759 = vpop.xlane.xlu0 %3758
    %v3760 = vsel %vm297, %v3291, 0.0
    %3761 = vadd.xlane.f32.xlu0 %v3760
    %v3762 = vpop.xlane.xlu0 %3761
    %v3763 = vsel %vm297, %v3292, 0.0
    %3764 = vadd.xlane.f32.xlu0 %v3763
    %v3765 = vpop.xlane.xlu0 %3764
    %v3766 = vsel %vm297, %v3293, 0.0
    %3767 = vadd.xlane.f32.xlu0 %v3766
    %v3768 = vpop.xlane.xlu0 %3767
    %v3769 = vsel %vm297, %v3294, 0.0
    %3770 = vadd.xlane.f32.xlu0 %v3769
    %v3771 = vpop.xlane.xlu0 %3770
    %v3772 = vsel %vm297, %v3295, 0.0
    %3773 = vadd.xlane.f32.xlu0 %v3772
    %v3774 = vpop.xlane.xlu0 %3773
    %v3775 = vsel %vm297, %v3296, 0.0
    %3776 = vadd.xlane.f32.xlu0 %v3775
    %v3777 = vpop.xlane.xlu0 %3776
    %v3778 = vsel %vm297, %v3297, 0.0
    %3779 = vadd.xlane.f32.xlu0 %v3778
    %v3780 = vpop.xlane.xlu0 %3779
    %v3781 = vsel %vm297, %v3298, 0.0
    %3782 = vadd.xlane.f32.xlu0 %v3781
    %v3783 = vpop.xlane.xlu0 %3782
    %v3784 = vsel %vm297, %v3299, 0.0
    %3785 = vadd.xlane.f32.xlu0 %v3784
    %v3786 = vpop.xlane.xlu0 %3785
    %v3787 = vsel %vm297, %v3300, 0.0
    %3788 = vadd.xlane.f32.xlu0 %v3787
    %v3789 = vpop.xlane.xlu0 %3788
    %v3790 = vsel %vm297, %v3301, 0.0
    %3791 = vadd.xlane.f32.xlu0 %v3790
    %v3792 = vpop.xlane.xlu0 %3791
    %v3793 = vsel %vm297, %v3302, 0.0
    %3794 = vadd.xlane.f32.xlu0 %v3793
    %v3795 = vpop.xlane.xlu0 %3794
    %v3796 = vsel %vm297, %v3303, 0.0
    %3797 = vadd.xlane.f32.xlu0 %v3796
    %v3798 = vpop.xlane.xlu0 %3797
    %v3799 = vsel %vm297, %v3304, 0.0
    %3800 = vadd.xlane.f32.xlu0 %v3799
    %v3801 = vpop.xlane.xlu0 %3800
    %v3802 = vsel %vm297, %v3305, 0.0
    %3803 = vadd.xlane.f32.xlu0 %v3802
    %v3804 = vpop.xlane.xlu0 %3803
    %v3805 = vsel %vm297, %v3306, 0.0
    %3806 = vadd.xlane.f32.xlu0 %v3805
    %v3807 = vpop.xlane.xlu0 %3806
    %v3808 = vsel %vm297, %v3307, 0.0
    %3809 = vadd.xlane.f32.xlu0 %v3808
    %v3810 = vpop.xlane.xlu0 %3809
    %v3811 = vsel %vm297, %v3308, 0.0
    %3812 = vadd.xlane.f32.xlu0 %v3811
    %v3813 = vpop.xlane.xlu0 %3812
    %v3814 = vsel %vm297, %v3309, 0.0
    %3815 = vadd.xlane.f32.xlu0 %v3814
    %v3816 = vpop.xlane.xlu0 %3815
    %v3817 = vsel %vm297, %v3310, 0.0
    %3818 = vadd.xlane.f32.xlu0 %v3817
    %v3819 = vpop.xlane.xlu0 %3818
    %v3820 = vsel %vm297, %v3311, 0.0
    %3821 = vadd.xlane.f32.xlu0 %v3820
    %v3822 = vpop.xlane.xlu0 %3821
    %v3823 = vsel %vm297, %v3312, 0.0
    %3824 = vadd.xlane.f32.xlu0 %v3823
    %v3825 = vpop.xlane.xlu0 %3824
    %v3826 = vsel %vm297, %v3313, 0.0
    %3827 = vadd.xlane.f32.xlu0 %v3826
    %v3828 = vpop.xlane.xlu0 %3827
    %v3829 = vsel %vm297, %v3314, 0.0
    %3830 = vadd.xlane.f32.xlu0 %v3829
    %v3831 = vpop.xlane.xlu0 %3830
    %v3832 = vsel %vm297, %v3315, 0.0
    %3833 = vadd.xlane.f32.xlu0 %v3832
    %v3834 = vpop.xlane.xlu0 %3833
    %v3835 = vsel %vm297, %v3316, 0.0
    %3836 = vadd.xlane.f32.xlu0 %v3835
    %v3837 = vpop.xlane.xlu0 %3836
    %v3838 = vsel %vm297, %v3317, 0.0
    %3839 = vadd.xlane.f32.xlu0 %v3838
    %v3840 = vpop.xlane.xlu0 %3839
    %v3841 = vsel %vm297, %v3318, 0.0
    %3842 = vadd.xlane.f32.xlu0 %v3841
    %v3843 = vpop.xlane.xlu0 %3842
    %v3844 = vsel %vm297, %v3319, 0.0
    %3845 = vadd.xlane.f32.xlu0 %v3844
    %v3846 = vpop.xlane.xlu0 %3845
    %v3847 = vsel %vm297, %v3320, 0.0
    %3848 = vadd.xlane.f32.xlu0 %v3847
    %v3849 = vpop.xlane.xlu0 %3848
    %v3850 = vsel %vm297, %v3321, 0.0
    %3851 = vadd.xlane.f32.xlu0 %v3850
    %v3852 = vpop.xlane.xlu0 %3851
    %v3853 = vmul.f32 %v3423, %v730
    %v3854 = vmul.f32 %v3426, %v730
    %v3855 = vmul.f32 %v3429, %v730
    %v3856 = vmul.f32 %v3432, %v730
    %v3857 = vmul.f32 %v3435, %v730
    %v3858 = vmul.f32 %v3438, %v730
    %v3859 = vmul.f32 %v3441, %v730
    %v3860 = vmul.f32 %v3444, %v730
    %v3861 = vmul.f32 %v3447, %v730
    %v3862 = vmul.f32 %v3450, %v730
    %v3863 = vmul.f32 %v3453, %v730
    %v3864 = vmul.f32 %v3456, %v730
    %v3865 = vmul.f32 %v3459, %v730
    %v3866 = vmul.f32 %v3462, %v730
    %v3867 = vmul.f32 %v3465, %v730
    %v3868 = vmul.f32 %v3468, %v730
    %v3869 = vmul.f32 %v3471, %v730
    %v3870 = vmul.f32 %v3474, %v730
    %v3871 = vmul.f32 %v3477, %v730
    %v3872 = vmul.f32 %v3480, %v730
    %v3873 = vmul.f32 %v3483, %v730
    %v3874 = vmul.f32 %v3486, %v730
    %v3875 = vmul.f32 %v3489, %v730
    %v3876 = vmul.f32 %v3492, %v730
    %v3877 = vmul.f32 %v3495, %v730
    %v3878 = vmul.f32 %v3498, %v730
    %v3879 = vmul.f32 %v3501, %v730
    %v3880 = vmul.f32 %v3504, %v730
    %v3881 = vmul.f32 %v3507, %v730
    %v3882 = vmul.f32 %v3510, %v730
    %v3883 = vmul.f32 %v3513, %v730
    %v3884 = vmul.f32 %v3516, %v730
    %v3885 = vmul.f32 %v3519, %v730
    %v3886 = vmul.f32 %v3522, %v730
    %v3887 = vmul.f32 %v3525, %v730
    %v3888 = vmul.f32 %v3528, %v730
    %v3889 = vmul.f32 %v3531, %v730
    %v3890 = vmul.f32 %v3534, %v730
    %v3891 = vmul.f32 %v3537, %v730
    %v3892 = vmul.f32 %v3540, %v730
    %v3893 = vmul.f32 %v3543, %v730
    %v3894 = vmul.f32 %v3546, %v730
    %v3895 = vmul.f32 %v3549, %v730
    %v3896 = vmul.f32 %v3552, %v730
    %v3897 = vmul.f32 %v3555, %v730
    %v3898 = vmul.f32 %v3558, %v730
    %v3899 = vmul.f32 %v3561, %v730
    %v3900 = vmul.f32 %v3564, %v730
    %v3901 = vmul.f32 %v3567, %v730
    %v3902 = vmul.f32 %v3570, %v730
    %v3903 = vmul.f32 %v3573, %v730
    %v3904 = vmul.f32 %v3576, %v730
    %v3905 = vmul.f32 %v3579, %v730
    %v3906 = vmul.f32 %v3582, %v730
    %v3907 = vmul.f32 %v3585, %v730
    %v3908 = vmul.f32 %v3588, %v730
    %v3909 = vmul.f32 %v3591, %v730
    %v3910 = vmul.f32 %v3594, %v730
    %v3911 = vmul.f32 %v3597, %v730
    %v3912 = vmul.f32 %v3600, %v730
    %v3913 = vmul.f32 %v3603, %v730
    %v3914 = vmul.f32 %v3606, %v730
    %v3915 = vmul.f32 %v3609, %v730
    %v3916 = vmul.f32 %v3612, %v730
    %v3917 = vmul.f32 %v3615, %v730
    %v3918 = vmul.f32 %v3618, %v730
    %v3919 = vmul.f32 %v3621, %v730
    %v3920 = vmul.f32 %v3624, %v730
    %v3921 = vmul.f32 %v3627, %v730
    %v3922 = vmul.f32 %v3630, %v730
    %v3923 = vmul.f32 %v3633, %v730
    %v3924 = vmul.f32 %v3636, %v730
    %v3925 = vmul.f32 %v3639, %v730
    %v3926 = vmul.f32 %v3642, %v730
    %v3927 = vmul.f32 %v3645, %v730
    %v3928 = vmul.f32 %v3648, %v730
    %v3929 = vmul.f32 %v3651, %v730
    %v3930 = vmul.f32 %v3654, %v730
    %v3931 = vmul.f32 %v3657, %v730
    %v3932 = vmul.f32 %v3660, %v730
    %v3933 = vmul.f32 %v3663, %v730
    %v3934 = vmul.f32 %v3666, %v730
    %v3935 = vmul.f32 %v3669, %v730
    %v3936 = vmul.f32 %v3672, %v730
    %v3937 = vmul.f32 %v3675, %v730
    %v3938 = vmul.f32 %v3678, %v730
    %v3939 = vmul.f32 %v3681, %v730
    %v3940 = vmul.f32 %v3684, %v730
    %v3941 = vmul.f32 %v3687, %v730
    %v3942 = vmul.f32 %v3690, %v730
    %v3943 = vmul.f32 %v3693, %v730
    %v3944 = vmul.f32 %v3696, %v730
    %v3945 = vmul.f32 %v3699, %v730
    %v3946 = vmul.f32 %v3702, %v730
    %v3947 = vmul.f32 %v3705, %v730
    %v3948 = vmul.f32 %v3708, %v730
    %v3949 = vmul.f32 %v3711, %v730
    %v3950 = vmul.f32 %v3714, %v730
    %v3951 = vmul.f32 %v3717, %v730
    %v3952 = vmul.f32 %v3720, %v730
    %v3953 = vmul.f32 %v3723, %v730
    %v3954 = vmul.f32 %v3726, %v730
    %v3955 = vmul.f32 %v3729, %v730
    %v3956 = vmul.f32 %v3732, %v730
    %v3957 = vmul.f32 %v3735, %v730
    %v3958 = vmul.f32 %v3738, %v730
    %v3959 = vmul.f32 %v3741, %v730
    %v3960 = vmul.f32 %v3744, %v730
    %v3961 = vmul.f32 %v3747, %v730
    %v3962 = vmul.f32 %v3750, %v730
    %v3963 = vmul.f32 %v3753, %v730
    %v3964 = vmul.f32 %v3756, %v730
    %v3965 = vmul.f32 %v3759, %v730
    %v3966 = vmul.f32 %v3762, %v730
    %v3967 = vmul.f32 %v3765, %v730
    %v3968 = vmul.f32 %v3768, %v730
    %v3969 = vmul.f32 %v3771, %v730
    %v3970 = vmul.f32 %v3774, %v730
    %v3971 = vmul.f32 %v3777, %v730
    %v3972 = vmul.f32 %v3780, %v730
    %v3973 = vmul.f32 %v3783, %v730
    %v3974 = vmul.f32 %v3786, %v730
    %v3975 = vmul.f32 %v3789, %v730
    %v3976 = vmul.f32 %v3792, %v730
    %v3977 = vmul.f32 %v3795, %v730
    %v3978 = vmul.f32 %v3798, %v730
    %v3979 = vmul.f32 %v3801, %v730
    %v3980 = vmul.f32 %v3804, %v730
    %v3981 = vmul.f32 %v3807, %v730
    %v3982 = vmul.f32 %v3810, %v730
    %v3983 = vmul.f32 %v3813, %v730
    %v3984 = vmul.f32 %v3816, %v730
    %v3985 = vmul.f32 %v3819, %v730
    %v3986 = vmul.f32 %v3822, %v730
    %v3987 = vmul.f32 %v3825, %v730
    %v3988 = vmul.f32 %v3828, %v730
    %v3989 = vmul.f32 %v3831, %v730
    %v3990 = vmul.f32 %v3834, %v730
    %v3991 = vmul.f32 %v3837, %v730
    %v3992 = vmul.f32 %v3840, %v730
    %v3993 = vmul.f32 %v3843, %v730
    %v3994 = vmul.f32 %v3846, %v730
    %v3995 = vmul.f32 %v3849, %v730
    %v3996 = vmul.f32 %v3852, %v730
    %v3998 = vlaneseq
    %v3999 = vshrl.u32 %v3998, 7
    %v4000 = vsub.s32 0, %v3999
    %v4001 = vrot.slane %v3394, %v4000
    %v4147 = vlaneseq
    %v4148 = vshrl.u32 %v4147, 7
    %v4149 = vsub.s32 %v1026, %v4148
    %v4150 = vrot.slane %v3853, %v4149
    %v4151 = vlaneseq
    %v4152 = vshrl.u32 %v4151, 7
    %v4153 = vsub.s32 %v1031, %v4152
    %v4154 = vrot.slane %v3854, %v4153
    %v4155 = vsel %vm1036, %v4154, %v4150
    %v4156 = vlaneseq
    %v4157 = vshrl.u32 %v4156, 7
    %v4158 = vsub.s32 %v1038, %v4157
    %v4159 = vrot.slane %v3855, %v4158
    %v4160 = vsel %vm1043, %v4159, %v4155
    %v4161 = vlaneseq
    %v4162 = vshrl.u32 %v4161, 7
    %v4163 = vsub.s32 %v1045, %v4162
    %v4164 = vrot.slane %v3856, %v4163
    %v4165 = vsel %vm1050, %v4164, %v4160
    %v4166 = vlaneseq
    %v4167 = vshrl.u32 %v4166, 7
    %v4168 = vsub.s32 %v1052, %v4167
    %v4169 = vrot.slane %v3857, %v4168
    %v4170 = vsel %vm1057, %v4169, %v4165
    %v4171 = vlaneseq
    %v4172 = vshrl.u32 %v4171, 7
    %v4173 = vsub.s32 %v1059, %v4172
    %v4174 = vrot.slane %v3858, %v4173
    %v4175 = vsel %vm1064, %v4174, %v4170
    %v4176 = vlaneseq
    %v4177 = vshrl.u32 %v4176, 7
    %v4178 = vsub.s32 %v1066, %v4177
    %v4179 = vrot.slane %v3859, %v4178
    %v4180 = vsel %vm1071, %v4179, %v4175
    %v4181 = vlaneseq
    %v4182 = vshrl.u32 %v4181, 7
    %v4183 = vsub.s32 %v1073, %v4182
    %v4184 = vrot.slane %v3860, %v4183
    %v4185 = vsel %vm1078, %v4184, %v4180
    %v4186 = vlaneseq
    %v4187 = vshrl.u32 %v4186, 7
    %v4188 = vsub.s32 %v1080, %v4187
    %v4189 = vrot.slane %v3861, %v4188
    %v4190 = vsel %vm1085, %v4189, %v4185
    %v4191 = vlaneseq
    %v4192 = vshrl.u32 %v4191, 7
    %v4193 = vsub.s32 %v1087, %v4192
    %v4194 = vrot.slane %v3862, %v4193
    %v4195 = vsel %vm1092, %v4194, %v4190
    %v4196 = vlaneseq
    %v4197 = vshrl.u32 %v4196, 7
    %v4198 = vsub.s32 %v1094, %v4197
    %v4199 = vrot.slane %v3863, %v4198
    %v4200 = vsel %vm1099, %v4199, %v4195
    %v4201 = vlaneseq
    %v4202 = vshrl.u32 %v4201, 7
    %v4203 = vsub.s32 %v1101, %v4202
    %v4204 = vrot.slane %v3864, %v4203
    %v4205 = vsel %vm1106, %v4204, %v4200
    %v4206 = vlaneseq
    %v4207 = vshrl.u32 %v4206, 7
    %v4208 = vsub.s32 %v1108, %v4207
    %v4209 = vrot.slane %v3865, %v4208
    %v4210 = vsel %vm1113, %v4209, %v4205
    %v4211 = vlaneseq
    %v4212 = vshrl.u32 %v4211, 7
    %v4213 = vsub.s32 %v1115, %v4212
    %v4214 = vrot.slane %v3866, %v4213
    %v4215 = vsel %vm1120, %v4214, %v4210
    %v4216 = vlaneseq
    %v4217 = vshrl.u32 %v4216, 7
    %v4218 = vsub.s32 %v1122, %v4217
    %v4219 = vrot.slane %v3867, %v4218
    %v4220 = vsel %vm1127, %v4219, %v4215
    %v4221 = vlaneseq
    %v4222 = vshrl.u32 %v4221, 7
    %v4223 = vsub.s32 %v1129, %v4222
    %v4224 = vrot.slane %v3868, %v4223
    %v4225 = vsel %vm1134, %v4224, %v4220
    %v4226 = vlaneseq
    %v4227 = vshrl.u32 %v4226, 7
    %v4228 = vsub.s32 %v1026, %v4227
    %v4229 = vrot.slane %v3869, %v4228
    %v4230 = vlaneseq
    %v4231 = vshrl.u32 %v4230, 7
    %v4232 = vsub.s32 %v1031, %v4231
    %v4233 = vrot.slane %v3870, %v4232
    %v4234 = vsel %vm1036, %v4233, %v4229
    %v4235 = vlaneseq
    %v4236 = vshrl.u32 %v4235, 7
    %v4237 = vsub.s32 %v1038, %v4236
    %v4238 = vrot.slane %v3871, %v4237
    %v4239 = vsel %vm1043, %v4238, %v4234
    %v4240 = vlaneseq
    %v4241 = vshrl.u32 %v4240, 7
    %v4242 = vsub.s32 %v1045, %v4241
    %v4243 = vrot.slane %v3872, %v4242
    %v4244 = vsel %vm1050, %v4243, %v4239
    %v4245 = vlaneseq
    %v4246 = vshrl.u32 %v4245, 7
    %v4247 = vsub.s32 %v1052, %v4246
    %v4248 = vrot.slane %v3873, %v4247
    %v4249 = vsel %vm1057, %v4248, %v4244
    %v4250 = vlaneseq
    %v4251 = vshrl.u32 %v4250, 7
    %v4252 = vsub.s32 %v1059, %v4251
    %v4253 = vrot.slane %v3874, %v4252
    %v4254 = vsel %vm1064, %v4253, %v4249
    %v4255 = vlaneseq
    %v4256 = vshrl.u32 %v4255, 7
    %v4257 = vsub.s32 %v1066, %v4256
    %v4258 = vrot.slane %v3875, %v4257
    %v4259 = vsel %vm1071, %v4258, %v4254
    %v4260 = vlaneseq
    %v4261 = vshrl.u32 %v4260, 7
    %v4262 = vsub.s32 %v1073, %v4261
    %v4263 = vrot.slane %v3876, %v4262
    %v4264 = vsel %vm1078, %v4263, %v4259
    %v4265 = vlaneseq
    %v4266 = vshrl.u32 %v4265, 7
    %v4267 = vsub.s32 %v1080, %v4266
    %v4268 = vrot.slane %v3877, %v4267
    %v4269 = vsel %vm1085, %v4268, %v4264
    %v4270 = vlaneseq
    %v4271 = vshrl.u32 %v4270, 7
    %v4272 = vsub.s32 %v1087, %v4271
    %v4273 = vrot.slane %v3878, %v4272
    %v4274 = vsel %vm1092, %v4273, %v4269
    %v4275 = vlaneseq
    %v4276 = vshrl.u32 %v4275, 7
    %v4277 = vsub.s32 %v1094, %v4276
    %v4278 = vrot.slane %v3879, %v4277
    %v4279 = vsel %vm1099, %v4278, %v4274
    %v4280 = vlaneseq
    %v4281 = vshrl.u32 %v4280, 7
    %v4282 = vsub.s32 %v1101, %v4281
    %v4283 = vrot.slane %v3880, %v4282
    %v4284 = vsel %vm1106, %v4283, %v4279
    %v4285 = vlaneseq
    %v4286 = vshrl.u32 %v4285, 7
    %v4287 = vsub.s32 %v1108, %v4286
    %v4288 = vrot.slane %v3881, %v4287
    %v4289 = vsel %vm1113, %v4288, %v4284
    %v4290 = vlaneseq
    %v4291 = vshrl.u32 %v4290, 7
    %v4292 = vsub.s32 %v1115, %v4291
    %v4293 = vrot.slane %v3882, %v4292
    %v4294 = vsel %vm1120, %v4293, %v4289
    %v4295 = vlaneseq
    %v4296 = vshrl.u32 %v4295, 7
    %v4297 = vsub.s32 %v1122, %v4296
    %v4298 = vrot.slane %v3883, %v4297
    %v4299 = vsel %vm1127, %v4298, %v4294
    %v4300 = vlaneseq
    %v4301 = vshrl.u32 %v4300, 7
    %v4302 = vsub.s32 %v1129, %v4301
    %v4303 = vrot.slane %v3884, %v4302
    %v4304 = vsel %vm1134, %v4303, %v4299
    %v4305 = vlaneseq
    %v4306 = vshrl.u32 %v4305, 7
    %v4307 = vsub.s32 %v1026, %v4306
    %v4308 = vrot.slane %v3885, %v4307
    %v4309 = vlaneseq
    %v4310 = vshrl.u32 %v4309, 7
    %v4311 = vsub.s32 %v1031, %v4310
    %v4312 = vrot.slane %v3886, %v4311
    %v4313 = vsel %vm1036, %v4312, %v4308
    %v4314 = vlaneseq
    %v4315 = vshrl.u32 %v4314, 7
    %v4316 = vsub.s32 %v1038, %v4315
    %v4317 = vrot.slane %v3887, %v4316
    %v4318 = vsel %vm1043, %v4317, %v4313
    %v4319 = vlaneseq
    %v4320 = vshrl.u32 %v4319, 7
    %v4321 = vsub.s32 %v1045, %v4320
    %v4322 = vrot.slane %v3888, %v4321
    %v4323 = vsel %vm1050, %v4322, %v4318
    %v4324 = vlaneseq
    %v4325 = vshrl.u32 %v4324, 7
    %v4326 = vsub.s32 %v1052, %v4325
    %v4327 = vrot.slane %v3889, %v4326
    %v4328 = vsel %vm1057, %v4327, %v4323
    %v4329 = vlaneseq
    %v4330 = vshrl.u32 %v4329, 7
    %v4331 = vsub.s32 %v1059, %v4330
    %v4332 = vrot.slane %v3890, %v4331
    %v4333 = vsel %vm1064, %v4332, %v4328
    %v4334 = vlaneseq
    %v4335 = vshrl.u32 %v4334, 7
    %v4336 = vsub.s32 %v1066, %v4335
    %v4337 = vrot.slane %v3891, %v4336
    %v4338 = vsel %vm1071, %v4337, %v4333
    %v4339 = vlaneseq
    %v4340 = vshrl.u32 %v4339, 7
    %v4341 = vsub.s32 %v1073, %v4340
    %v4342 = vrot.slane %v3892, %v4341
    %v4343 = vsel %vm1078, %v4342, %v4338
    %v4344 = vlaneseq
    %v4345 = vshrl.u32 %v4344, 7
    %v4346 = vsub.s32 %v1080, %v4345
    %v4347 = vrot.slane %v3893, %v4346
    %v4348 = vsel %vm1085, %v4347, %v4343
    %v4349 = vlaneseq
    %v4350 = vshrl.u32 %v4349, 7
    %v4351 = vsub.s32 %v1087, %v4350
    %v4352 = vrot.slane %v3894, %v4351
    %v4353 = vsel %vm1092, %v4352, %v4348
    %v4354 = vlaneseq
    %v4355 = vshrl.u32 %v4354, 7
    %v4356 = vsub.s32 %v1094, %v4355
    %v4357 = vrot.slane %v3895, %v4356
    %v4358 = vsel %vm1099, %v4357, %v4353
    %v4359 = vlaneseq
    %v4360 = vshrl.u32 %v4359, 7
    %v4361 = vsub.s32 %v1101, %v4360
    %v4362 = vrot.slane %v3896, %v4361
    %v4363 = vsel %vm1106, %v4362, %v4358
    %v4364 = vlaneseq
    %v4365 = vshrl.u32 %v4364, 7
    %v4366 = vsub.s32 %v1108, %v4365
    %v4367 = vrot.slane %v3897, %v4366
    %v4368 = vsel %vm1113, %v4367, %v4363
    %v4369 = vlaneseq
    %v4370 = vshrl.u32 %v4369, 7
    %v4371 = vsub.s32 %v1115, %v4370
    %v4372 = vrot.slane %v3898, %v4371
    %v4373 = vsel %vm1120, %v4372, %v4368
    %v4374 = vlaneseq
    %v4375 = vshrl.u32 %v4374, 7
    %v4376 = vsub.s32 %v1122, %v4375
    %v4377 = vrot.slane %v3899, %v4376
    %v4378 = vsel %vm1127, %v4377, %v4373
    %v4379 = vlaneseq
    %v4380 = vshrl.u32 %v4379, 7
    %v4381 = vsub.s32 %v1129, %v4380
    %v4382 = vrot.slane %v3900, %v4381
    %v4383 = vsel %vm1134, %v4382, %v4378
    %v4384 = vlaneseq
    %v4385 = vshrl.u32 %v4384, 7
    %v4386 = vsub.s32 %v1026, %v4385
    %v4387 = vrot.slane %v3901, %v4386
    %v4388 = vlaneseq
    %v4389 = vshrl.u32 %v4388, 7
    %v4390 = vsub.s32 %v1031, %v4389
    %v4391 = vrot.slane %v3902, %v4390
    %v4392 = vsel %vm1036, %v4391, %v4387
    %v4393 = vlaneseq
    %v4394 = vshrl.u32 %v4393, 7
    %v4395 = vsub.s32 %v1038, %v4394
    %v4396 = vrot.slane %v3903, %v4395
    %v4397 = vsel %vm1043, %v4396, %v4392
    %v4398 = vlaneseq
    %v4399 = vshrl.u32 %v4398, 7
    %v4400 = vsub.s32 %v1045, %v4399
    %v4401 = vrot.slane %v3904, %v4400
    %v4402 = vsel %vm1050, %v4401, %v4397
    %v4403 = vlaneseq
    %v4404 = vshrl.u32 %v4403, 7
    %v4405 = vsub.s32 %v1052, %v4404
    %v4406 = vrot.slane %v3905, %v4405
    %v4407 = vsel %vm1057, %v4406, %v4402
    %v4408 = vlaneseq
    %v4409 = vshrl.u32 %v4408, 7
    %v4410 = vsub.s32 %v1059, %v4409
    %v4411 = vrot.slane %v3906, %v4410
    %v4412 = vsel %vm1064, %v4411, %v4407
    %v4413 = vlaneseq
    %v4414 = vshrl.u32 %v4413, 7
    %v4415 = vsub.s32 %v1066, %v4414
    %v4416 = vrot.slane %v3907, %v4415
    %v4417 = vsel %vm1071, %v4416, %v4412
    %v4418 = vlaneseq
    %v4419 = vshrl.u32 %v4418, 7
    %v4420 = vsub.s32 %v1073, %v4419
    %v4421 = vrot.slane %v3908, %v4420
    %v4422 = vsel %vm1078, %v4421, %v4417
    %v4423 = vlaneseq
    %v4424 = vshrl.u32 %v4423, 7
    %v4425 = vsub.s32 %v1080, %v4424
    %v4426 = vrot.slane %v3909, %v4425
    %v4427 = vsel %vm1085, %v4426, %v4422
    %v4428 = vlaneseq
    %v4429 = vshrl.u32 %v4428, 7
    %v4430 = vsub.s32 %v1087, %v4429
    %v4431 = vrot.slane %v3910, %v4430
    %v4432 = vsel %vm1092, %v4431, %v4427
    %v4433 = vlaneseq
    %v4434 = vshrl.u32 %v4433, 7
    %v4435 = vsub.s32 %v1094, %v4434
    %v4436 = vrot.slane %v3911, %v4435
    %v4437 = vsel %vm1099, %v4436, %v4432
    %v4438 = vlaneseq
    %v4439 = vshrl.u32 %v4438, 7
    %v4440 = vsub.s32 %v1101, %v4439
    %v4441 = vrot.slane %v3912, %v4440
    %v4442 = vsel %vm1106, %v4441, %v4437
    %v4443 = vlaneseq
    %v4444 = vshrl.u32 %v4443, 7
    %v4445 = vsub.s32 %v1108, %v4444
    %v4446 = vrot.slane %v3913, %v4445
    %v4447 = vsel %vm1113, %v4446, %v4442
    %v4448 = vlaneseq
    %v4449 = vshrl.u32 %v4448, 7
    %v4450 = vsub.s32 %v1115, %v4449
    %v4451 = vrot.slane %v3914, %v4450
    %v4452 = vsel %vm1120, %v4451, %v4447
    %v4453 = vlaneseq
    %v4454 = vshrl.u32 %v4453, 7
    %v4455 = vsub.s32 %v1122, %v4454
    %v4456 = vrot.slane %v3915, %v4455
    %v4457 = vsel %vm1127, %v4456, %v4452
    %v4458 = vlaneseq
    %v4459 = vshrl.u32 %v4458, 7
    %v4460 = vsub.s32 %v1129, %v4459
    %v4461 = vrot.slane %v3916, %v4460
    %v4462 = vsel %vm1134, %v4461, %v4457
    %v4463 = vlaneseq
    %v4464 = vshrl.u32 %v4463, 7
    %v4465 = vsub.s32 %v1026, %v4464
    %v4466 = vrot.slane %v3917, %v4465
    %v4467 = vlaneseq
    %v4468 = vshrl.u32 %v4467, 7
    %v4469 = vsub.s32 %v1031, %v4468
    %v4470 = vrot.slane %v3918, %v4469
    %v4471 = vsel %vm1036, %v4470, %v4466
    %v4472 = vlaneseq
    %v4473 = vshrl.u32 %v4472, 7
    %v4474 = vsub.s32 %v1038, %v4473
    %v4475 = vrot.slane %v3919, %v4474
    %v4476 = vsel %vm1043, %v4475, %v4471
    %v4477 = vlaneseq
    %v4478 = vshrl.u32 %v4477, 7
    %v4479 = vsub.s32 %v1045, %v4478
    %v4480 = vrot.slane %v3920, %v4479
    %v4481 = vsel %vm1050, %v4480, %v4476
    %v4482 = vlaneseq
    %v4483 = vshrl.u32 %v4482, 7
    %v4484 = vsub.s32 %v1052, %v4483
    %v4485 = vrot.slane %v3921, %v4484
    %v4486 = vsel %vm1057, %v4485, %v4481
    %v4487 = vlaneseq
    %v4488 = vshrl.u32 %v4487, 7
    %v4489 = vsub.s32 %v1059, %v4488
    %v4490 = vrot.slane %v3922, %v4489
    %v4491 = vsel %vm1064, %v4490, %v4486
    %v4492 = vlaneseq
    %v4493 = vshrl.u32 %v4492, 7
    %v4494 = vsub.s32 %v1066, %v4493
    %v4495 = vrot.slane %v3923, %v4494
    %v4496 = vsel %vm1071, %v4495, %v4491
    %v4497 = vlaneseq
    %v4498 = vshrl.u32 %v4497, 7
    %v4499 = vsub.s32 %v1073, %v4498
    %v4500 = vrot.slane %v3924, %v4499
    %v4501 = vsel %vm1078, %v4500, %v4496
    %v4502 = vlaneseq
    %v4503 = vshrl.u32 %v4502, 7
    %v4504 = vsub.s32 %v1026, %v4503
    %v4505 = vrot.slane %v3925, %v4504
    %v4506 = vlaneseq
    %v4507 = vshrl.u32 %v4506, 7
    %v4508 = vsub.s32 %v1031, %v4507
    %v4509 = vrot.slane %v3926, %v4508
    %v4510 = vsel %vm1036, %v4509, %v4505
    %v4511 = vlaneseq
    %v4512 = vshrl.u32 %v4511, 7
    %v4513 = vsub.s32 %v1038, %v4512
    %v4514 = vrot.slane %v3927, %v4513
    %v4515 = vsel %vm1043, %v4514, %v4510
    %v4516 = vlaneseq
    %v4517 = vshrl.u32 %v4516, 7
    %v4518 = vsub.s32 %v1045, %v4517
    %v4519 = vrot.slane %v3928, %v4518
    %v4520 = vsel %vm1050, %v4519, %v4515
    %v4521 = vlaneseq
    %v4522 = vshrl.u32 %v4521, 7
    %v4523 = vsub.s32 %v1052, %v4522
    %v4524 = vrot.slane %v3929, %v4523
    %v4525 = vsel %vm1057, %v4524, %v4520
    %v4526 = vlaneseq
    %v4527 = vshrl.u32 %v4526, 7
    %v4528 = vsub.s32 %v1059, %v4527
    %v4529 = vrot.slane %v3930, %v4528
    %v4530 = vsel %vm1064, %v4529, %v4525
    %v4531 = vlaneseq
    %v4532 = vshrl.u32 %v4531, 7
    %v4533 = vsub.s32 %v1066, %v4532
    %v4534 = vrot.slane %v3931, %v4533
    %v4535 = vsel %vm1071, %v4534, %v4530
    %v4536 = vlaneseq
    %v4537 = vshrl.u32 %v4536, 7
    %v4538 = vsub.s32 %v1073, %v4537
    %v4539 = vrot.slane %v3932, %v4538
    %v4540 = vsel %vm1078, %v4539, %v4535
    %v4541 = vlaneseq
    %v4542 = vshrl.u32 %v4541, 7
    %v4543 = vsub.s32 %v1080, %v4542
    %v4544 = vrot.slane %v3933, %v4543
    %v4545 = vsel %vm1085, %v4544, %v4540
    %v4546 = vlaneseq
    %v4547 = vshrl.u32 %v4546, 7
    %v4548 = vsub.s32 %v1087, %v4547
    %v4549 = vrot.slane %v3934, %v4548
    %v4550 = vsel %vm1092, %v4549, %v4545
    %v4551 = vlaneseq
    %v4552 = vshrl.u32 %v4551, 7
    %v4553 = vsub.s32 %v1094, %v4552
    %v4554 = vrot.slane %v3935, %v4553
    %v4555 = vsel %vm1099, %v4554, %v4550
    %v4556 = vlaneseq
    %v4557 = vshrl.u32 %v4556, 7
    %v4558 = vsub.s32 %v1101, %v4557
    %v4559 = vrot.slane %v3936, %v4558
    %v4560 = vsel %vm1106, %v4559, %v4555
    %v4561 = vlaneseq
    %v4562 = vshrl.u32 %v4561, 7
    %v4563 = vsub.s32 %v1108, %v4562
    %v4564 = vrot.slane %v3937, %v4563
    %v4565 = vsel %vm1113, %v4564, %v4560
    %v4566 = vlaneseq
    %v4567 = vshrl.u32 %v4566, 7
    %v4568 = vsub.s32 %v1115, %v4567
    %v4569 = vrot.slane %v3938, %v4568
    %v4570 = vsel %vm1120, %v4569, %v4565
    %v4571 = vlaneseq
    %v4572 = vshrl.u32 %v4571, 7
    %v4573 = vsub.s32 %v1122, %v4572
    %v4574 = vrot.slane %v3939, %v4573
    %v4575 = vsel %vm1127, %v4574, %v4570
    %v4576 = vlaneseq
    %v4577 = vshrl.u32 %v4576, 7
    %v4578 = vsub.s32 %v1129, %v4577
    %v4579 = vrot.slane %v3940, %v4578
    %v4580 = vsel %vm1134, %v4579, %v4575
    %v4581 = vlaneseq
    %v4582 = vshrl.u32 %v4581, 7
    %v4583 = vsub.s32 %v1026, %v4582
    %v4584 = vrot.slane %v3941, %v4583
    %v4585 = vlaneseq
    %v4586 = vshrl.u32 %v4585, 7
    %v4587 = vsub.s32 %v1031, %v4586
    %v4588 = vrot.slane %v3942, %v4587
    %v4589 = vsel %vm1036, %v4588, %v4584
    %v4590 = vlaneseq
    %v4591 = vshrl.u32 %v4590, 7
    %v4592 = vsub.s32 %v1038, %v4591
    %v4593 = vrot.slane %v3943, %v4592
    %v4594 = vsel %vm1043, %v4593, %v4589
    %v4595 = vlaneseq
    %v4596 = vshrl.u32 %v4595, 7
    %v4597 = vsub.s32 %v1045, %v4596
    %v4598 = vrot.slane %v3944, %v4597
    %v4599 = vsel %vm1050, %v4598, %v4594
    %v4600 = vlaneseq
    %v4601 = vshrl.u32 %v4600, 7
    %v4602 = vsub.s32 %v1052, %v4601
    %v4603 = vrot.slane %v3945, %v4602
    %v4604 = vsel %vm1057, %v4603, %v4599
    %v4605 = vlaneseq
    %v4606 = vshrl.u32 %v4605, 7
    %v4607 = vsub.s32 %v1059, %v4606
    %v4608 = vrot.slane %v3946, %v4607
    %v4609 = vsel %vm1064, %v4608, %v4604
    %v4610 = vlaneseq
    %v4611 = vshrl.u32 %v4610, 7
    %v4612 = vsub.s32 %v1066, %v4611
    %v4613 = vrot.slane %v3947, %v4612
    %v4614 = vsel %vm1071, %v4613, %v4609
    %v4615 = vlaneseq
    %v4616 = vshrl.u32 %v4615, 7
    %v4617 = vsub.s32 %v1073, %v4616
    %v4618 = vrot.slane %v3948, %v4617
    %v4619 = vsel %vm1078, %v4618, %v4614
    %v4620 = vlaneseq
    %v4621 = vshrl.u32 %v4620, 7
    %v4622 = vsub.s32 %v1080, %v4621
    %v4623 = vrot.slane %v3949, %v4622
    %v4624 = vsel %vm1085, %v4623, %v4619
    %v4625 = vlaneseq
    %v4626 = vshrl.u32 %v4625, 7
    %v4627 = vsub.s32 %v1087, %v4626
    %v4628 = vrot.slane %v3950, %v4627
    %v4629 = vsel %vm1092, %v4628, %v4624
    %v4630 = vlaneseq
    %v4631 = vshrl.u32 %v4630, 7
    %v4632 = vsub.s32 %v1094, %v4631
    %v4633 = vrot.slane %v3951, %v4632
    %v4634 = vsel %vm1099, %v4633, %v4629
    %v4635 = vlaneseq
    %v4636 = vshrl.u32 %v4635, 7
    %v4637 = vsub.s32 %v1101, %v4636
    %v4638 = vrot.slane %v3952, %v4637
    %v4639 = vsel %vm1106, %v4638, %v4634
    %v4640 = vlaneseq
    %v4641 = vshrl.u32 %v4640, 7
    %v4642 = vsub.s32 %v1108, %v4641
    %v4643 = vrot.slane %v3953, %v4642
    %v4644 = vsel %vm1113, %v4643, %v4639
    %v4645 = vlaneseq
    %v4646 = vshrl.u32 %v4645, 7
    %v4647 = vsub.s32 %v1115, %v4646
    %v4648 = vrot.slane %v3954, %v4647
    %v4649 = vsel %vm1120, %v4648, %v4644
    %v4650 = vlaneseq
    %v4651 = vshrl.u32 %v4650, 7
    %v4652 = vsub.s32 %v1122, %v4651
    %v4653 = vrot.slane %v3955, %v4652
    %v4654 = vsel %vm1127, %v4653, %v4649
    %v4655 = vlaneseq
    %v4656 = vshrl.u32 %v4655, 7
    %v4657 = vsub.s32 %v1129, %v4656
    %v4658 = vrot.slane %v3956, %v4657
    %v4659 = vsel %vm1134, %v4658, %v4654
    %v4660 = vlaneseq
    %v4661 = vshrl.u32 %v4660, 7
    %v4662 = vsub.s32 %v1026, %v4661
    %v4663 = vrot.slane %v3957, %v4662
    %v4664 = vlaneseq
    %v4665 = vshrl.u32 %v4664, 7
    %v4666 = vsub.s32 %v1031, %v4665
    %v4667 = vrot.slane %v3958, %v4666
    %v4668 = vsel %vm1036, %v4667, %v4663
    %v4669 = vlaneseq
    %v4670 = vshrl.u32 %v4669, 7
    %v4671 = vsub.s32 %v1038, %v4670
    %v4672 = vrot.slane %v3959, %v4671
    %v4673 = vsel %vm1043, %v4672, %v4668
    %v4674 = vlaneseq
    %v4675 = vshrl.u32 %v4674, 7
    %v4676 = vsub.s32 %v1045, %v4675
    %v4677 = vrot.slane %v3960, %v4676
    %v4678 = vsel %vm1050, %v4677, %v4673
    %v4679 = vlaneseq
    %v4680 = vshrl.u32 %v4679, 7
    %v4681 = vsub.s32 %v1052, %v4680
    %v4682 = vrot.slane %v3961, %v4681
    %v4683 = vsel %vm1057, %v4682, %v4678
    %v4684 = vlaneseq
    %v4685 = vshrl.u32 %v4684, 7
    %v4686 = vsub.s32 %v1059, %v4685
    %v4687 = vrot.slane %v3962, %v4686
    %v4688 = vsel %vm1064, %v4687, %v4683
    %v4689 = vlaneseq
    %v4690 = vshrl.u32 %v4689, 7
    %v4691 = vsub.s32 %v1066, %v4690
    %v4692 = vrot.slane %v3963, %v4691
    %v4693 = vsel %vm1071, %v4692, %v4688
    %v4694 = vlaneseq
    %v4695 = vshrl.u32 %v4694, 7
    %v4696 = vsub.s32 %v1073, %v4695
    %v4697 = vrot.slane %v3964, %v4696
    %v4698 = vsel %vm1078, %v4697, %v4693
    %v4699 = vlaneseq
    %v4700 = vshrl.u32 %v4699, 7
    %v4701 = vsub.s32 %v1080, %v4700
    %v4702 = vrot.slane %v3965, %v4701
    %v4703 = vsel %vm1085, %v4702, %v4698
    %v4704 = vlaneseq
    %v4705 = vshrl.u32 %v4704, 7
    %v4706 = vsub.s32 %v1087, %v4705
    %v4707 = vrot.slane %v3966, %v4706
    %v4708 = vsel %vm1092, %v4707, %v4703
    %v4709 = vlaneseq
    %v4710 = vshrl.u32 %v4709, 7
    %v4711 = vsub.s32 %v1094, %v4710
    %v4712 = vrot.slane %v3967, %v4711
    %v4713 = vsel %vm1099, %v4712, %v4708
    %v4714 = vlaneseq
    %v4715 = vshrl.u32 %v4714, 7
    %v4716 = vsub.s32 %v1101, %v4715
    %v4717 = vrot.slane %v3968, %v4716
    %v4718 = vsel %vm1106, %v4717, %v4713
    %v4719 = vlaneseq
    %v4720 = vshrl.u32 %v4719, 7
    %v4721 = vsub.s32 %v1108, %v4720
    %v4722 = vrot.slane %v3969, %v4721
    %v4723 = vsel %vm1113, %v4722, %v4718
    %v4724 = vlaneseq
    %v4725 = vshrl.u32 %v4724, 7
    %v4726 = vsub.s32 %v1115, %v4725
    %v4727 = vrot.slane %v3970, %v4726
    %v4728 = vsel %vm1120, %v4727, %v4723
    %v4729 = vlaneseq
    %v4730 = vshrl.u32 %v4729, 7
    %v4731 = vsub.s32 %v1122, %v4730
    %v4732 = vrot.slane %v3971, %v4731
    %v4733 = vsel %vm1127, %v4732, %v4728
    %v4734 = vlaneseq
    %v4735 = vshrl.u32 %v4734, 7
    %v4736 = vsub.s32 %v1129, %v4735
    %v4737 = vrot.slane %v3972, %v4736
    %v4738 = vsel %vm1134, %v4737, %v4733
    %v4739 = vlaneseq
    %v4740 = vshrl.u32 %v4739, 7
    %v4741 = vsub.s32 %v1026, %v4740
    %v4742 = vrot.slane %v3973, %v4741
    %v4743 = vlaneseq
    %v4744 = vshrl.u32 %v4743, 7
    %v4745 = vsub.s32 %v1031, %v4744
    %v4746 = vrot.slane %v3974, %v4745
    %v4747 = vsel %vm1036, %v4746, %v4742
    %v4748 = vlaneseq
    %v4749 = vshrl.u32 %v4748, 7
    %v4750 = vsub.s32 %v1038, %v4749
    %v4751 = vrot.slane %v3975, %v4750
    %v4752 = vsel %vm1043, %v4751, %v4747
    %v4753 = vlaneseq
    %v4754 = vshrl.u32 %v4753, 7
    %v4755 = vsub.s32 %v1045, %v4754
    %v4756 = vrot.slane %v3976, %v4755
    %v4757 = vsel %vm1050, %v4756, %v4752
    %v4758 = vlaneseq
    %v4759 = vshrl.u32 %v4758, 7
    %v4760 = vsub.s32 %v1052, %v4759
    %v4761 = vrot.slane %v3977, %v4760
    %v4762 = vsel %vm1057, %v4761, %v4757
    %v4763 = vlaneseq
    %v4764 = vshrl.u32 %v4763, 7
    %v4765 = vsub.s32 %v1059, %v4764
    %v4766 = vrot.slane %v3978, %v4765
    %v4767 = vsel %vm1064, %v4766, %v4762
    %v4768 = vlaneseq
    %v4769 = vshrl.u32 %v4768, 7
    %v4770 = vsub.s32 %v1066, %v4769
    %v4771 = vrot.slane %v3979, %v4770
    %v4772 = vsel %vm1071, %v4771, %v4767
    %v4773 = vlaneseq
    %v4774 = vshrl.u32 %v4773, 7
    %v4775 = vsub.s32 %v1073, %v4774
    %v4776 = vrot.slane %v3980, %v4775
    %v4777 = vsel %vm1078, %v4776, %v4772
    %v4778 = vlaneseq
    %v4779 = vshrl.u32 %v4778, 7
    %v4780 = vsub.s32 %v1080, %v4779
    %v4781 = vrot.slane %v3981, %v4780
    %v4782 = vsel %vm1085, %v4781, %v4777
    %v4783 = vlaneseq
    %v4784 = vshrl.u32 %v4783, 7
    %v4785 = vsub.s32 %v1087, %v4784
    %v4786 = vrot.slane %v3982, %v4785
    %v4787 = vsel %vm1092, %v4786, %v4782
    %v4788 = vlaneseq
    %v4789 = vshrl.u32 %v4788, 7
    %v4790 = vsub.s32 %v1094, %v4789
    %v4791 = vrot.slane %v3983, %v4790
    %v4792 = vsel %vm1099, %v4791, %v4787
    %v4793 = vlaneseq
    %v4794 = vshrl.u32 %v4793, 7
    %v4795 = vsub.s32 %v1101, %v4794
    %v4796 = vrot.slane %v3984, %v4795
    %v4797 = vsel %vm1106, %v4796, %v4792
    %v4798 = vlaneseq
    %v4799 = vshrl.u32 %v4798, 7
    %v4800 = vsub.s32 %v1108, %v4799
    %v4801 = vrot.slane %v3985, %v4800
    %v4802 = vsel %vm1113, %v4801, %v4797
    %v4803 = vlaneseq
    %v4804 = vshrl.u32 %v4803, 7
    %v4805 = vsub.s32 %v1115, %v4804
    %v4806 = vrot.slane %v3986, %v4805
    %v4807 = vsel %vm1120, %v4806, %v4802
    %v4808 = vlaneseq
    %v4809 = vshrl.u32 %v4808, 7
    %v4810 = vsub.s32 %v1122, %v4809
    %v4811 = vrot.slane %v3987, %v4810
    %v4812 = vsel %vm1127, %v4811, %v4807
    %v4813 = vlaneseq
    %v4814 = vshrl.u32 %v4813, 7
    %v4815 = vsub.s32 %v1129, %v4814
    %v4816 = vrot.slane %v3988, %v4815
    %v4817 = vsel %vm1134, %v4816, %v4812
    %v4818 = vlaneseq
    %v4819 = vshrl.u32 %v4818, 7
    %v4820 = vsub.s32 %v1026, %v4819
    %v4821 = vrot.slane %v3989, %v4820
    %v4822 = vlaneseq
    %v4823 = vshrl.u32 %v4822, 7
    %v4824 = vsub.s32 %v1031, %v4823
    %v4825 = vrot.slane %v3990, %v4824
    %v4826 = vsel %vm1036, %v4825, %v4821
    %v4827 = vlaneseq
    %v4828 = vshrl.u32 %v4827, 7
    %v4829 = vsub.s32 %v1038, %v4828
    %v4830 = vrot.slane %v3991, %v4829
    %v4831 = vsel %vm1043, %v4830, %v4826
    %v4832 = vlaneseq
    %v4833 = vshrl.u32 %v4832, 7
    %v4834 = vsub.s32 %v1045, %v4833
    %v4835 = vrot.slane %v3992, %v4834
    %v4836 = vsel %vm1050, %v4835, %v4831
    %v4837 = vlaneseq
    %v4838 = vshrl.u32 %v4837, 7
    %v4839 = vsub.s32 %v1052, %v4838
    %v4840 = vrot.slane %v3993, %v4839
    %v4841 = vsel %vm1057, %v4840, %v4836
    %v4842 = vlaneseq
    %v4843 = vshrl.u32 %v4842, 7
    %v4844 = vsub.s32 %v1059, %v4843
    %v4845 = vrot.slane %v3994, %v4844
    %v4846 = vsel %vm1064, %v4845, %v4841
    %v4847 = vlaneseq
    %v4848 = vshrl.u32 %v4847, 7
    %v4849 = vsub.s32 %v1066, %v4848
    %v4850 = vrot.slane %v3995, %v4849
    %v4851 = vsel %vm1071, %v4850, %v4846
    %v4852 = vlaneseq
    %v4853 = vshrl.u32 %v4852, 7
    %v4854 = vsub.s32 %v1073, %v4853
    %v4855 = vrot.slane %v3996, %v4854
    %v4856 = vsel %vm1078, %v4855, %v4851
    %v4857 = vsel %vm1767, %v4580, %v4225
    %v4858 = vsel %vm1767, %v4659, %v4304
    %v4859 = vsel %vm1767, %v4738, %v4383
    %v4860 = vsel %vm1767, %v4817, %v4462
    %v4861 = vsel %vm1767, %v4856, %v4501
    %v4866 = vsel %vm1777, %v4861, 0
    %4868 = vmatprep.subr.mxu0 0.0
    %4869 = vmatpush1.msra.mxu0 %v3337
    %4870 = vmatprep.subr.mxu0 0.0
    %4871 = vmatpush1.msra.mxu0 %v3336
    %4872 = vmatprep.subr.mxu0 0.0
    %4873 = vmatpush1.msra.mxu0 %v3335
    %4874 = vmatprep.subr.mxu0 0.0
    %4875 = vmatpush1.msra.mxu0 %v3334
    %4876 = vmatprep.subr.mxu0 0.0
    %4877 = vmatpush1.msra.mxu0 %v3333
    %4878 = vmatprep.subr.mxu0 0.0
    %4879 = vmatpush1.msra.mxu0 %v3332
    %4880 = vmatprep.subr.mxu0 0.0
    %4881 = vmatpush1.msra.mxu0 %v3331
    %4882 = vmatprep.subr.mxu0 0.0
    %4883 = vmatpush1.msra.mxu0 %v3330
    %4884 = vmatprep.subr.mxu0 0.0
    %4885 = vmatpush1.msra.mxu0 %v3329
    %4886 = vmatprep.subr.mxu0 0.0
    %4887 = vmatpush1.msra.mxu0 %v3328
    %4888 = vmatprep.subr.mxu0 0.0
    %4889 = vmatpush1.msra.mxu0 %v3327
    %4890 = vmatprep.subr.mxu0 0.0
    %4891 = vmatpush1.msra.mxu0 %v3326
    %4892 = vmatprep.subr.mxu0 0.0
    %4893 = vmatpush1.msra.mxu0 %v3325
    %4894 = vmatprep.subr.mxu0 0.0
    %4895 = vmatpush1.msra.mxu0 %v3324
    %4896 = vmatprep.subr.mxu0 0.0
    %4897 = vmatpush1.msra.mxu0 %v3323
    %4898 = vmatprep.subr.mxu0 0.0
    %4899 = vmatpush1.msra.mxu0 %v3322
    %4900 = vmatprep.subr.mxu0 0.0
    %4901 = vmatpush2.msra.mxu0 %v3353
    %4902 = vmatprep.subr.mxu0 0.0
    %4903 = vmatpush2.msra.mxu0 %v3352
    %4904 = vmatprep.subr.mxu0 0.0
    %4905 = vmatpush2.msra.mxu0 %v3351
    %4906 = vmatprep.subr.mxu0 0.0
    %4907 = vmatpush2.msra.mxu0 %v3350
    %4908 = vmatprep.subr.mxu0 0.0
    %4909 = vmatpush2.msra.mxu0 %v3349
    %4910 = vmatprep.subr.mxu0 0.0
    %4911 = vmatpush2.msra.mxu0 %v3348
    %4912 = vmatprep.subr.mxu0 0.0
    %4913 = vmatpush2.msra.mxu0 %v3347
    %4914 = vmatprep.subr.mxu0 0.0
    %4915 = vmatpush2.msra.mxu0 %v3346
    %4916 = vmatprep.subr.mxu0 0.0
    %4917 = vmatpush2.msra.mxu0 %v3345
    %4918 = vmatprep.subr.mxu0 0.0
    %4919 = vmatpush2.msra.mxu0 %v3344
    %4920 = vmatprep.subr.mxu0 0.0
    %4921 = vmatpush2.msra.mxu0 %v3343
    %4922 = vmatprep.subr.mxu0 0.0
    %4923 = vmatpush2.msra.mxu0 %v3342
    %4924 = vmatprep.subr.mxu0 0.0
    %4925 = vmatpush2.msra.mxu0 %v3341
    %4926 = vmatprep.subr.mxu0 0.0
    %4927 = vmatpush2.msra.mxu0 %v3340
    %4928 = vmatprep.subr.mxu0 0.0
    %4929 = vmatpush2.msra.mxu0 %v3339
    %4930 = vmatprep.subr.mxu0 0.0
    %4931 = vmatpush2.msra.mxu0 %v3338
    %4932 = vmatprep.mubr.f32.mxu0 %v4858
    %4933 = vmatmul.mubr.f32.gmra.mxu0 %v4857
    %v4934 = vpop.f32.mrf.mxu0
    %v4935 = vadd.f32 %v4001, %v4934
    %v4936 = vpop.f32.mrf.mxu0
    %4937 = vdwg.mxu0
    %4938 = vmatprep.subr.mxu0 0.0
    %4939 = vmatpush1.msra.mxu0 %v3369
    %4940 = vmatprep.subr.mxu0 0.0
    %4941 = vmatpush1.msra.mxu0 %v3368
    %4942 = vmatprep.subr.mxu0 0.0
    %4943 = vmatpush1.msra.mxu0 %v3367
    %4944 = vmatprep.subr.mxu0 0.0
    %4945 = vmatpush1.msra.mxu0 %v3366
    %4946 = vmatprep.subr.mxu0 0.0
    %4947 = vmatpush1.msra.mxu0 %v3365
    %4948 = vmatprep.subr.mxu0 0.0
    %4949 = vmatpush1.msra.mxu0 %v3364
    %4950 = vmatprep.subr.mxu0 0.0
    %4951 = vmatpush1.msra.mxu0 %v3363
    %4952 = vmatprep.subr.mxu0 0.0
    %4953 = vmatpush1.msra.mxu0 %v3362
    %4954 = vmatprep.subr.mxu0 0.0
    %4955 = vmatpush1.msra.mxu0 %v3361
    %4956 = vmatprep.subr.mxu0 0.0
    %4957 = vmatpush1.msra.mxu0 %v3360
    %4958 = vmatprep.subr.mxu0 0.0
    %4959 = vmatpush1.msra.mxu0 %v3359
    %4960 = vmatprep.subr.mxu0 0.0
    %4961 = vmatpush1.msra.mxu0 %v3358
    %4962 = vmatprep.subr.mxu0 0.0
    %4963 = vmatpush1.msra.mxu0 %v3357
    %4964 = vmatprep.subr.mxu0 0.0
    %4965 = vmatpush1.msra.mxu0 %v3356
    %4966 = vmatprep.subr.mxu0 0.0
    %4967 = vmatpush1.msra.mxu0 %v3355
    %4968 = vmatprep.subr.mxu0 0.0
    %4969 = vmatpush1.msra.mxu0 %v3354
    %4970 = vmatprep.subr.mxu0 0.0
    %4971 = vmatpush2.msra.mxu0 %v3385
    %4972 = vmatprep.subr.mxu0 0.0
    %4973 = vmatpush2.msra.mxu0 %v3384
    %4974 = vmatprep.subr.mxu0 0.0
    %4975 = vmatpush2.msra.mxu0 %v3383
    %4976 = vmatprep.subr.mxu0 0.0
    %4977 = vmatpush2.msra.mxu0 %v3382
    %4978 = vmatprep.subr.mxu0 0.0
    %4979 = vmatpush2.msra.mxu0 %v3381
    %4980 = vmatprep.subr.mxu0 0.0
    %4981 = vmatpush2.msra.mxu0 %v3380
    %4982 = vmatprep.subr.mxu0 0.0
    %4983 = vmatpush2.msra.mxu0 %v3379
    %4984 = vmatprep.subr.mxu0 0.0
    %4985 = vmatpush2.msra.mxu0 %v3378
    %4986 = vmatprep.subr.mxu0 0.0
    %4987 = vmatpush2.msra.mxu0 %v3377
    %4988 = vmatprep.subr.mxu0 0.0
    %4989 = vmatpush2.msra.mxu0 %v3376
    %4990 = vmatprep.subr.mxu0 0.0
    %4991 = vmatpush2.msra.mxu0 %v3375
    %4992 = vmatprep.subr.mxu0 0.0
    %4993 = vmatpush2.msra.mxu0 %v3374
    %4994 = vmatprep.subr.mxu0 0.0
    %4995 = vmatpush2.msra.mxu0 %v3373
    %4996 = vmatprep.subr.mxu0 0.0
    %4997 = vmatpush2.msra.mxu0 %v3372
    %4998 = vmatprep.subr.mxu0 0.0
    %4999 = vmatpush2.msra.mxu0 %v3371
    %5000 = vmatprep.subr.mxu0 0.0
    %5001 = vmatpush2.msra.mxu0 %v3370
    %5002 = vmatprep.mubr.f32.mxu0 %v4860
    %5003 = vmatmul.mubr.f32.gmra.mxu0 %v4859
    %v5004 = vpop.f32.mrf.mxu0
    %v5005 = vadd.f32 %v4935, %v5004
    %v5006 = vpop.f32.mrf.mxu0
    %5007 = vdwg.mxu0
    %5008 = vmatprep.subr.mxu0 0.0
    %5009 = vmatpush1.msra.mxu0 0.0
    %5010 = vmatprep.subr.mxu0 0.0
    %5011 = vmatpush1.msra.mxu0 0.0
    %5012 = vmatprep.subr.mxu0 0.0
    %5013 = vmatpush1.msra.mxu0 0.0
    %5014 = vmatprep.subr.mxu0 0.0
    %5015 = vmatpush1.msra.mxu0 0.0
    %5016 = vmatprep.subr.mxu0 0.0
    %5017 = vmatpush1.msra.mxu0 0.0
    %5018 = vmatprep.subr.mxu0 0.0
    %5019 = vmatpush1.msra.mxu0 0.0
    %5020 = vmatprep.subr.mxu0 0.0
    %5021 = vmatpush1.msra.mxu0 0.0
    %5022 = vmatprep.subr.mxu0 0.0
    %5023 = vmatpush1.msra.mxu0 0.0
    %5024 = vmatprep.subr.mxu0 0.0
    %5025 = vmatpush1.msra.mxu0 %v3393
    %5026 = vmatprep.subr.mxu0 0.0
    %5027 = vmatpush1.msra.mxu0 %v3392
    %5028 = vmatprep.subr.mxu0 0.0
    %5029 = vmatpush1.msra.mxu0 %v3391
    %5030 = vmatprep.subr.mxu0 0.0
    %5031 = vmatpush1.msra.mxu0 %v3390
    %5032 = vmatprep.subr.mxu0 0.0
    %5033 = vmatpush1.msra.mxu0 %v3389
    %5034 = vmatprep.subr.mxu0 0.0
    %5035 = vmatpush1.msra.mxu0 %v3388
    %5036 = vmatprep.subr.mxu0 0.0
    %5037 = vmatpush1.msra.mxu0 %v3387
    %5038 = vmatprep.subr.mxu0 0.0
    %5039 = vmatpush1.msra.mxu0 %v3386
    %5040 = vmatprep.subr.mxu0 0.0
    %5041 = vmatpush2.msra.mxu0 0.0
    %5042 = vmatprep.subr.mxu0 0.0
    %5043 = vmatpush2.msra.mxu0 0.0
    %5044 = vmatprep.subr.mxu0 0.0
    %5045 = vmatpush2.msra.mxu0 0.0
    %5046 = vmatprep.subr.mxu0 0.0
    %5047 = vmatpush2.msra.mxu0 0.0
    %5048 = vmatprep.subr.mxu0 0.0
    %5049 = vmatpush2.msra.mxu0 0.0
    %5050 = vmatprep.subr.mxu0 0.0
    %5051 = vmatpush2.msra.mxu0 0.0
    %5052 = vmatprep.subr.mxu0 0.0
    %5053 = vmatpush2.msra.mxu0 0.0
    %5054 = vmatprep.subr.mxu0 0.0
    %5055 = vmatpush2.msra.mxu0 0.0
    %5056 = vmatprep.subr.mxu0 0.0
    %5057 = vmatpush2.msra.mxu0 0.0
    %5058 = vmatprep.subr.mxu0 0.0
    %5059 = vmatpush2.msra.mxu0 0.0
    %5060 = vmatprep.subr.mxu0 0.0
    %5061 = vmatpush2.msra.mxu0 0.0
    %5062 = vmatprep.subr.mxu0 0.0
    %5063 = vmatpush2.msra.mxu0 0.0
    %5064 = vmatprep.subr.mxu0 0.0
    %5065 = vmatpush2.msra.mxu0 0.0
    %5066 = vmatprep.subr.mxu0 0.0
    %5067 = vmatpush2.msra.mxu0 0.0
    %5068 = vmatprep.subr.mxu0 0.0
    %5069 = vmatpush2.msra.mxu0 0.0
    %5070 = vmatprep.subr.mxu0 0.0
    %5071 = vmatpush2.msra.mxu0 0.0
    %5072 = vmatprep.mubr.f32.mxu0 0.0
    %5073 = vmatmul.mubr.f32.gmra.mxu0 %v4866
    %v5074 = vpop.f32.mrf.mxu0
    %v5075 = vadd.f32 %v5005, %v5074
    %v5076 = vpop.f32.mrf.mxu0
    %5077 = vdwg.mxu0
    %v5078 = vmax.f32 %v5075, 0.0
    %v5080 = vlaneseq
    %v5081 = vshrl.u32 %v5080, 7
    %v5082 = vsub.s32 0, %v5081
    %v5083 = vrot.slane %v3420, %v5082
    %v5084 = vlaneseq
    %v5085 = vshrl.u32 %v5084, 7
    %v5086 = vsub.s32 1, %v5085
    %v5087 = vrot.slane %v3420, %v5086
    %v5088 = vlaneseq
    %v5089 = vshrl.u32 %v5088, 7
    %v5090 = vsub.s32 2, %v5089
    %v5091 = vrot.slane %v3420, %v5090
    %v5092 = vlaneseq
    %v5093 = vshrl.u32 %v5092, 7
    %v5094 = vsub.s32 3, %v5093
    %v5095 = vrot.slane %v3420, %v5094
    %v5096 = vlaneseq
    %v5097 = vshrl.u32 %v5096, 7
    %v5098 = vsub.s32 4, %v5097
    %v5099 = vrot.slane %v3420, %v5098
    %v5106 = vsel %vm2017, %v5078, 0
    %v5109 = vsel %vm2021, %v3415, 0
    %v5112 = vsel %vm2021, %v3416, 0
    %v5115 = vsel %vm2021, %v3417, 0
    %v5118 = vsel %vm2021, %v3418, 0
    %v5121 = vsel %vm2021, %v3419, 0
    %5123 = vmatprep.subr.mxu0 0.0
    %5124 = vmatpush1.msra.mxu0 0.0
    %5125 = vmatprep.subr.mxu0 0.0
    %5126 = vmatpush1.msra.mxu0 0.0
    %5127 = vmatprep.subr.mxu0 0.0
    %5128 = vmatpush1.msra.mxu0 0.0
    %5129 = vmatprep.subr.mxu0 0.0
    %5130 = vmatpush1.msra.mxu0 0.0
    %5131 = vmatprep.subr.mxu0 0.0
    %5132 = vmatpush1.msra.mxu0 0.0
    %5133 = vmatprep.subr.mxu0 0.0
    %5134 = vmatpush1.msra.mxu0 0.0
    %5135 = vmatprep.subr.mxu0 0.0
    %5136 = vmatpush1.msra.mxu0 0.0
    %5137 = vmatprep.subr.mxu0 0.0
    %5138 = vmatpush1.msra.mxu0 0.0
    %5139 = vmatprep.subr.mxu0 0.0
    %5140 = vmatpush1.msra.mxu0 0.0
    %5141 = vmatprep.subr.mxu0 0.0
    %5142 = vmatpush1.msra.mxu0 0.0
    %5143 = vmatprep.subr.mxu0 0.0
    %5144 = vmatpush1.msra.mxu0 0.0
    %5145 = vmatprep.subr.mxu0 %v5112
    %5146 = vmatpush1.msra.mxu0 %v5109
    %5147 = vmatprep.subr.mxu0 %v3411
    %5148 = vmatpush1.msra.mxu0 %v3410
    %5149 = vmatprep.subr.mxu0 %v3406
    %5150 = vmatpush1.msra.mxu0 %v3405
    %5151 = vmatprep.subr.mxu0 %v3401
    %5152 = vmatpush1.msra.mxu0 %v3400
    %5153 = vmatprep.subr.mxu0 %v3396
    %5154 = vmatpush1.msra.mxu0 %v3395
    %5155 = vmatprep.subr.mxu0 0.0
    %5156 = vmatpush2.msra.mxu0 0.0
    %5157 = vmatprep.subr.mxu0 0.0
    %5158 = vmatpush2.msra.mxu0 0.0
    %5159 = vmatprep.subr.mxu0 0.0
    %5160 = vmatpush2.msra.mxu0 0.0
    %5161 = vmatprep.subr.mxu0 0.0
    %5162 = vmatpush2.msra.mxu0 0.0
    %5163 = vmatprep.subr.mxu0 0.0
    %5164 = vmatpush2.msra.mxu0 0.0
    %5165 = vmatprep.subr.mxu0 0.0
    %5166 = vmatpush2.msra.mxu0 0.0
    %5167 = vmatprep.subr.mxu0 0.0
    %5168 = vmatpush2.msra.mxu0 0.0
    %5169 = vmatprep.subr.mxu0 0.0
    %5170 = vmatpush2.msra.mxu0 0.0
    %5171 = vmatprep.subr.mxu0 0.0
    %5172 = vmatpush2.msra.mxu0 0.0
    %5173 = vmatprep.subr.mxu0 0.0
    %5174 = vmatpush2.msra.mxu0 0.0
    %5175 = vmatprep.subr.mxu0 0.0
    %5176 = vmatpush2.msra.mxu0 0.0
    %5177 = vmatprep.subr.mxu0 0.0
    %5178 = vmatpush2.msra.mxu0 0.0
    %5179 = vmatprep.subr.mxu0 0.0
    %5180 = vmatpush2.msra.mxu0 0.0
    %5181 = vmatprep.subr.mxu0 0.0
    %5182 = vmatpush2.msra.mxu0 0.0
    %5183 = vmatprep.subr.mxu0 0.0
    %5184 = vmatpush2.msra.mxu0 0.0
    %5185 = vmatprep.subr.mxu0 0.0
    %5186 = vmatpush2.msra.mxu0 0.0
    %5187 = vmatprep.mubr.f32.mxu0 0.0
    %5188 = vmatmul.mubr.f32.gmra.mxu0 %v5106
    %v5189 = vpop.f32.mrf.mxu0
    %v5190 = vadd.f32 %v5083, %v5189
    %v5191 = vpop.f32.mrf.mxu0
    %v5192 = vadd.f32 %v5087, %v5191
    %5193 = vdwg.mxu0
    %5194 = vmatprep.subr.mxu0 0.0
    %5195 = vmatpush1.msra.mxu0 0.0
    %5196 = vmatprep.subr.mxu0 0.0
    %5197 = vmatpush1.msra.mxu0 0.0
    %5198 = vmatprep.subr.mxu0 0.0
    %5199 = vmatpush1.msra.mxu0 0.0
    %5200 = vmatprep.subr.mxu0 0.0
    %5201 = vmatpush1.msra.mxu0 0.0
    %5202 = vmatprep.subr.mxu0 0.0
    %5203 = vmatpush1.msra.mxu0 0.0
    %5204 = vmatprep.subr.mxu0 0.0
    %5205 = vmatpush1.msra.mxu0 0.0
    %5206 = vmatprep.subr.mxu0 0.0
    %5207 = vmatpush1.msra.mxu0 0.0
    %5208 = vmatprep.subr.mxu0 0.0
    %5209 = vmatpush1.msra.mxu0 0.0
    %5210 = vmatprep.subr.mxu0 0.0
    %5211 = vmatpush1.msra.mxu0 0.0
    %5212 = vmatprep.subr.mxu0 0.0
    %5213 = vmatpush1.msra.mxu0 0.0
    %5214 = vmatprep.subr.mxu0 0.0
    %5215 = vmatpush1.msra.mxu0 0.0
    %5216 = vmatprep.subr.mxu0 %v5118
    %5217 = vmatpush1.msra.mxu0 %v5115
    %5218 = vmatprep.subr.mxu0 %v3413
    %5219 = vmatpush1.msra.mxu0 %v3412
    %5220 = vmatprep.subr.mxu0 %v3408
    %5221 = vmatpush1.msra.mxu0 %v3407
    %5222 = vmatprep.subr.mxu0 %v3403
    %5223 = vmatpush1.msra.mxu0 %v3402
    %5224 = vmatprep.subr.mxu0 %v3398
    %5225 = vmatpush1.msra.mxu0 %v3397
    %5226 = vmatprep.subr.mxu0 0.0
    %5227 = vmatpush2.msra.mxu0 0.0
    %5228 = vmatprep.subr.mxu0 0.0
    %5229 = vmatpush2.msra.mxu0 0.0
    %5230 = vmatprep.subr.mxu0 0.0
    %5231 = vmatpush2.msra.mxu0 0.0
    %5232 = vmatprep.subr.mxu0 0.0
    %5233 = vmatpush2.msra.mxu0 0.0
    %5234 = vmatprep.subr.mxu0 0.0
    %5235 = vmatpush2.msra.mxu0 0.0
    %5236 = vmatprep.subr.mxu0 0.0
    %5237 = vmatpush2.msra.mxu0 0.0
    %5238 = vmatprep.subr.mxu0 0.0
    %5239 = vmatpush2.msra.mxu0 0.0
    %5240 = vmatprep.subr.mxu0 0.0
    %5241 = vmatpush2.msra.mxu0 0.0
    %5242 = vmatprep.subr.mxu0 0.0
    %5243 = vmatpush2.msra.mxu0 0.0
    %5244 = vmatprep.subr.mxu0 0.0
    %5245 = vmatpush2.msra.mxu0 0.0
    %5246 = vmatprep.subr.mxu0 0.0
    %5247 = vmatpush2.msra.mxu0 0.0
    %5248 = vmatprep.subr.mxu0 0.0
    %5249 = vmatpush2.msra.mxu0 0.0
    %5250 = vmatprep.subr.mxu0 0.0
    %5251 = vmatpush2.msra.mxu0 0.0
    %5252 = vmatprep.subr.mxu0 0.0
    %5253 = vmatpush2.msra.mxu0 0.0
    %5254 = vmatprep.subr.mxu0 0.0
    %5255 = vmatpush2.msra.mxu0 0.0
    %5256 = vmatprep.subr.mxu0 0.0
    %5257 = vmatpush2.msra.mxu0 0.0
    %5258 = vmatprep.mubr.f32.mxu0 0.0
    %5259 = vmatmul.mubr.f32.gmra.mxu0 %v5106
    %v5260 = vpop.f32.mrf.mxu0
    %v5261 = vadd.f32 %v5091, %v5260
    %v5262 = vpop.f32.mrf.mxu0
    %v5263 = vadd.f32 %v5095, %v5262
    %5264 = vdwg.mxu0
    %5265 = vmatprep.subr.mxu0 0.0
    %5266 = vmatpush1.msra.mxu0 0.0
    %5267 = vmatprep.subr.mxu0 0.0
    %5268 = vmatpush1.msra.mxu0 0.0
    %5269 = vmatprep.subr.mxu0 0.0
    %5270 = vmatpush1.msra.mxu0 0.0
    %5271 = vmatprep.subr.mxu0 0.0
    %5272 = vmatpush1.msra.mxu0 0.0
    %5273 = vmatprep.subr.mxu0 0.0
    %5274 = vmatpush1.msra.mxu0 0.0
    %5275 = vmatprep.subr.mxu0 0.0
    %5276 = vmatpush1.msra.mxu0 0.0
    %5277 = vmatprep.subr.mxu0 0.0
    %5278 = vmatpush1.msra.mxu0 0.0
    %5279 = vmatprep.subr.mxu0 0.0
    %5280 = vmatpush1.msra.mxu0 0.0
    %5281 = vmatprep.subr.mxu0 0.0
    %5282 = vmatpush1.msra.mxu0 0.0
    %5283 = vmatprep.subr.mxu0 0.0
    %5284 = vmatpush1.msra.mxu0 0.0
    %5285 = vmatprep.subr.mxu0 0.0
    %5286 = vmatpush1.msra.mxu0 0.0
    %5287 = vmatprep.subr.mxu0 0.0
    %5288 = vmatpush1.msra.mxu0 %v5121
    %5289 = vmatprep.subr.mxu0 0.0
    %5290 = vmatpush1.msra.mxu0 %v3414
    %5291 = vmatprep.subr.mxu0 0.0
    %5292 = vmatpush1.msra.mxu0 %v3409
    %5293 = vmatprep.subr.mxu0 0.0
    %5294 = vmatpush1.msra.mxu0 %v3404
    %5295 = vmatprep.subr.mxu0 0.0
    %5296 = vmatpush1.msra.mxu0 %v3399
    %5297 = vmatprep.subr.mxu0 0.0
    %5298 = vmatpush2.msra.mxu0 0.0
    %5299 = vmatprep.subr.mxu0 0.0
    %5300 = vmatpush2.msra.mxu0 0.0
    %5301 = vmatprep.subr.mxu0 0.0
    %5302 = vmatpush2.msra.mxu0 0.0
    %5303 = vmatprep.subr.mxu0 0.0
    %5304 = vmatpush2.msra.mxu0 0.0
    %5305 = vmatprep.subr.mxu0 0.0
    %5306 = vmatpush2.msra.mxu0 0.0
    %5307 = vmatprep.subr.mxu0 0.0
    %5308 = vmatpush2.msra.mxu0 0.0
    %5309 = vmatprep.subr.mxu0 0.0
    %5310 = vmatpush2.msra.mxu0 0.0
    %5311 = vmatprep.subr.mxu0 0.0
    %5312 = vmatpush2.msra.mxu0 0.0
    %5313 = vmatprep.subr.mxu0 0.0
    %5314 = vmatpush2.msra.mxu0 0.0
    %5315 = vmatprep.subr.mxu0 0.0
    %5316 = vmatpush2.msra.mxu0 0.0
    %5317 = vmatprep.subr.mxu0 0.0
    %5318 = vmatpush2.msra.mxu0 0.0
    %5319 = vmatprep.subr.mxu0 0.0
    %5320 = vmatpush2.msra.mxu0 0.0
    %5321 = vmatprep.subr.mxu0 0.0
    %5322 = vmatpush2.msra.mxu0 0.0
    %5323 = vmatprep.subr.mxu0 0.0
    %5324 = vmatpush2.msra.mxu0 0.0
    %5325 = vmatprep.subr.mxu0 0.0
    %5326 = vmatpush2.msra.mxu0 0.0
    %5327 = vmatprep.subr.mxu0 0.0
    %5328 = vmatpush2.msra.mxu0 0.0
    %5329 = vmatprep.mubr.f32.mxu0 0.0
    %5330 = vmatmul.mubr.f32.gmra.mxu0 %v5106
    %v5331 = vpop.f32.mrf.mxu0
    %v5332 = vadd.f32 %v5099, %v5331
    %v5333 = vpop.f32.mrf.mxu0
    %5334 = vdwg.mxu0
    %v5335 = vxor.u32 %v5190, 2147483648
    %v5336 = vxor.u32 %v5192, 2147483648
    %v5337 = vxor.u32 %v5261, 2147483648
    %v5338 = vxor.u32 %v5263, 2147483648
    %v5339 = vxor.u32 %v5332, 2147483648
    %v5340 = vmul.f32 %v5335, 1.442695
    %v5341 = vpow.pop %v5340
    %v5342 = vmul.f32 %v5336, 1.442695
    %v5343 = vpow.pop %v5342
    %v5344 = vmul.f32 %v5337, 1.442695
    %v5345 = vpow.pop %v5344
    %v5346 = vmul.f32 %v5338, 1.442695
    %v5347 = vpow.pop %v5346
    %v5348 = vmul.f32 %v5339, 1.442695
    %v5349 = vpow.pop %v5348
    %v5350 = vadd.f32 %v5341, 1.0
    %v5351 = vadd.f32 %v5343, 1.0
    %v5352 = vadd.f32 %v5345, 1.0
    %v5353 = vadd.f32 %v5347, 1.0
    %v5354 = vadd.f32 %v5349, 1.0
    %v5355 = vrcp.pop %v5350
    %v5356 = vmul.f32 1.0, %v5355
    %v5357 = vrcp.pop %v5351
    %v5358 = vmul.f32 1.0, %v5357
    %v5359 = vrcp.pop %v5352
    %v5360 = vmul.f32 1.0, %v5359
    %v5361 = vrcp.pop %v5353
    %v5362 = vmul.f32 1.0, %v5361
    %v5363 = vrcp.pop %v5354
    %v5364 = vmul.f32 1.0, %v5363
    %v5370 = vlaneseq
    %v5371 = vshrl.u32 %v5370, 7
    %v5372 = vsub.s32 0, %v5371
    %v5373 = vrot.slane %v5356, %v5372
    %5375 = vbcast.lane.b32.xlu0 %v5373, 256
    %v5376 = vpop.permute.xlu0 %5375
    %s5378 = sor.u32 256, 8
    %5379 = vbcast.lane.b32.xlu0 %v5373, %s5378
    %v5380 = vpop.permute.xlu0 %5379
    %s5382 = sor.u32 256, 16
    %5383 = vbcast.lane.b32.xlu0 %v5373, %s5382
    %v5384 = vpop.permute.xlu0 %5383
    %s5386 = sor.u32 256, 24
    %5387 = vbcast.lane.b32.xlu0 %v5373, %s5386
    %v5388 = vpop.permute.xlu0 %5387
    %s5390 = sor.u32 256, 32
    %5391 = vbcast.lane.b32.xlu0 %v5373, %s5390
    %v5392 = vpop.permute.xlu0 %5391
    %s5394 = sor.u32 256, 40
    %5395 = vbcast.lane.b32.xlu0 %v5373, %s5394
    %v5396 = vpop.permute.xlu0 %5395
    %s5398 = sor.u32 256, 48
    %5399 = vbcast.lane.b32.xlu0 %v5373, %s5398
    %v5400 = vpop.permute.xlu0 %5399
    %s5402 = sor.u32 256, 56
    %5403 = vbcast.lane.b32.xlu0 %v5373, %s5402
    %v5404 = vpop.permute.xlu0 %5403
    %s5406 = sor.u32 256, 64
    %5407 = vbcast.lane.b32.xlu0 %v5373, %s5406
    %v5408 = vpop.permute.xlu0 %5407
    %s5410 = sor.u32 256, 72
    %5411 = vbcast.lane.b32.xlu0 %v5373, %s5410
    %v5412 = vpop.permute.xlu0 %5411
    %s5414 = sor.u32 256, 80
    %5415 = vbcast.lane.b32.xlu0 %v5373, %s5414
    %v5416 = vpop.permute.xlu0 %5415
    %s5418 = sor.u32 256, 88
    %5419 = vbcast.lane.b32.xlu0 %v5373, %s5418
    %v5420 = vpop.permute.xlu0 %5419
    %s5422 = sor.u32 256, 96
    %5423 = vbcast.lane.b32.xlu0 %v5373, %s5422
    %v5424 = vpop.permute.xlu0 %5423
    %s5426 = sor.u32 256, 104
    %5427 = vbcast.lane.b32.xlu0 %v5373, %s5426
    %v5428 = vpop.permute.xlu0 %5427
    %s5430 = sor.u32 256, 112
    %5431 = vbcast.lane.b32.xlu0 %v5373, %s5430
    %v5432 = vpop.permute.xlu0 %5431
    %s5434 = sor.u32 256, 120
    %5435 = vbcast.lane.b32.xlu0 %v5373, %s5434
    %v5436 = vpop.permute.xlu0 %5435
    %v5437 = vlaneseq
    %v5438 = vshrl.u32 %v5437, 7
    %v5439 = vsub.s32 0, %v5438
    %v5440 = vrot.slane %v5358, %v5439
    %5442 = vbcast.lane.b32.xlu0 %v5440, 256
    %v5443 = vpop.permute.xlu0 %5442
    %s5445 = sor.u32 256, 8
    %5446 = vbcast.lane.b32.xlu0 %v5440, %s5445
    %v5447 = vpop.permute.xlu0 %5446
    %s5449 = sor.u32 256, 16
    %5450 = vbcast.lane.b32.xlu0 %v5440, %s5449
    %v5451 = vpop.permute.xlu0 %5450
    %s5453 = sor.u32 256, 24
    %5454 = vbcast.lane.b32.xlu0 %v5440, %s5453
    %v5455 = vpop.permute.xlu0 %5454
    %s5457 = sor.u32 256, 32
    %5458 = vbcast.lane.b32.xlu0 %v5440, %s5457
    %v5459 = vpop.permute.xlu0 %5458
    %s5461 = sor.u32 256, 40
    %5462 = vbcast.lane.b32.xlu0 %v5440, %s5461
    %v5463 = vpop.permute.xlu0 %5462
    %s5465 = sor.u32 256, 48
    %5466 = vbcast.lane.b32.xlu0 %v5440, %s5465
    %v5467 = vpop.permute.xlu0 %5466
    %s5469 = sor.u32 256, 56
    %5470 = vbcast.lane.b32.xlu0 %v5440, %s5469
    %v5471 = vpop.permute.xlu0 %5470
    %s5473 = sor.u32 256, 64
    %5474 = vbcast.lane.b32.xlu0 %v5440, %s5473
    %v5475 = vpop.permute.xlu0 %5474
    %s5477 = sor.u32 256, 72
    %5478 = vbcast.lane.b32.xlu0 %v5440, %s5477
    %v5479 = vpop.permute.xlu0 %5478
    %s5481 = sor.u32 256, 80
    %5482 = vbcast.lane.b32.xlu0 %v5440, %s5481
    %v5483 = vpop.permute.xlu0 %5482
    %s5485 = sor.u32 256, 88
    %5486 = vbcast.lane.b32.xlu0 %v5440, %s5485
    %v5487 = vpop.permute.xlu0 %5486
    %s5489 = sor.u32 256, 96
    %5490 = vbcast.lane.b32.xlu0 %v5440, %s5489
    %v5491 = vpop.permute.xlu0 %5490
    %s5493 = sor.u32 256, 104
    %5494 = vbcast.lane.b32.xlu0 %v5440, %s5493
    %v5495 = vpop.permute.xlu0 %5494
    %s5497 = sor.u32 256, 112
    %5498 = vbcast.lane.b32.xlu0 %v5440, %s5497
    %v5499 = vpop.permute.xlu0 %5498
    %s5501 = sor.u32 256, 120
    %5502 = vbcast.lane.b32.xlu0 %v5440, %s5501
    %v5503 = vpop.permute.xlu0 %5502
    %v5504 = vlaneseq
    %v5505 = vshrl.u32 %v5504, 7
    %v5506 = vsub.s32 0, %v5505
    %v5507 = vrot.slane %v5360, %v5506
    %5509 = vbcast.lane.b32.xlu0 %v5507, 256
    %v5510 = vpop.permute.xlu0 %5509
    %s5512 = sor.u32 256, 8
    %5513 = vbcast.lane.b32.xlu0 %v5507, %s5512
    %v5514 = vpop.permute.xlu0 %5513
    %s5516 = sor.u32 256, 16
    %5517 = vbcast.lane.b32.xlu0 %v5507, %s5516
    %v5518 = vpop.permute.xlu0 %5517
    %s5520 = sor.u32 256, 24
    %5521 = vbcast.lane.b32.xlu0 %v5507, %s5520
    %v5522 = vpop.permute.xlu0 %5521
    %s5524 = sor.u32 256, 32
    %5525 = vbcast.lane.b32.xlu0 %v5507, %s5524
    %v5526 = vpop.permute.xlu0 %5525
    %s5528 = sor.u32 256, 40
    %5529 = vbcast.lane.b32.xlu0 %v5507, %s5528
    %v5530 = vpop.permute.xlu0 %5529
    %s5532 = sor.u32 256, 48
    %5533 = vbcast.lane.b32.xlu0 %v5507, %s5532
    %v5534 = vpop.permute.xlu0 %5533
    %s5536 = sor.u32 256, 56
    %5537 = vbcast.lane.b32.xlu0 %v5507, %s5536
    %v5538 = vpop.permute.xlu0 %5537
    %s5540 = sor.u32 256, 64
    %5541 = vbcast.lane.b32.xlu0 %v5507, %s5540
    %v5542 = vpop.permute.xlu0 %5541
    %s5544 = sor.u32 256, 72
    %5545 = vbcast.lane.b32.xlu0 %v5507, %s5544
    %v5546 = vpop.permute.xlu0 %5545
    %s5548 = sor.u32 256, 80
    %5549 = vbcast.lane.b32.xlu0 %v5507, %s5548
    %v5550 = vpop.permute.xlu0 %5549
    %s5552 = sor.u32 256, 88
    %5553 = vbcast.lane.b32.xlu0 %v5507, %s5552
    %v5554 = vpop.permute.xlu0 %5553
    %s5556 = sor.u32 256, 96
    %5557 = vbcast.lane.b32.xlu0 %v5507, %s5556
    %v5558 = vpop.permute.xlu0 %5557
    %s5560 = sor.u32 256, 104
    %5561 = vbcast.lane.b32.xlu0 %v5507, %s5560
    %v5562 = vpop.permute.xlu0 %5561
    %s5564 = sor.u32 256, 112
    %5565 = vbcast.lane.b32.xlu0 %v5507, %s5564
    %v5566 = vpop.permute.xlu0 %5565
    %s5568 = sor.u32 256, 120
    %5569 = vbcast.lane.b32.xlu0 %v5507, %s5568
    %v5570 = vpop.permute.xlu0 %5569
    %v5571 = vlaneseq
    %v5572 = vshrl.u32 %v5571, 7
    %v5573 = vsub.s32 0, %v5572
    %v5574 = vrot.slane %v5362, %v5573
    %5576 = vbcast.lane.b32.xlu0 %v5574, 256
    %v5577 = vpop.permute.xlu0 %5576
    %s5579 = sor.u32 256, 8
    %5580 = vbcast.lane.b32.xlu0 %v5574, %s5579
    %v5581 = vpop.permute.xlu0 %5580
    %s5583 = sor.u32 256, 16
    %5584 = vbcast.lane.b32.xlu0 %v5574, %s5583
    %v5585 = vpop.permute.xlu0 %5584
    %s5587 = sor.u32 256, 24
    %5588 = vbcast.lane.b32.xlu0 %v5574, %s5587
    %v5589 = vpop.permute.xlu0 %5588
    %s5591 = sor.u32 256, 32
    %5592 = vbcast.lane.b32.xlu0 %v5574, %s5591
    %v5593 = vpop.permute.xlu0 %5592
    %s5595 = sor.u32 256, 40
    %5596 = vbcast.lane.b32.xlu0 %v5574, %s5595
    %v5597 = vpop.permute.xlu0 %5596
    %s5599 = sor.u32 256, 48
    %5600 = vbcast.lane.b32.xlu0 %v5574, %s5599
    %v5601 = vpop.permute.xlu0 %5600
    %s5603 = sor.u32 256, 56
    %5604 = vbcast.lane.b32.xlu0 %v5574, %s5603
    %v5605 = vpop.permute.xlu0 %5604
    %s5607 = sor.u32 256, 64
    %5608 = vbcast.lane.b32.xlu0 %v5574, %s5607
    %v5609 = vpop.permute.xlu0 %5608
    %s5611 = sor.u32 256, 72
    %5612 = vbcast.lane.b32.xlu0 %v5574, %s5611
    %v5613 = vpop.permute.xlu0 %5612
    %s5615 = sor.u32 256, 80
    %5616 = vbcast.lane.b32.xlu0 %v5574, %s5615
    %v5617 = vpop.permute.xlu0 %5616
    %s5619 = sor.u32 256, 88
    %5620 = vbcast.lane.b32.xlu0 %v5574, %s5619
    %v5621 = vpop.permute.xlu0 %5620
    %s5623 = sor.u32 256, 96
    %5624 = vbcast.lane.b32.xlu0 %v5574, %s5623
    %v5625 = vpop.permute.xlu0 %5624
    %s5627 = sor.u32 256, 104
    %5628 = vbcast.lane.b32.xlu0 %v5574, %s5627
    %v5629 = vpop.permute.xlu0 %5628
    %s5631 = sor.u32 256, 112
    %5632 = vbcast.lane.b32.xlu0 %v5574, %s5631
    %v5633 = vpop.permute.xlu0 %5632
    %s5635 = sor.u32 256, 120
    %5636 = vbcast.lane.b32.xlu0 %v5574, %s5635
    %v5637 = vpop.permute.xlu0 %5636
    %v5638 = vlaneseq
    %v5639 = vshrl.u32 %v5638, 7
    %v5640 = vsub.s32 0, %v5639
    %v5641 = vrot.slane %v5364, %v5640
    %5643 = vbcast.lane.b32.xlu0 %v5641, 256
    %v5644 = vpop.permute.xlu0 %5643
    %s5646 = sor.u32 256, 8
    %5647 = vbcast.lane.b32.xlu0 %v5641, %s5646
    %v5648 = vpop.permute.xlu0 %5647
    %s5650 = sor.u32 256, 16
    %5651 = vbcast.lane.b32.xlu0 %v5641, %s5650
    %v5652 = vpop.permute.xlu0 %5651
    %s5654 = sor.u32 256, 24
    %5655 = vbcast.lane.b32.xlu0 %v5641, %s5654
    %v5656 = vpop.permute.xlu0 %5655
    %s5658 = sor.u32 256, 32
    %5659 = vbcast.lane.b32.xlu0 %v5641, %s5658
    %v5660 = vpop.permute.xlu0 %5659
    %s5662 = sor.u32 256, 40
    %5663 = vbcast.lane.b32.xlu0 %v5641, %s5662
    %v5664 = vpop.permute.xlu0 %5663
    %s5666 = sor.u32 256, 48
    %5667 = vbcast.lane.b32.xlu0 %v5641, %s5666
    %v5668 = vpop.permute.xlu0 %5667
    %s5670 = sor.u32 256, 56
    %5671 = vbcast.lane.b32.xlu0 %v5641, %s5670
    %v5672 = vpop.permute.xlu0 %5671
    %v5673 = vlaneseq
    %v5674 = vshrl.u32 %v5673, 7
    %v5675 = vsub.s32 1, %v5674
    %v5676 = vrot.slane %v5356, %v5675
    %5678 = vbcast.lane.b32.xlu0 %v5676, 256
    %v5679 = vpop.permute.xlu0 %5678
    %s5681 = sor.u32 256, 8
    %5682 = vbcast.lane.b32.xlu0 %v5676, %s5681
    %v5683 = vpop.permute.xlu0 %5682
    %s5685 = sor.u32 256, 16
    %5686 = vbcast.lane.b32.xlu0 %v5676, %s5685
    %v5687 = vpop.permute.xlu0 %5686
    %s5689 = sor.u32 256, 24
    %5690 = vbcast.lane.b32.xlu0 %v5676, %s5689
    %v5691 = vpop.permute.xlu0 %5690
    %s5693 = sor.u32 256, 32
    %5694 = vbcast.lane.b32.xlu0 %v5676, %s5693
    %v5695 = vpop.permute.xlu0 %5694
    %s5697 = sor.u32 256, 40
    %5698 = vbcast.lane.b32.xlu0 %v5676, %s5697
    %v5699 = vpop.permute.xlu0 %5698
    %s5701 = sor.u32 256, 48
    %5702 = vbcast.lane.b32.xlu0 %v5676, %s5701
    %v5703 = vpop.permute.xlu0 %5702
    %s5705 = sor.u32 256, 56
    %5706 = vbcast.lane.b32.xlu0 %v5676, %s5705
    %v5707 = vpop.permute.xlu0 %5706
    %s5709 = sor.u32 256, 64
    %5710 = vbcast.lane.b32.xlu0 %v5676, %s5709
    %v5711 = vpop.permute.xlu0 %5710
    %s5713 = sor.u32 256, 72
    %5714 = vbcast.lane.b32.xlu0 %v5676, %s5713
    %v5715 = vpop.permute.xlu0 %5714
    %s5717 = sor.u32 256, 80
    %5718 = vbcast.lane.b32.xlu0 %v5676, %s5717
    %v5719 = vpop.permute.xlu0 %5718
    %s5721 = sor.u32 256, 88
    %5722 = vbcast.lane.b32.xlu0 %v5676, %s5721
    %v5723 = vpop.permute.xlu0 %5722
    %s5725 = sor.u32 256, 96
    %5726 = vbcast.lane.b32.xlu0 %v5676, %s5725
    %v5727 = vpop.permute.xlu0 %5726
    %s5729 = sor.u32 256, 104
    %5730 = vbcast.lane.b32.xlu0 %v5676, %s5729
    %v5731 = vpop.permute.xlu0 %5730
    %s5733 = sor.u32 256, 112
    %5734 = vbcast.lane.b32.xlu0 %v5676, %s5733
    %v5735 = vpop.permute.xlu0 %5734
    %s5737 = sor.u32 256, 120
    %5738 = vbcast.lane.b32.xlu0 %v5676, %s5737
    %v5739 = vpop.permute.xlu0 %5738
    %v5740 = vlaneseq
    %v5741 = vshrl.u32 %v5740, 7
    %v5742 = vsub.s32 1, %v5741
    %v5743 = vrot.slane %v5358, %v5742
    %5745 = vbcast.lane.b32.xlu0 %v5743, 256
    %v5746 = vpop.permute.xlu0 %5745
    %s5748 = sor.u32 256, 8
    %5749 = vbcast.lane.b32.xlu0 %v5743, %s5748
    %v5750 = vpop.permute.xlu0 %5749
    %s5752 = sor.u32 256, 16
    %5753 = vbcast.lane.b32.xlu0 %v5743, %s5752
    %v5754 = vpop.permute.xlu0 %5753
    %s5756 = sor.u32 256, 24
    %5757 = vbcast.lane.b32.xlu0 %v5743, %s5756
    %v5758 = vpop.permute.xlu0 %5757
    %s5760 = sor.u32 256, 32
    %5761 = vbcast.lane.b32.xlu0 %v5743, %s5760
    %v5762 = vpop.permute.xlu0 %5761
    %s5764 = sor.u32 256, 40
    %5765 = vbcast.lane.b32.xlu0 %v5743, %s5764
    %v5766 = vpop.permute.xlu0 %5765
    %s5768 = sor.u32 256, 48
    %5769 = vbcast.lane.b32.xlu0 %v5743, %s5768
    %v5770 = vpop.permute.xlu0 %5769
    %s5772 = sor.u32 256, 56
    %5773 = vbcast.lane.b32.xlu0 %v5743, %s5772
    %v5774 = vpop.permute.xlu0 %5773
    %s5776 = sor.u32 256, 64
    %5777 = vbcast.lane.b32.xlu0 %v5743, %s5776
    %v5778 = vpop.permute.xlu0 %5777
    %s5780 = sor.u32 256, 72
    %5781 = vbcast.lane.b32.xlu0 %v5743, %s5780
    %v5782 = vpop.permute.xlu0 %5781
    %s5784 = sor.u32 256, 80
    %5785 = vbcast.lane.b32.xlu0 %v5743, %s5784
    %v5786 = vpop.permute.xlu0 %5785
    %s5788 = sor.u32 256, 88
    %5789 = vbcast.lane.b32.xlu0 %v5743, %s5788
    %v5790 = vpop.permute.xlu0 %5789
    %s5792 = sor.u32 256, 96
    %5793 = vbcast.lane.b32.xlu0 %v5743, %s5792
    %v5794 = vpop.permute.xlu0 %5793
    %s5796 = sor.u32 256, 104
    %5797 = vbcast.lane.b32.xlu0 %v5743, %s5796
    %v5798 = vpop.permute.xlu0 %5797
    %s5800 = sor.u32 256, 112
    %5801 = vbcast.lane.b32.xlu0 %v5743, %s5800
    %v5802 = vpop.permute.xlu0 %5801
    %s5804 = sor.u32 256, 120
    %5805 = vbcast.lane.b32.xlu0 %v5743, %s5804
    %v5806 = vpop.permute.xlu0 %5805
    %v5807 = vlaneseq
    %v5808 = vshrl.u32 %v5807, 7
    %v5809 = vsub.s32 1, %v5808
    %v5810 = vrot.slane %v5360, %v5809
    %5812 = vbcast.lane.b32.xlu0 %v5810, 256
    %v5813 = vpop.permute.xlu0 %5812
    %s5815 = sor.u32 256, 8
    %5816 = vbcast.lane.b32.xlu0 %v5810, %s5815
    %v5817 = vpop.permute.xlu0 %5816
    %s5819 = sor.u32 256, 16
    %5820 = vbcast.lane.b32.xlu0 %v5810, %s5819
    %v5821 = vpop.permute.xlu0 %5820
    %s5823 = sor.u32 256, 24
    %5824 = vbcast.lane.b32.xlu0 %v5810, %s5823
    %v5825 = vpop.permute.xlu0 %5824
    %s5827 = sor.u32 256, 32
    %5828 = vbcast.lane.b32.xlu0 %v5810, %s5827
    %v5829 = vpop.permute.xlu0 %5828
    %s5831 = sor.u32 256, 40
    %5832 = vbcast.lane.b32.xlu0 %v5810, %s5831
    %v5833 = vpop.permute.xlu0 %5832
    %s5835 = sor.u32 256, 48
    %5836 = vbcast.lane.b32.xlu0 %v5810, %s5835
    %v5837 = vpop.permute.xlu0 %5836
    %s5839 = sor.u32 256, 56
    %5840 = vbcast.lane.b32.xlu0 %v5810, %s5839
    %v5841 = vpop.permute.xlu0 %5840
    %s5843 = sor.u32 256, 64
    %5844 = vbcast.lane.b32.xlu0 %v5810, %s5843
    %v5845 = vpop.permute.xlu0 %5844
    %s5847 = sor.u32 256, 72
    %5848 = vbcast.lane.b32.xlu0 %v5810, %s5847
    %v5849 = vpop.permute.xlu0 %5848
    %s5851 = sor.u32 256, 80
    %5852 = vbcast.lane.b32.xlu0 %v5810, %s5851
    %v5853 = vpop.permute.xlu0 %5852
    %s5855 = sor.u32 256, 88
    %5856 = vbcast.lane.b32.xlu0 %v5810, %s5855
    %v5857 = vpop.permute.xlu0 %5856
    %s5859 = sor.u32 256, 96
    %5860 = vbcast.lane.b32.xlu0 %v5810, %s5859
    %v5861 = vpop.permute.xlu0 %5860
    %s5863 = sor.u32 256, 104
    %5864 = vbcast.lane.b32.xlu0 %v5810, %s5863
    %v5865 = vpop.permute.xlu0 %5864
    %s5867 = sor.u32 256, 112
    %5868 = vbcast.lane.b32.xlu0 %v5810, %s5867
    %v5869 = vpop.permute.xlu0 %5868
    %s5871 = sor.u32 256, 120
    %5872 = vbcast.lane.b32.xlu0 %v5810, %s5871
    %v5873 = vpop.permute.xlu0 %5872
    %v5874 = vlaneseq
    %v5875 = vshrl.u32 %v5874, 7
    %v5876 = vsub.s32 1, %v5875
    %v5877 = vrot.slane %v5362, %v5876
    %5879 = vbcast.lane.b32.xlu0 %v5877, 256
    %v5880 = vpop.permute.xlu0 %5879
    %s5882 = sor.u32 256, 8
    %5883 = vbcast.lane.b32.xlu0 %v5877, %s5882
    %v5884 = vpop.permute.xlu0 %5883
    %s5886 = sor.u32 256, 16
    %5887 = vbcast.lane.b32.xlu0 %v5877, %s5886
    %v5888 = vpop.permute.xlu0 %5887
    %s5890 = sor.u32 256, 24
    %5891 = vbcast.lane.b32.xlu0 %v5877, %s5890
    %v5892 = vpop.permute.xlu0 %5891
    %s5894 = sor.u32 256, 32
    %5895 = vbcast.lane.b32.xlu0 %v5877, %s5894
    %v5896 = vpop.permute.xlu0 %5895
    %s5898 = sor.u32 256, 40
    %5899 = vbcast.lane.b32.xlu0 %v5877, %s5898
    %v5900 = vpop.permute.xlu0 %5899
    %s5902 = sor.u32 256, 48
    %5903 = vbcast.lane.b32.xlu0 %v5877, %s5902
    %v5904 = vpop.permute.xlu0 %5903
    %s5906 = sor.u32 256, 56
    %5907 = vbcast.lane.b32.xlu0 %v5877, %s5906
    %v5908 = vpop.permute.xlu0 %5907
    %s5910 = sor.u32 256, 64
    %5911 = vbcast.lane.b32.xlu0 %v5877, %s5910
    %v5912 = vpop.permute.xlu0 %5911
    %s5914 = sor.u32 256, 72
    %5915 = vbcast.lane.b32.xlu0 %v5877, %s5914
    %v5916 = vpop.permute.xlu0 %5915
    %s5918 = sor.u32 256, 80
    %5919 = vbcast.lane.b32.xlu0 %v5877, %s5918
    %v5920 = vpop.permute.xlu0 %5919
    %s5922 = sor.u32 256, 88
    %5923 = vbcast.lane.b32.xlu0 %v5877, %s5922
    %v5924 = vpop.permute.xlu0 %5923
    %s5926 = sor.u32 256, 96
    %5927 = vbcast.lane.b32.xlu0 %v5877, %s5926
    %v5928 = vpop.permute.xlu0 %5927
    %s5930 = sor.u32 256, 104
    %5931 = vbcast.lane.b32.xlu0 %v5877, %s5930
    %v5932 = vpop.permute.xlu0 %5931
    %s5934 = sor.u32 256, 112
    %5935 = vbcast.lane.b32.xlu0 %v5877, %s5934
    %v5936 = vpop.permute.xlu0 %5935
    %s5938 = sor.u32 256, 120
    %5939 = vbcast.lane.b32.xlu0 %v5877, %s5938
    %v5940 = vpop.permute.xlu0 %5939
    %v5941 = vlaneseq
    %v5942 = vshrl.u32 %v5941, 7
    %v5943 = vsub.s32 1, %v5942
    %v5944 = vrot.slane %v5364, %v5943
    %5946 = vbcast.lane.b32.xlu0 %v5944, 256
    %v5947 = vpop.permute.xlu0 %5946
    %s5949 = sor.u32 256, 8
    %5950 = vbcast.lane.b32.xlu0 %v5944, %s5949
    %v5951 = vpop.permute.xlu0 %5950
    %s5953 = sor.u32 256, 16
    %5954 = vbcast.lane.b32.xlu0 %v5944, %s5953
    %v5955 = vpop.permute.xlu0 %5954
    %s5957 = sor.u32 256, 24
    %5958 = vbcast.lane.b32.xlu0 %v5944, %s5957
    %v5959 = vpop.permute.xlu0 %5958
    %s5961 = sor.u32 256, 32
    %5962 = vbcast.lane.b32.xlu0 %v5944, %s5961
    %v5963 = vpop.permute.xlu0 %5962
    %s5965 = sor.u32 256, 40
    %5966 = vbcast.lane.b32.xlu0 %v5944, %s5965
    %v5967 = vpop.permute.xlu0 %5966
    %s5969 = sor.u32 256, 48
    %5970 = vbcast.lane.b32.xlu0 %v5944, %s5969
    %v5971 = vpop.permute.xlu0 %5970
    %s5973 = sor.u32 256, 56
    %5974 = vbcast.lane.b32.xlu0 %v5944, %s5973
    %v5975 = vpop.permute.xlu0 %5974
    %v6120 = vmul.f32 %v3853, %v5376
    %v6121 = vmul.f32 %v3854, %v5380
    %v6122 = vmul.f32 %v3855, %v5384
    %v6123 = vmul.f32 %v3856, %v5388
    %v6124 = vmul.f32 %v3857, %v5392
    %v6125 = vmul.f32 %v3858, %v5396
    %v6126 = vmul.f32 %v3859, %v5400
    %v6127 = vmul.f32 %v3860, %v5404
    %v6128 = vmul.f32 %v3861, %v5408
    %v6129 = vmul.f32 %v3862, %v5412
    %v6130 = vmul.f32 %v3863, %v5416
    %v6131 = vmul.f32 %v3864, %v5420
    %v6132 = vmul.f32 %v3865, %v5424
    %v6133 = vmul.f32 %v3866, %v5428
    %v6134 = vmul.f32 %v3867, %v5432
    %v6135 = vmul.f32 %v3868, %v5436
    %v6136 = vmul.f32 %v3869, %v5443
    %v6137 = vmul.f32 %v3870, %v5447
    %v6138 = vmul.f32 %v3871, %v5451
    %v6139 = vmul.f32 %v3872, %v5455
    %v6140 = vmul.f32 %v3873, %v5459
    %v6141 = vmul.f32 %v3874, %v5463
    %v6142 = vmul.f32 %v3875, %v5467
    %v6143 = vmul.f32 %v3876, %v5471
    %v6144 = vmul.f32 %v3877, %v5475
    %v6145 = vmul.f32 %v3878, %v5479
    %v6146 = vmul.f32 %v3879, %v5483
    %v6147 = vmul.f32 %v3880, %v5487
    %v6148 = vmul.f32 %v3881, %v5491
    %v6149 = vmul.f32 %v3882, %v5495
    %v6150 = vmul.f32 %v3883, %v5499
    %v6151 = vmul.f32 %v3884, %v5503
    %v6152 = vmul.f32 %v3885, %v5510
    %v6153 = vmul.f32 %v3886, %v5514
    %v6154 = vmul.f32 %v3887, %v5518
    %v6155 = vmul.f32 %v3888, %v5522
    %v6156 = vmul.f32 %v3889, %v5526
    %v6157 = vmul.f32 %v3890, %v5530
    %v6158 = vmul.f32 %v3891, %v5534
    %v6159 = vmul.f32 %v3892, %v5538
    %v6160 = vmul.f32 %v3893, %v5542
    %v6161 = vmul.f32 %v3894, %v5546
    %v6162 = vmul.f32 %v3895, %v5550
    %v6163 = vmul.f32 %v3896, %v5554
    %v6164 = vmul.f32 %v3897, %v5558
    %v6165 = vmul.f32 %v3898, %v5562
    %v6166 = vmul.f32 %v3899, %v5566
    %v6167 = vmul.f32 %v3900, %v5570
    %v6168 = vmul.f32 %v3901, %v5577
    %v6169 = vmul.f32 %v3902, %v5581
    %v6170 = vmul.f32 %v3903, %v5585
    %v6171 = vmul.f32 %v3904, %v5589
    %v6172 = vmul.f32 %v3905, %v5593
    %v6173 = vmul.f32 %v3906, %v5597
    %v6174 = vmul.f32 %v3907, %v5601
    %v6175 = vmul.f32 %v3908, %v5605
    %v6176 = vmul.f32 %v3909, %v5609
    %v6177 = vmul.f32 %v3910, %v5613
    %v6178 = vmul.f32 %v3911, %v5617
    %v6179 = vmul.f32 %v3912, %v5621
    %v6180 = vmul.f32 %v3913, %v5625
    %v6181 = vmul.f32 %v3914, %v5629
    %v6182 = vmul.f32 %v3915, %v5633
    %v6183 = vmul.f32 %v3916, %v5637
    %v6184 = vmul.f32 %v3917, %v5644
    %v6185 = vmul.f32 %v3918, %v5648
    %v6186 = vmul.f32 %v3919, %v5652
    %v6187 = vmul.f32 %v3920, %v5656
    %v6188 = vmul.f32 %v3921, %v5660
    %v6189 = vmul.f32 %v3922, %v5664
    %v6190 = vmul.f32 %v3923, %v5668
    %v6191 = vmul.f32 %v3924, %v5672
    %v6192 = vmul.f32 %v3925, %v5679
    %v6193 = vmul.f32 %v3926, %v5683
    %v6194 = vmul.f32 %v3927, %v5687
    %v6195 = vmul.f32 %v3928, %v5691
    %v6196 = vmul.f32 %v3929, %v5695
    %v6197 = vmul.f32 %v3930, %v5699
    %v6198 = vmul.f32 %v3931, %v5703
    %v6199 = vmul.f32 %v3932, %v5707
    %v6200 = vmul.f32 %v3933, %v5711
    %v6201 = vmul.f32 %v3934, %v5715
    %v6202 = vmul.f32 %v3935, %v5719
    %v6203 = vmul.f32 %v3936, %v5723
    %v6204 = vmul.f32 %v3937, %v5727
    %v6205 = vmul.f32 %v3938, %v5731
    %v6206 = vmul.f32 %v3939, %v5735
    %v6207 = vmul.f32 %v3940, %v5739
    %v6208 = vmul.f32 %v3941, %v5746
    %v6209 = vmul.f32 %v3942, %v5750
    %v6210 = vmul.f32 %v3943, %v5754
    %v6211 = vmul.f32 %v3944, %v5758
    %v6212 = vmul.f32 %v3945, %v5762
    %v6213 = vmul.f32 %v3946, %v5766
    %v6214 = vmul.f32 %v3947, %v5770
    %v6215 = vmul.f32 %v3948, %v5774
    %v6216 = vmul.f32 %v3949, %v5778
    %v6217 = vmul.f32 %v3950, %v5782
    %v6218 = vmul.f32 %v3951, %v5786
    %v6219 = vmul.f32 %v3952, %v5790
    %v6220 = vmul.f32 %v3953, %v5794
    %v6221 = vmul.f32 %v3954, %v5798
    %v6222 = vmul.f32 %v3955, %v5802
    %v6223 = vmul.f32 %v3956, %v5806
    %v6224 = vmul.f32 %v3957, %v5813
    %v6225 = vmul.f32 %v3958, %v5817
    %v6226 = vmul.f32 %v3959, %v5821
    %v6227 = vmul.f32 %v3960, %v5825
    %v6228 = vmul.f32 %v3961, %v5829
    %v6229 = vmul.f32 %v3962, %v5833
    %v6230 = vmul.f32 %v3963, %v5837
    %v6231 = vmul.f32 %v3964, %v5841
    %v6232 = vmul.f32 %v3965, %v5845
    %v6233 = vmul.f32 %v3966, %v5849
    %v6234 = vmul.f32 %v3967, %v5853
    %v6235 = vmul.f32 %v3968, %v5857
    %v6236 = vmul.f32 %v3969, %v5861
    %v6237 = vmul.f32 %v3970, %v5865
    %v6238 = vmul.f32 %v3971, %v5869
    %v6239 = vmul.f32 %v3972, %v5873
    %v6240 = vmul.f32 %v3973, %v5880
    %v6241 = vmul.f32 %v3974, %v5884
    %v6242 = vmul.f32 %v3975, %v5888
    %v6243 = vmul.f32 %v3976, %v5892
    %v6244 = vmul.f32 %v3977, %v5896
    %v6245 = vmul.f32 %v3978, %v5900
    %v6246 = vmul.f32 %v3979, %v5904
    %v6247 = vmul.f32 %v3980, %v5908
    %v6248 = vmul.f32 %v3981, %v5912
    %v6249 = vmul.f32 %v3982, %v5916
    %v6250 = vmul.f32 %v3983, %v5920
    %v6251 = vmul.f32 %v3984, %v5924
    %v6252 = vmul.f32 %v3985, %v5928
    %v6253 = vmul.f32 %v3986, %v5932
    %v6254 = vmul.f32 %v3987, %v5936
    %v6255 = vmul.f32 %v3988, %v5940
    %v6256 = vmul.f32 %v3989, %v5947
    %v6257 = vmul.f32 %v3990, %v5951
    %v6258 = vmul.f32 %v3991, %v5955
    %v6259 = vmul.f32 %v3992, %v5959
    %v6260 = vmul.f32 %v3993, %v5963
    %v6261 = vmul.f32 %v3994, %v5967
    %v6262 = vmul.f32 %v3995, %v5971
    %v6263 = vmul.f32 %v3996, %v5975
    %v6264 = vld [vmem:[%s10] sm:$0xff]
    %v6265 = vld [vmem:[%s10 + $0x8] sm:$0xff]
    %v6266 = vld [vmem:[%s10 + $0x10] sm:$0xff]
    %v6267 = vld [vmem:[%s10 + $0x18] sm:$0xff]
    %v6268 = vld [vmem:[%s10 + $0x20] sm:$0xff]
    %v6269 = vld [vmem:[%s10 + $0x28] sm:$0xff]
    %v6270 = vld [vmem:[%s10 + $0x30] sm:$0xff]
    %v6271 = vld [vmem:[%s10 + $0x38] sm:$0xff]
    %v6272 = vld [vmem:[%s10 + $0x40] sm:$0xff]
    %v6273 = vld [vmem:[%s10 + $0x48] sm:$0xff]
    %v6274 = vld [vmem:[%s10 + $0x50] sm:$0xff]
    %v6275 = vld [vmem:[%s10 + $0x58] sm:$0xff]
    %v6276 = vld [vmem:[%s10 + $0x60] sm:$0xff]
    %v6277 = vld [vmem:[%s10 + $0x68] sm:$0xff]
    %v6278 = vld [vmem:[%s10 + $0x70] sm:$0xff]
    %v6279 = vld [vmem:[%s10 + $0x78] sm:$0xff]
    %v6280 = vld [vmem:[%s10 + $0x80] sm:$0xff]
    %v6281 = vld [vmem:[%s10 + $0x88] sm:$0xff]
    %v6282 = vld [vmem:[%s10 + $0x90] sm:$0xff]
    %v6283 = vld [vmem:[%s10 + $0x98] sm:$0xff]
    %v6284 = vld [vmem:[%s10 + $0xa0] sm:$0xff]
    %v6285 = vld [vmem:[%s10 + $0xa8] sm:$0xff]
    %v6286 = vld [vmem:[%s10 + $0xb0] sm:$0xff]
    %v6287 = vld [vmem:[%s10 + $0xb8] sm:$0xff]
    %v6288 = vld [vmem:[%s10 + $0xc0] sm:$0xff]
    %v6289 = vld [vmem:[%s10 + $0xc8] sm:$0xff]
    %v6290 = vld [vmem:[%s10 + $0xd0] sm:$0xff]
    %v6291 = vld [vmem:[%s10 + $0xd8] sm:$0xff]
    %v6292 = vld [vmem:[%s10 + $0xe0] sm:$0xff]
    %v6293 = vld [vmem:[%s10 + $0xe8] sm:$0xff]
    %v6294 = vld [vmem:[%s10 + $0xf0] sm:$0xff]
    %v6295 = vld [vmem:[%s10 + $0xf8] sm:$0xff]
    %v6296 = vld [vmem:[%s10 + $0x100] sm:$0xff]
    %v6297 = vld [vmem:[%s10 + $0x108] sm:$0xff]
    %v6298 = vld [vmem:[%s10 + $0x110] sm:$0xff]
    %v6299 = vld [vmem:[%s10 + $0x118] sm:$0xff]
    %v6300 = vld [vmem:[%s10 + $0x120] sm:$0xff]
    %v6301 = vld [vmem:[%s10 + $0x128] sm:$0xff]
    %v6302 = vld [vmem:[%s10 + $0x130] sm:$0xff]
    %v6303 = vld [vmem:[%s10 + $0x138] sm:$0xff]
    %v6304 = vld [vmem:[%s10 + $0x140] sm:$0xff]
    %v6305 = vld [vmem:[%s10 + $0x148] sm:$0xff]
    %v6306 = vld [vmem:[%s10 + $0x150] sm:$0xff]
    %v6307 = vld [vmem:[%s10 + $0x158] sm:$0xff]
    %v6308 = vld [vmem:[%s10 + $0x160] sm:$0xff]
    %v6309 = vld [vmem:[%s10 + $0x168] sm:$0xff]
    %v6310 = vld [vmem:[%s10 + $0x170] sm:$0xff]
    %v6311 = vld [vmem:[%s10 + $0x178] sm:$0xff]
    %v6312 = vld [vmem:[%s10 + $0x180] sm:$0xff]
    %v6313 = vld [vmem:[%s10 + $0x188] sm:$0xff]
    %v6314 = vld [vmem:[%s10 + $0x190] sm:$0xff]
    %v6315 = vld [vmem:[%s10 + $0x198] sm:$0xff]
    %v6316 = vld [vmem:[%s10 + $0x1a0] sm:$0xff]
    %v6317 = vld [vmem:[%s10 + $0x1a8] sm:$0xff]
    %v6318 = vld [vmem:[%s10 + $0x1b0] sm:$0xff]
    %v6319 = vld [vmem:[%s10 + $0x1b8] sm:$0xff]
    %v6320 = vld [vmem:[%s10 + $0x1c0] sm:$0xff]
    %v6321 = vld [vmem:[%s10 + $0x1c8] sm:$0xff]
    %v6322 = vld [vmem:[%s10 + $0x1d0] sm:$0xff]
    %v6323 = vld [vmem:[%s10 + $0x1d8] sm:$0xff]
    %v6324 = vld [vmem:[%s10 + $0x1e0] sm:$0xff]
    %v6325 = vld [vmem:[%s10 + $0x1e8] sm:$0xff]
    %v6326 = vld [vmem:[%s10 + $0x1f0] sm:$0xff]
    %v6327 = vld [vmem:[%s10 + $0x1f8] sm:$0xff]
    %v6328 = vld [vmem:[%s10 + $0x200] sm:$0xff]
    %v6329 = vld [vmem:[%s10 + $0x208] sm:$0xff]
    %v6330 = vld [vmem:[%s10 + $0x210] sm:$0xff]
    %v6331 = vld [vmem:[%s10 + $0x218] sm:$0xff]
    %v6332 = vld [vmem:[%s10 + $0x220] sm:$0xff]
    %v6333 = vld [vmem:[%s10 + $0x228] sm:$0xff]
    %v6334 = vld [vmem:[%s10 + $0x230] sm:$0xff]
    %v6335 = vld [vmem:[%s10 + $0x238] sm:$0xff]
    %v6336 = vld [vmem:[%s10 + $0x240] sm:$0xff]
    %v6337 = vld [vmem:[%s10 + $0x248] sm:$0xff]
    %v6338 = vld [vmem:[%s10 + $0x250] sm:$0xff]
    %v6339 = vld [vmem:[%s10 + $0x258] sm:$0xff]
    %v6340 = vld [vmem:[%s10 + $0x260] sm:$0xff]
    %v6341 = vld [vmem:[%s10 + $0x268] sm:$0xff]
    %v6342 = vld [vmem:[%s10 + $0x270] sm:$0xff]
    %v6343 = vld [vmem:[%s10 + $0x278] sm:$0xff]
    %v6344 = vld [vmem:[%s10 + $0x280] sm:$0xff]
    %v6345 = vld [vmem:[%s10 + $0x288] sm:$0xff]
    %v6346 = vld [vmem:[%s10 + $0x290] sm:$0xff]
    %v6347 = vld [vmem:[%s10 + $0x298] sm:$0xff]
    %v6348 = vld [vmem:[%s10 + $0x2a0] sm:$0xff]
    %v6349 = vld [vmem:[%s10 + $0x2a8] sm:$0xff]
    %v6350 = vld [vmem:[%s10 + $0x2b0] sm:$0xff]
    %v6351 = vld [vmem:[%s10 + $0x2b8] sm:$0xff]
    %v6352 = vld [vmem:[%s10 + $0x2c0] sm:$0xff]
    %v6353 = vld [vmem:[%s10 + $0x2c8] sm:$0xff]
    %v6354 = vld [vmem:[%s10 + $0x2d0] sm:$0xff]
    %v6355 = vld [vmem:[%s10 + $0x2d8] sm:$0xff]
    %v6356 = vld [vmem:[%s10 + $0x2e0] sm:$0xff]
    %v6357 = vld [vmem:[%s10 + $0x2e8] sm:$0xff]
    %v6358 = vld [vmem:[%s10 + $0x2f0] sm:$0xff]
    %v6359 = vld [vmem:[%s10 + $0x2f8] sm:$0xff]
    %v6360 = vld [vmem:[%s10 + $0x300] sm:$0xff]
    %v6361 = vld [vmem:[%s10 + $0x308] sm:$0xff]
    %v6362 = vld [vmem:[%s10 + $0x310] sm:$0xff]
    %v6363 = vld [vmem:[%s10 + $0x318] sm:$0xff]
    %v6364 = vld [vmem:[%s10 + $0x320] sm:$0xff]
    %v6365 = vld [vmem:[%s10 + $0x328] sm:$0xff]
    %v6366 = vld [vmem:[%s10 + $0x330] sm:$0xff]
    %v6367 = vld [vmem:[%s10 + $0x338] sm:$0xff]
    %v6368 = vld [vmem:[%s10 + $0x340] sm:$0xff]
    %v6369 = vld [vmem:[%s10 + $0x348] sm:$0xff]
    %v6370 = vld [vmem:[%s10 + $0x350] sm:$0xff]
    %v6371 = vld [vmem:[%s10 + $0x358] sm:$0xff]
    %v6372 = vld [vmem:[%s10 + $0x360] sm:$0xff]
    %v6373 = vld [vmem:[%s10 + $0x368] sm:$0xff]
    %v6374 = vld [vmem:[%s10 + $0x370] sm:$0xff]
    %v6375 = vld [vmem:[%s10 + $0x378] sm:$0xff]
    %v6376 = vld [vmem:[%s10 + $0x380] sm:$0xff]
    %v6377 = vld [vmem:[%s10 + $0x388] sm:$0xff]
    %v6378 = vld [vmem:[%s10 + $0x390] sm:$0xff]
    %v6379 = vld [vmem:[%s10 + $0x398] sm:$0xff]
    %v6380 = vld [vmem:[%s10 + $0x3a0] sm:$0xff]
    %v6381 = vld [vmem:[%s10 + $0x3a8] sm:$0xff]
    %v6382 = vld [vmem:[%s10 + $0x3b0] sm:$0xff]
    %v6383 = vld [vmem:[%s10 + $0x3b8] sm:$0xff]
    %v6384 = vld [vmem:[%s10 + $0x3c0] sm:$0xff]
    %v6385 = vld [vmem:[%s10 + $0x3c8] sm:$0xff]
    %v6386 = vld [vmem:[%s10 + $0x3d0] sm:$0xff]
    %v6387 = vld [vmem:[%s10 + $0x3d8] sm:$0xff]
    %v6388 = vld [vmem:[%s10 + $0x3e0] sm:$0xff]
    %v6389 = vld [vmem:[%s10 + $0x3e8] sm:$0xff]
    %v6390 = vld [vmem:[%s10 + $0x3f0] sm:$0xff]
    %v6391 = vld [vmem:[%s10 + $0x3f8] sm:$0xff]
    %v6392 = vld [vmem:[%s10 + $0x400] sm:$0xff]
    %v6393 = vld [vmem:[%s10 + $0x408] sm:$0xff]
    %v6394 = vld [vmem:[%s10 + $0x410] sm:$0xff]
    %v6395 = vld [vmem:[%s10 + $0x418] sm:$0xff]
    %v6396 = vld [vmem:[%s10 + $0x420] sm:$0xff]
    %v6397 = vld [vmem:[%s10 + $0x428] sm:$0xff]
    %v6398 = vld [vmem:[%s10 + $0x430] sm:$0xff]
    %v6399 = vld [vmem:[%s10 + $0x438] sm:$0xff]
    %v6400 = vld [vmem:[%s10 + $0x440] sm:$0xff]
    %v6401 = vld [vmem:[%s10 + $0x448] sm:$0xff]
    %v6402 = vld [vmem:[%s10 + $0x450] sm:$0xff]
    %v6403 = vld [vmem:[%s10 + $0x458] sm:$0xff]
    %v6404 = vld [vmem:[%s10 + $0x460] sm:$0xff]
    %v6405 = vld [vmem:[%s10 + $0x468] sm:$0xff]
    %v6406 = vld [vmem:[%s10 + $0x470] sm:$0xff]
    %v6407 = vld [vmem:[%s10 + $0x478] sm:$0xff]
    %6552 = vset.pattern.permute.xlu0 0
    %6553 = vperm.xlu0 %6552, %v6120
    %v6554 = vpop.permute.xlu0 %6553
    %6555 = vset.pattern.permute.xlu0 0
    %6556 = vperm.xlu0 %6555, %v6121
    %v6557 = vpop.permute.xlu0 %6556
    %6558 = vset.pattern.permute.xlu0 0
    %6559 = vperm.xlu0 %6558, %v6122
    %v6560 = vpop.permute.xlu0 %6559
    %6561 = vset.pattern.permute.xlu0 0
    %6562 = vperm.xlu0 %6561, %v6123
    %v6563 = vpop.permute.xlu0 %6562
    %6564 = vset.pattern.permute.xlu0 0
    %6565 = vperm.xlu0 %6564, %v6124
    %v6566 = vpop.permute.xlu0 %6565
    %6567 = vset.pattern.permute.xlu0 0
    %6568 = vperm.xlu0 %6567, %v6125
    %v6569 = vpop.permute.xlu0 %6568
    %6570 = vset.pattern.permute.xlu0 0
    %6571 = vperm.xlu0 %6570, %v6126
    %v6572 = vpop.permute.xlu0 %6571
    %6573 = vset.pattern.permute.xlu0 0
    %6574 = vperm.xlu0 %6573, %v6127
    %v6575 = vpop.permute.xlu0 %6574
    %6576 = vset.pattern.permute.xlu0 0
    %6577 = vperm.xlu0 %6576, %v6128
    %v6578 = vpop.permute.xlu0 %6577
    %6579 = vset.pattern.permute.xlu0 0
    %6580 = vperm.xlu0 %6579, %v6129
    %v6581 = vpop.permute.xlu0 %6580
    %6582 = vset.pattern.permute.xlu0 0
    %6583 = vperm.xlu0 %6582, %v6130
    %v6584 = vpop.permute.xlu0 %6583
    %6585 = vset.pattern.permute.xlu0 0
    %6586 = vperm.xlu0 %6585, %v6131
    %v6587 = vpop.permute.xlu0 %6586
    %6588 = vset.pattern.permute.xlu0 0
    %6589 = vperm.xlu0 %6588, %v6132
    %v6590 = vpop.permute.xlu0 %6589
    %6591 = vset.pattern.permute.xlu0 0
    %6592 = vperm.xlu0 %6591, %v6133
    %v6593 = vpop.permute.xlu0 %6592
    %6594 = vset.pattern.permute.xlu0 0
    %6595 = vperm.xlu0 %6594, %v6134
    %v6596 = vpop.permute.xlu0 %6595
    %6597 = vset.pattern.permute.xlu0 0
    %6598 = vperm.xlu0 %6597, %v6135
    %v6599 = vpop.permute.xlu0 %6598
    %6600 = vset.pattern.permute.xlu0 0
    %6601 = vperm.xlu0 %6600, %v6136
    %v6602 = vpop.permute.xlu0 %6601
    %6603 = vset.pattern.permute.xlu0 0
    %6604 = vperm.xlu0 %6603, %v6137
    %v6605 = vpop.permute.xlu0 %6604
    %6606 = vset.pattern.permute.xlu0 0
    %6607 = vperm.xlu0 %6606, %v6138
    %v6608 = vpop.permute.xlu0 %6607
    %6609 = vset.pattern.permute.xlu0 0
    %6610 = vperm.xlu0 %6609, %v6139
    %v6611 = vpop.permute.xlu0 %6610
    %6612 = vset.pattern.permute.xlu0 0
    %6613 = vperm.xlu0 %6612, %v6140
    %v6614 = vpop.permute.xlu0 %6613
    %6615 = vset.pattern.permute.xlu0 0
    %6616 = vperm.xlu0 %6615, %v6141
    %v6617 = vpop.permute.xlu0 %6616
    %6618 = vset.pattern.permute.xlu0 0
    %6619 = vperm.xlu0 %6618, %v6142
    %v6620 = vpop.permute.xlu0 %6619
    %6621 = vset.pattern.permute.xlu0 0
    %6622 = vperm.xlu0 %6621, %v6143
    %v6623 = vpop.permute.xlu0 %6622
    %6624 = vset.pattern.permute.xlu0 0
    %6625 = vperm.xlu0 %6624, %v6144
    %v6626 = vpop.permute.xlu0 %6625
    %6627 = vset.pattern.permute.xlu0 0
    %6628 = vperm.xlu0 %6627, %v6145
    %v6629 = vpop.permute.xlu0 %6628
    %6630 = vset.pattern.permute.xlu0 0
    %6631 = vperm.xlu0 %6630, %v6146
    %v6632 = vpop.permute.xlu0 %6631
    %6633 = vset.pattern.permute.xlu0 0
    %6634 = vperm.xlu0 %6633, %v6147
    %v6635 = vpop.permute.xlu0 %6634
    %6636 = vset.pattern.permute.xlu0 0
    %6637 = vperm.xlu0 %6636, %v6148
    %v6638 = vpop.permute.xlu0 %6637
    %6639 = vset.pattern.permute.xlu0 0
    %6640 = vperm.xlu0 %6639, %v6149
    %v6641 = vpop.permute.xlu0 %6640
    %6642 = vset.pattern.permute.xlu0 0
    %6643 = vperm.xlu0 %6642, %v6150
    %v6644 = vpop.permute.xlu0 %6643
    %6645 = vset.pattern.permute.xlu0 0
    %6646 = vperm.xlu0 %6645, %v6151
    %v6647 = vpop.permute.xlu0 %6646
    %6648 = vset.pattern.permute.xlu0 0
    %6649 = vperm.xlu0 %6648, %v6152
    %v6650 = vpop.permute.xlu0 %6649
    %6651 = vset.pattern.permute.xlu0 0
    %6652 = vperm.xlu0 %6651, %v6153
    %v6653 = vpop.permute.xlu0 %6652
    %6654 = vset.pattern.permute.xlu0 0
    %6655 = vperm.xlu0 %6654, %v6154
    %v6656 = vpop.permute.xlu0 %6655
    %6657 = vset.pattern.permute.xlu0 0
    %6658 = vperm.xlu0 %6657, %v6155
    %v6659 = vpop.permute.xlu0 %6658
    %6660 = vset.pattern.permute.xlu0 0
    %6661 = vperm.xlu0 %6660, %v6156
    %v6662 = vpop.permute.xlu0 %6661
    %6663 = vset.pattern.permute.xlu0 0
    %6664 = vperm.xlu0 %6663, %v6157
    %v6665 = vpop.permute.xlu0 %6664
    %6666 = vset.pattern.permute.xlu0 0
    %6667 = vperm.xlu0 %6666, %v6158
    %v6668 = vpop.permute.xlu0 %6667
    %6669 = vset.pattern.permute.xlu0 0
    %6670 = vperm.xlu0 %6669, %v6159
    %v6671 = vpop.permute.xlu0 %6670
    %6672 = vset.pattern.permute.xlu0 0
    %6673 = vperm.xlu0 %6672, %v6160
    %v6674 = vpop.permute.xlu0 %6673
    %6675 = vset.pattern.permute.xlu0 0
    %6676 = vperm.xlu0 %6675, %v6161
    %v6677 = vpop.permute.xlu0 %6676
    %6678 = vset.pattern.permute.xlu0 0
    %6679 = vperm.xlu0 %6678, %v6162
    %v6680 = vpop.permute.xlu0 %6679
    %6681 = vset.pattern.permute.xlu0 0
    %6682 = vperm.xlu0 %6681, %v6163
    %v6683 = vpop.permute.xlu0 %6682
    %6684 = vset.pattern.permute.xlu0 0
    %6685 = vperm.xlu0 %6684, %v6164
    %v6686 = vpop.permute.xlu0 %6685
    %6687 = vset.pattern.permute.xlu0 0
    %6688 = vperm.xlu0 %6687, %v6165
    %v6689 = vpop.permute.xlu0 %6688
    %6690 = vset.pattern.permute.xlu0 0
    %6691 = vperm.xlu0 %6690, %v6166
    %v6692 = vpop.permute.xlu0 %6691
    %6693 = vset.pattern.permute.xlu0 0
    %6694 = vperm.xlu0 %6693, %v6167
    %v6695 = vpop.permute.xlu0 %6694
    %6696 = vset.pattern.permute.xlu0 0
    %6697 = vperm.xlu0 %6696, %v6168
    %v6698 = vpop.permute.xlu0 %6697
    %6699 = vset.pattern.permute.xlu0 0
    %6700 = vperm.xlu0 %6699, %v6169
    %v6701 = vpop.permute.xlu0 %6700
    %6702 = vset.pattern.permute.xlu0 0
    %6703 = vperm.xlu0 %6702, %v6170
    %v6704 = vpop.permute.xlu0 %6703
    %6705 = vset.pattern.permute.xlu0 0
    %6706 = vperm.xlu0 %6705, %v6171
    %v6707 = vpop.permute.xlu0 %6706
    %6708 = vset.pattern.permute.xlu0 0
    %6709 = vperm.xlu0 %6708, %v6172
    %v6710 = vpop.permute.xlu0 %6709
    %6711 = vset.pattern.permute.xlu0 0
    %6712 = vperm.xlu0 %6711, %v6173
    %v6713 = vpop.permute.xlu0 %6712
    %6714 = vset.pattern.permute.xlu0 0
    %6715 = vperm.xlu0 %6714, %v6174
    %v6716 = vpop.permute.xlu0 %6715
    %6717 = vset.pattern.permute.xlu0 0
    %6718 = vperm.xlu0 %6717, %v6175
    %v6719 = vpop.permute.xlu0 %6718
    %6720 = vset.pattern.permute.xlu0 0
    %6721 = vperm.xlu0 %6720, %v6176
    %v6722 = vpop.permute.xlu0 %6721
    %6723 = vset.pattern.permute.xlu0 0
    %6724 = vperm.xlu0 %6723, %v6177
    %v6725 = vpop.permute.xlu0 %6724
    %6726 = vset.pattern.permute.xlu0 0
    %6727 = vperm.xlu0 %6726, %v6178
    %v6728 = vpop.permute.xlu0 %6727
    %6729 = vset.pattern.permute.xlu0 0
    %6730 = vperm.xlu0 %6729, %v6179
    %v6731 = vpop.permute.xlu0 %6730
    %6732 = vset.pattern.permute.xlu0 0
    %6733 = vperm.xlu0 %6732, %v6180
    %v6734 = vpop.permute.xlu0 %6733
    %6735 = vset.pattern.permute.xlu0 0
    %6736 = vperm.xlu0 %6735, %v6181
    %v6737 = vpop.permute.xlu0 %6736
    %6738 = vset.pattern.permute.xlu0 0
    %6739 = vperm.xlu0 %6738, %v6182
    %v6740 = vpop.permute.xlu0 %6739
    %6741 = vset.pattern.permute.xlu0 0
    %6742 = vperm.xlu0 %6741, %v6183
    %v6743 = vpop.permute.xlu0 %6742
    %6744 = vset.pattern.permute.xlu0 0
    %6745 = vperm.xlu0 %6744, %v6184
    %v6746 = vpop.permute.xlu0 %6745
    %6747 = vset.pattern.permute.xlu0 0
    %6748 = vperm.xlu0 %6747, %v6185
    %v6749 = vpop.permute.xlu0 %6748
    %6750 = vset.pattern.permute.xlu0 0
    %6751 = vperm.xlu0 %6750, %v6186
    %v6752 = vpop.permute.xlu0 %6751
    %6753 = vset.pattern.permute.xlu0 0
    %6754 = vperm.xlu0 %6753, %v6187
    %v6755 = vpop.permute.xlu0 %6754
    %6756 = vset.pattern.permute.xlu0 0
    %6757 = vperm.xlu0 %6756, %v6188
    %v6758 = vpop.permute.xlu0 %6757
    %6759 = vset.pattern.permute.xlu0 0
    %6760 = vperm.xlu0 %6759, %v6189
    %v6761 = vpop.permute.xlu0 %6760
    %6762 = vset.pattern.permute.xlu0 0
    %6763 = vperm.xlu0 %6762, %v6190
    %v6764 = vpop.permute.xlu0 %6763
    %6765 = vset.pattern.permute.xlu0 0
    %6766 = vperm.xlu0 %6765, %v6191
    %v6767 = vpop.permute.xlu0 %6766
    %6768 = vset.pattern.permute.xlu0 0
    %6769 = vperm.xlu0 %6768, %v6192
    %v6770 = vpop.permute.xlu0 %6769
    %6771 = vset.pattern.permute.xlu0 0
    %6772 = vperm.xlu0 %6771, %v6193
    %v6773 = vpop.permute.xlu0 %6772
    %6774 = vset.pattern.permute.xlu0 0
    %6775 = vperm.xlu0 %6774, %v6194
    %v6776 = vpop.permute.xlu0 %6775
    %6777 = vset.pattern.permute.xlu0 0
    %6778 = vperm.xlu0 %6777, %v6195
    %v6779 = vpop.permute.xlu0 %6778
    %6780 = vset.pattern.permute.xlu0 0
    %6781 = vperm.xlu0 %6780, %v6196
    %v6782 = vpop.permute.xlu0 %6781
    %6783 = vset.pattern.permute.xlu0 0
    %6784 = vperm.xlu0 %6783, %v6197
    %v6785 = vpop.permute.xlu0 %6784
    %6786 = vset.pattern.permute.xlu0 0
    %6787 = vperm.xlu0 %6786, %v6198
    %v6788 = vpop.permute.xlu0 %6787
    %6789 = vset.pattern.permute.xlu0 0
    %6790 = vperm.xlu0 %6789, %v6199
    %v6791 = vpop.permute.xlu0 %6790
    %6792 = vset.pattern.permute.xlu0 0
    %6793 = vperm.xlu0 %6792, %v6200
    %v6794 = vpop.permute.xlu0 %6793
    %6795 = vset.pattern.permute.xlu0 0
    %6796 = vperm.xlu0 %6795, %v6201
    %v6797 = vpop.permute.xlu0 %6796
    %6798 = vset.pattern.permute.xlu0 0
    %6799 = vperm.xlu0 %6798, %v6202
    %v6800 = vpop.permute.xlu0 %6799
    %6801 = vset.pattern.permute.xlu0 0
    %6802 = vperm.xlu0 %6801, %v6203
    %v6803 = vpop.permute.xlu0 %6802
    %6804 = vset.pattern.permute.xlu0 0
    %6805 = vperm.xlu0 %6804, %v6204
    %v6806 = vpop.permute.xlu0 %6805
    %6807 = vset.pattern.permute.xlu0 0
    %6808 = vperm.xlu0 %6807, %v6205
    %v6809 = vpop.permute.xlu0 %6808
    %6810 = vset.pattern.permute.xlu0 0
    %6811 = vperm.xlu0 %6810, %v6206
    %v6812 = vpop.permute.xlu0 %6811
    %6813 = vset.pattern.permute.xlu0 0
    %6814 = vperm.xlu0 %6813, %v6207
    %v6815 = vpop.permute.xlu0 %6814
    %6816 = vset.pattern.permute.xlu0 0
    %6817 = vperm.xlu0 %6816, %v6208
    %v6818 = vpop.permute.xlu0 %6817
    %6819 = vset.pattern.permute.xlu0 0
    %6820 = vperm.xlu0 %6819, %v6209
    %v6821 = vpop.permute.xlu0 %6820
    %6822 = vset.pattern.permute.xlu0 0
    %6823 = vperm.xlu0 %6822, %v6210
    %v6824 = vpop.permute.xlu0 %6823
    %6825 = vset.pattern.permute.xlu0 0
    %6826 = vperm.xlu0 %6825, %v6211
    %v6827 = vpop.permute.xlu0 %6826
    %6828 = vset.pattern.permute.xlu0 0
    %6829 = vperm.xlu0 %6828, %v6212
    %v6830 = vpop.permute.xlu0 %6829
    %6831 = vset.pattern.permute.xlu0 0
    %6832 = vperm.xlu0 %6831, %v6213
    %v6833 = vpop.permute.xlu0 %6832
    %6834 = vset.pattern.permute.xlu0 0
    %6835 = vperm.xlu0 %6834, %v6214
    %v6836 = vpop.permute.xlu0 %6835
    %6837 = vset.pattern.permute.xlu0 0
    %6838 = vperm.xlu0 %6837, %v6215
    %v6839 = vpop.permute.xlu0 %6838
    %6840 = vset.pattern.permute.xlu0 0
    %6841 = vperm.xlu0 %6840, %v6216
    %v6842 = vpop.permute.xlu0 %6841
    %6843 = vset.pattern.permute.xlu0 0
    %6844 = vperm.xlu0 %6843, %v6217
    %v6845 = vpop.permute.xlu0 %6844
    %6846 = vset.pattern.permute.xlu0 0
    %6847 = vperm.xlu0 %6846, %v6218
    %v6848 = vpop.permute.xlu0 %6847
    %6849 = vset.pattern.permute.xlu0 0
    %6850 = vperm.xlu0 %6849, %v6219
    %v6851 = vpop.permute.xlu0 %6850
    %6852 = vset.pattern.permute.xlu0 0
    %6853 = vperm.xlu0 %6852, %v6220
    %v6854 = vpop.permute.xlu0 %6853
    %6855 = vset.pattern.permute.xlu0 0
    %6856 = vperm.xlu0 %6855, %v6221
    %v6857 = vpop.permute.xlu0 %6856
    %6858 = vset.pattern.permute.xlu0 0
    %6859 = vperm.xlu0 %6858, %v6222
    %v6860 = vpop.permute.xlu0 %6859
    %6861 = vset.pattern.permute.xlu0 0
    %6862 = vperm.xlu0 %6861, %v6223
    %v6863 = vpop.permute.xlu0 %6862
    %6864 = vset.pattern.permute.xlu0 0
    %6865 = vperm.xlu0 %6864, %v6224
    %v6866 = vpop.permute.xlu0 %6865
    %6867 = vset.pattern.permute.xlu0 0
    %6868 = vperm.xlu0 %6867, %v6225
    %v6869 = vpop.permute.xlu0 %6868
    %6870 = vset.pattern.permute.xlu0 0
    %6871 = vperm.xlu0 %6870, %v6226
    %v6872 = vpop.permute.xlu0 %6871
    %6873 = vset.pattern.permute.xlu0 0
    %6874 = vperm.xlu0 %6873, %v6227
    %v6875 = vpop.permute.xlu0 %6874
    %6876 = vset.pattern.permute.xlu0 0
    %6877 = vperm.xlu0 %6876, %v6228
    %v6878 = vpop.permute.xlu0 %6877
    %6879 = vset.pattern.permute.xlu0 0
    %6880 = vperm.xlu0 %6879, %v6229
    %v6881 = vpop.permute.xlu0 %6880
    %6882 = vset.pattern.permute.xlu0 0
    %6883 = vperm.xlu0 %6882, %v6230
    %v6884 = vpop.permute.xlu0 %6883
    %6885 = vset.pattern.permute.xlu0 0
    %6886 = vperm.xlu0 %6885, %v6231
    %v6887 = vpop.permute.xlu0 %6886
    %6888 = vset.pattern.permute.xlu0 0
    %6889 = vperm.xlu0 %6888, %v6232
    %v6890 = vpop.permute.xlu0 %6889
    %6891 = vset.pattern.permute.xlu0 0
    %6892 = vperm.xlu0 %6891, %v6233
    %v6893 = vpop.permute.xlu0 %6892
    %6894 = vset.pattern.permute.xlu0 0
    %6895 = vperm.xlu0 %6894, %v6234
    %v6896 = vpop.permute.xlu0 %6895
    %6897 = vset.pattern.permute.xlu0 0
    %6898 = vperm.xlu0 %6897, %v6235
    %v6899 = vpop.permute.xlu0 %6898
    %6900 = vset.pattern.permute.xlu0 0
    %6901 = vperm.xlu0 %6900, %v6236
    %v6902 = vpop.permute.xlu0 %6901
    %6903 = vset.pattern.permute.xlu0 0
    %6904 = vperm.xlu0 %6903, %v6237
    %v6905 = vpop.permute.xlu0 %6904
    %6906 = vset.pattern.permute.xlu0 0
    %6907 = vperm.xlu0 %6906, %v6238
    %v6908 = vpop.permute.xlu0 %6907
    %6909 = vset.pattern.permute.xlu0 0
    %6910 = vperm.xlu0 %6909, %v6239
    %v6911 = vpop.permute.xlu0 %6910
    %6912 = vset.pattern.permute.xlu0 0
    %6913 = vperm.xlu0 %6912, %v6240
    %v6914 = vpop.permute.xlu0 %6913
    %6915 = vset.pattern.permute.xlu0 0
    %6916 = vperm.xlu0 %6915, %v6241
    %v6917 = vpop.permute.xlu0 %6916
    %6918 = vset.pattern.permute.xlu0 0
    %6919 = vperm.xlu0 %6918, %v6242
    %v6920 = vpop.permute.xlu0 %6919
    %6921 = vset.pattern.permute.xlu0 0
    %6922 = vperm.xlu0 %6921, %v6243
    %v6923 = vpop.permute.xlu0 %6922
    %6924 = vset.pattern.permute.xlu0 0
    %6925 = vperm.xlu0 %6924, %v6244
    %v6926 = vpop.permute.xlu0 %6925
    %6927 = vset.pattern.permute.xlu0 0
    %6928 = vperm.xlu0 %6927, %v6245
    %v6929 = vpop.permute.xlu0 %6928
    %6930 = vset.pattern.permute.xlu0 0
    %6931 = vperm.xlu0 %6930, %v6246
    %v6932 = vpop.permute.xlu0 %6931
    %6933 = vset.pattern.permute.xlu0 0
    %6934 = vperm.xlu0 %6933, %v6247
    %v6935 = vpop.permute.xlu0 %6934
    %6936 = vset.pattern.permute.xlu0 0
    %6937 = vperm.xlu0 %6936, %v6248
    %v6938 = vpop.permute.xlu0 %6937
    %6939 = vset.pattern.permute.xlu0 0
    %6940 = vperm.xlu0 %6939, %v6249
    %v6941 = vpop.permute.xlu0 %6940
    %6942 = vset.pattern.permute.xlu0 0
    %6943 = vperm.xlu0 %6942, %v6250
    %v6944 = vpop.permute.xlu0 %6943
    %6945 = vset.pattern.permute.xlu0 0
    %6946 = vperm.xlu0 %6945, %v6251
    %v6947 = vpop.permute.xlu0 %6946
    %6948 = vset.pattern.permute.xlu0 0
    %6949 = vperm.xlu0 %6948, %v6252
    %v6950 = vpop.permute.xlu0 %6949
    %6951 = vset.pattern.permute.xlu0 0
    %6952 = vperm.xlu0 %6951, %v6253
    %v6953 = vpop.permute.xlu0 %6952
    %6954 = vset.pattern.permute.xlu0 0
    %6955 = vperm.xlu0 %6954, %v6254
    %v6956 = vpop.permute.xlu0 %6955
    %6957 = vset.pattern.permute.xlu0 0
    %6958 = vperm.xlu0 %6957, %v6255
    %v6959 = vpop.permute.xlu0 %6958
    %6960 = vset.pattern.permute.xlu0 0
    %6961 = vperm.xlu0 %6960, %v6256
    %v6962 = vpop.permute.xlu0 %6961
    %6963 = vset.pattern.permute.xlu0 0
    %6964 = vperm.xlu0 %6963, %v6257
    %v6965 = vpop.permute.xlu0 %6964
    %6966 = vset.pattern.permute.xlu0 0
    %6967 = vperm.xlu0 %6966, %v6258
    %v6968 = vpop.permute.xlu0 %6967
    %6969 = vset.pattern.permute.xlu0 0
    %6970 = vperm.xlu0 %6969, %v6259
    %v6971 = vpop.permute.xlu0 %6970
    %6972 = vset.pattern.permute.xlu0 0
    %6973 = vperm.xlu0 %6972, %v6260
    %v6974 = vpop.permute.xlu0 %6973
    %6975 = vset.pattern.permute.xlu0 0
    %6976 = vperm.xlu0 %6975, %v6261
    %v6977 = vpop.permute.xlu0 %6976
    %6978 = vset.pattern.permute.xlu0 0
    %6979 = vperm.xlu0 %6978, %v6262
    %v6980 = vpop.permute.xlu0 %6979
    %6981 = vset.pattern.permute.xlu0 0
    %6982 = vperm.xlu0 %6981, %v6263
    %v6983 = vpop.permute.xlu0 %6982
    %v6984 = vlaneseq
    %v6985 = vshrl.u32 %v6984, 7
    %v6986 = vsub.s32 %v1026, %v6985
    %v6987 = vrot.slane %v6554, %v6986
    %v6988 = vlaneseq
    %v6989 = vshrl.u32 %v6988, 7
    %v6990 = vsub.s32 %v1031, %v6989
    %v6991 = vrot.slane %v6557, %v6990
    %v6992 = vsel %vm1036, %v6991, %v6987
    %v6993 = vlaneseq
    %v6994 = vshrl.u32 %v6993, 7
    %v6995 = vsub.s32 %v1038, %v6994
    %v6996 = vrot.slane %v6560, %v6995
    %v6997 = vsel %vm1043, %v6996, %v6992
    %v6998 = vlaneseq
    %v6999 = vshrl.u32 %v6998, 7
    %v7000 = vsub.s32 %v1045, %v6999
    %v7001 = vrot.slane %v6563, %v7000
    %v7002 = vsel %vm1050, %v7001, %v6997
    %v7003 = vlaneseq
    %v7004 = vshrl.u32 %v7003, 7
    %v7005 = vsub.s32 %v1052, %v7004
    %v7006 = vrot.slane %v6566, %v7005
    %v7007 = vsel %vm1057, %v7006, %v7002
    %v7008 = vlaneseq
    %v7009 = vshrl.u32 %v7008, 7
    %v7010 = vsub.s32 %v1059, %v7009
    %v7011 = vrot.slane %v6569, %v7010
    %v7012 = vsel %vm1064, %v7011, %v7007
    %v7013 = vlaneseq
    %v7014 = vshrl.u32 %v7013, 7
    %v7015 = vsub.s32 %v1066, %v7014
    %v7016 = vrot.slane %v6572, %v7015
    %v7017 = vsel %vm1071, %v7016, %v7012
    %v7018 = vlaneseq
    %v7019 = vshrl.u32 %v7018, 7
    %v7020 = vsub.s32 %v1073, %v7019
    %v7021 = vrot.slane %v6575, %v7020
    %v7022 = vsel %vm1078, %v7021, %v7017
    %v7023 = vlaneseq
    %v7024 = vshrl.u32 %v7023, 7
    %v7025 = vsub.s32 %v1080, %v7024
    %v7026 = vrot.slane %v6578, %v7025
    %v7027 = vsel %vm1085, %v7026, %v7022
    %v7028 = vlaneseq
    %v7029 = vshrl.u32 %v7028, 7
    %v7030 = vsub.s32 %v1087, %v7029
    %v7031 = vrot.slane %v6581, %v7030
    %v7032 = vsel %vm1092, %v7031, %v7027
    %v7033 = vlaneseq
    %v7034 = vshrl.u32 %v7033, 7
    %v7035 = vsub.s32 %v1094, %v7034
    %v7036 = vrot.slane %v6584, %v7035
    %v7037 = vsel %vm1099, %v7036, %v7032
    %v7038 = vlaneseq
    %v7039 = vshrl.u32 %v7038, 7
    %v7040 = vsub.s32 %v1101, %v7039
    %v7041 = vrot.slane %v6587, %v7040
    %v7042 = vsel %vm1106, %v7041, %v7037
    %v7043 = vlaneseq
    %v7044 = vshrl.u32 %v7043, 7
    %v7045 = vsub.s32 %v1108, %v7044
    %v7046 = vrot.slane %v6590, %v7045
    %v7047 = vsel %vm1113, %v7046, %v7042
    %v7048 = vlaneseq
    %v7049 = vshrl.u32 %v7048, 7
    %v7050 = vsub.s32 %v1115, %v7049
    %v7051 = vrot.slane %v6593, %v7050
    %v7052 = vsel %vm1120, %v7051, %v7047
    %v7053 = vlaneseq
    %v7054 = vshrl.u32 %v7053, 7
    %v7055 = vsub.s32 %v1122, %v7054
    %v7056 = vrot.slane %v6596, %v7055
    %v7057 = vsel %vm1127, %v7056, %v7052
    %v7058 = vlaneseq
    %v7059 = vshrl.u32 %v7058, 7
    %v7060 = vsub.s32 %v1129, %v7059
    %v7061 = vrot.slane %v6599, %v7060
    %v7062 = vsel %vm1134, %v7061, %v7057
    %v7063 = vlaneseq
    %v7064 = vshrl.u32 %v7063, 7
    %v7065 = vsub.s32 %v1026, %v7064
    %v7066 = vrot.slane %v6602, %v7065
    %v7067 = vlaneseq
    %v7068 = vshrl.u32 %v7067, 7
    %v7069 = vsub.s32 %v1031, %v7068
    %v7070 = vrot.slane %v6605, %v7069
    %v7071 = vsel %vm1036, %v7070, %v7066
    %v7072 = vlaneseq
    %v7073 = vshrl.u32 %v7072, 7
    %v7074 = vsub.s32 %v1038, %v7073
    %v7075 = vrot.slane %v6608, %v7074
    %v7076 = vsel %vm1043, %v7075, %v7071
    %v7077 = vlaneseq
    %v7078 = vshrl.u32 %v7077, 7
    %v7079 = vsub.s32 %v1045, %v7078
    %v7080 = vrot.slane %v6611, %v7079
    %v7081 = vsel %vm1050, %v7080, %v7076
    %v7082 = vlaneseq
    %v7083 = vshrl.u32 %v7082, 7
    %v7084 = vsub.s32 %v1052, %v7083
    %v7085 = vrot.slane %v6614, %v7084
    %v7086 = vsel %vm1057, %v7085, %v7081
    %v7087 = vlaneseq
    %v7088 = vshrl.u32 %v7087, 7
    %v7089 = vsub.s32 %v1059, %v7088
    %v7090 = vrot.slane %v6617, %v7089
    %v7091 = vsel %vm1064, %v7090, %v7086
    %v7092 = vlaneseq
    %v7093 = vshrl.u32 %v7092, 7
    %v7094 = vsub.s32 %v1066, %v7093
    %v7095 = vrot.slane %v6620, %v7094
    %v7096 = vsel %vm1071, %v7095, %v7091
    %v7097 = vlaneseq
    %v7098 = vshrl.u32 %v7097, 7
    %v7099 = vsub.s32 %v1073, %v7098
    %v7100 = vrot.slane %v6623, %v7099
    %v7101 = vsel %vm1078, %v7100, %v7096
    %v7102 = vlaneseq
    %v7103 = vshrl.u32 %v7102, 7
    %v7104 = vsub.s32 %v1080, %v7103
    %v7105 = vrot.slane %v6626, %v7104
    %v7106 = vsel %vm1085, %v7105, %v7101
    %v7107 = vlaneseq
    %v7108 = vshrl.u32 %v7107, 7
    %v7109 = vsub.s32 %v1087, %v7108
    %v7110 = vrot.slane %v6629, %v7109
    %v7111 = vsel %vm1092, %v7110, %v7106
    %v7112 = vlaneseq
    %v7113 = vshrl.u32 %v7112, 7
    %v7114 = vsub.s32 %v1094, %v7113
    %v7115 = vrot.slane %v6632, %v7114
    %v7116 = vsel %vm1099, %v7115, %v7111
    %v7117 = vlaneseq
    %v7118 = vshrl.u32 %v7117, 7
    %v7119 = vsub.s32 %v1101, %v7118
    %v7120 = vrot.slane %v6635, %v7119
    %v7121 = vsel %vm1106, %v7120, %v7116
    %v7122 = vlaneseq
    %v7123 = vshrl.u32 %v7122, 7
    %v7124 = vsub.s32 %v1108, %v7123
    %v7125 = vrot.slane %v6638, %v7124
    %v7126 = vsel %vm1113, %v7125, %v7121
    %v7127 = vlaneseq
    %v7128 = vshrl.u32 %v7127, 7
    %v7129 = vsub.s32 %v1115, %v7128
    %v7130 = vrot.slane %v6641, %v7129
    %v7131 = vsel %vm1120, %v7130, %v7126
    %v7132 = vlaneseq
    %v7133 = vshrl.u32 %v7132, 7
    %v7134 = vsub.s32 %v1122, %v7133
    %v7135 = vrot.slane %v6644, %v7134
    %v7136 = vsel %vm1127, %v7135, %v7131
    %v7137 = vlaneseq
    %v7138 = vshrl.u32 %v7137, 7
    %v7139 = vsub.s32 %v1129, %v7138
    %v7140 = vrot.slane %v6647, %v7139
    %v7141 = vsel %vm1134, %v7140, %v7136
    %v7142 = vlaneseq
    %v7143 = vshrl.u32 %v7142, 7
    %v7144 = vsub.s32 %v1026, %v7143
    %v7145 = vrot.slane %v6650, %v7144
    %v7146 = vlaneseq
    %v7147 = vshrl.u32 %v7146, 7
    %v7148 = vsub.s32 %v1031, %v7147
    %v7149 = vrot.slane %v6653, %v7148
    %v7150 = vsel %vm1036, %v7149, %v7145
    %v7151 = vlaneseq
    %v7152 = vshrl.u32 %v7151, 7
    %v7153 = vsub.s32 %v1038, %v7152
    %v7154 = vrot.slane %v6656, %v7153
    %v7155 = vsel %vm1043, %v7154, %v7150
    %v7156 = vlaneseq
    %v7157 = vshrl.u32 %v7156, 7
    %v7158 = vsub.s32 %v1045, %v7157
    %v7159 = vrot.slane %v6659, %v7158
    %v7160 = vsel %vm1050, %v7159, %v7155
    %v7161 = vlaneseq
    %v7162 = vshrl.u32 %v7161, 7
    %v7163 = vsub.s32 %v1052, %v7162
    %v7164 = vrot.slane %v6662, %v7163
    %v7165 = vsel %vm1057, %v7164, %v7160
    %v7166 = vlaneseq
    %v7167 = vshrl.u32 %v7166, 7
    %v7168 = vsub.s32 %v1059, %v7167
    %v7169 = vrot.slane %v6665, %v7168
    %v7170 = vsel %vm1064, %v7169, %v7165
    %v7171 = vlaneseq
    %v7172 = vshrl.u32 %v7171, 7
    %v7173 = vsub.s32 %v1066, %v7172
    %v7174 = vrot.slane %v6668, %v7173
    %v7175 = vsel %vm1071, %v7174, %v7170
    %v7176 = vlaneseq
    %v7177 = vshrl.u32 %v7176, 7
    %v7178 = vsub.s32 %v1073, %v7177
    %v7179 = vrot.slane %v6671, %v7178
    %v7180 = vsel %vm1078, %v7179, %v7175
    %v7181 = vlaneseq
    %v7182 = vshrl.u32 %v7181, 7
    %v7183 = vsub.s32 %v1080, %v7182
    %v7184 = vrot.slane %v6674, %v7183
    %v7185 = vsel %vm1085, %v7184, %v7180
    %v7186 = vlaneseq
    %v7187 = vshrl.u32 %v7186, 7
    %v7188 = vsub.s32 %v1087, %v7187
    %v7189 = vrot.slane %v6677, %v7188
    %v7190 = vsel %vm1092, %v7189, %v7185
    %v7191 = vlaneseq
    %v7192 = vshrl.u32 %v7191, 7
    %v7193 = vsub.s32 %v1094, %v7192
    %v7194 = vrot.slane %v6680, %v7193
    %v7195 = vsel %vm1099, %v7194, %v7190
    %v7196 = vlaneseq
    %v7197 = vshrl.u32 %v7196, 7
    %v7198 = vsub.s32 %v1101, %v7197
    %v7199 = vrot.slane %v6683, %v7198
    %v7200 = vsel %vm1106, %v7199, %v7195
    %v7201 = vlaneseq
    %v7202 = vshrl.u32 %v7201, 7
    %v7203 = vsub.s32 %v1108, %v7202
    %v7204 = vrot.slane %v6686, %v7203
    %v7205 = vsel %vm1113, %v7204, %v7200
    %v7206 = vlaneseq
    %v7207 = vshrl.u32 %v7206, 7
    %v7208 = vsub.s32 %v1115, %v7207
    %v7209 = vrot.slane %v6689, %v7208
    %v7210 = vsel %vm1120, %v7209, %v7205
    %v7211 = vlaneseq
    %v7212 = vshrl.u32 %v7211, 7
    %v7213 = vsub.s32 %v1122, %v7212
    %v7214 = vrot.slane %v6692, %v7213
    %v7215 = vsel %vm1127, %v7214, %v7210
    %v7216 = vlaneseq
    %v7217 = vshrl.u32 %v7216, 7
    %v7218 = vsub.s32 %v1129, %v7217
    %v7219 = vrot.slane %v6695, %v7218
    %v7220 = vsel %vm1134, %v7219, %v7215
    %v7221 = vlaneseq
    %v7222 = vshrl.u32 %v7221, 7
    %v7223 = vsub.s32 %v1026, %v7222
    %v7224 = vrot.slane %v6698, %v7223
    %v7225 = vlaneseq
    %v7226 = vshrl.u32 %v7225, 7
    %v7227 = vsub.s32 %v1031, %v7226
    %v7228 = vrot.slane %v6701, %v7227
    %v7229 = vsel %vm1036, %v7228, %v7224
    %v7230 = vlaneseq
    %v7231 = vshrl.u32 %v7230, 7
    %v7232 = vsub.s32 %v1038, %v7231
    %v7233 = vrot.slane %v6704, %v7232
    %v7234 = vsel %vm1043, %v7233, %v7229
    %v7235 = vlaneseq
    %v7236 = vshrl.u32 %v7235, 7
    %v7237 = vsub.s32 %v1045, %v7236
    %v7238 = vrot.slane %v6707, %v7237
    %v7239 = vsel %vm1050, %v7238, %v7234
    %v7240 = vlaneseq
    %v7241 = vshrl.u32 %v7240, 7
    %v7242 = vsub.s32 %v1052, %v7241
    %v7243 = vrot.slane %v6710, %v7242
    %v7244 = vsel %vm1057, %v7243, %v7239
    %v7245 = vlaneseq
    %v7246 = vshrl.u32 %v7245, 7
    %v7247 = vsub.s32 %v1059, %v7246
    %v7248 = vrot.slane %v6713, %v7247
    %v7249 = vsel %vm1064, %v7248, %v7244
    %v7250 = vlaneseq
    %v7251 = vshrl.u32 %v7250, 7
    %v7252 = vsub.s32 %v1066, %v7251
    %v7253 = vrot.slane %v6716, %v7252
    %v7254 = vsel %vm1071, %v7253, %v7249
    %v7255 = vlaneseq
    %v7256 = vshrl.u32 %v7255, 7
    %v7257 = vsub.s32 %v1073, %v7256
    %v7258 = vrot.slane %v6719, %v7257
    %v7259 = vsel %vm1078, %v7258, %v7254
    %v7260 = vlaneseq
    %v7261 = vshrl.u32 %v7260, 7
    %v7262 = vsub.s32 %v1080, %v7261
    %v7263 = vrot.slane %v6722, %v7262
    %v7264 = vsel %vm1085, %v7263, %v7259
    %v7265 = vlaneseq
    %v7266 = vshrl.u32 %v7265, 7
    %v7267 = vsub.s32 %v1087, %v7266
    %v7268 = vrot.slane %v6725, %v7267
    %v7269 = vsel %vm1092, %v7268, %v7264
    %v7270 = vlaneseq
    %v7271 = vshrl.u32 %v7270, 7
    %v7272 = vsub.s32 %v1094, %v7271
    %v7273 = vrot.slane %v6728, %v7272
    %v7274 = vsel %vm1099, %v7273, %v7269
    %v7275 = vlaneseq
    %v7276 = vshrl.u32 %v7275, 7
    %v7277 = vsub.s32 %v1101, %v7276
    %v7278 = vrot.slane %v6731, %v7277
    %v7279 = vsel %vm1106, %v7278, %v7274
    %v7280 = vlaneseq
    %v7281 = vshrl.u32 %v7280, 7
    %v7282 = vsub.s32 %v1108, %v7281
    %v7283 = vrot.slane %v6734, %v7282
    %v7284 = vsel %vm1113, %v7283, %v7279
    %v7285 = vlaneseq
    %v7286 = vshrl.u32 %v7285, 7
    %v7287 = vsub.s32 %v1115, %v7286
    %v7288 = vrot.slane %v6737, %v7287
    %v7289 = vsel %vm1120, %v7288, %v7284
    %v7290 = vlaneseq
    %v7291 = vshrl.u32 %v7290, 7
    %v7292 = vsub.s32 %v1122, %v7291
    %v7293 = vrot.slane %v6740, %v7292
    %v7294 = vsel %vm1127, %v7293, %v7289
    %v7295 = vlaneseq
    %v7296 = vshrl.u32 %v7295, 7
    %v7297 = vsub.s32 %v1129, %v7296
    %v7298 = vrot.slane %v6743, %v7297
    %v7299 = vsel %vm1134, %v7298, %v7294
    %v7300 = vlaneseq
    %v7301 = vshrl.u32 %v7300, 7
    %v7302 = vsub.s32 %v1026, %v7301
    %v7303 = vrot.slane %v6746, %v7302
    %v7304 = vlaneseq
    %v7305 = vshrl.u32 %v7304, 7
    %v7306 = vsub.s32 %v1031, %v7305
    %v7307 = vrot.slane %v6749, %v7306
    %v7308 = vsel %vm1036, %v7307, %v7303
    %v7309 = vlaneseq
    %v7310 = vshrl.u32 %v7309, 7
    %v7311 = vsub.s32 %v1038, %v7310
    %v7312 = vrot.slane %v6752, %v7311
    %v7313 = vsel %vm1043, %v7312, %v7308
    %v7314 = vlaneseq
    %v7315 = vshrl.u32 %v7314, 7
    %v7316 = vsub.s32 %v1045, %v7315
    %v7317 = vrot.slane %v6755, %v7316
    %v7318 = vsel %vm1050, %v7317, %v7313
    %v7319 = vlaneseq
    %v7320 = vshrl.u32 %v7319, 7
    %v7321 = vsub.s32 %v1052, %v7320
    %v7322 = vrot.slane %v6758, %v7321
    %v7323 = vsel %vm1057, %v7322, %v7318
    %v7324 = vlaneseq
    %v7325 = vshrl.u32 %v7324, 7
    %v7326 = vsub.s32 %v1059, %v7325
    %v7327 = vrot.slane %v6761, %v7326
    %v7328 = vsel %vm1064, %v7327, %v7323
    %v7329 = vlaneseq
    %v7330 = vshrl.u32 %v7329, 7
    %v7331 = vsub.s32 %v1066, %v7330
    %v7332 = vrot.slane %v6764, %v7331
    %v7333 = vsel %vm1071, %v7332, %v7328
    %v7334 = vlaneseq
    %v7335 = vshrl.u32 %v7334, 7
    %v7336 = vsub.s32 %v1073, %v7335
    %v7337 = vrot.slane %v6767, %v7336
    %v7338 = vsel %vm1078, %v7337, %v7333
    %v7339 = vlaneseq
    %v7340 = vshrl.u32 %v7339, 7
    %v7341 = vsub.s32 %v1026, %v7340
    %v7342 = vrot.slane %v6770, %v7341
    %v7343 = vlaneseq
    %v7344 = vshrl.u32 %v7343, 7
    %v7345 = vsub.s32 %v1031, %v7344
    %v7346 = vrot.slane %v6773, %v7345
    %v7347 = vsel %vm1036, %v7346, %v7342
    %v7348 = vlaneseq
    %v7349 = vshrl.u32 %v7348, 7
    %v7350 = vsub.s32 %v1038, %v7349
    %v7351 = vrot.slane %v6776, %v7350
    %v7352 = vsel %vm1043, %v7351, %v7347
    %v7353 = vlaneseq
    %v7354 = vshrl.u32 %v7353, 7
    %v7355 = vsub.s32 %v1045, %v7354
    %v7356 = vrot.slane %v6779, %v7355
    %v7357 = vsel %vm1050, %v7356, %v7352
    %v7358 = vlaneseq
    %v7359 = vshrl.u32 %v7358, 7
    %v7360 = vsub.s32 %v1052, %v7359
    %v7361 = vrot.slane %v6782, %v7360
    %v7362 = vsel %vm1057, %v7361, %v7357
    %v7363 = vlaneseq
    %v7364 = vshrl.u32 %v7363, 7
    %v7365 = vsub.s32 %v1059, %v7364
    %v7366 = vrot.slane %v6785, %v7365
    %v7367 = vsel %vm1064, %v7366, %v7362
    %v7368 = vlaneseq
    %v7369 = vshrl.u32 %v7368, 7
    %v7370 = vsub.s32 %v1066, %v7369
    %v7371 = vrot.slane %v6788, %v7370
    %v7372 = vsel %vm1071, %v7371, %v7367
    %v7373 = vlaneseq
    %v7374 = vshrl.u32 %v7373, 7
    %v7375 = vsub.s32 %v1073, %v7374
    %v7376 = vrot.slane %v6791, %v7375
    %v7377 = vsel %vm1078, %v7376, %v7372
    %v7378 = vlaneseq
    %v7379 = vshrl.u32 %v7378, 7
    %v7380 = vsub.s32 %v1080, %v7379
    %v7381 = vrot.slane %v6794, %v7380
    %v7382 = vsel %vm1085, %v7381, %v7377
    %v7383 = vlaneseq
    %v7384 = vshrl.u32 %v7383, 7
    %v7385 = vsub.s32 %v1087, %v7384
    %v7386 = vrot.slane %v6797, %v7385
    %v7387 = vsel %vm1092, %v7386, %v7382
    %v7388 = vlaneseq
    %v7389 = vshrl.u32 %v7388, 7
    %v7390 = vsub.s32 %v1094, %v7389
    %v7391 = vrot.slane %v6800, %v7390
    %v7392 = vsel %vm1099, %v7391, %v7387
    %v7393 = vlaneseq
    %v7394 = vshrl.u32 %v7393, 7
    %v7395 = vsub.s32 %v1101, %v7394
    %v7396 = vrot.slane %v6803, %v7395
    %v7397 = vsel %vm1106, %v7396, %v7392
    %v7398 = vlaneseq
    %v7399 = vshrl.u32 %v7398, 7
    %v7400 = vsub.s32 %v1108, %v7399
    %v7401 = vrot.slane %v6806, %v7400
    %v7402 = vsel %vm1113, %v7401, %v7397
    %v7403 = vlaneseq
    %v7404 = vshrl.u32 %v7403, 7
    %v7405 = vsub.s32 %v1115, %v7404
    %v7406 = vrot.slane %v6809, %v7405
    %v7407 = vsel %vm1120, %v7406, %v7402
    %v7408 = vlaneseq
    %v7409 = vshrl.u32 %v7408, 7
    %v7410 = vsub.s32 %v1122, %v7409
    %v7411 = vrot.slane %v6812, %v7410
    %v7412 = vsel %vm1127, %v7411, %v7407
    %v7413 = vlaneseq
    %v7414 = vshrl.u32 %v7413, 7
    %v7415 = vsub.s32 %v1129, %v7414
    %v7416 = vrot.slane %v6815, %v7415
    %v7417 = vsel %vm1134, %v7416, %v7412
    %v7418 = vlaneseq
    %v7419 = vshrl.u32 %v7418, 7
    %v7420 = vsub.s32 %v1026, %v7419
    %v7421 = vrot.slane %v6818, %v7420
    %v7422 = vlaneseq
    %v7423 = vshrl.u32 %v7422, 7
    %v7424 = vsub.s32 %v1031, %v7423
    %v7425 = vrot.slane %v6821, %v7424
    %v7426 = vsel %vm1036, %v7425, %v7421
    %v7427 = vlaneseq
    %v7428 = vshrl.u32 %v7427, 7
    %v7429 = vsub.s32 %v1038, %v7428
    %v7430 = vrot.slane %v6824, %v7429
    %v7431 = vsel %vm1043, %v7430, %v7426
    %v7432 = vlaneseq
    %v7433 = vshrl.u32 %v7432, 7
    %v7434 = vsub.s32 %v1045, %v7433
    %v7435 = vrot.slane %v6827, %v7434
    %v7436 = vsel %vm1050, %v7435, %v7431
    %v7437 = vlaneseq
    %v7438 = vshrl.u32 %v7437, 7
    %v7439 = vsub.s32 %v1052, %v7438
    %v7440 = vrot.slane %v6830, %v7439
    %v7441 = vsel %vm1057, %v7440, %v7436
    %v7442 = vlaneseq
    %v7443 = vshrl.u32 %v7442, 7
    %v7444 = vsub.s32 %v1059, %v7443
    %v7445 = vrot.slane %v6833, %v7444
    %v7446 = vsel %vm1064, %v7445, %v7441
    %v7447 = vlaneseq
    %v7448 = vshrl.u32 %v7447, 7
    %v7449 = vsub.s32 %v1066, %v7448
    %v7450 = vrot.slane %v6836, %v7449
    %v7451 = vsel %vm1071, %v7450, %v7446
    %v7452 = vlaneseq
    %v7453 = vshrl.u32 %v7452, 7
    %v7454 = vsub.s32 %v1073, %v7453
    %v7455 = vrot.slane %v6839, %v7454
    %v7456 = vsel %vm1078, %v7455, %v7451
    %v7457 = vlaneseq
    %v7458 = vshrl.u32 %v7457, 7
    %v7459 = vsub.s32 %v1080, %v7458
    %v7460 = vrot.slane %v6842, %v7459
    %v7461 = vsel %vm1085, %v7460, %v7456
    %v7462 = vlaneseq
    %v7463 = vshrl.u32 %v7462, 7
    %v7464 = vsub.s32 %v1087, %v7463
    %v7465 = vrot.slane %v6845, %v7464
    %v7466 = vsel %vm1092, %v7465, %v7461
    %v7467 = vlaneseq
    %v7468 = vshrl.u32 %v7467, 7
    %v7469 = vsub.s32 %v1094, %v7468
    %v7470 = vrot.slane %v6848, %v7469
    %v7471 = vsel %vm1099, %v7470, %v7466
    %v7472 = vlaneseq
    %v7473 = vshrl.u32 %v7472, 7
    %v7474 = vsub.s32 %v1101, %v7473
    %v7475 = vrot.slane %v6851, %v7474
    %v7476 = vsel %vm1106, %v7475, %v7471
    %v7477 = vlaneseq
    %v7478 = vshrl.u32 %v7477, 7
    %v7479 = vsub.s32 %v1108, %v7478
    %v7480 = vrot.slane %v6854, %v7479
    %v7481 = vsel %vm1113, %v7480, %v7476
    %v7482 = vlaneseq
    %v7483 = vshrl.u32 %v7482, 7
    %v7484 = vsub.s32 %v1115, %v7483
    %v7485 = vrot.slane %v6857, %v7484
    %v7486 = vsel %vm1120, %v7485, %v7481
    %v7487 = vlaneseq
    %v7488 = vshrl.u32 %v7487, 7
    %v7489 = vsub.s32 %v1122, %v7488
    %v7490 = vrot.slane %v6860, %v7489
    %v7491 = vsel %vm1127, %v7490, %v7486
    %v7492 = vlaneseq
    %v7493 = vshrl.u32 %v7492, 7
    %v7494 = vsub.s32 %v1129, %v7493
    %v7495 = vrot.slane %v6863, %v7494
    %v7496 = vsel %vm1134, %v7495, %v7491
    %v7497 = vlaneseq
    %v7498 = vshrl.u32 %v7497, 7
    %v7499 = vsub.s32 %v1026, %v7498
    %v7500 = vrot.slane %v6866, %v7499
    %v7501 = vlaneseq
    %v7502 = vshrl.u32 %v7501, 7
    %v7503 = vsub.s32 %v1031, %v7502
    %v7504 = vrot.slane %v6869, %v7503
    %v7505 = vsel %vm1036, %v7504, %v7500
    %v7506 = vlaneseq
    %v7507 = vshrl.u32 %v7506, 7
    %v7508 = vsub.s32 %v1038, %v7507
    %v7509 = vrot.slane %v6872, %v7508
    %v7510 = vsel %vm1043, %v7509, %v7505
    %v7511 = vlaneseq
    %v7512 = vshrl.u32 %v7511, 7
    %v7513 = vsub.s32 %v1045, %v7512
    %v7514 = vrot.slane %v6875, %v7513
    %v7515 = vsel %vm1050, %v7514, %v7510
    %v7516 = vlaneseq
    %v7517 = vshrl.u32 %v7516, 7
    %v7518 = vsub.s32 %v1052, %v7517
    %v7519 = vrot.slane %v6878, %v7518
    %v7520 = vsel %vm1057, %v7519, %v7515
    %v7521 = vlaneseq
    %v7522 = vshrl.u32 %v7521, 7
    %v7523 = vsub.s32 %v1059, %v7522
    %v7524 = vrot.slane %v6881, %v7523
    %v7525 = vsel %vm1064, %v7524, %v7520
    %v7526 = vlaneseq
    %v7527 = vshrl.u32 %v7526, 7
    %v7528 = vsub.s32 %v1066, %v7527
    %v7529 = vrot.slane %v6884, %v7528
    %v7530 = vsel %vm1071, %v7529, %v7525
    %v7531 = vlaneseq
    %v7532 = vshrl.u32 %v7531, 7
    %v7533 = vsub.s32 %v1073, %v7532
    %v7534 = vrot.slane %v6887, %v7533
    %v7535 = vsel %vm1078, %v7534, %v7530
    %v7536 = vlaneseq
    %v7537 = vshrl.u32 %v7536, 7
    %v7538 = vsub.s32 %v1080, %v7537
    %v7539 = vrot.slane %v6890, %v7538
    %v7540 = vsel %vm1085, %v7539, %v7535
    %v7541 = vlaneseq
    %v7542 = vshrl.u32 %v7541, 7
    %v7543 = vsub.s32 %v1087, %v7542
    %v7544 = vrot.slane %v6893, %v7543
    %v7545 = vsel %vm1092, %v7544, %v7540
    %v7546 = vlaneseq
    %v7547 = vshrl.u32 %v7546, 7
    %v7548 = vsub.s32 %v1094, %v7547
    %v7549 = vrot.slane %v6896, %v7548
    %v7550 = vsel %vm1099, %v7549, %v7545
    %v7551 = vlaneseq
    %v7552 = vshrl.u32 %v7551, 7
    %v7553 = vsub.s32 %v1101, %v7552
    %v7554 = vrot.slane %v6899, %v7553
    %v7555 = vsel %vm1106, %v7554, %v7550
    %v7556 = vlaneseq
    %v7557 = vshrl.u32 %v7556, 7
    %v7558 = vsub.s32 %v1108, %v7557
    %v7559 = vrot.slane %v6902, %v7558
    %v7560 = vsel %vm1113, %v7559, %v7555
    %v7561 = vlaneseq
    %v7562 = vshrl.u32 %v7561, 7
    %v7563 = vsub.s32 %v1115, %v7562
    %v7564 = vrot.slane %v6905, %v7563
    %v7565 = vsel %vm1120, %v7564, %v7560
    %v7566 = vlaneseq
    %v7567 = vshrl.u32 %v7566, 7
    %v7568 = vsub.s32 %v1122, %v7567
    %v7569 = vrot.slane %v6908, %v7568
    %v7570 = vsel %vm1127, %v7569, %v7565
    %v7571 = vlaneseq
    %v7572 = vshrl.u32 %v7571, 7
    %v7573 = vsub.s32 %v1129, %v7572
    %v7574 = vrot.slane %v6911, %v7573
    %v7575 = vsel %vm1134, %v7574, %v7570
    %v7576 = vlaneseq
    %v7577 = vshrl.u32 %v7576, 7
    %v7578 = vsub.s32 %v1026, %v7577
    %v7579 = vrot.slane %v6914, %v7578
    %v7580 = vlaneseq
    %v7581 = vshrl.u32 %v7580, 7
    %v7582 = vsub.s32 %v1031, %v7581
    %v7583 = vrot.slane %v6917, %v7582
    %v7584 = vsel %vm1036, %v7583, %v7579
    %v7585 = vlaneseq
    %v7586 = vshrl.u32 %v7585, 7
    %v7587 = vsub.s32 %v1038, %v7586
    %v7588 = vrot.slane %v6920, %v7587
    %v7589 = vsel %vm1043, %v7588, %v7584
    %v7590 = vlaneseq
    %v7591 = vshrl.u32 %v7590, 7
    %v7592 = vsub.s32 %v1045, %v7591
    %v7593 = vrot.slane %v6923, %v7592
    %v7594 = vsel %vm1050, %v7593, %v7589
    %v7595 = vlaneseq
    %v7596 = vshrl.u32 %v7595, 7
    %v7597 = vsub.s32 %v1052, %v7596
    %v7598 = vrot.slane %v6926, %v7597
    %v7599 = vsel %vm1057, %v7598, %v7594
    %v7600 = vlaneseq
    %v7601 = vshrl.u32 %v7600, 7
    %v7602 = vsub.s32 %v1059, %v7601
    %v7603 = vrot.slane %v6929, %v7602
    %v7604 = vsel %vm1064, %v7603, %v7599
    %v7605 = vlaneseq
    %v7606 = vshrl.u32 %v7605, 7
    %v7607 = vsub.s32 %v1066, %v7606
    %v7608 = vrot.slane %v6932, %v7607
    %v7609 = vsel %vm1071, %v7608, %v7604
    %v7610 = vlaneseq
    %v7611 = vshrl.u32 %v7610, 7
    %v7612 = vsub.s32 %v1073, %v7611
    %v7613 = vrot.slane %v6935, %v7612
    %v7614 = vsel %vm1078, %v7613, %v7609
    %v7615 = vlaneseq
    %v7616 = vshrl.u32 %v7615, 7
    %v7617 = vsub.s32 %v1080, %v7616
    %v7618 = vrot.slane %v6938, %v7617
    %v7619 = vsel %vm1085, %v7618, %v7614
    %v7620 = vlaneseq
    %v7621 = vshrl.u32 %v7620, 7
    %v7622 = vsub.s32 %v1087, %v7621
    %v7623 = vrot.slane %v6941, %v7622
    %v7624 = vsel %vm1092, %v7623, %v7619
    %v7625 = vlaneseq
    %v7626 = vshrl.u32 %v7625, 7
    %v7627 = vsub.s32 %v1094, %v7626
    %v7628 = vrot.slane %v6944, %v7627
    %v7629 = vsel %vm1099, %v7628, %v7624
    %v7630 = vlaneseq
    %v7631 = vshrl.u32 %v7630, 7
    %v7632 = vsub.s32 %v1101, %v7631
    %v7633 = vrot.slane %v6947, %v7632
    %v7634 = vsel %vm1106, %v7633, %v7629
    %v7635 = vlaneseq
    %v7636 = vshrl.u32 %v7635, 7
    %v7637 = vsub.s32 %v1108, %v7636
    %v7638 = vrot.slane %v6950, %v7637
    %v7639 = vsel %vm1113, %v7638, %v7634
    %v7640 = vlaneseq
    %v7641 = vshrl.u32 %v7640, 7
    %v7642 = vsub.s32 %v1115, %v7641
    %v7643 = vrot.slane %v6953, %v7642
    %v7644 = vsel %vm1120, %v7643, %v7639
    %v7645 = vlaneseq
    %v7646 = vshrl.u32 %v7645, 7
    %v7647 = vsub.s32 %v1122, %v7646
    %v7648 = vrot.slane %v6956, %v7647
    %v7649 = vsel %vm1127, %v7648, %v7644
    %v7650 = vlaneseq
    %v7651 = vshrl.u32 %v7650, 7
    %v7652 = vsub.s32 %v1129, %v7651
    %v7653 = vrot.slane %v6959, %v7652
    %v7654 = vsel %vm1134, %v7653, %v7649
    %v7655 = vlaneseq
    %v7656 = vshrl.u32 %v7655, 7
    %v7657 = vsub.s32 %v1026, %v7656
    %v7658 = vrot.slane %v6962, %v7657
    %v7659 = vlaneseq
    %v7660 = vshrl.u32 %v7659, 7
    %v7661 = vsub.s32 %v1031, %v7660
    %v7662 = vrot.slane %v6965, %v7661
    %v7663 = vsel %vm1036, %v7662, %v7658
    %v7664 = vlaneseq
    %v7665 = vshrl.u32 %v7664, 7
    %v7666 = vsub.s32 %v1038, %v7665
    %v7667 = vrot.slane %v6968, %v7666
    %v7668 = vsel %vm1043, %v7667, %v7663
    %v7669 = vlaneseq
    %v7670 = vshrl.u32 %v7669, 7
    %v7671 = vsub.s32 %v1045, %v7670
    %v7672 = vrot.slane %v6971, %v7671
    %v7673 = vsel %vm1050, %v7672, %v7668
    %v7674 = vlaneseq
    %v7675 = vshrl.u32 %v7674, 7
    %v7676 = vsub.s32 %v1052, %v7675
    %v7677 = vrot.slane %v6974, %v7676
    %v7678 = vsel %vm1057, %v7677, %v7673
    %v7679 = vlaneseq
    %v7680 = vshrl.u32 %v7679, 7
    %v7681 = vsub.s32 %v1059, %v7680
    %v7682 = vrot.slane %v6977, %v7681
    %v7683 = vsel %vm1064, %v7682, %v7678
    %v7684 = vlaneseq
    %v7685 = vshrl.u32 %v7684, 7
    %v7686 = vsub.s32 %v1066, %v7685
    %v7687 = vrot.slane %v6980, %v7686
    %v7688 = vsel %vm1071, %v7687, %v7683
    %v7689 = vlaneseq
    %v7690 = vshrl.u32 %v7689, 7
    %v7691 = vsub.s32 %v1073, %v7690
    %v7692 = vrot.slane %v6983, %v7691
    %v7693 = vsel %vm1078, %v7692, %v7688
    %v7694 = vsel %vm1767, %v7417, %v7062
    %v7695 = vsel %vm1767, %v7496, %v7141
    %v7696 = vsel %vm1767, %v7575, %v7220
    %v7697 = vsel %vm1767, %v7654, %v7299
    %v7698 = vsel %vm1767, %v7693, %v7338
    %v7703 = vsel %vm1777, %v7698, 0
    %7705 = vmatprep.subr.mxu0 0.0
    %7706 = vmatpush1.msra.mxu0 %v6351
    %7707 = vmatprep.subr.mxu0 0.0
    %7708 = vmatpush1.msra.mxu0 %v6350
    %7709 = vmatprep.subr.mxu0 0.0
    %7710 = vmatpush1.msra.mxu0 %v6349
    %7711 = vmatprep.subr.mxu0 0.0
    %7712 = vmatpush1.msra.mxu0 %v6348
    %7713 = vmatprep.subr.mxu0 0.0
    %7714 = vmatpush1.msra.mxu0 %v6347
    %7715 = vmatprep.subr.mxu0 0.0
    %7716 = vmatpush1.msra.mxu0 %v6346
    %7717 = vmatprep.subr.mxu0 0.0
    %7718 = vmatpush1.msra.mxu0 %v6345
    %7719 = vmatprep.subr.mxu0 0.0
    %7720 = vmatpush1.msra.mxu0 %v6344
    %7721 = vmatprep.subr.mxu0 0.0
    %7722 = vmatpush1.msra.mxu0 %v6343
    %7723 = vmatprep.subr.mxu0 0.0
    %7724 = vmatpush1.msra.mxu0 %v6342
    %7725 = vmatprep.subr.mxu0 0.0
    %7726 = vmatpush1.msra.mxu0 %v6341
    %7727 = vmatprep.subr.mxu0 0.0
    %7728 = vmatpush1.msra.mxu0 %v6340
    %7729 = vmatprep.subr.mxu0 0.0
    %7730 = vmatpush1.msra.mxu0 %v6339
    %7731 = vmatprep.subr.mxu0 0.0
    %7732 = vmatpush1.msra.mxu0 %v6338
    %7733 = vmatprep.subr.mxu0 0.0
    %7734 = vmatpush1.msra.mxu0 %v6337
    %7735 = vmatprep.subr.mxu0 0.0
    %7736 = vmatpush1.msra.mxu0 %v6336
    %7737 = vmatprep.subr.mxu0 0.0
    %7738 = vmatpush2.msra.mxu0 %v6367
    %7739 = vmatprep.subr.mxu0 0.0
    %7740 = vmatpush2.msra.mxu0 %v6366
    %7741 = vmatprep.subr.mxu0 0.0
    %7742 = vmatpush2.msra.mxu0 %v6365
    %7743 = vmatprep.subr.mxu0 0.0
    %7744 = vmatpush2.msra.mxu0 %v6364
    %7745 = vmatprep.subr.mxu0 0.0
    %7746 = vmatpush2.msra.mxu0 %v6363
    %7747 = vmatprep.subr.mxu0 0.0
    %7748 = vmatpush2.msra.mxu0 %v6362
    %7749 = vmatprep.subr.mxu0 0.0
    %7750 = vmatpush2.msra.mxu0 %v6361
    %7751 = vmatprep.subr.mxu0 0.0
    %7752 = vmatpush2.msra.mxu0 %v6360
    %7753 = vmatprep.subr.mxu0 0.0
    %7754 = vmatpush2.msra.mxu0 %v6359
    %7755 = vmatprep.subr.mxu0 0.0
    %7756 = vmatpush2.msra.mxu0 %v6358
    %7757 = vmatprep.subr.mxu0 0.0
    %7758 = vmatpush2.msra.mxu0 %v6357
    %7759 = vmatprep.subr.mxu0 0.0
    %7760 = vmatpush2.msra.mxu0 %v6356
    %7761 = vmatprep.subr.mxu0 0.0
    %7762 = vmatpush2.msra.mxu0 %v6355
    %7763 = vmatprep.subr.mxu0 0.0
    %7764 = vmatpush2.msra.mxu0 %v6354
    %7765 = vmatprep.subr.mxu0 0.0
    %7766 = vmatpush2.msra.mxu0 %v6353
    %7767 = vmatprep.subr.mxu0 0.0
    %7768 = vmatpush2.msra.mxu0 %v6352
    %7769 = vmatprep.mubr.f32.mxu0 %v7695
    %7770 = vmatmul.mubr.f32.gmra.mxu0 %v7694
    %v7771 = vpop.f32.mrf.mxu0
    %v7772 = vadd.f32 0.0, %v7771
    %v7773 = vpop.f32.mrf.mxu0
    %7774 = vdwg.mxu0
    %7775 = vmatprep.subr.mxu0 0.0
    %7776 = vmatpush1.msra.mxu0 %v6383
    %7777 = vmatprep.subr.mxu0 0.0
    %7778 = vmatpush1.msra.mxu0 %v6382
    %7779 = vmatprep.subr.mxu0 0.0
    %7780 = vmatpush1.msra.mxu0 %v6381
    %7781 = vmatprep.subr.mxu0 0.0
    %7782 = vmatpush1.msra.mxu0 %v6380
    %7783 = vmatprep.subr.mxu0 0.0
    %7784 = vmatpush1.msra.mxu0 %v6379
    %7785 = vmatprep.subr.mxu0 0.0
    %7786 = vmatpush1.msra.mxu0 %v6378
    %7787 = vmatprep.subr.mxu0 0.0
    %7788 = vmatpush1.msra.mxu0 %v6377
    %7789 = vmatprep.subr.mxu0 0.0
    %7790 = vmatpush1.msra.mxu0 %v6376
    %7791 = vmatprep.subr.mxu0 0.0
    %7792 = vmatpush1.msra.mxu0 %v6375
    %7793 = vmatprep.subr.mxu0 0.0
    %7794 = vmatpush1.msra.mxu0 %v6374
    %7795 = vmatprep.subr.mxu0 0.0
    %7796 = vmatpush1.msra.mxu0 %v6373
    %7797 = vmatprep.subr.mxu0 0.0
    %7798 = vmatpush1.msra.mxu0 %v6372
    %7799 = vmatprep.subr.mxu0 0.0
    %7800 = vmatpush1.msra.mxu0 %v6371
    %7801 = vmatprep.subr.mxu0 0.0
    %7802 = vmatpush1.msra.mxu0 %v6370
    %7803 = vmatprep.subr.mxu0 0.0
    %7804 = vmatpush1.msra.mxu0 %v6369
    %7805 = vmatprep.subr.mxu0 0.0
    %7806 = vmatpush1.msra.mxu0 %v6368
    %7807 = vmatprep.subr.mxu0 0.0
    %7808 = vmatpush2.msra.mxu0 %v6399
    %7809 = vmatprep.subr.mxu0 0.0
    %7810 = vmatpush2.msra.mxu0 %v6398
    %7811 = vmatprep.subr.mxu0 0.0
    %7812 = vmatpush2.msra.mxu0 %v6397
    %7813 = vmatprep.subr.mxu0 0.0
    %7814 = vmatpush2.msra.mxu0 %v6396
    %7815 = vmatprep.subr.mxu0 0.0
    %7816 = vmatpush2.msra.mxu0 %v6395
    %7817 = vmatprep.subr.mxu0 0.0
    %7818 = vmatpush2.msra.mxu0 %v6394
    %7819 = vmatprep.subr.mxu0 0.0
    %7820 = vmatpush2.msra.mxu0 %v6393
    %7821 = vmatprep.subr.mxu0 0.0
    %7822 = vmatpush2.msra.mxu0 %v6392
    %7823 = vmatprep.subr.mxu0 0.0
    %7824 = vmatpush2.msra.mxu0 %v6391
    %7825 = vmatprep.subr.mxu0 0.0
    %7826 = vmatpush2.msra.mxu0 %v6390
    %7827 = vmatprep.subr.mxu0 0.0
    %7828 = vmatpush2.msra.mxu0 %v6389
    %7829 = vmatprep.subr.mxu0 0.0
    %7830 = vmatpush2.msra.mxu0 %v6388
    %7831 = vmatprep.subr.mxu0 0.0
    %7832 = vmatpush2.msra.mxu0 %v6387
    %7833 = vmatprep.subr.mxu0 0.0
    %7834 = vmatpush2.msra.mxu0 %v6386
    %7835 = vmatprep.subr.mxu0 0.0
    %7836 = vmatpush2.msra.mxu0 %v6385
    %7837 = vmatprep.subr.mxu0 0.0
    %7838 = vmatpush2.msra.mxu0 %v6384
    %7839 = vmatprep.mubr.f32.mxu0 %v7697
    %7840 = vmatmul.mubr.f32.gmra.mxu0 %v7696
    %v7841 = vpop.f32.mrf.mxu0
    %v7842 = vadd.f32 %v7772, %v7841
    %v7843 = vpop.f32.mrf.mxu0
    %7844 = vdwg.mxu0
    %7845 = vmatprep.subr.mxu0 0.0
    %7846 = vmatpush1.msra.mxu0 0.0
    %7847 = vmatprep.subr.mxu0 0.0
    %7848 = vmatpush1.msra.mxu0 0.0
    %7849 = vmatprep.subr.mxu0 0.0
    %7850 = vmatpush1.msra.mxu0 0.0
    %7851 = vmatprep.subr.mxu0 0.0
    %7852 = vmatpush1.msra.mxu0 0.0
    %7853 = vmatprep.subr.mxu0 0.0
    %7854 = vmatpush1.msra.mxu0 0.0
    %7855 = vmatprep.subr.mxu0 0.0
    %7856 = vmatpush1.msra.mxu0 0.0
    %7857 = vmatprep.subr.mxu0 0.0
    %7858 = vmatpush1.msra.mxu0 0.0
    %7859 = vmatprep.subr.mxu0 0.0
    %7860 = vmatpush1.msra.mxu0 0.0
    %7861 = vmatprep.subr.mxu0 0.0
    %7862 = vmatpush1.msra.mxu0 %v6407
    %7863 = vmatprep.subr.mxu0 0.0
    %7864 = vmatpush1.msra.mxu0 %v6406
    %7865 = vmatprep.subr.mxu0 0.0
    %7866 = vmatpush1.msra.mxu0 %v6405
    %7867 = vmatprep.subr.mxu0 0.0
    %7868 = vmatpush1.msra.mxu0 %v6404
    %7869 = vmatprep.subr.mxu0 0.0
    %7870 = vmatpush1.msra.mxu0 %v6403
    %7871 = vmatprep.subr.mxu0 0.0
    %7872 = vmatpush1.msra.mxu0 %v6402
    %7873 = vmatprep.subr.mxu0 0.0
    %7874 = vmatpush1.msra.mxu0 %v6401
    %7875 = vmatprep.subr.mxu0 0.0
    %7876 = vmatpush1.msra.mxu0 %v6400
    %7877 = vmatprep.subr.mxu0 0.0
    %7878 = vmatpush2.msra.mxu0 0.0
    %7879 = vmatprep.subr.mxu0 0.0
    %7880 = vmatpush2.msra.mxu0 0.0
    %7881 = vmatprep.subr.mxu0 0.0
    %7882 = vmatpush2.msra.mxu0 0.0
    %7883 = vmatprep.subr.mxu0 0.0
    %7884 = vmatpush2.msra.mxu0 0.0
    %7885 = vmatprep.subr.mxu0 0.0
    %7886 = vmatpush2.msra.mxu0 0.0
    %7887 = vmatprep.subr.mxu0 0.0
    %7888 = vmatpush2.msra.mxu0 0.0
    %7889 = vmatprep.subr.mxu0 0.0
    %7890 = vmatpush2.msra.mxu0 0.0
    %7891 = vmatprep.subr.mxu0 0.0
    %7892 = vmatpush2.msra.mxu0 0.0
    %7893 = vmatprep.subr.mxu0 0.0
    %7894 = vmatpush2.msra.mxu0 0.0
    %7895 = vmatprep.subr.mxu0 0.0
    %7896 = vmatpush2.msra.mxu0 0.0
    %7897 = vmatprep.subr.mxu0 0.0
    %7898 = vmatpush2.msra.mxu0 0.0
    %7899 = vmatprep.subr.mxu0 0.0
    %7900 = vmatpush2.msra.mxu0 0.0
    %7901 = vmatprep.subr.mxu0 0.0
    %7902 = vmatpush2.msra.mxu0 0.0
    %7903 = vmatprep.subr.mxu0 0.0
    %7904 = vmatpush2.msra.mxu0 0.0
    %7905 = vmatprep.subr.mxu0 0.0
    %7906 = vmatpush2.msra.mxu0 0.0
    %7907 = vmatprep.subr.mxu0 0.0
    %7908 = vmatpush2.msra.mxu0 0.0
    %7909 = vmatprep.mubr.f32.mxu0 0.0
    %7910 = vmatmul.mubr.f32.gmra.mxu0 %v7703
    %v7911 = vpop.f32.mrf.mxu0
    %v7912 = vadd.f32 %v7842, %v7911
    %v7913 = vpop.f32.mrf.mxu0
    %7914 = vdwg.mxu0
    %8059 = vset.pattern.permute.xlu0 0
    %8060 = vperm.xlu0 %8059, %v3034
    %v8061 = vpop.permute.xlu0 %8060
    %8062 = vset.pattern.permute.xlu0 0
    %8063 = vperm.xlu0 %8062, %v3035
    %v8064 = vpop.permute.xlu0 %8063
    %8065 = vset.pattern.permute.xlu0 0
    %8066 = vperm.xlu0 %8065, %v3036
    %v8067 = vpop.permute.xlu0 %8066
    %8068 = vset.pattern.permute.xlu0 0
    %8069 = vperm.xlu0 %8068, %v3037
    %v8070 = vpop.permute.xlu0 %8069
    %8071 = vset.pattern.permute.xlu0 0
    %8072 = vperm.xlu0 %8071, %v3038
    %v8073 = vpop.permute.xlu0 %8072
    %8074 = vset.pattern.permute.xlu0 0
    %8075 = vperm.xlu0 %8074, %v3039
    %v8076 = vpop.permute.xlu0 %8075
    %8077 = vset.pattern.permute.xlu0 0
    %8078 = vperm.xlu0 %8077, %v3040
    %v8079 = vpop.permute.xlu0 %8078
    %8080 = vset.pattern.permute.xlu0 0
    %8081 = vperm.xlu0 %8080, %v3041
    %v8082 = vpop.permute.xlu0 %8081
    %8083 = vset.pattern.permute.xlu0 0
    %8084 = vperm.xlu0 %8083, %v3042
    %v8085 = vpop.permute.xlu0 %8084
    %8086 = vset.pattern.permute.xlu0 0
    %8087 = vperm.xlu0 %8086, %v3043
    %v8088 = vpop.permute.xlu0 %8087
    %8089 = vset.pattern.permute.xlu0 0
    %8090 = vperm.xlu0 %8089, %v3044
    %v8091 = vpop.permute.xlu0 %8090
    %8092 = vset.pattern.permute.xlu0 0
    %8093 = vperm.xlu0 %8092, %v3045
    %v8094 = vpop.permute.xlu0 %8093
    %8095 = vset.pattern.permute.xlu0 0
    %8096 = vperm.xlu0 %8095, %v3046
    %v8097 = vpop.permute.xlu0 %8096
    %8098 = vset.pattern.permute.xlu0 0
    %8099 = vperm.xlu0 %8098, %v3047
    %v8100 = vpop.permute.xlu0 %8099
    %8101 = vset.pattern.permute.xlu0 0
    %8102 = vperm.xlu0 %8101, %v3048
    %v8103 = vpop.permute.xlu0 %8102
    %8104 = vset.pattern.permute.xlu0 0
    %8105 = vperm.xlu0 %8104, %v3049
    %v8106 = vpop.permute.xlu0 %8105
    %8107 = vset.pattern.permute.xlu0 0
    %8108 = vperm.xlu0 %8107, %v3050
    %v8109 = vpop.permute.xlu0 %8108
    %8110 = vset.pattern.permute.xlu0 0
    %8111 = vperm.xlu0 %8110, %v3051
    %v8112 = vpop.permute.xlu0 %8111
    %8113 = vset.pattern.permute.xlu0 0
    %8114 = vperm.xlu0 %8113, %v3052
    %v8115 = vpop.permute.xlu0 %8114
    %8116 = vset.pattern.permute.xlu0 0
    %8117 = vperm.xlu0 %8116, %v3053
    %v8118 = vpop.permute.xlu0 %8117
    %8119 = vset.pattern.permute.xlu0 0
    %8120 = vperm.xlu0 %8119, %v3054
    %v8121 = vpop.permute.xlu0 %8120
    %8122 = vset.pattern.permute.xlu0 0
    %8123 = vperm.xlu0 %8122, %v3055
    %v8124 = vpop.permute.xlu0 %8123
    %8125 = vset.pattern.permute.xlu0 0
    %8126 = vperm.xlu0 %8125, %v3056
    %v8127 = vpop.permute.xlu0 %8126
    %8128 = vset.pattern.permute.xlu0 0
    %8129 = vperm.xlu0 %8128, %v3057
    %v8130 = vpop.permute.xlu0 %8129
    %8131 = vset.pattern.permute.xlu0 0
    %8132 = vperm.xlu0 %8131, %v3058
    %v8133 = vpop.permute.xlu0 %8132
    %8134 = vset.pattern.permute.xlu0 0
    %8135 = vperm.xlu0 %8134, %v3059
    %v8136 = vpop.permute.xlu0 %8135
    %8137 = vset.pattern.permute.xlu0 0
    %8138 = vperm.xlu0 %8137, %v3060
    %v8139 = vpop.permute.xlu0 %8138
    %8140 = vset.pattern.permute.xlu0 0
    %8141 = vperm.xlu0 %8140, %v3061
    %v8142 = vpop.permute.xlu0 %8141
    %8143 = vset.pattern.permute.xlu0 0
    %8144 = vperm.xlu0 %8143, %v3062
    %v8145 = vpop.permute.xlu0 %8144
    %8146 = vset.pattern.permute.xlu0 0
    %8147 = vperm.xlu0 %8146, %v3063
    %v8148 = vpop.permute.xlu0 %8147
    %8149 = vset.pattern.permute.xlu0 0
    %8150 = vperm.xlu0 %8149, %v3064
    %v8151 = vpop.permute.xlu0 %8150
    %8152 = vset.pattern.permute.xlu0 0
    %8153 = vperm.xlu0 %8152, %v3065
    %v8154 = vpop.permute.xlu0 %8153
    %8155 = vset.pattern.permute.xlu0 0
    %8156 = vperm.xlu0 %8155, %v3066
    %v8157 = vpop.permute.xlu0 %8156
    %8158 = vset.pattern.permute.xlu0 0
    %8159 = vperm.xlu0 %8158, %v3067
    %v8160 = vpop.permute.xlu0 %8159
    %8161 = vset.pattern.permute.xlu0 0
    %8162 = vperm.xlu0 %8161, %v3068
    %v8163 = vpop.permute.xlu0 %8162
    %8164 = vset.pattern.permute.xlu0 0
    %8165 = vperm.xlu0 %8164, %v3069
    %v8166 = vpop.permute.xlu0 %8165
    %8167 = vset.pattern.permute.xlu0 0
    %8168 = vperm.xlu0 %8167, %v3070
    %v8169 = vpop.permute.xlu0 %8168
    %8170 = vset.pattern.permute.xlu0 0
    %8171 = vperm.xlu0 %8170, %v3071
    %v8172 = vpop.permute.xlu0 %8171
    %8173 = vset.pattern.permute.xlu0 0
    %8174 = vperm.xlu0 %8173, %v3072
    %v8175 = vpop.permute.xlu0 %8174
    %8176 = vset.pattern.permute.xlu0 0
    %8177 = vperm.xlu0 %8176, %v3073
    %v8178 = vpop.permute.xlu0 %8177
    %8179 = vset.pattern.permute.xlu0 0
    %8180 = vperm.xlu0 %8179, %v3074
    %v8181 = vpop.permute.xlu0 %8180
    %8182 = vset.pattern.permute.xlu0 0
    %8183 = vperm.xlu0 %8182, %v3075
    %v8184 = vpop.permute.xlu0 %8183
    %8185 = vset.pattern.permute.xlu0 0
    %8186 = vperm.xlu0 %8185, %v3076
    %v8187 = vpop.permute.xlu0 %8186
    %8188 = vset.pattern.permute.xlu0 0
    %8189 = vperm.xlu0 %8188, %v3077
    %v8190 = vpop.permute.xlu0 %8189
    %8191 = vset.pattern.permute.xlu0 0
    %8192 = vperm.xlu0 %8191, %v3078
    %v8193 = vpop.permute.xlu0 %8192
    %8194 = vset.pattern.permute.xlu0 0
    %8195 = vperm.xlu0 %8194, %v3079
    %v8196 = vpop.permute.xlu0 %8195
    %8197 = vset.pattern.permute.xlu0 0
    %8198 = vperm.xlu0 %8197, %v3080
    %v8199 = vpop.permute.xlu0 %8198
    %8200 = vset.pattern.permute.xlu0 0
    %8201 = vperm.xlu0 %8200, %v3081
    %v8202 = vpop.permute.xlu0 %8201
    %8203 = vset.pattern.permute.xlu0 0
    %8204 = vperm.xlu0 %8203, %v3082
    %v8205 = vpop.permute.xlu0 %8204
    %8206 = vset.pattern.permute.xlu0 0
    %8207 = vperm.xlu0 %8206, %v3083
    %v8208 = vpop.permute.xlu0 %8207
    %8209 = vset.pattern.permute.xlu0 0
    %8210 = vperm.xlu0 %8209, %v3084
    %v8211 = vpop.permute.xlu0 %8210
    %8212 = vset.pattern.permute.xlu0 0
    %8213 = vperm.xlu0 %8212, %v3085
    %v8214 = vpop.permute.xlu0 %8213
    %8215 = vset.pattern.permute.xlu0 0
    %8216 = vperm.xlu0 %8215, %v3086
    %v8217 = vpop.permute.xlu0 %8216
    %8218 = vset.pattern.permute.xlu0 0
    %8219 = vperm.xlu0 %8218, %v3087
    %v8220 = vpop.permute.xlu0 %8219
    %8221 = vset.pattern.permute.xlu0 0
    %8222 = vperm.xlu0 %8221, %v3088
    %v8223 = vpop.permute.xlu0 %8222
    %8224 = vset.pattern.permute.xlu0 0
    %8225 = vperm.xlu0 %8224, %v3089
    %v8226 = vpop.permute.xlu0 %8225
    %8227 = vset.pattern.permute.xlu0 0
    %8228 = vperm.xlu0 %8227, %v3090
    %v8229 = vpop.permute.xlu0 %8228
    %8230 = vset.pattern.permute.xlu0 0
    %8231 = vperm.xlu0 %8230, %v3091
    %v8232 = vpop.permute.xlu0 %8231
    %8233 = vset.pattern.permute.xlu0 0
    %8234 = vperm.xlu0 %8233, %v3092
    %v8235 = vpop.permute.xlu0 %8234
    %8236 = vset.pattern.permute.xlu0 0
    %8237 = vperm.xlu0 %8236, %v3093
    %v8238 = vpop.permute.xlu0 %8237
    %8239 = vset.pattern.permute.xlu0 0
    %8240 = vperm.xlu0 %8239, %v3094
    %v8241 = vpop.permute.xlu0 %8240
    %8242 = vset.pattern.permute.xlu0 0
    %8243 = vperm.xlu0 %8242, %v3095
    %v8244 = vpop.permute.xlu0 %8243
    %8245 = vset.pattern.permute.xlu0 0
    %8246 = vperm.xlu0 %8245, %v3096
    %v8247 = vpop.permute.xlu0 %8246
    %8248 = vset.pattern.permute.xlu0 0
    %8249 = vperm.xlu0 %8248, %v3097
    %v8250 = vpop.permute.xlu0 %8249
    %8251 = vset.pattern.permute.xlu0 0
    %8252 = vperm.xlu0 %8251, %v3098
    %v8253 = vpop.permute.xlu0 %8252
    %8254 = vset.pattern.permute.xlu0 0
    %8255 = vperm.xlu0 %8254, %v3099
    %v8256 = vpop.permute.xlu0 %8255
    %8257 = vset.pattern.permute.xlu0 0
    %8258 = vperm.xlu0 %8257, %v3100
    %v8259 = vpop.permute.xlu0 %8258
    %8260 = vset.pattern.permute.xlu0 0
    %8261 = vperm.xlu0 %8260, %v3101
    %v8262 = vpop.permute.xlu0 %8261
    %8263 = vset.pattern.permute.xlu0 0
    %8264 = vperm.xlu0 %8263, %v3102
    %v8265 = vpop.permute.xlu0 %8264
    %8266 = vset.pattern.permute.xlu0 0
    %8267 = vperm.xlu0 %8266, %v3103
    %v8268 = vpop.permute.xlu0 %8267
    %8269 = vset.pattern.permute.xlu0 0
    %8270 = vperm.xlu0 %8269, %v3104
    %v8271 = vpop.permute.xlu0 %8270
    %8272 = vset.pattern.permute.xlu0 0
    %8273 = vperm.xlu0 %8272, %v3105
    %v8274 = vpop.permute.xlu0 %8273
    %8275 = vset.pattern.permute.xlu0 0
    %8276 = vperm.xlu0 %8275, %v3106
    %v8277 = vpop.permute.xlu0 %8276
    %8278 = vset.pattern.permute.xlu0 0
    %8279 = vperm.xlu0 %8278, %v3107
    %v8280 = vpop.permute.xlu0 %8279
    %8281 = vset.pattern.permute.xlu0 0
    %8282 = vperm.xlu0 %8281, %v3108
    %v8283 = vpop.permute.xlu0 %8282
    %8284 = vset.pattern.permute.xlu0 0
    %8285 = vperm.xlu0 %8284, %v3109
    %v8286 = vpop.permute.xlu0 %8285
    %8287 = vset.pattern.permute.xlu0 0
    %8288 = vperm.xlu0 %8287, %v3110
    %v8289 = vpop.permute.xlu0 %8288
    %8290 = vset.pattern.permute.xlu0 0
    %8291 = vperm.xlu0 %8290, %v3111
    %v8292 = vpop.permute.xlu0 %8291
    %8293 = vset.pattern.permute.xlu0 0
    %8294 = vperm.xlu0 %8293, %v3112
    %v8295 = vpop.permute.xlu0 %8294
    %8296 = vset.pattern.permute.xlu0 0
    %8297 = vperm.xlu0 %8296, %v3113
    %v8298 = vpop.permute.xlu0 %8297
    %8299 = vset.pattern.permute.xlu0 0
    %8300 = vperm.xlu0 %8299, %v3114
    %v8301 = vpop.permute.xlu0 %8300
    %8302 = vset.pattern.permute.xlu0 0
    %8303 = vperm.xlu0 %8302, %v3115
    %v8304 = vpop.permute.xlu0 %8303
    %8305 = vset.pattern.permute.xlu0 0
    %8306 = vperm.xlu0 %8305, %v3116
    %v8307 = vpop.permute.xlu0 %8306
    %8308 = vset.pattern.permute.xlu0 0
    %8309 = vperm.xlu0 %8308, %v3117
    %v8310 = vpop.permute.xlu0 %8309
    %8311 = vset.pattern.permute.xlu0 0
    %8312 = vperm.xlu0 %8311, %v3118
    %v8313 = vpop.permute.xlu0 %8312
    %8314 = vset.pattern.permute.xlu0 0
    %8315 = vperm.xlu0 %8314, %v3119
    %v8316 = vpop.permute.xlu0 %8315
    %8317 = vset.pattern.permute.xlu0 0
    %8318 = vperm.xlu0 %8317, %v3120
    %v8319 = vpop.permute.xlu0 %8318
    %8320 = vset.pattern.permute.xlu0 0
    %8321 = vperm.xlu0 %8320, %v3121
    %v8322 = vpop.permute.xlu0 %8321
    %8323 = vset.pattern.permute.xlu0 0
    %8324 = vperm.xlu0 %8323, %v3122
    %v8325 = vpop.permute.xlu0 %8324
    %8326 = vset.pattern.permute.xlu0 0
    %8327 = vperm.xlu0 %8326, %v3123
    %v8328 = vpop.permute.xlu0 %8327
    %8329 = vset.pattern.permute.xlu0 0
    %8330 = vperm.xlu0 %8329, %v3124
    %v8331 = vpop.permute.xlu0 %8330
    %8332 = vset.pattern.permute.xlu0 0
    %8333 = vperm.xlu0 %8332, %v3125
    %v8334 = vpop.permute.xlu0 %8333
    %8335 = vset.pattern.permute.xlu0 0
    %8336 = vperm.xlu0 %8335, %v3126
    %v8337 = vpop.permute.xlu0 %8336
    %8338 = vset.pattern.permute.xlu0 0
    %8339 = vperm.xlu0 %8338, %v3127
    %v8340 = vpop.permute.xlu0 %8339
    %8341 = vset.pattern.permute.xlu0 0
    %8342 = vperm.xlu0 %8341, %v3128
    %v8343 = vpop.permute.xlu0 %8342
    %8344 = vset.pattern.permute.xlu0 0
    %8345 = vperm.xlu0 %8344, %v3129
    %v8346 = vpop.permute.xlu0 %8345
    %8347 = vset.pattern.permute.xlu0 0
    %8348 = vperm.xlu0 %8347, %v3130
    %v8349 = vpop.permute.xlu0 %8348
    %8350 = vset.pattern.permute.xlu0 0
    %8351 = vperm.xlu0 %8350, %v3131
    %v8352 = vpop.permute.xlu0 %8351
    %8353 = vset.pattern.permute.xlu0 0
    %8354 = vperm.xlu0 %8353, %v3132
    %v8355 = vpop.permute.xlu0 %8354
    %8356 = vset.pattern.permute.xlu0 0
    %8357 = vperm.xlu0 %8356, %v3133
    %v8358 = vpop.permute.xlu0 %8357
    %8359 = vset.pattern.permute.xlu0 0
    %8360 = vperm.xlu0 %8359, %v3134
    %v8361 = vpop.permute.xlu0 %8360
    %8362 = vset.pattern.permute.xlu0 0
    %8363 = vperm.xlu0 %8362, %v3135
    %v8364 = vpop.permute.xlu0 %8363
    %8365 = vset.pattern.permute.xlu0 0
    %8366 = vperm.xlu0 %8365, %v3136
    %v8367 = vpop.permute.xlu0 %8366
    %8368 = vset.pattern.permute.xlu0 0
    %8369 = vperm.xlu0 %8368, %v3137
    %v8370 = vpop.permute.xlu0 %8369
    %8371 = vset.pattern.permute.xlu0 0
    %8372 = vperm.xlu0 %8371, %v3138
    %v8373 = vpop.permute.xlu0 %8372
    %8374 = vset.pattern.permute.xlu0 0
    %8375 = vperm.xlu0 %8374, %v3139
    %v8376 = vpop.permute.xlu0 %8375
    %8377 = vset.pattern.permute.xlu0 0
    %8378 = vperm.xlu0 %8377, %v3140
    %v8379 = vpop.permute.xlu0 %8378
    %8380 = vset.pattern.permute.xlu0 0
    %8381 = vperm.xlu0 %8380, %v3141
    %v8382 = vpop.permute.xlu0 %8381
    %8383 = vset.pattern.permute.xlu0 0
    %8384 = vperm.xlu0 %8383, %v3142
    %v8385 = vpop.permute.xlu0 %8384
    %8386 = vset.pattern.permute.xlu0 0
    %8387 = vperm.xlu0 %8386, %v3143
    %v8388 = vpop.permute.xlu0 %8387
    %8389 = vset.pattern.permute.xlu0 0
    %8390 = vperm.xlu0 %8389, %v3144
    %v8391 = vpop.permute.xlu0 %8390
    %8392 = vset.pattern.permute.xlu0 0
    %8393 = vperm.xlu0 %8392, %v3145
    %v8394 = vpop.permute.xlu0 %8393
    %8395 = vset.pattern.permute.xlu0 0
    %8396 = vperm.xlu0 %8395, %v3146
    %v8397 = vpop.permute.xlu0 %8396
    %8398 = vset.pattern.permute.xlu0 0
    %8399 = vperm.xlu0 %8398, %v3147
    %v8400 = vpop.permute.xlu0 %8399
    %8401 = vset.pattern.permute.xlu0 0
    %8402 = vperm.xlu0 %8401, %v3148
    %v8403 = vpop.permute.xlu0 %8402
    %8404 = vset.pattern.permute.xlu0 0
    %8405 = vperm.xlu0 %8404, %v3149
    %v8406 = vpop.permute.xlu0 %8405
    %8407 = vset.pattern.permute.xlu0 0
    %8408 = vperm.xlu0 %8407, %v3150
    %v8409 = vpop.permute.xlu0 %8408
    %8410 = vset.pattern.permute.xlu0 0
    %8411 = vperm.xlu0 %8410, %v3151
    %v8412 = vpop.permute.xlu0 %8411
    %8413 = vset.pattern.permute.xlu0 0
    %8414 = vperm.xlu0 %8413, %v3152
    %v8415 = vpop.permute.xlu0 %8414
    %8416 = vset.pattern.permute.xlu0 0
    %8417 = vperm.xlu0 %8416, %v3153
    %v8418 = vpop.permute.xlu0 %8417
    %8419 = vset.pattern.permute.xlu0 0
    %8420 = vperm.xlu0 %8419, %v3154
    %v8421 = vpop.permute.xlu0 %8420
    %8422 = vset.pattern.permute.xlu0 0
    %8423 = vperm.xlu0 %8422, %v3155
    %v8424 = vpop.permute.xlu0 %8423
    %8425 = vset.pattern.permute.xlu0 0
    %8426 = vperm.xlu0 %8425, %v3156
    %v8427 = vpop.permute.xlu0 %8426
    %8428 = vset.pattern.permute.xlu0 0
    %8429 = vperm.xlu0 %8428, %v3157
    %v8430 = vpop.permute.xlu0 %8429
    %8431 = vset.pattern.permute.xlu0 0
    %8432 = vperm.xlu0 %8431, %v3158
    %v8433 = vpop.permute.xlu0 %8432
    %8434 = vset.pattern.permute.xlu0 0
    %8435 = vperm.xlu0 %8434, %v3159
    %v8436 = vpop.permute.xlu0 %8435
    %8437 = vset.pattern.permute.xlu0 0
    %8438 = vperm.xlu0 %8437, %v3160
    %v8439 = vpop.permute.xlu0 %8438
    %8440 = vset.pattern.permute.xlu0 0
    %8441 = vperm.xlu0 %8440, %v3161
    %v8442 = vpop.permute.xlu0 %8441
    %8443 = vset.pattern.permute.xlu0 0
    %8444 = vperm.xlu0 %8443, %v3162
    %v8445 = vpop.permute.xlu0 %8444
    %8446 = vset.pattern.permute.xlu0 0
    %8447 = vperm.xlu0 %8446, %v3163
    %v8448 = vpop.permute.xlu0 %8447
    %8449 = vset.pattern.permute.xlu0 0
    %8450 = vperm.xlu0 %8449, %v3164
    %v8451 = vpop.permute.xlu0 %8450
    %8452 = vset.pattern.permute.xlu0 0
    %8453 = vperm.xlu0 %8452, %v3165
    %v8454 = vpop.permute.xlu0 %8453
    %8455 = vset.pattern.permute.xlu0 0
    %8456 = vperm.xlu0 %8455, %v3166
    %v8457 = vpop.permute.xlu0 %8456
    %8458 = vset.pattern.permute.xlu0 0
    %8459 = vperm.xlu0 %8458, %v3167
    %v8460 = vpop.permute.xlu0 %8459
    %8461 = vset.pattern.permute.xlu0 0
    %8462 = vperm.xlu0 %8461, %v3168
    %v8463 = vpop.permute.xlu0 %8462
    %8464 = vset.pattern.permute.xlu0 0
    %8465 = vperm.xlu0 %8464, %v3169
    %v8466 = vpop.permute.xlu0 %8465
    %8467 = vset.pattern.permute.xlu0 0
    %8468 = vperm.xlu0 %8467, %v3170
    %v8469 = vpop.permute.xlu0 %8468
    %8470 = vset.pattern.permute.xlu0 0
    %8471 = vperm.xlu0 %8470, %v3171
    %v8472 = vpop.permute.xlu0 %8471
    %8473 = vset.pattern.permute.xlu0 0
    %8474 = vperm.xlu0 %8473, %v3172
    %v8475 = vpop.permute.xlu0 %8474
    %8476 = vset.pattern.permute.xlu0 0
    %8477 = vperm.xlu0 %8476, %v3173
    %v8478 = vpop.permute.xlu0 %8477
    %8479 = vset.pattern.permute.xlu0 0
    %8480 = vperm.xlu0 %8479, %v3174
    %v8481 = vpop.permute.xlu0 %8480
    %8482 = vset.pattern.permute.xlu0 0
    %8483 = vperm.xlu0 %8482, %v3175
    %v8484 = vpop.permute.xlu0 %8483
    %8485 = vset.pattern.permute.xlu0 0
    %8486 = vperm.xlu0 %8485, %v3176
    %v8487 = vpop.permute.xlu0 %8486
    %8488 = vset.pattern.permute.xlu0 0
    %8489 = vperm.xlu0 %8488, %v3177
    %v8490 = vpop.permute.xlu0 %8489
    %v8491 = vlaneseq
    %v8492 = vshrl.u32 %v8491, 7
    %v8493 = vsub.s32 %v1026, %v8492
    %v8494 = vrot.slane %v8061, %v8493
    %v8495 = vlaneseq
    %v8496 = vshrl.u32 %v8495, 7
    %v8497 = vsub.s32 %v1031, %v8496
    %v8498 = vrot.slane %v8064, %v8497
    %v8499 = vsel %vm1036, %v8498, %v8494
    %v8500 = vlaneseq
    %v8501 = vshrl.u32 %v8500, 7
    %v8502 = vsub.s32 %v1038, %v8501
    %v8503 = vrot.slane %v8067, %v8502
    %v8504 = vsel %vm1043, %v8503, %v8499
    %v8505 = vlaneseq
    %v8506 = vshrl.u32 %v8505, 7
    %v8507 = vsub.s32 %v1045, %v8506
    %v8508 = vrot.slane %v8070, %v8507
    %v8509 = vsel %vm1050, %v8508, %v8504
    %v8510 = vlaneseq
    %v8511 = vshrl.u32 %v8510, 7
    %v8512 = vsub.s32 %v1052, %v8511
    %v8513 = vrot.slane %v8073, %v8512
    %v8514 = vsel %vm1057, %v8513, %v8509
    %v8515 = vlaneseq
    %v8516 = vshrl.u32 %v8515, 7
    %v8517 = vsub.s32 %v1059, %v8516
    %v8518 = vrot.slane %v8076, %v8517
    %v8519 = vsel %vm1064, %v8518, %v8514
    %v8520 = vlaneseq
    %v8521 = vshrl.u32 %v8520, 7
    %v8522 = vsub.s32 %v1066, %v8521
    %v8523 = vrot.slane %v8079, %v8522
    %v8524 = vsel %vm1071, %v8523, %v8519
    %v8525 = vlaneseq
    %v8526 = vshrl.u32 %v8525, 7
    %v8527 = vsub.s32 %v1073, %v8526
    %v8528 = vrot.slane %v8082, %v8527
    %v8529 = vsel %vm1078, %v8528, %v8524
    %v8530 = vlaneseq
    %v8531 = vshrl.u32 %v8530, 7
    %v8532 = vsub.s32 %v1080, %v8531
    %v8533 = vrot.slane %v8085, %v8532
    %v8534 = vsel %vm1085, %v8533, %v8529
    %v8535 = vlaneseq
    %v8536 = vshrl.u32 %v8535, 7
    %v8537 = vsub.s32 %v1087, %v8536
    %v8538 = vrot.slane %v8088, %v8537
    %v8539 = vsel %vm1092, %v8538, %v8534
    %v8540 = vlaneseq
    %v8541 = vshrl.u32 %v8540, 7
    %v8542 = vsub.s32 %v1094, %v8541
    %v8543 = vrot.slane %v8091, %v8542
    %v8544 = vsel %vm1099, %v8543, %v8539
    %v8545 = vlaneseq
    %v8546 = vshrl.u32 %v8545, 7
    %v8547 = vsub.s32 %v1101, %v8546
    %v8548 = vrot.slane %v8094, %v8547
    %v8549 = vsel %vm1106, %v8548, %v8544
    %v8550 = vlaneseq
    %v8551 = vshrl.u32 %v8550, 7
    %v8552 = vsub.s32 %v1108, %v8551
    %v8553 = vrot.slane %v8097, %v8552
    %v8554 = vsel %vm1113, %v8553, %v8549
    %v8555 = vlaneseq
    %v8556 = vshrl.u32 %v8555, 7
    %v8557 = vsub.s32 %v1115, %v8556
    %v8558 = vrot.slane %v8100, %v8557
    %v8559 = vsel %vm1120, %v8558, %v8554
    %v8560 = vlaneseq
    %v8561 = vshrl.u32 %v8560, 7
    %v8562 = vsub.s32 %v1122, %v8561
    %v8563 = vrot.slane %v8103, %v8562
    %v8564 = vsel %vm1127, %v8563, %v8559
    %v8565 = vlaneseq
    %v8566 = vshrl.u32 %v8565, 7
    %v8567 = vsub.s32 %v1129, %v8566
    %v8568 = vrot.slane %v8106, %v8567
    %v8569 = vsel %vm1134, %v8568, %v8564
    %v8570 = vlaneseq
    %v8571 = vshrl.u32 %v8570, 7
    %v8572 = vsub.s32 %v1026, %v8571
    %v8573 = vrot.slane %v8109, %v8572
    %v8574 = vlaneseq
    %v8575 = vshrl.u32 %v8574, 7
    %v8576 = vsub.s32 %v1031, %v8575
    %v8577 = vrot.slane %v8112, %v8576
    %v8578 = vsel %vm1036, %v8577, %v8573
    %v8579 = vlaneseq
    %v8580 = vshrl.u32 %v8579, 7
    %v8581 = vsub.s32 %v1038, %v8580
    %v8582 = vrot.slane %v8115, %v8581
    %v8583 = vsel %vm1043, %v8582, %v8578
    %v8584 = vlaneseq
    %v8585 = vshrl.u32 %v8584, 7
    %v8586 = vsub.s32 %v1045, %v8585
    %v8587 = vrot.slane %v8118, %v8586
    %v8588 = vsel %vm1050, %v8587, %v8583
    %v8589 = vlaneseq
    %v8590 = vshrl.u32 %v8589, 7
    %v8591 = vsub.s32 %v1052, %v8590
    %v8592 = vrot.slane %v8121, %v8591
    %v8593 = vsel %vm1057, %v8592, %v8588
    %v8594 = vlaneseq
    %v8595 = vshrl.u32 %v8594, 7
    %v8596 = vsub.s32 %v1059, %v8595
    %v8597 = vrot.slane %v8124, %v8596
    %v8598 = vsel %vm1064, %v8597, %v8593
    %v8599 = vlaneseq
    %v8600 = vshrl.u32 %v8599, 7
    %v8601 = vsub.s32 %v1066, %v8600
    %v8602 = vrot.slane %v8127, %v8601
    %v8603 = vsel %vm1071, %v8602, %v8598
    %v8604 = vlaneseq
    %v8605 = vshrl.u32 %v8604, 7
    %v8606 = vsub.s32 %v1073, %v8605
    %v8607 = vrot.slane %v8130, %v8606
    %v8608 = vsel %vm1078, %v8607, %v8603
    %v8609 = vlaneseq
    %v8610 = vshrl.u32 %v8609, 7
    %v8611 = vsub.s32 %v1080, %v8610
    %v8612 = vrot.slane %v8133, %v8611
    %v8613 = vsel %vm1085, %v8612, %v8608
    %v8614 = vlaneseq
    %v8615 = vshrl.u32 %v8614, 7
    %v8616 = vsub.s32 %v1087, %v8615
    %v8617 = vrot.slane %v8136, %v8616
    %v8618 = vsel %vm1092, %v8617, %v8613
    %v8619 = vlaneseq
    %v8620 = vshrl.u32 %v8619, 7
    %v8621 = vsub.s32 %v1094, %v8620
    %v8622 = vrot.slane %v8139, %v8621
    %v8623 = vsel %vm1099, %v8622, %v8618
    %v8624 = vlaneseq
    %v8625 = vshrl.u32 %v8624, 7
    %v8626 = vsub.s32 %v1101, %v8625
    %v8627 = vrot.slane %v8142, %v8626
    %v8628 = vsel %vm1106, %v8627, %v8623
    %v8629 = vlaneseq
    %v8630 = vshrl.u32 %v8629, 7
    %v8631 = vsub.s32 %v1108, %v8630
    %v8632 = vrot.slane %v8145, %v8631
    %v8633 = vsel %vm1113, %v8632, %v8628
    %v8634 = vlaneseq
    %v8635 = vshrl.u32 %v8634, 7
    %v8636 = vsub.s32 %v1115, %v8635
    %v8637 = vrot.slane %v8148, %v8636
    %v8638 = vsel %vm1120, %v8637, %v8633
    %v8639 = vlaneseq
    %v8640 = vshrl.u32 %v8639, 7
    %v8641 = vsub.s32 %v1122, %v8640
    %v8642 = vrot.slane %v8151, %v8641
    %v8643 = vsel %vm1127, %v8642, %v8638
    %v8644 = vlaneseq
    %v8645 = vshrl.u32 %v8644, 7
    %v8646 = vsub.s32 %v1129, %v8645
    %v8647 = vrot.slane %v8154, %v8646
    %v8648 = vsel %vm1134, %v8647, %v8643
    %v8649 = vlaneseq
    %v8650 = vshrl.u32 %v8649, 7
    %v8651 = vsub.s32 %v1026, %v8650
    %v8652 = vrot.slane %v8157, %v8651
    %v8653 = vlaneseq
    %v8654 = vshrl.u32 %v8653, 7
    %v8655 = vsub.s32 %v1031, %v8654
    %v8656 = vrot.slane %v8160, %v8655
    %v8657 = vsel %vm1036, %v8656, %v8652
    %v8658 = vlaneseq
    %v8659 = vshrl.u32 %v8658, 7
    %v8660 = vsub.s32 %v1038, %v8659
    %v8661 = vrot.slane %v8163, %v8660
    %v8662 = vsel %vm1043, %v8661, %v8657
    %v8663 = vlaneseq
    %v8664 = vshrl.u32 %v8663, 7
    %v8665 = vsub.s32 %v1045, %v8664
    %v8666 = vrot.slane %v8166, %v8665
    %v8667 = vsel %vm1050, %v8666, %v8662
    %v8668 = vlaneseq
    %v8669 = vshrl.u32 %v8668, 7
    %v8670 = vsub.s32 %v1052, %v8669
    %v8671 = vrot.slane %v8169, %v8670
    %v8672 = vsel %vm1057, %v8671, %v8667
    %v8673 = vlaneseq
    %v8674 = vshrl.u32 %v8673, 7
    %v8675 = vsub.s32 %v1059, %v8674
    %v8676 = vrot.slane %v8172, %v8675
    %v8677 = vsel %vm1064, %v8676, %v8672
    %v8678 = vlaneseq
    %v8679 = vshrl.u32 %v8678, 7
    %v8680 = vsub.s32 %v1066, %v8679
    %v8681 = vrot.slane %v8175, %v8680
    %v8682 = vsel %vm1071, %v8681, %v8677
    %v8683 = vlaneseq
    %v8684 = vshrl.u32 %v8683, 7
    %v8685 = vsub.s32 %v1073, %v8684
    %v8686 = vrot.slane %v8178, %v8685
    %v8687 = vsel %vm1078, %v8686, %v8682
    %v8688 = vlaneseq
    %v8689 = vshrl.u32 %v8688, 7
    %v8690 = vsub.s32 %v1080, %v8689
    %v8691 = vrot.slane %v8181, %v8690
    %v8692 = vsel %vm1085, %v8691, %v8687
    %v8693 = vlaneseq
    %v8694 = vshrl.u32 %v8693, 7
    %v8695 = vsub.s32 %v1087, %v8694
    %v8696 = vrot.slane %v8184, %v8695
    %v8697 = vsel %vm1092, %v8696, %v8692
    %v8698 = vlaneseq
    %v8699 = vshrl.u32 %v8698, 7
    %v8700 = vsub.s32 %v1094, %v8699
    %v8701 = vrot.slane %v8187, %v8700
    %v8702 = vsel %vm1099, %v8701, %v8697
    %v8703 = vlaneseq
    %v8704 = vshrl.u32 %v8703, 7
    %v8705 = vsub.s32 %v1101, %v8704
    %v8706 = vrot.slane %v8190, %v8705
    %v8707 = vsel %vm1106, %v8706, %v8702
    %v8708 = vlaneseq
    %v8709 = vshrl.u32 %v8708, 7
    %v8710 = vsub.s32 %v1108, %v8709
    %v8711 = vrot.slane %v8193, %v8710
    %v8712 = vsel %vm1113, %v8711, %v8707
    %v8713 = vlaneseq
    %v8714 = vshrl.u32 %v8713, 7
    %v8715 = vsub.s32 %v1115, %v8714
    %v8716 = vrot.slane %v8196, %v8715
    %v8717 = vsel %vm1120, %v8716, %v8712
    %v8718 = vlaneseq
    %v8719 = vshrl.u32 %v8718, 7
    %v8720 = vsub.s32 %v1122, %v8719
    %v8721 = vrot.slane %v8199, %v8720
    %v8722 = vsel %vm1127, %v8721, %v8717
    %v8723 = vlaneseq
    %v8724 = vshrl.u32 %v8723, 7
    %v8725 = vsub.s32 %v1129, %v8724
    %v8726 = vrot.slane %v8202, %v8725
    %v8727 = vsel %vm1134, %v8726, %v8722
    %v8728 = vlaneseq
    %v8729 = vshrl.u32 %v8728, 7
    %v8730 = vsub.s32 %v1026, %v8729
    %v8731 = vrot.slane %v8205, %v8730
    %v8732 = vlaneseq
    %v8733 = vshrl.u32 %v8732, 7
    %v8734 = vsub.s32 %v1031, %v8733
    %v8735 = vrot.slane %v8208, %v8734
    %v8736 = vsel %vm1036, %v8735, %v8731
    %v8737 = vlaneseq
    %v8738 = vshrl.u32 %v8737, 7
    %v8739 = vsub.s32 %v1038, %v8738
    %v8740 = vrot.slane %v8211, %v8739
    %v8741 = vsel %vm1043, %v8740, %v8736
    %v8742 = vlaneseq
    %v8743 = vshrl.u32 %v8742, 7
    %v8744 = vsub.s32 %v1045, %v8743
    %v8745 = vrot.slane %v8214, %v8744
    %v8746 = vsel %vm1050, %v8745, %v8741
    %v8747 = vlaneseq
    %v8748 = vshrl.u32 %v8747, 7
    %v8749 = vsub.s32 %v1052, %v8748
    %v8750 = vrot.slane %v8217, %v8749
    %v8751 = vsel %vm1057, %v8750, %v8746
    %v8752 = vlaneseq
    %v8753 = vshrl.u32 %v8752, 7
    %v8754 = vsub.s32 %v1059, %v8753
    %v8755 = vrot.slane %v8220, %v8754
    %v8756 = vsel %vm1064, %v8755, %v8751
    %v8757 = vlaneseq
    %v8758 = vshrl.u32 %v8757, 7
    %v8759 = vsub.s32 %v1066, %v8758
    %v8760 = vrot.slane %v8223, %v8759
    %v8761 = vsel %vm1071, %v8760, %v8756
    %v8762 = vlaneseq
    %v8763 = vshrl.u32 %v8762, 7
    %v8764 = vsub.s32 %v1073, %v8763
    %v8765 = vrot.slane %v8226, %v8764
    %v8766 = vsel %vm1078, %v8765, %v8761
    %v8767 = vlaneseq
    %v8768 = vshrl.u32 %v8767, 7
    %v8769 = vsub.s32 %v1080, %v8768
    %v8770 = vrot.slane %v8229, %v8769
    %v8771 = vsel %vm1085, %v8770, %v8766
    %v8772 = vlaneseq
    %v8773 = vshrl.u32 %v8772, 7
    %v8774 = vsub.s32 %v1087, %v8773
    %v8775 = vrot.slane %v8232, %v8774
    %v8776 = vsel %vm1092, %v8775, %v8771
    %v8777 = vlaneseq
    %v8778 = vshrl.u32 %v8777, 7
    %v8779 = vsub.s32 %v1094, %v8778
    %v8780 = vrot.slane %v8235, %v8779
    %v8781 = vsel %vm1099, %v8780, %v8776
    %v8782 = vlaneseq
    %v8783 = vshrl.u32 %v8782, 7
    %v8784 = vsub.s32 %v1101, %v8783
    %v8785 = vrot.slane %v8238, %v8784
    %v8786 = vsel %vm1106, %v8785, %v8781
    %v8787 = vlaneseq
    %v8788 = vshrl.u32 %v8787, 7
    %v8789 = vsub.s32 %v1108, %v8788
    %v8790 = vrot.slane %v8241, %v8789
    %v8791 = vsel %vm1113, %v8790, %v8786
    %v8792 = vlaneseq
    %v8793 = vshrl.u32 %v8792, 7
    %v8794 = vsub.s32 %v1115, %v8793
    %v8795 = vrot.slane %v8244, %v8794
    %v8796 = vsel %vm1120, %v8795, %v8791
    %v8797 = vlaneseq
    %v8798 = vshrl.u32 %v8797, 7
    %v8799 = vsub.s32 %v1122, %v8798
    %v8800 = vrot.slane %v8247, %v8799
    %v8801 = vsel %vm1127, %v8800, %v8796
    %v8802 = vlaneseq
    %v8803 = vshrl.u32 %v8802, 7
    %v8804 = vsub.s32 %v1129, %v8803
    %v8805 = vrot.slane %v8250, %v8804
    %v8806 = vsel %vm1134, %v8805, %v8801
    %v8807 = vlaneseq
    %v8808 = vshrl.u32 %v8807, 7
    %v8809 = vsub.s32 %v1026, %v8808
    %v8810 = vrot.slane %v8253, %v8809
    %v8811 = vlaneseq
    %v8812 = vshrl.u32 %v8811, 7
    %v8813 = vsub.s32 %v1031, %v8812
    %v8814 = vrot.slane %v8256, %v8813
    %v8815 = vsel %vm1036, %v8814, %v8810
    %v8816 = vlaneseq
    %v8817 = vshrl.u32 %v8816, 7
    %v8818 = vsub.s32 %v1038, %v8817
    %v8819 = vrot.slane %v8259, %v8818
    %v8820 = vsel %vm1043, %v8819, %v8815
    %v8821 = vlaneseq
    %v8822 = vshrl.u32 %v8821, 7
    %v8823 = vsub.s32 %v1045, %v8822
    %v8824 = vrot.slane %v8262, %v8823
    %v8825 = vsel %vm1050, %v8824, %v8820
    %v8826 = vlaneseq
    %v8827 = vshrl.u32 %v8826, 7
    %v8828 = vsub.s32 %v1052, %v8827
    %v8829 = vrot.slane %v8265, %v8828
    %v8830 = vsel %vm1057, %v8829, %v8825
    %v8831 = vlaneseq
    %v8832 = vshrl.u32 %v8831, 7
    %v8833 = vsub.s32 %v1059, %v8832
    %v8834 = vrot.slane %v8268, %v8833
    %v8835 = vsel %vm1064, %v8834, %v8830
    %v8836 = vlaneseq
    %v8837 = vshrl.u32 %v8836, 7
    %v8838 = vsub.s32 %v1066, %v8837
    %v8839 = vrot.slane %v8271, %v8838
    %v8840 = vsel %vm1071, %v8839, %v8835
    %v8841 = vlaneseq
    %v8842 = vshrl.u32 %v8841, 7
    %v8843 = vsub.s32 %v1073, %v8842
    %v8844 = vrot.slane %v8274, %v8843
    %v8845 = vsel %vm1078, %v8844, %v8840
    %v8846 = vlaneseq
    %v8847 = vshrl.u32 %v8846, 7
    %v8848 = vsub.s32 %v1026, %v8847
    %v8849 = vrot.slane %v8277, %v8848
    %v8850 = vlaneseq
    %v8851 = vshrl.u32 %v8850, 7
    %v8852 = vsub.s32 %v1031, %v8851
    %v8853 = vrot.slane %v8280, %v8852
    %v8854 = vsel %vm1036, %v8853, %v8849
    %v8855 = vlaneseq
    %v8856 = vshrl.u32 %v8855, 7
    %v8857 = vsub.s32 %v1038, %v8856
    %v8858 = vrot.slane %v8283, %v8857
    %v8859 = vsel %vm1043, %v8858, %v8854
    %v8860 = vlaneseq
    %v8861 = vshrl.u32 %v8860, 7
    %v8862 = vsub.s32 %v1045, %v8861
    %v8863 = vrot.slane %v8286, %v8862
    %v8864 = vsel %vm1050, %v8863, %v8859
    %v8865 = vlaneseq
    %v8866 = vshrl.u32 %v8865, 7
    %v8867 = vsub.s32 %v1052, %v8866
    %v8868 = vrot.slane %v8289, %v8867
    %v8869 = vsel %vm1057, %v8868, %v8864
    %v8870 = vlaneseq
    %v8871 = vshrl.u32 %v8870, 7
    %v8872 = vsub.s32 %v1059, %v8871
    %v8873 = vrot.slane %v8292, %v8872
    %v8874 = vsel %vm1064, %v8873, %v8869
    %v8875 = vlaneseq
    %v8876 = vshrl.u32 %v8875, 7
    %v8877 = vsub.s32 %v1066, %v8876
    %v8878 = vrot.slane %v8295, %v8877
    %v8879 = vsel %vm1071, %v8878, %v8874
    %v8880 = vlaneseq
    %v8881 = vshrl.u32 %v8880, 7
    %v8882 = vsub.s32 %v1073, %v8881
    %v8883 = vrot.slane %v8298, %v8882
    %v8884 = vsel %vm1078, %v8883, %v8879
    %v8885 = vlaneseq
    %v8886 = vshrl.u32 %v8885, 7
    %v8887 = vsub.s32 %v1080, %v8886
    %v8888 = vrot.slane %v8301, %v8887
    %v8889 = vsel %vm1085, %v8888, %v8884
    %v8890 = vlaneseq
    %v8891 = vshrl.u32 %v8890, 7
    %v8892 = vsub.s32 %v1087, %v8891
    %v8893 = vrot.slane %v8304, %v8892
    %v8894 = vsel %vm1092, %v8893, %v8889
    %v8895 = vlaneseq
    %v8896 = vshrl.u32 %v8895, 7
    %v8897 = vsub.s32 %v1094, %v8896
    %v8898 = vrot.slane %v8307, %v8897
    %v8899 = vsel %vm1099, %v8898, %v8894
    %v8900 = vlaneseq
    %v8901 = vshrl.u32 %v8900, 7
    %v8902 = vsub.s32 %v1101, %v8901
    %v8903 = vrot.slane %v8310, %v8902
    %v8904 = vsel %vm1106, %v8903, %v8899
    %v8905 = vlaneseq
    %v8906 = vshrl.u32 %v8905, 7
    %v8907 = vsub.s32 %v1108, %v8906
    %v8908 = vrot.slane %v8313, %v8907
    %v8909 = vsel %vm1113, %v8908, %v8904
    %v8910 = vlaneseq
    %v8911 = vshrl.u32 %v8910, 7
    %v8912 = vsub.s32 %v1115, %v8911
    %v8913 = vrot.slane %v8316, %v8912
    %v8914 = vsel %vm1120, %v8913, %v8909
    %v8915 = vlaneseq
    %v8916 = vshrl.u32 %v8915, 7
    %v8917 = vsub.s32 %v1122, %v8916
    %v8918 = vrot.slane %v8319, %v8917
    %v8919 = vsel %vm1127, %v8918, %v8914
    %v8920 = vlaneseq
    %v8921 = vshrl.u32 %v8920, 7
    %v8922 = vsub.s32 %v1129, %v8921
    %v8923 = vrot.slane %v8322, %v8922
    %v8924 = vsel %vm1134, %v8923, %v8919
    %v8925 = vlaneseq
    %v8926 = vshrl.u32 %v8925, 7
    %v8927 = vsub.s32 %v1026, %v8926
    %v8928 = vrot.slane %v8325, %v8927
    %v8929 = vlaneseq
    %v8930 = vshrl.u32 %v8929, 7
    %v8931 = vsub.s32 %v1031, %v8930
    %v8932 = vrot.slane %v8328, %v8931
    %v8933 = vsel %vm1036, %v8932, %v8928
    %v8934 = vlaneseq
    %v8935 = vshrl.u32 %v8934, 7
    %v8936 = vsub.s32 %v1038, %v8935
    %v8937 = vrot.slane %v8331, %v8936
    %v8938 = vsel %vm1043, %v8937, %v8933
    %v8939 = vlaneseq
    %v8940 = vshrl.u32 %v8939, 7
    %v8941 = vsub.s32 %v1045, %v8940
    %v8942 = vrot.slane %v8334, %v8941
    %v8943 = vsel %vm1050, %v8942, %v8938
    %v8944 = vlaneseq
    %v8945 = vshrl.u32 %v8944, 7
    %v8946 = vsub.s32 %v1052, %v8945
    %v8947 = vrot.slane %v8337, %v8946
    %v8948 = vsel %vm1057, %v8947, %v8943
    %v8949 = vlaneseq
    %v8950 = vshrl.u32 %v8949, 7
    %v8951 = vsub.s32 %v1059, %v8950
    %v8952 = vrot.slane %v8340, %v8951
    %v8953 = vsel %vm1064, %v8952, %v8948
    %v8954 = vlaneseq
    %v8955 = vshrl.u32 %v8954, 7
    %v8956 = vsub.s32 %v1066, %v8955
    %v8957 = vrot.slane %v8343, %v8956
    %v8958 = vsel %vm1071, %v8957, %v8953
    %v8959 = vlaneseq
    %v8960 = vshrl.u32 %v8959, 7
    %v8961 = vsub.s32 %v1073, %v8960
    %v8962 = vrot.slane %v8346, %v8961
    %v8963 = vsel %vm1078, %v8962, %v8958
    %v8964 = vlaneseq
    %v8965 = vshrl.u32 %v8964, 7
    %v8966 = vsub.s32 %v1080, %v8965
    %v8967 = vrot.slane %v8349, %v8966
    %v8968 = vsel %vm1085, %v8967, %v8963
    %v8969 = vlaneseq
    %v8970 = vshrl.u32 %v8969, 7
    %v8971 = vsub.s32 %v1087, %v8970
    %v8972 = vrot.slane %v8352, %v8971
    %v8973 = vsel %vm1092, %v8972, %v8968
    %v8974 = vlaneseq
    %v8975 = vshrl.u32 %v8974, 7
    %v8976 = vsub.s32 %v1094, %v8975
    %v8977 = vrot.slane %v8355, %v8976
    %v8978 = vsel %vm1099, %v8977, %v8973
    %v8979 = vlaneseq
    %v8980 = vshrl.u32 %v8979, 7
    %v8981 = vsub.s32 %v1101, %v8980
    %v8982 = vrot.slane %v8358, %v8981
    %v8983 = vsel %vm1106, %v8982, %v8978
    %v8984 = vlaneseq
    %v8985 = vshrl.u32 %v8984, 7
    %v8986 = vsub.s32 %v1108, %v8985
    %v8987 = vrot.slane %v8361, %v8986
    %v8988 = vsel %vm1113, %v8987, %v8983
    %v8989 = vlaneseq
    %v8990 = vshrl.u32 %v8989, 7
    %v8991 = vsub.s32 %v1115, %v8990
    %v8992 = vrot.slane %v8364, %v8991
    %v8993 = vsel %vm1120, %v8992, %v8988
    %v8994 = vlaneseq
    %v8995 = vshrl.u32 %v8994, 7
    %v8996 = vsub.s32 %v1122, %v8995
    %v8997 = vrot.slane %v8367, %v8996
    %v8998 = vsel %vm1127, %v8997, %v8993
    %v8999 = vlaneseq
    %v9000 = vshrl.u32 %v8999, 7
    %v9001 = vsub.s32 %v1129, %v9000
    %v9002 = vrot.slane %v8370, %v9001
    %v9003 = vsel %vm1134, %v9002, %v8998
    %v9004 = vlaneseq
    %v9005 = vshrl.u32 %v9004, 7
    %v9006 = vsub.s32 %v1026, %v9005
    %v9007 = vrot.slane %v8373, %v9006
    %v9008 = vlaneseq
    %v9009 = vshrl.u32 %v9008, 7
    %v9010 = vsub.s32 %v1031, %v9009
    %v9011 = vrot.slane %v8376, %v9010
    %v9012 = vsel %vm1036, %v9011, %v9007
    %v9013 = vlaneseq
    %v9014 = vshrl.u32 %v9013, 7
    %v9015 = vsub.s32 %v1038, %v9014
    %v9016 = vrot.slane %v8379, %v9015
    %v9017 = vsel %vm1043, %v9016, %v9012
    %v9018 = vlaneseq
    %v9019 = vshrl.u32 %v9018, 7
    %v9020 = vsub.s32 %v1045, %v9019
    %v9021 = vrot.slane %v8382, %v9020
    %v9022 = vsel %vm1050, %v9021, %v9017
    %v9023 = vlaneseq
    %v9024 = vshrl.u32 %v9023, 7
    %v9025 = vsub.s32 %v1052, %v9024
    %v9026 = vrot.slane %v8385, %v9025
    %v9027 = vsel %vm1057, %v9026, %v9022
    %v9028 = vlaneseq
    %v9029 = vshrl.u32 %v9028, 7
    %v9030 = vsub.s32 %v1059, %v9029
    %v9031 = vrot.slane %v8388, %v9030
    %v9032 = vsel %vm1064, %v9031, %v9027
    %v9033 = vlaneseq
    %v9034 = vshrl.u32 %v9033, 7
    %v9035 = vsub.s32 %v1066, %v9034
    %v9036 = vrot.slane %v8391, %v9035
    %v9037 = vsel %vm1071, %v9036, %v9032
    %v9038 = vlaneseq
    %v9039 = vshrl.u32 %v9038, 7
    %v9040 = vsub.s32 %v1073, %v9039
    %v9041 = vrot.slane %v8394, %v9040
    %v9042 = vsel %vm1078, %v9041, %v9037
    %v9043 = vlaneseq
    %v9044 = vshrl.u32 %v9043, 7
    %v9045 = vsub.s32 %v1080, %v9044
    %v9046 = vrot.slane %v8397, %v9045
    %v9047 = vsel %vm1085, %v9046, %v9042
    %v9048 = vlaneseq
    %v9049 = vshrl.u32 %v9048, 7
    %v9050 = vsub.s32 %v1087, %v9049
    %v9051 = vrot.slane %v8400, %v9050
    %v9052 = vsel %vm1092, %v9051, %v9047
    %v9053 = vlaneseq
    %v9054 = vshrl.u32 %v9053, 7
    %v9055 = vsub.s32 %v1094, %v9054
    %v9056 = vrot.slane %v8403, %v9055
    %v9057 = vsel %vm1099, %v9056, %v9052
    %v9058 = vlaneseq
    %v9059 = vshrl.u32 %v9058, 7
    %v9060 = vsub.s32 %v1101, %v9059
    %v9061 = vrot.slane %v8406, %v9060
    %v9062 = vsel %vm1106, %v9061, %v9057
    %v9063 = vlaneseq
    %v9064 = vshrl.u32 %v9063, 7
    %v9065 = vsub.s32 %v1108, %v9064
    %v9066 = vrot.slane %v8409, %v9065
    %v9067 = vsel %vm1113, %v9066, %v9062
    %v9068 = vlaneseq
    %v9069 = vshrl.u32 %v9068, 7
    %v9070 = vsub.s32 %v1115, %v9069
    %v9071 = vrot.slane %v8412, %v9070
    %v9072 = vsel %vm1120, %v9071, %v9067
    %v9073 = vlaneseq
    %v9074 = vshrl.u32 %v9073, 7
    %v9075 = vsub.s32 %v1122, %v9074
    %v9076 = vrot.slane %v8415, %v9075
    %v9077 = vsel %vm1127, %v9076, %v9072
    %v9078 = vlaneseq
    %v9079 = vshrl.u32 %v9078, 7
    %v9080 = vsub.s32 %v1129, %v9079
    %v9081 = vrot.slane %v8418, %v9080
    %v9082 = vsel %vm1134, %v9081, %v9077
    %v9083 = vlaneseq
    %v9084 = vshrl.u32 %v9083, 7
    %v9085 = vsub.s32 %v1026, %v9084
    %v9086 = vrot.slane %v8421, %v9085
    %v9087 = vlaneseq
    %v9088 = vshrl.u32 %v9087, 7
    %v9089 = vsub.s32 %v1031, %v9088
    %v9090 = vrot.slane %v8424, %v9089
    %v9091 = vsel %vm1036, %v9090, %v9086
    %v9092 = vlaneseq
    %v9093 = vshrl.u32 %v9092, 7
    %v9094 = vsub.s32 %v1038, %v9093
    %v9095 = vrot.slane %v8427, %v9094
    %v9096 = vsel %vm1043, %v9095, %v9091
    %v9097 = vlaneseq
    %v9098 = vshrl.u32 %v9097, 7
    %v9099 = vsub.s32 %v1045, %v9098
    %v9100 = vrot.slane %v8430, %v9099
    %v9101 = vsel %vm1050, %v9100, %v9096
    %v9102 = vlaneseq
    %v9103 = vshrl.u32 %v9102, 7
    %v9104 = vsub.s32 %v1052, %v9103
    %v9105 = vrot.slane %v8433, %v9104
    %v9106 = vsel %vm1057, %v9105, %v9101
    %v9107 = vlaneseq
    %v9108 = vshrl.u32 %v9107, 7
    %v9109 = vsub.s32 %v1059, %v9108
    %v9110 = vrot.slane %v8436, %v9109
    %v9111 = vsel %vm1064, %v9110, %v9106
    %v9112 = vlaneseq
    %v9113 = vshrl.u32 %v9112, 7
    %v9114 = vsub.s32 %v1066, %v9113
    %v9115 = vrot.slane %v8439, %v9114
    %v9116 = vsel %vm1071, %v9115, %v9111
    %v9117 = vlaneseq
    %v9118 = vshrl.u32 %v9117, 7
    %v9119 = vsub.s32 %v1073, %v9118
    %v9120 = vrot.slane %v8442, %v9119
    %v9121 = vsel %vm1078, %v9120, %v9116
    %v9122 = vlaneseq
    %v9123 = vshrl.u32 %v9122, 7
    %v9124 = vsub.s32 %v1080, %v9123
    %v9125 = vrot.slane %v8445, %v9124
    %v9126 = vsel %vm1085, %v9125, %v9121
    %v9127 = vlaneseq
    %v9128 = vshrl.u32 %v9127, 7
    %v9129 = vsub.s32 %v1087, %v9128
    %v9130 = vrot.slane %v8448, %v9129
    %v9131 = vsel %vm1092, %v9130, %v9126
    %v9132 = vlaneseq
    %v9133 = vshrl.u32 %v9132, 7
    %v9134 = vsub.s32 %v1094, %v9133
    %v9135 = vrot.slane %v8451, %v9134
    %v9136 = vsel %vm1099, %v9135, %v9131
    %v9137 = vlaneseq
    %v9138 = vshrl.u32 %v9137, 7
    %v9139 = vsub.s32 %v1101, %v9138
    %v9140 = vrot.slane %v8454, %v9139
    %v9141 = vsel %vm1106, %v9140, %v9136
    %v9142 = vlaneseq
    %v9143 = vshrl.u32 %v9142, 7
    %v9144 = vsub.s32 %v1108, %v9143
    %v9145 = vrot.slane %v8457, %v9144
    %v9146 = vsel %vm1113, %v9145, %v9141
    %v9147 = vlaneseq
    %v9148 = vshrl.u32 %v9147, 7
    %v9149 = vsub.s32 %v1115, %v9148
    %v9150 = vrot.slane %v8460, %v9149
    %v9151 = vsel %vm1120, %v9150, %v9146
    %v9152 = vlaneseq
    %v9153 = vshrl.u32 %v9152, 7
    %v9154 = vsub.s32 %v1122, %v9153
    %v9155 = vrot.slane %v8463, %v9154
    %v9156 = vsel %vm1127, %v9155, %v9151
    %v9157 = vlaneseq
    %v9158 = vshrl.u32 %v9157, 7
    %v9159 = vsub.s32 %v1129, %v9158
    %v9160 = vrot.slane %v8466, %v9159
    %v9161 = vsel %vm1134, %v9160, %v9156
    %v9162 = vlaneseq
    %v9163 = vshrl.u32 %v9162, 7
    %v9164 = vsub.s32 %v1026, %v9163
    %v9165 = vrot.slane %v8469, %v9164
    %v9166 = vlaneseq
    %v9167 = vshrl.u32 %v9166, 7
    %v9168 = vsub.s32 %v1031, %v9167
    %v9169 = vrot.slane %v8472, %v9168
    %v9170 = vsel %vm1036, %v9169, %v9165
    %v9171 = vlaneseq
    %v9172 = vshrl.u32 %v9171, 7
    %v9173 = vsub.s32 %v1038, %v9172
    %v9174 = vrot.slane %v8475, %v9173
    %v9175 = vsel %vm1043, %v9174, %v9170
    %v9176 = vlaneseq
    %v9177 = vshrl.u32 %v9176, 7
    %v9178 = vsub.s32 %v1045, %v9177
    %v9179 = vrot.slane %v8478, %v9178
    %v9180 = vsel %vm1050, %v9179, %v9175
    %v9181 = vlaneseq
    %v9182 = vshrl.u32 %v9181, 7
    %v9183 = vsub.s32 %v1052, %v9182
    %v9184 = vrot.slane %v8481, %v9183
    %v9185 = vsel %vm1057, %v9184, %v9180
    %v9186 = vlaneseq
    %v9187 = vshrl.u32 %v9186, 7
    %v9188 = vsub.s32 %v1059, %v9187
    %v9189 = vrot.slane %v8484, %v9188
    %v9190 = vsel %vm1064, %v9189, %v9185
    %v9191 = vlaneseq
    %v9192 = vshrl.u32 %v9191, 7
    %v9193 = vsub.s32 %v1066, %v9192
    %v9194 = vrot.slane %v8487, %v9193
    %v9195 = vsel %vm1071, %v9194, %v9190
    %v9196 = vlaneseq
    %v9197 = vshrl.u32 %v9196, 7
    %v9198 = vsub.s32 %v1073, %v9197
    %v9199 = vrot.slane %v8490, %v9198
    %v9200 = vsel %vm1078, %v9199, %v9195
    %v9201 = vsel %vm1767, %v8924, %v8569
    %v9202 = vsel %vm1767, %v9003, %v8648
    %v9203 = vsel %vm1767, %v9082, %v8727
    %v9204 = vsel %vm1767, %v9161, %v8806
    %v9205 = vsel %vm1767, %v9200, %v8845
    %v9210 = vsel %vm1777, %v9205, 0
    %9212 = vmatprep.subr.mxu0 0.0
    %9213 = vmatpush1.msra.mxu0 %v6279
    %9214 = vmatprep.subr.mxu0 0.0
    %9215 = vmatpush1.msra.mxu0 %v6278
    %9216 = vmatprep.subr.mxu0 0.0
    %9217 = vmatpush1.msra.mxu0 %v6277
    %9218 = vmatprep.subr.mxu0 0.0
    %9219 = vmatpush1.msra.mxu0 %v6276
    %9220 = vmatprep.subr.mxu0 0.0
    %9221 = vmatpush1.msra.mxu0 %v6275
    %9222 = vmatprep.subr.mxu0 0.0
    %9223 = vmatpush1.msra.mxu0 %v6274
    %9224 = vmatprep.subr.mxu0 0.0
    %9225 = vmatpush1.msra.mxu0 %v6273
    %9226 = vmatprep.subr.mxu0 0.0
    %9227 = vmatpush1.msra.mxu0 %v6272
    %9228 = vmatprep.subr.mxu0 0.0
    %9229 = vmatpush1.msra.mxu0 %v6271
    %9230 = vmatprep.subr.mxu0 0.0
    %9231 = vmatpush1.msra.mxu0 %v6270
    %9232 = vmatprep.subr.mxu0 0.0
    %9233 = vmatpush1.msra.mxu0 %v6269
    %9234 = vmatprep.subr.mxu0 0.0
    %9235 = vmatpush1.msra.mxu0 %v6268
    %9236 = vmatprep.subr.mxu0 0.0
    %9237 = vmatpush1.msra.mxu0 %v6267
    %9238 = vmatprep.subr.mxu0 0.0
    %9239 = vmatpush1.msra.mxu0 %v6266
    %9240 = vmatprep.subr.mxu0 0.0
    %9241 = vmatpush1.msra.mxu0 %v6265
    %9242 = vmatprep.subr.mxu0 0.0
    %9243 = vmatpush1.msra.mxu0 %v6264
    %9244 = vmatprep.subr.mxu0 0.0
    %9245 = vmatpush2.msra.mxu0 %v6295
    %9246 = vmatprep.subr.mxu0 0.0
    %9247 = vmatpush2.msra.mxu0 %v6294
    %9248 = vmatprep.subr.mxu0 0.0
    %9249 = vmatpush2.msra.mxu0 %v6293
    %9250 = vmatprep.subr.mxu0 0.0
    %9251 = vmatpush2.msra.mxu0 %v6292
    %9252 = vmatprep.subr.mxu0 0.0
    %9253 = vmatpush2.msra.mxu0 %v6291
    %9254 = vmatprep.subr.mxu0 0.0
    %9255 = vmatpush2.msra.mxu0 %v6290
    %9256 = vmatprep.subr.mxu0 0.0
    %9257 = vmatpush2.msra.mxu0 %v6289
    %9258 = vmatprep.subr.mxu0 0.0
    %9259 = vmatpush2.msra.mxu0 %v6288
    %9260 = vmatprep.subr.mxu0 0.0
    %9261 = vmatpush2.msra.mxu0 %v6287
    %9262 = vmatprep.subr.mxu0 0.0
    %9263 = vmatpush2.msra.mxu0 %v6286
    %9264 = vmatprep.subr.mxu0 0.0
    %9265 = vmatpush2.msra.mxu0 %v6285
    %9266 = vmatprep.subr.mxu0 0.0
    %9267 = vmatpush2.msra.mxu0 %v6284
    %9268 = vmatprep.subr.mxu0 0.0
    %9269 = vmatpush2.msra.mxu0 %v6283
    %9270 = vmatprep.subr.mxu0 0.0
    %9271 = vmatpush2.msra.mxu0 %v6282
    %9272 = vmatprep.subr.mxu0 0.0
    %9273 = vmatpush2.msra.mxu0 %v6281
    %9274 = vmatprep.subr.mxu0 0.0
    %9275 = vmatpush2.msra.mxu0 %v6280
    %9276 = vmatprep.mubr.f32.mxu0 %v9202
    %9277 = vmatmul.mubr.f32.gmra.mxu0 %v9201
    %v9278 = vpop.f32.mrf.mxu0
    %v9279 = vadd.f32 %v7912, %v9278
    %v9280 = vpop.f32.mrf.mxu0
    %9281 = vdwg.mxu0
    %9282 = vmatprep.subr.mxu0 0.0
    %9283 = vmatpush1.msra.mxu0 %v6311
    %9284 = vmatprep.subr.mxu0 0.0
    %9285 = vmatpush1.msra.mxu0 %v6310
    %9286 = vmatprep.subr.mxu0 0.0
    %9287 = vmatpush1.msra.mxu0 %v6309
    %9288 = vmatprep.subr.mxu0 0.0
    %9289 = vmatpush1.msra.mxu0 %v6308
    %9290 = vmatprep.subr.mxu0 0.0
    %9291 = vmatpush1.msra.mxu0 %v6307
    %9292 = vmatprep.subr.mxu0 0.0
    %9293 = vmatpush1.msra.mxu0 %v6306
    %9294 = vmatprep.subr.mxu0 0.0
    %9295 = vmatpush1.msra.mxu0 %v6305
    %9296 = vmatprep.subr.mxu0 0.0
    %9297 = vmatpush1.msra.mxu0 %v6304
    %9298 = vmatprep.subr.mxu0 0.0
    %9299 = vmatpush1.msra.mxu0 %v6303
    %9300 = vmatprep.subr.mxu0 0.0
    %9301 = vmatpush1.msra.mxu0 %v6302
    %9302 = vmatprep.subr.mxu0 0.0
    %9303 = vmatpush1.msra.mxu0 %v6301
    %9304 = vmatprep.subr.mxu0 0.0
    %9305 = vmatpush1.msra.mxu0 %v6300
    %9306 = vmatprep.subr.mxu0 0.0
    %9307 = vmatpush1.msra.mxu0 %v6299
    %9308 = vmatprep.subr.mxu0 0.0
    %9309 = vmatpush1.msra.mxu0 %v6298
    %9310 = vmatprep.subr.mxu0 0.0
    %9311 = vmatpush1.msra.mxu0 %v6297
    %9312 = vmatprep.subr.mxu0 0.0
    %9313 = vmatpush1.msra.mxu0 %v6296
    %9314 = vmatprep.subr.mxu0 0.0
    %9315 = vmatpush2.msra.mxu0 %v6327
    %9316 = vmatprep.subr.mxu0 0.0
    %9317 = vmatpush2.msra.mxu0 %v6326
    %9318 = vmatprep.subr.mxu0 0.0
    %9319 = vmatpush2.msra.mxu0 %v6325
    %9320 = vmatprep.subr.mxu0 0.0
    %9321 = vmatpush2.msra.mxu0 %v6324
    %9322 = vmatprep.subr.mxu0 0.0
    %9323 = vmatpush2.msra.mxu0 %v6323
    %9324 = vmatprep.subr.mxu0 0.0
    %9325 = vmatpush2.msra.mxu0 %v6322
    %9326 = vmatprep.subr.mxu0 0.0
    %9327 = vmatpush2.msra.mxu0 %v6321
    %9328 = vmatprep.subr.mxu0 0.0
    %9329 = vmatpush2.msra.mxu0 %v6320
    %9330 = vmatprep.subr.mxu0 0.0
    %9331 = vmatpush2.msra.mxu0 %v6319
    %9332 = vmatprep.subr.mxu0 0.0
    %9333 = vmatpush2.msra.mxu0 %v6318
    %9334 = vmatprep.subr.mxu0 0.0
    %9335 = vmatpush2.msra.mxu0 %v6317
    %9336 = vmatprep.subr.mxu0 0.0
    %9337 = vmatpush2.msra.mxu0 %v6316
    %9338 = vmatprep.subr.mxu0 0.0
    %9339 = vmatpush2.msra.mxu0 %v6315
    %9340 = vmatprep.subr.mxu0 0.0
    %9341 = vmatpush2.msra.mxu0 %v6314
    %9342 = vmatprep.subr.mxu0 0.0
    %9343 = vmatpush2.msra.mxu0 %v6313
    %9344 = vmatprep.subr.mxu0 0.0
    %9345 = vmatpush2.msra.mxu0 %v6312
    %9346 = vmatprep.mubr.f32.mxu0 %v9204
    %9347 = vmatmul.mubr.f32.gmra.mxu0 %v9203
    %v9348 = vpop.f32.mrf.mxu0
    %v9349 = vadd.f32 %v9279, %v9348
    %v9350 = vpop.f32.mrf.mxu0
    %9351 = vdwg.mxu0
    %9352 = vmatprep.subr.mxu0 0.0
    %9353 = vmatpush1.msra.mxu0 0.0
    %9354 = vmatprep.subr.mxu0 0.0
    %9355 = vmatpush1.msra.mxu0 0.0
    %9356 = vmatprep.subr.mxu0 0.0
    %9357 = vmatpush1.msra.mxu0 0.0
    %9358 = vmatprep.subr.mxu0 0.0
    %9359 = vmatpush1.msra.mxu0 0.0
    %9360 = vmatprep.subr.mxu0 0.0
    %9361 = vmatpush1.msra.mxu0 0.0
    %9362 = vmatprep.subr.mxu0 0.0
    %9363 = vmatpush1.msra.mxu0 0.0
    %9364 = vmatprep.subr.mxu0 0.0
    %9365 = vmatpush1.msra.mxu0 0.0
    %9366 = vmatprep.subr.mxu0 0.0
    %9367 = vmatpush1.msra.mxu0 0.0
    %9368 = vmatprep.subr.mxu0 0.0
    %9369 = vmatpush1.msra.mxu0 %v6335
    %9370 = vmatprep.subr.mxu0 0.0
    %9371 = vmatpush1.msra.mxu0 %v6334
    %9372 = vmatprep.subr.mxu0 0.0
    %9373 = vmatpush1.msra.mxu0 %v6333
    %9374 = vmatprep.subr.mxu0 0.0
    %9375 = vmatpush1.msra.mxu0 %v6332
    %9376 = vmatprep.subr.mxu0 0.0
    %9377 = vmatpush1.msra.mxu0 %v6331
    %9378 = vmatprep.subr.mxu0 0.0
    %9379 = vmatpush1.msra.mxu0 %v6330
    %9380 = vmatprep.subr.mxu0 0.0
    %9381 = vmatpush1.msra.mxu0 %v6329
    %9382 = vmatprep.subr.mxu0 0.0
    %9383 = vmatpush1.msra.mxu0 %v6328
    %9384 = vmatprep.subr.mxu0 0.0
    %9385 = vmatpush2.msra.mxu0 0.0
    %9386 = vmatprep.subr.mxu0 0.0
    %9387 = vmatpush2.msra.mxu0 0.0
    %9388 = vmatprep.subr.mxu0 0.0
    %9389 = vmatpush2.msra.mxu0 0.0
    %9390 = vmatprep.subr.mxu0 0.0
    %9391 = vmatpush2.msra.mxu0 0.0
    %9392 = vmatprep.subr.mxu0 0.0
    %9393 = vmatpush2.msra.mxu0 0.0
    %9394 = vmatprep.subr.mxu0 0.0
    %9395 = vmatpush2.msra.mxu0 0.0
    %9396 = vmatprep.subr.mxu0 0.0
    %9397 = vmatpush2.msra.mxu0 0.0
    %9398 = vmatprep.subr.mxu0 0.0
    %9399 = vmatpush2.msra.mxu0 0.0
    %9400 = vmatprep.subr.mxu0 0.0
    %9401 = vmatpush2.msra.mxu0 0.0
    %9402 = vmatprep.subr.mxu0 0.0
    %9403 = vmatpush2.msra.mxu0 0.0
    %9404 = vmatprep.subr.mxu0 0.0
    %9405 = vmatpush2.msra.mxu0 0.0
    %9406 = vmatprep.subr.mxu0 0.0
    %9407 = vmatpush2.msra.mxu0 0.0
    %9408 = vmatprep.subr.mxu0 0.0
    %9409 = vmatpush2.msra.mxu0 0.0
    %9410 = vmatprep.subr.mxu0 0.0
    %9411 = vmatpush2.msra.mxu0 0.0
    %9412 = vmatprep.subr.mxu0 0.0
    %9413 = vmatpush2.msra.mxu0 0.0
    %9414 = vmatprep.subr.mxu0 0.0
    %9415 = vmatpush2.msra.mxu0 0.0
    %9416 = vmatprep.mubr.f32.mxu0 0.0
    %9417 = vmatmul.mubr.f32.gmra.mxu0 %v9210
    %v9418 = vpop.f32.mrf.mxu0
    %v9419 = vadd.f32 %v9349, %v9418
    %v9420 = vpop.f32.mrf.mxu0
    %9421 = vdwg.mxu0
    %v9422 = vld [vmem:[%s11] sm:$0x1]
    %v9424 = vlaneseq
    %v9425 = vshrl.u32 %v9424, 7
    %v9426 = vsub.s32 0, %v9425
    %v9427 = vrot.slane %v9422, %v9426
    %v9429 = vadd.f32 %v9419, %v9427
    %v9430 = vmax.f32 %v9429, 0.0
    %v9431 = vld [vmem:[%s12] sm:$0xff]
    %v9432 = vld [vmem:[%s12 + $0x8] sm:$0xff]
    %v9433 = vld [vmem:[%s12 + $0x10] sm:$0xff]
    %v9434 = vld [vmem:[%s12 + $0x18] sm:$0xff]
    %v9435 = vld [vmem:[%s12 + $0x20] sm:$0xff]
    %v9436 = vld [vmem:[%s12 + $0x28] sm:$0xff]
    %v9437 = vld [vmem:[%s12 + $0x30] sm:$0xff]
    %v9438 = vld [vmem:[%s12 + $0x38] sm:$0xff]
    %v9439 = vld [vmem:[%s12 + $0x40] sm:$0xff]
    %v9440 = vld [vmem:[%s12 + $0x48] sm:$0xff]
    %v9441 = vld [vmem:[%s12 + $0x50] sm:$0xff]
    %v9442 = vld [vmem:[%s12 + $0x58] sm:$0xff]
    %v9443 = vld [vmem:[%s12 + $0x60] sm:$0xff]
    %v9444 = vld [vmem:[%s12 + $0x68] sm:$0xff]
    %v9445 = vld [vmem:[%s12 + $0x70] sm:$0xff]
    %v9446 = vld [vmem:[%s12 + $0x78] sm:$0xff]
    %v9447 = vld [vmem:[%s13] sm:$0x1]
    %v9449 = vlaneseq
    %v9450 = vshrl.u32 %v9449, 7
    %v9451 = vsub.s32 0, %v9450
    %v9452 = vrot.slane %v9447, %v9451
    %9454 = vmatprep.subr.mxu0 0.0
    %9455 = vmatpush1.msra.mxu0 %v9446
    %9456 = vmatprep.subr.mxu0 0.0
    %9457 = vmatpush1.msra.mxu0 %v9445
    %9458 = vmatprep.subr.mxu0 0.0
    %9459 = vmatpush1.msra.mxu0 %v9444
    %9460 = vmatprep.subr.mxu0 0.0
    %9461 = vmatpush1.msra.mxu0 %v9443
    %9462 = vmatprep.subr.mxu0 0.0
    %9463 = vmatpush1.msra.mxu0 %v9442
    %9464 = vmatprep.subr.mxu0 0.0
    %9465 = vmatpush1.msra.mxu0 %v9441
    %9466 = vmatprep.subr.mxu0 0.0
    %9467 = vmatpush1.msra.mxu0 %v9440
    %9468 = vmatprep.subr.mxu0 0.0
    %9469 = vmatpush1.msra.mxu0 %v9439
    %9470 = vmatprep.subr.mxu0 0.0
    %9471 = vmatpush1.msra.mxu0 %v9438
    %9472 = vmatprep.subr.mxu0 0.0
    %9473 = vmatpush1.msra.mxu0 %v9437
    %9474 = vmatprep.subr.mxu0 0.0
    %9475 = vmatpush1.msra.mxu0 %v9436
    %9476 = vmatprep.subr.mxu0 0.0
    %9477 = vmatpush1.msra.mxu0 %v9435
    %9478 = vmatprep.subr.mxu0 0.0
    %9479 = vmatpush1.msra.mxu0 %v9434
    %9480 = vmatprep.subr.mxu0 0.0
    %9481 = vmatpush1.msra.mxu0 %v9433
    %9482 = vmatprep.subr.mxu0 0.0
    %9483 = vmatpush1.msra.mxu0 %v9432
    %9484 = vmatprep.subr.mxu0 0.0
    %9485 = vmatpush1.msra.mxu0 %v9431
    %9486 = vmatprep.subr.mxu0 0.0
    %9487 = vmatpush2.msra.mxu0 0.0
    %9488 = vmatprep.subr.mxu0 0.0
    %9489 = vmatpush2.msra.mxu0 0.0
    %9490 = vmatprep.subr.mxu0 0.0
    %9491 = vmatpush2.msra.mxu0 0.0
    %9492 = vmatprep.subr.mxu0 0.0
    %9493 = vmatpush2.msra.mxu0 0.0
    %9494 = vmatprep.subr.mxu0 0.0
    %9495 = vmatpush2.msra.mxu0 0.0
    %9496 = vmatprep.subr.mxu0 0.0
    %9497 = vmatpush2.msra.mxu0 0.0
    %9498 = vmatprep.subr.mxu0 0.0
    %9499 = vmatpush2.msra.mxu0 0.0
    %9500 = vmatprep.subr.mxu0 0.0
    %9501 = vmatpush2.msra.mxu0 0.0
    %9502 = vmatprep.subr.mxu0 0.0
    %9503 = vmatpush2.msra.mxu0 0.0
    %9504 = vmatprep.subr.mxu0 0.0
    %9505 = vmatpush2.msra.mxu0 0.0
    %9506 = vmatprep.subr.mxu0 0.0
    %9507 = vmatpush2.msra.mxu0 0.0
    %9508 = vmatprep.subr.mxu0 0.0
    %9509 = vmatpush2.msra.mxu0 0.0
    %9510 = vmatprep.subr.mxu0 0.0
    %9511 = vmatpush2.msra.mxu0 0.0
    %9512 = vmatprep.subr.mxu0 0.0
    %9513 = vmatpush2.msra.mxu0 0.0
    %9514 = vmatprep.subr.mxu0 0.0
    %9515 = vmatpush2.msra.mxu0 0.0
    %9516 = vmatprep.subr.mxu0 0.0
    %9517 = vmatpush2.msra.mxu0 0.0
    %9518 = vmatprep.mubr.f32.mxu0 0.0
    %9519 = vmatmul.mubr.f32.gmra.mxu0 %v9430
    %v9520 = vpop.f32.mrf.mxu0
    %v9521 = vadd.f32 %v9452, %v9520
    %v9522 = vpop.f32.mrf.mxu0
    %9523 = vdwg.mxu0
    %v9524 = vmax.f32 %v9521, 0.0
    %v9525 = vld [vmem:[%s14] sm:$0xff]
    %v9526 = vld [vmem:[%s14 + $0x8] sm:$0xff]
    %v9527 = vld [vmem:[%s14 + $0x10] sm:$0xff]
    %v9528 = vld [vmem:[%s14 + $0x18] sm:$0xff]
    %v9529 = vld [vmem:[%s15] sm:$0x1]
    %v9531 = vlaneseq
    %v9532 = vshrl.u32 %v9531, 7
    %v9533 = vsub.s32 0, %v9532
    %v9534 = vrot.slane %v9529, %v9533
    %vm9536 = vcmask 261120
    %v9538 = vsel %vm9536, %v9524, 0
    %9540 = vmatprep.subr.mxu0 0.0
    %9541 = vmatpush1.msra.mxu0 0.0
    %9542 = vmatprep.subr.mxu0 0.0
    %9543 = vmatpush1.msra.mxu0 0.0
    %9544 = vmatprep.subr.mxu0 0.0
    %9545 = vmatpush1.msra.mxu0 0.0
    %9546 = vmatprep.subr.mxu0 0.0
    %9547 = vmatpush1.msra.mxu0 0.0
    %9548 = vmatprep.subr.mxu0 0.0
    %9549 = vmatpush1.msra.mxu0 0.0
    %9550 = vmatprep.subr.mxu0 0.0
    %9551 = vmatpush1.msra.mxu0 0.0
    %9552 = vmatprep.subr.mxu0 0.0
    %9553 = vmatpush1.msra.mxu0 0.0
    %9554 = vmatprep.subr.mxu0 0.0
    %9555 = vmatpush1.msra.mxu0 0.0
    %9556 = vmatprep.subr.mxu0 0.0
    %9557 = vmatpush1.msra.mxu0 0.0
    %9558 = vmatprep.subr.mxu0 0.0
    %9559 = vmatpush1.msra.mxu0 0.0
    %9560 = vmatprep.subr.mxu0 0.0
    %9561 = vmatpush1.msra.mxu0 0.0
    %9562 = vmatprep.subr.mxu0 0.0
    %9563 = vmatpush1.msra.mxu0 0.0
    %9564 = vmatprep.subr.mxu0 0.0
    %9565 = vmatpush1.msra.mxu0 %v9528
    %9566 = vmatprep.subr.mxu0 0.0
    %9567 = vmatpush1.msra.mxu0 %v9527
    %9568 = vmatprep.subr.mxu0 0.0
    %9569 = vmatpush1.msra.mxu0 %v9526
    %9570 = vmatprep.subr.mxu0 0.0
    %9571 = vmatpush1.msra.mxu0 %v9525
    %9572 = vmatprep.subr.mxu0 0.0
    %9573 = vmatpush2.msra.mxu0 0.0
    %9574 = vmatprep.subr.mxu0 0.0
    %9575 = vmatpush2.msra.mxu0 0.0
    %9576 = vmatprep.subr.mxu0 0.0
    %9577 = vmatpush2.msra.mxu0 0.0
    %9578 = vmatprep.subr.mxu0 0.0
    %9579 = vmatpush2.msra.mxu0 0.0
    %9580 = vmatprep.subr.mxu0 0.0
    %9581 = vmatpush2.msra.mxu0 0.0
    %9582 = vmatprep.subr.mxu0 0.0
    %9583 = vmatpush2.msra.mxu0 0.0
    %9584 = vmatprep.subr.mxu0 0.0
    %9585 = vmatpush2.msra.mxu0 0.0
    %9586 = vmatprep.subr.mxu0 0.0
    %9587 = vmatpush2.msra.mxu0 0.0
    %9588 = vmatprep.subr.mxu0 0.0
    %9589 = vmatpush2.msra.mxu0 0.0
    %9590 = vmatprep.subr.mxu0 0.0
    %9591 = vmatpush2.msra.mxu0 0.0
    %9592 = vmatprep.subr.mxu0 0.0
    %9593 = vmatpush2.msra.mxu0 0.0
    %9594 = vmatprep.subr.mxu0 0.0
    %9595 = vmatpush2.msra.mxu0 0.0
    %9596 = vmatprep.subr.mxu0 0.0
    %9597 = vmatpush2.msra.mxu0 0.0
    %9598 = vmatprep.subr.mxu0 0.0
    %9599 = vmatpush2.msra.mxu0 0.0
    %9600 = vmatprep.subr.mxu0 0.0
    %9601 = vmatpush2.msra.mxu0 0.0
    %9602 = vmatprep.subr.mxu0 0.0
    %9603 = vmatpush2.msra.mxu0 0.0
    %9604 = vmatprep.mubr.f32.mxu0 0.0
    %9605 = vmatmul.mubr.f32.gmra.mxu0 %v9538
    %v9606 = vpop.f32.mrf.mxu0
    %v9607 = vadd.f32 %v9534, %v9606
    %v9608 = vpop.f32.mrf.mxu0
    %9609 = vdwg.mxu0
    %v9610 = vxor.u32 %v9607, 2147483648
    %v9611 = vmul.f32 %v9610, 1.442695
    %v9612 = vpow.pop %v9611
    %v9613 = vadd.f32 %v9612, 1.0
    %v9614 = vrcp.pop %v9613
    %v9615 = vmul.f32 1.0, %v9614
    %vm9616 = vcmask 9216
    %9617 = vst.msk [vmem:[#allocation2] sm:$0x3] %vm9616, %v9615
    // Predicated region
    $region66: #{tpu_custom_call.1} parent=1 // pred_check
      _
    $region67: #{tpu_custom_call.1} parent=1 // pred_check_branch
      %9619 = sbr.rel (0) target = $region69
    $region68: #{tpu_custom_call.1} parent=1 // pred_region
      %s9621 = ssub.s32 32, 32
      %9622 = vsyncadd [#allocation3], %s9621
      %s9624 = sshll.u32 [#allocation2], 4
      %s9625 = int_to_ptr.vmem [resolvable:$true] %s9624
      %9627 = dma.vmem_to_hbm [thread:$0]  %s9625, 32, %s16, [#allocation3]
    $region69: #{tpu_custom_call.1} parent=1 // pred_fallthru
      _
    // Predicated region
    $region70: #{tpu_custom_call.1} parent=1 // pred_check
      _
    $region71: #{tpu_custom_call.1} parent=1 // pred_check_branch
      %9629 = sbr.rel (0) target = $region73
    $region72: #{tpu_custom_call.1} parent=1 // pred_region
      %9630 = dma.done [#allocation3], 32
    $region73: #{tpu_custom_call.1} parent=1 // pred_fallthru
      _
    %9631 = vsyncpa [#allocation3], 1

</llo_original>
